<compile_context>
chip_gen: v7x
topology: tpu7x:2x2x1
jax: 0.10.0
libtpu: 0.0.40
codegen_flags: <defaults>
</compile_context>

<pallas_src>
import functools
import math

import numpy as np
import jax
import jax.numpy as jnp
from jax.experimental import pallas as pl
from jax.experimental.pallas import tpu as pltpu

THRESHOLD = 1000.0

# ---- fixed layout constants for this model configuration --------------------------------
C_IN_PAD = 8      # conv1 input channels: 4 -> 8 (K block per tap)
C1_PAD   = 16     # conv1 matmul lanes: 13 sane ch + 1 checksum -> 16
C2_PAD   = 24     # conv2 matmul lanes: 22 sane ch + 1 checksum -> 24
C3_PAD   = 40     # fc1   matmul lanes: 39 sane ch + 1 checksum -> 40
C4_PAD   = 128    # fc2   matmul lanes: 15 sane ch + 1 checksum -> 128 (lane-dense store)
CHK1, CHK2, CHK3, CHK4 = 13, 22, 39, 15    # checksum-column indices
MARGIN   = 24     # frame-row margin (multiple of 8, >= max |tap row offset| = (W+2)+1)
N_PAD    = 8      # batch rows padded for the fc matmuls / final store
POOL_OUT = 4      # AdaptiveAvgPool2d output spatial size


# ------------------------------------------------------------------------------------------
# Sanity bookkeeping (mirrors SimplifiedMaintainingSanityModel.__init__ / add_msanity)
# ------------------------------------------------------------------------------------------
def build_sanity_tables(out_sizes):
    num_san, rev_san = {}, {}
    for outs in out_sizes:
        sans = int(math.log2(outs)) + 2
        num_san[outs] = sans
        rev_san[outs + sans] = sans
    k = max(num_san)
    idx_arr = [[n - 1 for n in range(1, k + 1) if n & (2 ** m) == 2 ** m]
               for m in range(num_san[k] - 1)]
    return num_san, rev_san, idx_arr


def add_sanity_rows(W, b, num_san, idx_arr):
    """Append sanity output rows to a Linear (outs,in) or Conv (outs,in,kh,kw) weight."""
    outs = W.shape[0]
    sans = num_san[outs]
    Wn = np.zeros((outs + sans,) + W.shape[1:], np.float32)
    bn = np.zeros((outs + sans,), np.float32)
    Wn[:outs] = W
    bn[:outs] = b
    for i in range(sans - 1):
        indices = [j for j in idx_arr[i] if j < outs]   # == idx_arr[i][:bisect_left(., outs)]
        Wn[outs + i] = -W[indices].sum(0)
        bn[outs + i] = -b[indices].sum()
    Wn[-1] = -W.sum(0)
    bn[-1] = -b.sum()
    return Wn, bn


# ------------------------------------------------------------------------------------------
# Host-side packing of kernel-layout weights (K-concat layout + checksum column + lane pad)
# ------------------------------------------------------------------------------------------
def _pack_matmul_weight(wm, bv, outs, width):
    """wm: (K, ctot) matmul-layout weight; bv: (ctot,) bias.
    Appends the MXU checksum column at index `ctot` and zero-pads lanes to `width`.
    The checksum column is ~0 by construction (sum of original cols + last sanity col)."""
    K, ctot = wm.shape
    chk_w = wm[:, :outs].sum(-1) + wm[:, ctot - 1]
    chk_b = bv[:outs].sum() + bv[ctot - 1]
    out_w = np.zeros((K, width), np.float32)
    out_w[:, :ctot] = wm
    out_w[:, ctot] = chk_w
    out_b = np.zeros((1, width), np.float32)
    out_b[0, :ctot] = bv
    out_b[0, ctot] = chk_b
    return out_w, out_b


def _conv_taps_concat(w, cin_pad):
    """(Cout, Cin, KH, KW) -> (KH*KW*cin_pad, Cout): tap-major K-concatenated matmul weight."""
    co, ci, kh, kw = w.shape
    taps = np.zeros((kh * kw, cin_pad, co), np.float32)
    for a in range(kh):
        for b in range(kw):
            taps[a * kw + b, :ci, :] = w[:, :, a, b].T
    return taps.reshape(kh * kw * cin_pad, co)


def build_pool_matrix(N, H, W):
    """(POOL_OUT^2 * N, N*(H+2)*(W+2)) selection matrix implementing AdaptiveAvgPool2d((4,4))
    over interior frame rows only; row index = s*N + n  (s = ph*POOL_OUT + pw)."""
    Hp, Wp = H + 2, W + 2
    frame = N * Hp * Wp
    bh, bw = H // POOL_OUT, W // POOL_OUT
    S = np.zeros((POOL_OUT * POOL_OUT * N, frame), np.float32)
    for n in range(N):
        for ph in range(POOL_OUT):
            for pw in range(POOL_OUT):
                s = ph * POOL_OUT + pw
                for dh in range(bh):
                    for dw in range(bw):
                        q = n * Hp * Wp + (ph * bh + dh + 1) * Wp + (pw * bw + dw + 1)
                        S[s * N + n, q] = 1.0 / (bh * bw)
    return S


def build_valid_mask(N, H, W):
    """(frame, 1) 0/1 mask of interior (non-border) frame rows."""
    Hp, Wp = H + 2, W + 2
    m = np.zeros((N, Hp, Wp, 1), np.float32)
    m[:, 1:H + 1, 1:W + 1, :] = 1.0
    return m.reshape(N * Hp * Wp, 1)


def pack_params(base, N, H, W):
    assert N < N_PAD
    num_san, _, idx_arr = build_sanity_tables([8, 16, 32, 10])
    c1w, c1b = add_sanity_rows(base["c1w"], base["c1b"], num_san, idx_arr)   # (13,4,3,3)
    c2w, c2b = add_sanity_rows(base["c2w"], base["c2b"], num_san, idx_arr)   # (22,8,3,3)
    f1w, f1b = add_sanity_rows(base["f1w"], base["f1b"], num_san, idx_arr)   # (39,256)
    f2w, f2b = add_sanity_rows(base["f2w"], base["f2b"], num_san, idx_arr)   # (15,32)

    # conv weights in tap-K-concat layout: row = t*cin_pad + ci  (t = kh*3+kw)
    w1, b1 = _pack_matmul_weight(_conv_taps_concat(c1w, C_IN_PAD), c1b, outs=8,  width=C1_PAD)
    w2, b2 = _pack_matmul_weight(_conv_taps_concat(c2w, C1_PAD),  c2b, outs=16, width=C2_PAD)

    # fc1 in pooled-K-concat layout: row = s*C2_PAD + c, mapping torch CHW-flatten col c*16+s.
    n_pool = POOL_OUT * POOL_OUT
    wf1_k = np.zeros((n_pool * C2_PAD, f1w.shape[0]), np.float32)
    for s in range(n_pool):
        for c in range(16):
            wf1_k[s * C2_PAD + c, :] = f1w[:, c * n_pool + s]
    wf1, bf1 = _pack_matmul_weight(wf1_k, f1b, outs=32, width=C3_PAD)

    wf2_k = np.zeros((C3_PAD, f2w.shape[0]), np.float32)
    wf2_k[:32, :] = f2w.T
    wf2, bf2 = _pack_matmul_weight(wf2_k, f2b, outs=10, width=C4_PAD)

    pool = build_pool_matrix(N, H, W)
    mask = build_valid_mask(N, H, W)
    # Make the border/pool coupling explicit (review concern): act2's frame-border rows are
    # left unmasked in the kernel, so the pool matrix must never select them.
    border = (mask[:, 0] == 0.0)
    assert not pool[:, border].any(), "pool matrix selects frame-border rows"

    bf = jnp.bfloat16
    return dict(
        w1=jnp.asarray(w1, bf),  b1=jnp.asarray(b1),
        w2=jnp.asarray(w2, bf),  b2=jnp.asarray(b2),
        wf1=jnp.asarray(wf1, bf), bf1=jnp.asarray(bf1),
        wf2=jnp.asarray(wf2, bf), bf2=jnp.asarray(bf2),
        pool=jnp.asarray(pool, bf), mask=jnp.asarray(mask))


# ------------------------------------------------------------------------------------------
# The single fused Pallas kernel
# ------------------------------------------------------------------------------------------
def _fused_forward_kernel(x1_ref, w1_ref, b1_ref, w2_ref, b2_ref, mask_ref, pool_ref,
                          wf1_ref, bf1_ref, wf2_ref, bf2_ref,
                          out_ref,
                          xp2_ref, x2cat_ref, pooled_ref, fc1cat_ref,
                          *, frame, margin, taps, n_pool, batch, n_pad):
    f32, bf16 = jnp.float32, jnp.bfloat16
    mask = mask_ref[...]                                              # (frame, 1) f32

    # ---- conv1 (+sanity): ONE K=72 MXU matmul (taps pre-concatenated along K host/XLA side)
    y1 = jnp.dot(x1_ref[...], w1_ref[...], preferred_element_type=f32) + b1_ref[...]
    st1 = jnp.max(jnp.abs(y1[:, CHK1:CHK1 + 1] * mask), keepdims=True)        # (1,1)
    # sanity-channel strip is implicit: conv2 weight rows for lanes >= 8 are zero.
    act1 = (jnp.maximum(y1, 0.0) * mask).astype(bf16)                 # ReLU; zero border rows

    # ---- build conv2's K-concatenated operand: 9 shifted copies of act1 along lanes --------
    xp2_ref[0:margin, :] = jnp.zeros((margin, C1_PAD), bf16)
    xp2_ref[margin + frame:2 * margin + frame, :] = jnp.zeros((margin, C1_PAD), bf16)
    xp2_ref[margin:margin + frame, :] = act1
    for t, d in enumerate(taps):
        x2cat_ref[:, t * C1_PAD:(t + 1) * C1_PAD] = xp2_ref[margin + d: margin + d + frame, :]

    # ---- conv2 (+sanity): ONE K=144 MXU matmul ----------------------------------------------
    y2 = jnp.dot(x2cat_ref[...], w2_ref[...], preferred_element_type=f32) + b2_ref[...]
    st2 = jnp.max(jnp.abs(y2[:, CHK2:CHK2 + 1] * mask), keepdims=True)
    act2 = jnp.maximum(y2, 0.0).astype(bf16)      # border rows never selected by pool matrix

    # ---- AdaptiveAvgPool2d((4,4)) as one (16*N, frame) selection matmul ---------------------
    pooled_ref[...] = jnp.dot(pool_ref[...], act2, preferred_element_type=f32).astype(bf16)

    # ---- repack pooled positions along K so fc1 is a single K=384 matmul --------------------
    fc1cat_ref[...] = jnp.zeros((n_pad, n_pool * C2_PAD), bf16)        # zero padded batch rows
    for s in range(n_pool):
        fc1cat_ref[0:batch, s * C2_PAD:(s + 1) * C2_PAD] = pooled_ref[s * batch:(s + 1) * batch, :]

    # ---- fc1 (+sanity) + ReLU ----------------------------------------------------------------
    h1 = jnp.dot(fc1cat_ref[...], wf1_ref[...], preferred_element_type=f32) + bf1_ref[...]
    st3 = jnp.max(jnp.abs(h1[:, CHK3:CHK3 + 1]), keepdims=True)
    a1 = jnp.maximum(h1, 0.0).astype(bf16)

    # ---- fc2 (+sanity, no ReLU): lane-dense (8, 128) store ------------------------------------
    y4 = jnp.dot(a1, wf2_ref[...], preferred_element_type=f32) + bf2_ref[...]
    st4 = jnp.max(jnp.abs(y4[:, CHK4:CHK4 + 1]), keepdims=True)

    out_ref[...] = y4
    # stash the four per-layer sanity stats in an unused padding row of the output
    out_ref[n_pad - 1:n_pad, 0:1] = st1
    out_ref[n_pad - 1:n_pad, 1:2] = st2
    out_ref[n_pad - 1:n_pad, 2:3] = st3
    out_ref[n_pad - 1:n_pad, 3:4] = st4


# ------------------------------------------------------------------------------------------
# Wrapper: input formatting (once, at the boundary) + the single pallas_call
# ------------------------------------------------------------------------------------------
def forward(x_nchw, kp):
    N, Cin, H, W = x_nchw.shape
    assert N < N_PAD
    Hp, Wp = H + 2, W + 2
    frame = N * Hp * Wp
    assert frame % 8 == 0
    taps = tuple((kh - 1) * Wp + (kw - 1) for kh in range(3) for kw in range(3))

    # NCHW -> zero-padded NHWC "frame row" layout (row = n*Hp*Wp + hp*Wp + wp, lanes = ch),
    # then K-concatenate the 9 shifted slabs so conv1 is a single K=72 matmul in the kernel.
    x_nhwc = jnp.transpose(x_nchw, (0, 2, 3, 1))
    xpad = jnp.pad(x_nhwc, ((0, 0), (1, 1), (1, 1), (0, C_IN_PAD - Cin))).reshape(frame, C_IN_PAD)
    xbig = jnp.pad(xpad, ((MARGIN, MARGIN), (0, 0)))
    x1cat = jnp.concatenate([xbig[MARGIN + d: MARGIN + d + frame, :] for d in taps],
                            axis=1).astype(jnp.bfloat16)                    # (frame, 72)

    kernel = functools.partial(
        _fused_forward_kernel, frame=frame, margin=MARGIN, taps=taps,
        n_pool=POOL_OUT * POOL_OUT, batch=N, n_pad=N_PAD)

    out_full = pl.pallas_call(
        kernel,
        out_shape=jax.ShapeDtypeStruct((N_PAD, C4_PAD), jnp.float32),
        in_specs=[pl.BlockSpec(memory_space=pltpu.MemorySpace.VMEM) for _ in range(11)],
        out_specs=pl.BlockSpec(memory_space=pltpu.MemorySpace.VMEM),
        scratch_shapes=[
            pltpu.VMEM((2 * MARGIN + frame, C1_PAD), jnp.bfloat16),              # act1 frame
            pltpu.VMEM((frame, 9 * C1_PAD), jnp.bfloat16),                       # conv2 K-concat
            pltpu.VMEM((POOL_OUT * POOL_OUT * N, C2_PAD), jnp.bfloat16),         # pooled rows
            pltpu.VMEM((N_PAD, POOL_OUT * POOL_OUT * C2_PAD), jnp.bfloat16),     # fc1 K-concat
        ],
    )(x1cat, kp["w1"], kp["b1"], kp["w2"], kp["b2"], kp["mask"], kp["pool"],
      kp["wf1"], kp["bf1"], kp["wf2"], kp["bf2"])

    # free slices: strip batch / lane padding; the four per-layer sanity stats live in row 7
    logits = out_full[:N, :10]
    stats = out_full[N_PAD - 1, 0:4]
    return logits, stats


# ------------------------------------------------------------------------------------------
# Pure-JAX reference of the *base* model (sanity channels stripped == base output)
# ------------------------------------------------------------------------------------------
def ref_forward(x_nchw, bp):
    def conv(x, w, b):
        y = jax.lax.conv_general_dilated(x, w, (1, 1), "SAME",
                                         dimension_numbers=("NCHW", "OIHW", "NCHW"))
        return y + b[None, :, None, None]

    x = jnp.maximum(conv(x_nchw, bp["c1w"], bp["c1b"]), 0.0)
    x = jnp.maximum(conv(x, bp["c2w"], bp["c2b"]), 0.0)
    N, C, H, W = x.shape
    x = x.reshape(N, C, 4, H // 4, 4, W // 4).mean(axis=(3, 5))
    x = x.reshape(N, -1)
    x = jnp.maximum(x @ bp["f1w"].T + bp["f1b"], 0.0)
    x = x @ bp["f2w"].T + bp["f2b"]
    return x


# ------------------------------------------------------------------------------------------
if __name__ == "__main__":
    key = jax.random.PRNGKey(0)
    N, Cin, H, W = 2, 4, 16, 16
    x_nchw = jax.random.normal(key, (N, Cin, H, W), jnp.float32)

    # deterministic base-model parameters (tiny AlexNet-like net)
    rng = np.random.default_rng(0)
    init = lambda shape: (rng.standard_normal(shape) * 0.05).astype(np.float32)
    base = {
        "c1w": init((8, 4, 3, 3)),  "c1b": init((8,)),
        "c2w": init((16, 8, 3, 3)), "c2b": init((16,)),
        "f1w": init((32, 16 * 4 * 4)), "f1b": init((32,)),
        "f2w": init((10, 32)), "f2b": init((10,)),
    }

    params = pack_params(base, N, H, W)

    out, stats = jax.jit(forward)(x_nchw, params)
    out = jax.block_until_ready(out)
    stats = jax.block_until_ready(stats)

    # sanity statistics must stay ~0 (far below the 1000 threshold) with intact weights
    assert bool(jnp.all(stats < THRESHOLD)), f"sanity check tripped: {stats}"

    # output (sanity channels stripped) must match the base model forward
    # (tolerance accounts for bf16 matmul operands with f32 accumulation)
    ref = ref_forward(x_nchw, {k: jnp.asarray(v) for k, v in base.items()})
    np.testing.assert_allclose(np.asarray(out), np.asarray(ref), rtol=2e-2, atol=2e-3)

    print("KERNEL_OK")
</pallas_src>

<mosaic_0001>
module attributes {stable_mosaic.version = 11 : i64} {
  func.func @_fused_forward_kernel(%arg0: memref<648x72xbf16, #tpu.memory_space<vmem>>, %arg1: memref<72x16xbf16, #tpu.memory_space<vmem>>, %arg2: memref<1x16xf32, #tpu.memory_space<vmem>>, %arg3: memref<144x24xbf16, #tpu.memory_space<vmem>>, %arg4: memref<1x24xf32, #tpu.memory_space<vmem>>, %arg5: memref<648x1xf32, #tpu.memory_space<vmem>>, %arg6: memref<32x648xbf16, #tpu.memory_space<vmem>>, %arg7: memref<384x40xbf16, #tpu.memory_space<vmem>>, %arg8: memref<1x40xf32, #tpu.memory_space<vmem>>, %arg9: memref<40x128xbf16, #tpu.memory_space<vmem>>, %arg10: memref<1x128xf32, #tpu.memory_space<vmem>>, %arg11: memref<8x128xf32, #tpu.memory_space<vmem>>, %arg12: memref<696x16xbf16, #tpu.memory_space<vmem>>, %arg13: memref<648x144xbf16, #tpu.memory_space<vmem>>, %arg14: memref<32x24xbf16, #tpu.memory_space<vmem>>, %arg15: memref<8x384xbf16, #tpu.memory_space<vmem>>) attributes {dimension_semantics = [], scalar_prefetch = 0 : i64, scratch_operands = 4 : i64, tpu.core_type = #tpu.core_type<tc>} {
    %c0 = arith.constant 0 : index
    %c0_0 = arith.constant 0 : index
    %0 = vector.load %arg5[%c0, %c0_0] : memref<648x1xf32, #tpu.memory_space<vmem>>, vector<648x1xf32>
    %c0_1 = arith.constant 0 : index
    %c0_2 = arith.constant 0 : index
    %1 = vector.load %arg0[%c0_1, %c0_2] : memref<648x72xbf16, #tpu.memory_space<vmem>>, vector<648x72xbf16>
    %c0_3 = arith.constant 0 : index
    %c0_4 = arith.constant 0 : index
    %2 = vector.load %arg1[%c0_3, %c0_4] : memref<72x16xbf16, #tpu.memory_space<vmem>>, vector<72x16xbf16>
    %cst = arith.constant dense<0.000000e+00> : vector<648x16xf32>
    %3 = tpu.matmul %1, %2, %cst {dimension_numbers = #tpu.dot_dimension_numbers<[1], [0], [0], [1], [0, 0, 1, 1], [], []>} : vector<648x72xbf16>, vector<72x16xbf16>, vector<648x16xf32> -> vector<648x16xf32>
    %c0_5 = arith.constant 0 : index
    %c0_6 = arith.constant 0 : index
    %4 = vector.load %arg2[%c0_5, %c0_6] : memref<1x16xf32, #tpu.memory_space<vmem>>, vector<1x16xf32>
    %5 = vector.broadcast %4 : vector<1x16xf32> to vector<648x16xf32>
    %6 = arith.addf %3, %5 : vector<648x16xf32>
    %7 = vector.extract_strided_slice %6 {offsets = [0, 13], sizes = [648, 1], strides = [1, 1]} : vector<648x16xf32> to vector<648x1xf32>
    %8 = arith.mulf %7, %0 : vector<648x1xf32>
    %9 = math.absf %8 : vector<648x1xf32>
    %10 = vector.shape_cast %9 : vector<648x1xf32> to vector<1x648x1xf32>
    %cst_7 = arith.constant dense<0xFF800000> : vector<1xf32>
    %11 = vector.multi_reduction <maximumf>, %10, %cst_7 [1, 2] : vector<1x648x1xf32> to vector<1xf32>
    %12 = vector.shape_cast %11 : vector<1xf32> to vector<1x1x1xf32>
    %13 = vector.extract %12[0, 0, 0] : f32 from vector<1x1x1xf32>
    %14 = vector.broadcast %13 : f32 to vector<1x1xf32>
    %cst_8 = arith.constant 0.000000e+00 : f32
    %15 = vector.broadcast %cst_8 : f32 to vector<648x16xf32>
    %16 = arith.maximumf %6, %15 : vector<648x16xf32>
    %17 = vector.broadcast %0 : vector<648x1xf32> to vector<648x16xf32>
    %18 = arith.mulf %16, %17 : vector<648x16xf32>
    %19 = arith.truncf %18 : vector<648x16xf32> to vector<648x16xbf16>
    %cst_9 = arith.constant 0.000000e+00 : bf16
    %20 = vector.broadcast %cst_9 : bf16 to vector<24x16xbf16>
    %c0_10 = arith.constant 0 : index
    %c0_11 = arith.constant 0 : index
    %21 = vector.load %arg12[%c0_10, %c0_11] : memref<696x16xbf16, #tpu.memory_space<vmem>>, vector<24x16xbf16>
    tpu.vector_store %arg12[%c0_10, %c0_11], %20 {strides = array<i32>} : memref<696x16xbf16, #tpu.memory_space<vmem>>, vector<24x16xbf16>,
    %cst_12 = arith.constant 0.000000e+00 : bf16
    %22 = vector.broadcast %cst_12 : bf16 to vector<24x16xbf16>
    %c672 = arith.constant 672 : index
    %c0_13 = arith.constant 0 : index
    %23 = vector.load %arg12[%c672, %c0_13] : memref<696x16xbf16, #tpu.memory_space<vmem>>, vector<24x16xbf16>
    tpu.vector_store %arg12[%c672, %c0_13], %22 {strides = array<i32>} : memref<696x16xbf16, #tpu.memory_space<vmem>>, vector<24x16xbf16>,
    %c24 = arith.constant 24 : index
    %c0_14 = arith.constant 0 : index
    %24 = vector.load %arg12[%c24, %c0_14] : memref<696x16xbf16, #tpu.memory_space<vmem>>, vector<648x16xbf16>
    tpu.vector_store %arg12[%c24, %c0_14], %19 {strides = array<i32>} : memref<696x16xbf16, #tpu.memory_space<vmem>>, vector<648x16xbf16>,
    %c5 = arith.constant 5 : index
    %c0_15 = arith.constant 0 : index
    %25 = vector.load %arg12[%c5, %c0_15] : memref<696x16xbf16, #tpu.memory_space<vmem>>, vector<648x16xbf16>
    %c0_16 = arith.constant 0 : index
    %c0_17 = arith.constant 0 : index
    %26 = vector.load %arg13[%c0_16, %c0_17] : memref<648x144xbf16, #tpu.memory_space<vmem>>, vector<648x16xbf16>
    tpu.vector_store %arg13[%c0_16, %c0_17], %25 {strides = array<i32>} : memref<648x144xbf16, #tpu.memory_space<vmem>>, vector<648x16xbf16>,
    %c6 = arith.constant 6 : index
    %c0_18 = arith.constant 0 : index
    %27 = vector.load %arg12[%c6, %c0_18] : memref<696x16xbf16, #tpu.memory_space<vmem>>, vector<648x16xbf16>
    %c0_19 = arith.constant 0 : index
    %c16 = arith.constant 16 : index
    %28 = vector.load %arg13[%c0_19, %c16] : memref<648x144xbf16, #tpu.memory_space<vmem>>, vector<648x16xbf16>
    tpu.vector_store %arg13[%c0_19, %c16], %27 {strides = array<i32>} : memref<648x144xbf16, #tpu.memory_space<vmem>>, vector<648x16xbf16>,
    %c7 = arith.constant 7 : index
    %c0_20 = arith.constant 0 : index
    %29 = vector.load %arg12[%c7, %c0_20] : memref<696x16xbf16, #tpu.memory_space<vmem>>, vector<648x16xbf16>
    %c0_21 = arith.constant 0 : index
    %c32 = arith.constant 32 : index
    %30 = vector.load %arg13[%c0_21, %c32] : memref<648x144xbf16, #tpu.memory_space<vmem>>, vector<648x16xbf16>
    tpu.vector_store %arg13[%c0_21, %c32], %29 {strides = array<i32>} : memref<648x144xbf16, #tpu.memory_space<vmem>>, vector<648x16xbf16>,
    %c23 = arith.constant 23 : index
    %c0_22 = arith.constant 0 : index
    %31 = vector.load %arg12[%c23, %c0_22] : memref<696x16xbf16, #tpu.memory_space<vmem>>, vector<648x16xbf16>
    %c0_23 = arith.constant 0 : index
    %c48 = arith.constant 48 : index
    %32 = vector.load %arg13[%c0_23, %c48] : memref<648x144xbf16, #tpu.memory_space<vmem>>, vector<648x16xbf16>
    tpu.vector_store %arg13[%c0_23, %c48], %31 {strides = array<i32>} : memref<648x144xbf16, #tpu.memory_space<vmem>>, vector<648x16xbf16>,
    %c24_24 = arith.constant 24 : index
    %c0_25 = arith.constant 0 : index
    %33 = vector.load %arg12[%c24_24, %c0_25] : memref<696x16xbf16, #tpu.memory_space<vmem>>, vector<648x16xbf16>
    %c0_26 = arith.constant 0 : index
    %c64 = arith.constant 64 : index
    %34 = vector.load %arg13[%c0_26, %c64] : memref<648x144xbf16, #tpu.memory_space<vmem>>, vector<648x16xbf16>
    tpu.vector_store %arg13[%c0_26, %c64], %33 {strides = array<i32>} : memref<648x144xbf16, #tpu.memory_space<vmem>>, vector<648x16xbf16>,
    %c25 = arith.constant 25 : index
    %c0_27 = arith.constant 0 : index
    %35 = vector.load %arg12[%c25, %c0_27] : memref<696x16xbf16, #tpu.memory_space<vmem>>, vector<648x16xbf16>
    %c0_28 = arith.constant 0 : index
    %c80 = arith.constant 80 : index
    %36 = vector.load %arg13[%c0_28, %c80] : memref<648x144xbf16, #tpu.memory_space<vmem>>, vector<648x16xbf16>
    tpu.vector_store %arg13[%c0_28, %c80], %35 {strides = array<i32>} : memref<648x144xbf16, #tpu.memory_space<vmem>>, vector<648x16xbf16>,
    %c41 = arith.constant 41 : index
    %c0_29 = arith.constant 0 : index
    %37 = vector.load %arg12[%c41, %c0_29] : memref<696x16xbf16, #tpu.memory_space<vmem>>, vector<648x16xbf16>
    %c0_30 = arith.constant 0 : index
    %c96 = arith.constant 96 : index
    %38 = vector.load %arg13[%c0_30, %c96] : memref<648x144xbf16, #tpu.memory_space<vmem>>, vector<648x16xbf16>
    tpu.vector_store %arg13[%c0_30, %c96], %37 {strides = array<i32>} : memref<648x144xbf16, #tpu.memory_space<vmem>>, vector<648x16xbf16>,
    %c42 = arith.constant 42 : index
    %c0_31 = arith.constant 0 : index
    %39 = vector.load %arg12[%c42, %c0_31] : memref<696x16xbf16, #tpu.memory_space<vmem>>, vector<648x16xbf16>
    %c0_32 = arith.constant 0 : index
    %c112 = arith.constant 112 : index
    %40 = vector.load %arg13[%c0_32, %c112] : memref<648x144xbf16, #tpu.memory_space<vmem>>, vector<648x16xbf16>
    tpu.vector_store %arg13[%c0_32, %c112], %39 {strides = array<i32>} : memref<648x144xbf16, #tpu.memory_space<vmem>>, vector<648x16xbf16>,
    %c43 = arith.constant 43 : index
    %c0_33 = arith.constant 0 : index
    %41 = vector.load %arg12[%c43, %c0_33] : memref<696x16xbf16, #tpu.memory_space<vmem>>, vector<648x16xbf16>
    %c0_34 = arith.constant 0 : index
    %c128 = arith.constant 128 : index
    %42 = vector.load %arg13[%c0_34, %c128] : memref<648x144xbf16, #tpu.memory_space<vmem>>, vector<648x16xbf16>
    tpu.vector_store %arg13[%c0_34, %c128], %41 {strides = array<i32>} : memref<648x144xbf16, #tpu.memory_space<vmem>>, vector<648x16xbf16>,
    %c0_35 = arith.constant 0 : index
    %c0_36 = arith.constant 0 : index
    %43 = vector.load %arg13[%c0_35, %c0_36] : memref<648x144xbf16, #tpu.memory_space<vmem>>, vector<648x144xbf16>
    %c0_37 = arith.constant 0 : index
    %c0_38 = arith.constant 0 : index
    %44 = vector.load %arg3[%c0_37, %c0_38] : memref<144x24xbf16, #tpu.memory_space<vmem>>, vector<144x24xbf16>
    %cst_39 = arith.constant dense<0.000000e+00> : vector<648x24xf32>
    %45 = tpu.matmul %43, %44, %cst_39 {dimension_numbers = #tpu.dot_dimension_numbers<[1], [0], [0], [1], [0, 0, 1, 1], [], []>} : vector<648x144xbf16>, vector<144x24xbf16>, vector<648x24xf32> -> vector<648x24xf32>
    %c0_40 = arith.constant 0 : index
    %c0_41 = arith.constant 0 : index
    %46 = vector.load %arg4[%c0_40, %c0_41] : memref<1x24xf32, #tpu.memory_space<vmem>>, vector<1x24xf32>
    %47 = vector.broadcast %46 : vector<1x24xf32> to vector<648x24xf32>
    %48 = arith.addf %45, %47 : vector<648x24xf32>
    %49 = vector.extract_strided_slice %48 {offsets = [0, 22], sizes = [648, 1], strides = [1, 1]} : vector<648x24xf32> to vector<648x1xf32>
    %50 = arith.mulf %49, %0 : vector<648x1xf32>
    %51 = math.absf %50 : vector<648x1xf32>
    %52 = vector.shape_cast %51 : vector<648x1xf32> to vector<1x648x1xf32>
    %cst_42 = arith.constant dense<0xFF800000> : vector<1xf32>
    %53 = vector.multi_reduction <maximumf>, %52, %cst_42 [1, 2] : vector<1x648x1xf32> to vector<1xf32>
    %54 = vector.shape_cast %53 : vector<1xf32> to vector<1x1x1xf32>
    %55 = vector.extract %54[0, 0, 0] : f32 from vector<1x1x1xf32>
    %56 = vector.broadcast %55 : f32 to vector<1x1xf32>
    %cst_43 = arith.constant 0.000000e+00 : f32
    %57 = vector.broadcast %cst_43 : f32 to vector<648x24xf32>
    %58 = arith.maximumf %48, %57 : vector<648x24xf32>
    %59 = arith.truncf %58 : vector<648x24xf32> to vector<648x24xbf16>
    %c0_44 = arith.constant 0 : index
    %c0_45 = arith.constant 0 : index
    %60 = vector.load %arg6[%c0_44, %c0_45] : memref<32x648xbf16, #tpu.memory_space<vmem>>, vector<32x648xbf16>
    %cst_46 = arith.constant dense<0.000000e+00> : vector<32x24xf32>
    %61 = tpu.matmul %60, %59, %cst_46 {dimension_numbers = #tpu.dot_dimension_numbers<[1], [0], [0], [1], [0, 0, 1, 1], [], []>} : vector<32x648xbf16>, vector<648x24xbf16>, vector<32x24xf32> -> vector<32x24xf32>
    %62 = arith.truncf %61 : vector<32x24xf32> to vector<32x24xbf16>
    %c0_47 = arith.constant 0 : index
    %c0_48 = arith.constant 0 : index
    %63 = vector.load %arg14[%c0_47, %c0_48] : memref<32x24xbf16, #tpu.memory_space<vmem>>, vector<32x24xbf16>
    tpu.vector_store %arg14[%c0_47, %c0_48], %62 {strides = array<i32>} : memref<32x24xbf16, #tpu.memory_space<vmem>>, vector<32x24xbf16>,
    %cst_49 = arith.constant 0.000000e+00 : bf16
    %64 = vector.broadcast %cst_49 : bf16 to vector<8x384xbf16>
    %c0_50 = arith.constant 0 : index
    %c0_51 = arith.constant 0 : index
    %65 = vector.load %arg15[%c0_50, %c0_51] : memref<8x384xbf16, #tpu.memory_space<vmem>>, vector<8x384xbf16>
    tpu.vector_store %arg15[%c0_50, %c0_51], %64 {strides = array<i32>} : memref<8x384xbf16, #tpu.memory_space<vmem>>, vector<8x384xbf16>,
    %c0_52 = arith.constant 0 : index
    %c0_53 = arith.constant 0 : index
    %66 = vector.load %arg14[%c0_52, %c0_53] : memref<32x24xbf16, #tpu.memory_space<vmem>>, vector<2x24xbf16>
    %c0_54 = arith.constant 0 : index
    %c0_55 = arith.constant 0 : index
    %67 = vector.load %arg15[%c0_54, %c0_55] : memref<8x384xbf16, #tpu.memory_space<vmem>>, vector<2x24xbf16>
    tpu.vector_store %arg15[%c0_54, %c0_55], %66 {strides = array<i32>} : memref<8x384xbf16, #tpu.memory_space<vmem>>, vector<2x24xbf16>,
    %c2 = arith.constant 2 : index
    %c0_56 = arith.constant 0 : index
    %68 = vector.load %arg14[%c2, %c0_56] : memref<32x24xbf16, #tpu.memory_space<vmem>>, vector<2x24xbf16>
    %c0_57 = arith.constant 0 : index
    %c24_58 = arith.constant 24 : index
    %69 = vector.load %arg15[%c0_57, %c24_58] : memref<8x384xbf16, #tpu.memory_space<vmem>>, vector<2x24xbf16>
    tpu.vector_store %arg15[%c0_57, %c24_58], %68 {strides = array<i32>} : memref<8x384xbf16, #tpu.memory_space<vmem>>, vector<2x24xbf16>,
    %c4 = arith.constant 4 : index
    %c0_59 = arith.constant 0 : index
    %70 = vector.load %arg14[%c4, %c0_59] : memref<32x24xbf16, #tpu.memory_space<vmem>>, vector<2x24xbf16>
    %c0_60 = arith.constant 0 : index
    %c48_61 = arith.constant 48 : index
    %71 = vector.load %arg15[%c0_60, %c48_61] : memref<8x384xbf16, #tpu.memory_space<vmem>>, vector<2x24xbf16>
    tpu.vector_store %arg15[%c0_60, %c48_61], %70 {strides = array<i32>} : memref<8x384xbf16, #tpu.memory_space<vmem>>, vector<2x24xbf16>,
    %c6_62 = arith.constant 6 : index
    %c0_63 = arith.constant 0 : index
    %72 = vector.load %arg14[%c6_62, %c0_63] : memref<32x24xbf16, #tpu.memory_space<vmem>>, vector<2x24xbf16>
    %c0_64 = arith.constant 0 : index
    %c72 = arith.constant 72 : index
    %73 = vector.load %arg15[%c0_64, %c72] : memref<8x384xbf16, #tpu.memory_space<vmem>>, vector<2x24xbf16>
    tpu.vector_store %arg15[%c0_64, %c72], %72 {strides = array<i32>} : memref<8x384xbf16, #tpu.memory_space<vmem>>, vector<2x24xbf16>,
    %c8 = arith.constant 8 : index
    %c0_65 = arith.constant 0 : index
    %74 = vector.load %arg14[%c8, %c0_65] : memref<32x24xbf16, #tpu.memory_space<vmem>>, vector<2x24xbf16>
    %c0_66 = arith.constant 0 : index
    %c96_67 = arith.constant 96 : index
    %75 = vector.load %arg15[%c0_66, %c96_67] : memref<8x384xbf16, #tpu.memory_space<vmem>>, vector<2x24xbf16>
    tpu.vector_store %arg15[%c0_66, %c96_67], %74 {strides = array<i32>} : memref<8x384xbf16, #tpu.memory_space<vmem>>, vector<2x24xbf16>,
    %c10 = arith.constant 10 : index
    %c0_68 = arith.constant 0 : index
    %76 = vector.load %arg14[%c10, %c0_68] : memref<32x24xbf16, #tpu.memory_space<vmem>>, vector<2x24xbf16>
    %c0_69 = arith.constant 0 : index
    %c120 = arith.constant 120 : index
    %77 = vector.load %arg15[%c0_69, %c120] : memref<8x384xbf16, #tpu.memory_space<vmem>>, vector<2x24xbf16>
    tpu.vector_store %arg15[%c0_69, %c120], %76 {strides = array<i32>} : memref<8x384xbf16, #tpu.memory_space<vmem>>, vector<2x24xbf16>,
    %c12 = arith.constant 12 : index
    %c0_70 = arith.constant 0 : index
    %78 = vector.load %arg14[%c12, %c0_70] : memref<32x24xbf16, #tpu.memory_space<vmem>>, vector<2x24xbf16>
    %c0_71 = arith.constant 0 : index
    %c144 = arith.constant 144 : index
    %79 = vector.load %arg15[%c0_71, %c144] : memref<8x384xbf16, #tpu.memory_space<vmem>>, vector<2x24xbf16>
    tpu.vector_store %arg15[%c0_71, %c144], %78 {strides = array<i32>} : memref<8x384xbf16, #tpu.memory_space<vmem>>, vector<2x24xbf16>,
    %c14 = arith.constant 14 : index
    %c0_72 = arith.constant 0 : index
    %80 = vector.load %arg14[%c14, %c0_72] : memref<32x24xbf16, #tpu.memory_space<vmem>>, vector<2x24xbf16>
    %c0_73 = arith.constant 0 : index
    %c168 = arith.constant 168 : index
    %81 = vector.load %arg15[%c0_73, %c168] : memref<8x384xbf16, #tpu.memory_space<vmem>>, vector<2x24xbf16>
    tpu.vector_store %arg15[%c0_73, %c168], %80 {strides = array<i32>} : memref<8x384xbf16, #tpu.memory_space<vmem>>, vector<2x24xbf16>,
    %c16_74 = arith.constant 16 : index
    %c0_75 = arith.constant 0 : index
    %82 = vector.load %arg14[%c16_74, %c0_75] : memref<32x24xbf16, #tpu.memory_space<vmem>>, vector<2x24xbf16>
    %c0_76 = arith.constant 0 : index
    %c192 = arith.constant 192 : index
    %83 = vector.load %arg15[%c0_76, %c192] : memref<8x384xbf16, #tpu.memory_space<vmem>>, vector<2x24xbf16>
    tpu.vector_store %arg15[%c0_76, %c192], %82 {strides = array<i32>} : memref<8x384xbf16, #tpu.memory_space<vmem>>, vector<2x24xbf16>,
    %c18 = arith.constant 18 : index
    %c0_77 = arith.constant 0 : index
    %84 = vector.load %arg14[%c18, %c0_77] : memref<32x24xbf16, #tpu.memory_space<vmem>>, vector<2x24xbf16>
    %c0_78 = arith.constant 0 : index
    %c216 = arith.constant 216 : index
    %85 = vector.load %arg15[%c0_78, %c216] : memref<8x384xbf16, #tpu.memory_space<vmem>>, vector<2x24xbf16>
    tpu.vector_store %arg15[%c0_78, %c216], %84 {strides = array<i32>} : memref<8x384xbf16, #tpu.memory_space<vmem>>, vector<2x24xbf16>,
    %c20 = arith.constant 20 : index
    %c0_79 = arith.constant 0 : index
    %86 = vector.load %arg14[%c20, %c0_79] : memref<32x24xbf16, #tpu.memory_space<vmem>>, vector<2x24xbf16>
    %c0_80 = arith.constant 0 : index
    %c240 = arith.constant 240 : index
    %87 = vector.load %arg15[%c0_80, %c240] : memref<8x384xbf16, #tpu.memory_space<vmem>>, vector<2x24xbf16>
    tpu.vector_store %arg15[%c0_80, %c240], %86 {strides = array<i32>} : memref<8x384xbf16, #tpu.memory_space<vmem>>, vector<2x24xbf16>,
    %c22 = arith.constant 22 : index
    %c0_81 = arith.constant 0 : index
    %88 = vector.load %arg14[%c22, %c0_81] : memref<32x24xbf16, #tpu.memory_space<vmem>>, vector<2x24xbf16>
    %c0_82 = arith.constant 0 : index
    %c264 = arith.constant 264 : index
    %89 = vector.load %arg15[%c0_82, %c264] : memref<8x384xbf16, #tpu.memory_space<vmem>>, vector<2x24xbf16>
    tpu.vector_store %arg15[%c0_82, %c264], %88 {strides = array<i32>} : memref<8x384xbf16, #tpu.memory_space<vmem>>, vector<2x24xbf16>,
    %c24_83 = arith.constant 24 : index
    %c0_84 = arith.constant 0 : index
    %90 = vector.load %arg14[%c24_83, %c0_84] : memref<32x24xbf16, #tpu.memory_space<vmem>>, vector<2x24xbf16>
    %c0_85 = arith.constant 0 : index
    %c288 = arith.constant 288 : index
    %91 = vector.load %arg15[%c0_85, %c288] : memref<8x384xbf16, #tpu.memory_space<vmem>>, vector<2x24xbf16>
    tpu.vector_store %arg15[%c0_85, %c288], %90 {strides = array<i32>} : memref<8x384xbf16, #tpu.memory_space<vmem>>, vector<2x24xbf16>,
    %c26 = arith.constant 26 : index
    %c0_86 = arith.constant 0 : index
    %92 = vector.load %arg14[%c26, %c0_86] : memref<32x24xbf16, #tpu.memory_space<vmem>>, vector<2x24xbf16>
    %c0_87 = arith.constant 0 : index
    %c312 = arith.constant 312 : index
    %93 = vector.load %arg15[%c0_87, %c312] : memref<8x384xbf16, #tpu.memory_space<vmem>>, vector<2x24xbf16>
    tpu.vector_store %arg15[%c0_87, %c312], %92 {strides = array<i32>} : memref<8x384xbf16, #tpu.memory_space<vmem>>, vector<2x24xbf16>,
    %c28 = arith.constant 28 : index
    %c0_88 = arith.constant 0 : index
    %94 = vector.load %arg14[%c28, %c0_88] : memref<32x24xbf16, #tpu.memory_space<vmem>>, vector<2x24xbf16>
    %c0_89 = arith.constant 0 : index
    %c336 = arith.constant 336 : index
    %95 = vector.load %arg15[%c0_89, %c336] : memref<8x384xbf16, #tpu.memory_space<vmem>>, vector<2x24xbf16>
    tpu.vector_store %arg15[%c0_89, %c336], %94 {strides = array<i32>} : memref<8x384xbf16, #tpu.memory_space<vmem>>, vector<2x24xbf16>,
    %c30 = arith.constant 30 : index
    %c0_90 = arith.constant 0 : index
    %96 = vector.load %arg14[%c30, %c0_90] : memref<32x24xbf16, #tpu.memory_space<vmem>>, vector<2x24xbf16>
    %c0_91 = arith.constant 0 : index
    %c360 = arith.constant 360 : index
    %97 = vector.load %arg15[%c0_91, %c360] : memref<8x384xbf16, #tpu.memory_space<vmem>>, vector<2x24xbf16>
    tpu.vector_store %arg15[%c0_91, %c360], %96 {strides = array<i32>} : memref<8x384xbf16, #tpu.memory_space<vmem>>, vector<2x24xbf16>,
    %c0_92 = arith.constant 0 : index
    %c0_93 = arith.constant 0 : index
    %98 = vector.load %arg15[%c0_92, %c0_93] : memref<8x384xbf16, #tpu.memory_space<vmem>>, vector<8x384xbf16>
    %c0_94 = arith.constant 0 : index
    %c0_95 = arith.constant 0 : index
    %99 = vector.load %arg7[%c0_94, %c0_95] : memref<384x40xbf16, #tpu.memory_space<vmem>>, vector<384x40xbf16>
    %cst_96 = arith.constant dense<0.000000e+00> : vector<8x40xf32>
    %100 = tpu.matmul %98, %99, %cst_96 {dimension_numbers = #tpu.dot_dimension_numbers<[1], [0], [0], [1], [0, 0, 1, 1], [], []>} : vector<8x384xbf16>, vector<384x40xbf16>, vector<8x40xf32> -> vector<8x40xf32>
    %c0_97 = arith.constant 0 : index
    %c0_98 = arith.constant 0 : index
    %101 = vector.load %arg8[%c0_97, %c0_98] : memref<1x40xf32, #tpu.memory_space<vmem>>, vector<1x40xf32>
    %102 = vector.broadcast %101 : vector<1x40xf32> to vector<8x40xf32>
    %103 = arith.addf %100, %102 : vector<8x40xf32>
    %104 = vector.extract_strided_slice %103 {offsets = [0, 39], sizes = [8, 1], strides = [1, 1]} : vector<8x40xf32> to vector<8x1xf32>
    %105 = math.absf %104 : vector<8x1xf32>
    %106 = vector.shape_cast %105 : vector<8x1xf32> to vector<1x8x1xf32>
    %cst_99 = arith.constant dense<0xFF800000> : vector<1xf32>
    %107 = vector.multi_reduction <maximumf>, %106, %cst_99 [1, 2] : vector<1x8x1xf32> to vector<1xf32>
    %108 = vector.shape_cast %107 : vector<1xf32> to vector<1x1x1xf32>
    %109 = vector.extract %108[0, 0, 0] : f32 from vector<1x1x1xf32>
    %110 = vector.broadcast %109 : f32 to vector<1x1xf32>
    %cst_100 = arith.constant 0.000000e+00 : f32
    %111 = vector.broadcast %cst_100 : f32 to vector<8x40xf32>
    %112 = arith.maximumf %103, %111 : vector<8x40xf32>
    %113 = arith.truncf %112 : vector<8x40xf32> to vector<8x40xbf16>
    %c0_101 = arith.constant 0 : index
    %c0_102 = arith.constant 0 : index
    %114 = vector.load %arg9[%c0_101, %c0_102] : memref<40x128xbf16, #tpu.memory_space<vmem>>, vector<40x128xbf16>
    %cst_103 = arith.constant dense<0.000000e+00> : vector<8x128xf32>
    %115 = tpu.matmul %113, %114, %cst_103 {dimension_numbers = #tpu.dot_dimension_numbers<[1], [0], [0], [1], [0, 0, 1, 1], [], []>} : vector<8x40xbf16>, vector<40x128xbf16>, vector<8x128xf32> -> vector<8x128xf32>
    %c0_104 = arith.constant 0 : index
    %c0_105 = arith.constant 0 : index
    %116 = vector.load %arg10[%c0_104, %c0_105] : memref<1x128xf32, #tpu.memory_space<vmem>>, vector<1x128xf32>
    %117 = vector.broadcast %116 : vector<1x128xf32> to vector<8x128xf32>
    %118 = arith.addf %115, %117 : vector<8x128xf32>
    %119 = vector.extract_strided_slice %118 {offsets = [0, 15], sizes = [8, 1], strides = [1, 1]} : vector<8x128xf32> to vector<8x1xf32>
    %120 = math.absf %119 : vector<8x1xf32>
    %121 = vector.shape_cast %120 : vector<8x1xf32> to vector<1x8x1xf32>
    %cst_106 = arith.constant dense<0xFF800000> : vector<1xf32>
    %122 = vector.multi_reduction <maximumf>, %121, %cst_106 [1, 2] : vector<1x8x1xf32> to vector<1xf32>
    %123 = vector.shape_cast %122 : vector<1xf32> to vector<1x1x1xf32>
    %124 = vector.extract %123[0, 0, 0] : f32 from vector<1x1x1xf32>
    %125 = vector.broadcast %124 : f32 to vector<1x1xf32>
    %c0_107 = arith.constant 0 : index
    %c0_108 = arith.constant 0 : index
    %126 = vector.load %arg11[%c0_107, %c0_108] : memref<8x128xf32, #tpu.memory_space<vmem>>, vector<8x128xf32>
    tpu.vector_store %arg11[%c0_107, %c0_108], %118 {strides = array<i32>} : memref<8x128xf32, #tpu.memory_space<vmem>>, vector<8x128xf32>,
    %c7_109 = arith.constant 7 : index
    %c0_110 = arith.constant 0 : index
    %127 = vector.load %arg11[%c7_109, %c0_110] : memref<8x128xf32, #tpu.memory_space<vmem>>, vector<1x1xf32>
    tpu.vector_store %arg11[%c7_109, %c0_110], %14 {strides = array<i32>} : memref<8x128xf32, #tpu.memory_space<vmem>>, vector<1x1xf32>,
    %c7_111 = arith.constant 7 : index
    %c1 = arith.constant 1 : index
    %128 = vector.load %arg11[%c7_111, %c1] : memref<8x128xf32, #tpu.memory_space<vmem>>, vector<1x1xf32>
    tpu.vector_store %arg11[%c7_111, %c1], %56 {strides = array<i32>} : memref<8x128xf32, #tpu.memory_space<vmem>>, vector<1x1xf32>,
    %c7_112 = arith.constant 7 : index
    %c2_113 = arith.constant 2 : index
    %129 = vector.load %arg11[%c7_112, %c2_113] : memref<8x128xf32, #tpu.memory_space<vmem>>, vector<1x1xf32>
    tpu.vector_store %arg11[%c7_112, %c2_113], %110 {strides = array<i32>} : memref<8x128xf32, #tpu.memory_space<vmem>>, vector<1x1xf32>,
    %c7_114 = arith.constant 7 : index
    %c3 = arith.constant 3 : index
    %130 = vector.load %arg11[%c7_114, %c3] : memref<8x128xf32, #tpu.memory_space<vmem>>, vector<1x1xf32>
    tpu.vector_store %arg11[%c7_114, %c3], %125 {strides = array<i32>} : memref<8x128xf32, #tpu.memory_space<vmem>>, vector<1x1xf32>,
    return
  }
}

</mosaic_0001>

<llo_original>
// kernel: forward.1
$region0: #{forward.1}
  #allocation0 [shape = 'u32[]', space=smem, size = 0x4, offset = 0x4, fixed_abs, tag = 'smem constant byte address 0x4 - core index']
  #allocation1 [shape = 'u32[144,128]{1,0:T(1,128)}', space=vmem, size = 0x12000, scoped, tag = 'internal scratch']
  #allocation2 [shape = 'bf16[696,16]{1,0:T(8,128)(2,1)}', space=vmem, size = 0x2b800, scoped, tag = 'scratch operand']
  #allocation3 [shape = 'bf16[648,144]{1,0:T(8,128)(2,1)}', space=vmem, size = 0x51000, scoped, tag = 'scratch operand']
  #allocation4 [shape = 'bf16[32,24]{1,0:T(16,128)(2,1)}', space=vmem, size = 0x2000, scoped, tag = 'scratch operand']
  #allocation5 [shape = 'bf16[8,384]{1,0:T(8,128)(2,1)}', space=vmem, size = 0x1800, scoped, tag = 'scratch operand']
  %s0 = inlined_call_operand.vmem [shape: bf16[648,72], index: 0, kind: input, shape index: {}]
  %s1 = inlined_call_operand.vmem [shape: bf16[72,16], index: 1, kind: input, shape index: {}]
  %s2 = inlined_call_operand.vmem [shape: f32[1,16], index: 2, kind: input, shape index: {}]
  %s3 = inlined_call_operand.vmem [shape: bf16[144,24], index: 3, kind: input, shape index: {}]
  %s4 = inlined_call_operand.vmem [shape: f32[1,24], index: 4, kind: input, shape index: {}]
  %s5 = inlined_call_operand.vmem [shape: f32[648,1], index: 5, kind: input, shape index: {}]
  %s6 = inlined_call_operand.vmem [shape: bf16[32,648], index: 6, kind: input, shape index: {}]
  %s7 = inlined_call_operand.vmem [shape: bf16[384,40], index: 7, kind: input, shape index: {}]
  %s8 = inlined_call_operand.vmem [shape: f32[1,40], index: 8, kind: input, shape index: {}]
  %s9 = inlined_call_operand.vmem [shape: bf16[40,128], index: 9, kind: input, shape index: {}]
  %s10 = inlined_call_operand.vmem [shape: f32[1,128], index: 10, kind: input, shape index: {}]
  %s11 = inlined_call_operand.vmem [shape: f32[8,128], index: 11, kind: output, shape index: {}]
  %s12 = sld [smem:[#allocation0]]
  $region54: #{forward.1} parent=0
    _
  %s14 = ssub.s32 1, %s12
  %s15 = scalar_select 0, %s14, %s12
  // Predicated region
  $region2: #{forward.1} parent=0 // pred_check
    _
  $region3: #{forward.1} parent=0 // pred_check_branch
    %17 = sbr.rel (0) target = $region5
  $region4: #{forward.1} parent=0 // pred_region
    _
  $region5: #{forward.1} parent=0 // pred_fallthru
    _
  // Predicated region
  $region6: #{forward.1} parent=0 // pred_check
    _
  $region7: #{forward.1} parent=0 // pred_check_branch
    %19 = sbr.rel (0) target = $region9
  $region8: #{forward.1} parent=0 // pred_region
    _
  $region9: #{forward.1} parent=0 // pred_fallthru
    _
  // Predicated region
  $region10: #{forward.1} parent=0 // pred_check
    _
  $region11: #{forward.1} parent=0 // pred_check_branch
    %21 = sbr.rel (0) target = $region13
  $region12: #{forward.1} parent=0 // pred_region
    _
  $region13: #{forward.1} parent=0 // pred_fallthru
    _
  // Predicated region
  $region14: #{forward.1} parent=0 // pred_check
    _
  $region15: #{forward.1} parent=0 // pred_check_branch
    %23 = sbr.rel (0) target = $region17
  $region16: #{forward.1} parent=0 // pred_region
    _
  $region17: #{forward.1} parent=0 // pred_fallthru
    _
  // Predicated region
  $region18: #{forward.1} parent=0 // pred_check
    _
  $region19: #{forward.1} parent=0 // pred_check_branch
    %25 = sbr.rel (0) target = $region21
  $region20: #{forward.1} parent=0 // pred_region
    _
  $region21: #{forward.1} parent=0 // pred_fallthru
    _
  // Predicated region
  $region22: #{forward.1} parent=0 // pred_check
    _
  $region23: #{forward.1} parent=0 // pred_check_branch
    %27 = sbr.rel (0) target = $region25
  $region24: #{forward.1} parent=0 // pred_region
    _
  $region25: #{forward.1} parent=0 // pred_fallthru
    _
  // Predicated region
  $region26: #{forward.1} parent=0 // pred_check
    _
  $region27: #{forward.1} parent=0 // pred_check_branch
    %29 = sbr.rel (0) target = $region29
  $region28: #{forward.1} parent=0 // pred_region
    _
  $region29: #{forward.1} parent=0 // pred_fallthru
    _
  // Predicated region
  $region30: #{forward.1} parent=0 // pred_check
    _
  $region31: #{forward.1} parent=0 // pred_check_branch
    %31 = sbr.rel (0) target = $region33
  $region32: #{forward.1} parent=0 // pred_region
    _
  $region33: #{forward.1} parent=0 // pred_fallthru
    _
  // Predicated region
  $region34: #{forward.1} parent=0 // pred_check
    _
  $region35: #{forward.1} parent=0 // pred_check_branch
    %33 = sbr.rel (0) target = $region37
  $region36: #{forward.1} parent=0 // pred_region
    _
  $region37: #{forward.1} parent=0 // pred_fallthru
    _
  // Predicated region
  $region38: #{forward.1} parent=0 // pred_check
    _
  $region39: #{forward.1} parent=0 // pred_check_branch
    %35 = sbr.rel (0) target = $region41
  $region40: #{forward.1} parent=0 // pred_region
    _
  $region41: #{forward.1} parent=0 // pred_fallthru
    _
  // Predicated region
  $region42: #{forward.1} parent=0 // pred_check
    _
  $region43: #{forward.1} parent=0 // pred_check_branch
    %37 = sbr.rel (0) target = $region45
  $region44: #{forward.1} parent=0 // pred_region
    _
  $region45: #{forward.1} parent=0 // pred_fallthru
    _
  %v39 = vld [vmem:[%s5] sm:$0xff]
  %v40 = vld [vmem:[%s5 + $0x8] sm:$0xff]
  %v41 = vld [vmem:[%s5 + $0x10] sm:$0xff]
  %v42 = vld [vmem:[%s5 + $0x18] sm:$0xff]
  %v43 = vld [vmem:[%s5 + $0x20] sm:$0xff]
  %v44 = vld [vmem:[%s5 + $0x28] sm:$0xff]
  %v45 = vld [vmem:[%s5 + $0x30] sm:$0xff]
  %v46 = vld [vmem:[%s5 + $0x38] sm:$0xff]
  %v47 = vld [vmem:[%s5 + $0x40] sm:$0xff]
  %v48 = vld [vmem:[%s5 + $0x48] sm:$0xff]
  %v49 = vld [vmem:[%s5 + $0x50] sm:$0xff]
  %v50 = vld [vmem:[%s5 + $0x58] sm:$0xff]
  %v51 = vld [vmem:[%s5 + $0x60] sm:$0xff]
  %v52 = vld [vmem:[%s5 + $0x68] sm:$0xff]
  %v53 = vld [vmem:[%s5 + $0x70] sm:$0xff]
  %v54 = vld [vmem:[%s5 + $0x78] sm:$0xff]
  %v55 = vld [vmem:[%s5 + $0x80] sm:$0xff]
  %v56 = vld [vmem:[%s5 + $0x88] sm:$0xff]
  %v57 = vld [vmem:[%s5 + $0x90] sm:$0xff]
  %v58 = vld [vmem:[%s5 + $0x98] sm:$0xff]
  %v59 = vld [vmem:[%s5 + $0xa0] sm:$0xff]
  %v60 = vld [vmem:[%s5 + $0xa8] sm:$0xff]
  %v61 = vld [vmem:[%s5 + $0xb0] sm:$0xff]
  %v62 = vld [vmem:[%s5 + $0xb8] sm:$0xff]
  %v63 = vld [vmem:[%s5 + $0xc0] sm:$0xff]
  %v64 = vld [vmem:[%s5 + $0xc8] sm:$0xff]
  %v65 = vld [vmem:[%s5 + $0xd0] sm:$0xff]
  %v66 = vld [vmem:[%s5 + $0xd8] sm:$0xff]
  %v67 = vld [vmem:[%s5 + $0xe0] sm:$0xff]
  %v68 = vld [vmem:[%s5 + $0xe8] sm:$0xff]
  %v69 = vld [vmem:[%s5 + $0xf0] sm:$0xff]
  %v70 = vld [vmem:[%s5 + $0xf8] sm:$0xff]
  %v71 = vld [vmem:[%s5 + $0x100] sm:$0xff]
  %v72 = vld [vmem:[%s5 + $0x108] sm:$0xff]
  %v73 = vld [vmem:[%s5 + $0x110] sm:$0xff]
  %v74 = vld [vmem:[%s5 + $0x118] sm:$0xff]
  %v75 = vld [vmem:[%s5 + $0x120] sm:$0xff]
  %v76 = vld [vmem:[%s5 + $0x128] sm:$0xff]
  %v77 = vld [vmem:[%s5 + $0x130] sm:$0xff]
  %v78 = vld [vmem:[%s5 + $0x138] sm:$0xff]
  %v79 = vld [vmem:[%s5 + $0x140] sm:$0xff]
  %v80 = vld [vmem:[%s5 + $0x148] sm:$0xff]
  %v81 = vld [vmem:[%s5 + $0x150] sm:$0xff]
  %v82 = vld [vmem:[%s5 + $0x158] sm:$0xff]
  %v83 = vld [vmem:[%s5 + $0x160] sm:$0xff]
  %v84 = vld [vmem:[%s5 + $0x168] sm:$0xff]
  %v85 = vld [vmem:[%s5 + $0x170] sm:$0xff]
  %v86 = vld [vmem:[%s5 + $0x178] sm:$0xff]
  %v87 = vld [vmem:[%s5 + $0x180] sm:$0xff]
  %v88 = vld [vmem:[%s5 + $0x188] sm:$0xff]
  %v89 = vld [vmem:[%s5 + $0x190] sm:$0xff]
  %v90 = vld [vmem:[%s5 + $0x198] sm:$0xff]
  %v91 = vld [vmem:[%s5 + $0x1a0] sm:$0xff]
  %v92 = vld [vmem:[%s5 + $0x1a8] sm:$0xff]
  %v93 = vld [vmem:[%s5 + $0x1b0] sm:$0xff]
  %v94 = vld [vmem:[%s5 + $0x1b8] sm:$0xff]
  %v95 = vld [vmem:[%s5 + $0x1c0] sm:$0xff]
  %v96 = vld [vmem:[%s5 + $0x1c8] sm:$0xff]
  %v97 = vld [vmem:[%s5 + $0x1d0] sm:$0xff]
  %v98 = vld [vmem:[%s5 + $0x1d8] sm:$0xff]
  %v99 = vld [vmem:[%s5 + $0x1e0] sm:$0xff]
  %v100 = vld [vmem:[%s5 + $0x1e8] sm:$0xff]
  %v101 = vld [vmem:[%s5 + $0x1f0] sm:$0xff]
  %v102 = vld [vmem:[%s5 + $0x1f8] sm:$0xff]
  %v103 = vld [vmem:[%s5 + $0x200] sm:$0xff]
  %v104 = vld [vmem:[%s5 + $0x208] sm:$0xff]
  %v105 = vld [vmem:[%s5 + $0x210] sm:$0xff]
  %v106 = vld [vmem:[%s5 + $0x218] sm:$0xff]
  %v107 = vld [vmem:[%s5 + $0x220] sm:$0xff]
  %v108 = vld [vmem:[%s5 + $0x228] sm:$0xff]
  %v109 = vld [vmem:[%s5 + $0x230] sm:$0xff]
  %v110 = vld [vmem:[%s5 + $0x238] sm:$0xff]
  %v111 = vld [vmem:[%s5 + $0x240] sm:$0xff]
  %v112 = vld [vmem:[%s5 + $0x248] sm:$0xff]
  %v113 = vld [vmem:[%s5 + $0x250] sm:$0xff]
  %v114 = vld [vmem:[%s5 + $0x258] sm:$0xff]
  %v115 = vld [vmem:[%s5 + $0x260] sm:$0xff]
  %v116 = vld [vmem:[%s5 + $0x268] sm:$0xff]
  %v117 = vld [vmem:[%s5 + $0x270] sm:$0xff]
  %v118 = vld [vmem:[%s5 + $0x278] sm:$0xff]
  %v119 = vld [vmem:[%s5 + $0x280] sm:$0xff]
  %v120 = vld [vmem:[%s0] sm:$0xf]
  %v121 = vld [vmem:[%s0 + $0x4] sm:$0xf]
  %v122 = vld [vmem:[%s0 + $0x8] sm:$0xf]
  %v123 = vld [vmem:[%s0 + $0xc] sm:$0xf]
  %v124 = vld [vmem:[%s0 + $0x10] sm:$0xf]
  %v125 = vld [vmem:[%s0 + $0x14] sm:$0xf]
  %v126 = vld [vmem:[%s0 + $0x18] sm:$0xf]
  %v127 = vld [vmem:[%s0 + $0x1c] sm:$0xf]
  %v128 = vld [vmem:[%s0 + $0x20] sm:$0xf]
  %v129 = vld [vmem:[%s0 + $0x24] sm:$0xf]
  %v130 = vld [vmem:[%s0 + $0x28] sm:$0xf]
  %v131 = vld [vmem:[%s0 + $0x2c] sm:$0xf]
  %v132 = vld [vmem:[%s0 + $0x30] sm:$0xf]
  %v133 = vld [vmem:[%s0 + $0x34] sm:$0xf]
  %v134 = vld [vmem:[%s0 + $0x38] sm:$0xf]
  %v135 = vld [vmem:[%s0 + $0x3c] sm:$0xf]
  %v136 = vld [vmem:[%s0 + $0x40] sm:$0xf]
  %v137 = vld [vmem:[%s0 + $0x44] sm:$0xf]
  %v138 = vld [vmem:[%s0 + $0x48] sm:$0xf]
  %v139 = vld [vmem:[%s0 + $0x4c] sm:$0xf]
  %v140 = vld [vmem:[%s0 + $0x50] sm:$0xf]
  %v141 = vld [vmem:[%s0 + $0x54] sm:$0xf]
  %v142 = vld [vmem:[%s0 + $0x58] sm:$0xf]
  %v143 = vld [vmem:[%s0 + $0x5c] sm:$0xf]
  %v144 = vld [vmem:[%s0 + $0x60] sm:$0xf]
  %v145 = vld [vmem:[%s0 + $0x64] sm:$0xf]
  %v146 = vld [vmem:[%s0 + $0x68] sm:$0xf]
  %v147 = vld [vmem:[%s0 + $0x6c] sm:$0xf]
  %v148 = vld [vmem:[%s0 + $0x70] sm:$0xf]
  %v149 = vld [vmem:[%s0 + $0x74] sm:$0xf]
  %v150 = vld [vmem:[%s0 + $0x78] sm:$0xf]
  %v151 = vld [vmem:[%s0 + $0x7c] sm:$0xf]
  %v152 = vld [vmem:[%s0 + $0x80] sm:$0xf]
  %v153 = vld [vmem:[%s0 + $0x84] sm:$0xf]
  %v154 = vld [vmem:[%s0 + $0x88] sm:$0xf]
  %v155 = vld [vmem:[%s0 + $0x8c] sm:$0xf]
  %v156 = vld [vmem:[%s0 + $0x90] sm:$0xf]
  %v157 = vld [vmem:[%s0 + $0x94] sm:$0xf]
  %v158 = vld [vmem:[%s0 + $0x98] sm:$0xf]
  %v159 = vld [vmem:[%s0 + $0x9c] sm:$0xf]
  %v160 = vld [vmem:[%s0 + $0xa0] sm:$0xf]
  %v161 = vld [vmem:[%s0 + $0xa4] sm:$0xf]
  %v162 = vld [vmem:[%s0 + $0xa8] sm:$0xf]
  %v163 = vld [vmem:[%s0 + $0xac] sm:$0xf]
  %v164 = vld [vmem:[%s0 + $0xb0] sm:$0xf]
  %v165 = vld [vmem:[%s0 + $0xb4] sm:$0xf]
  %v166 = vld [vmem:[%s0 + $0xb8] sm:$0xf]
  %v167 = vld [vmem:[%s0 + $0xbc] sm:$0xf]
  %v168 = vld [vmem:[%s0 + $0xc0] sm:$0xf]
  %v169 = vld [vmem:[%s0 + $0xc4] sm:$0xf]
  %v170 = vld [vmem:[%s0 + $0xc8] sm:$0xf]
  %v171 = vld [vmem:[%s0 + $0xcc] sm:$0xf]
  %v172 = vld [vmem:[%s0 + $0xd0] sm:$0xf]
  %v173 = vld [vmem:[%s0 + $0xd4] sm:$0xf]
  %v174 = vld [vmem:[%s0 + $0xd8] sm:$0xf]
  %v175 = vld [vmem:[%s0 + $0xdc] sm:$0xf]
  %v176 = vld [vmem:[%s0 + $0xe0] sm:$0xf]
  %v177 = vld [vmem:[%s0 + $0xe4] sm:$0xf]
  %v178 = vld [vmem:[%s0 + $0xe8] sm:$0xf]
  %v179 = vld [vmem:[%s0 + $0xec] sm:$0xf]
  %v180 = vld [vmem:[%s0 + $0xf0] sm:$0xf]
  %v181 = vld [vmem:[%s0 + $0xf4] sm:$0xf]
  %v182 = vld [vmem:[%s0 + $0xf8] sm:$0xf]
  %v183 = vld [vmem:[%s0 + $0xfc] sm:$0xf]
  %v184 = vld [vmem:[%s0 + $0x100] sm:$0xf]
  %v185 = vld [vmem:[%s0 + $0x104] sm:$0xf]
  %v186 = vld [vmem:[%s0 + $0x108] sm:$0xf]
  %v187 = vld [vmem:[%s0 + $0x10c] sm:$0xf]
  %v188 = vld [vmem:[%s0 + $0x110] sm:$0xf]
  %v189 = vld [vmem:[%s0 + $0x114] sm:$0xf]
  %v190 = vld [vmem:[%s0 + $0x118] sm:$0xf]
  %v191 = vld [vmem:[%s0 + $0x11c] sm:$0xf]
  %v192 = vld [vmem:[%s0 + $0x120] sm:$0xf]
  %v193 = vld [vmem:[%s0 + $0x124] sm:$0xf]
  %v194 = vld [vmem:[%s0 + $0x128] sm:$0xf]
  %v195 = vld [vmem:[%s0 + $0x12c] sm:$0xf]
  %v196 = vld [vmem:[%s0 + $0x130] sm:$0xf]
  %v197 = vld [vmem:[%s0 + $0x134] sm:$0xf]
  %v198 = vld [vmem:[%s0 + $0x138] sm:$0xf]
  %v199 = vld [vmem:[%s0 + $0x13c] sm:$0xf]
  %v200 = vld [vmem:[%s0 + $0x140] sm:$0xf]
  %v201 = vld [vmem:[%s1] sm:$0xf]
  %v202 = vld [vmem:[%s1 + $0x4] sm:$0xf]
  %v203 = vld [vmem:[%s1 + $0x8] sm:$0xf]
  %v204 = vld [vmem:[%s1 + $0xc] sm:$0xf]
  %v205 = vld [vmem:[%s1 + $0x10] sm:$0xf]
  %v206 = vld [vmem:[%s1 + $0x14] sm:$0xf]
  %v207 = vld [vmem:[%s1 + $0x18] sm:$0xf]
  %v208 = vld [vmem:[%s1 + $0x1c] sm:$0xf]
  %v209 = vld [vmem:[%s1 + $0x20] sm:$0xf]
  %v210 = vld [vmem:[%s2] sm:$0x1]
  %v212 = vlaneseq
  %v213 = vshrl.u32 %v212, 7
  %v214 = vsub.s32 0, %v213
  %v215 = vrot.slane %v210, %v214
  %v298 = vunpack.c.l.b16 %v120
  %v299 = vunpack.c.l.b16 %v121
  %v300 = vunpack.c.l.b16 %v122
  %v301 = vunpack.c.l.b16 %v123
  %v302 = vunpack.c.l.b16 %v124
  %v303 = vunpack.c.l.b16 %v125
  %v304 = vunpack.c.l.b16 %v126
  %v305 = vunpack.c.l.b16 %v127
  %v306 = vunpack.c.l.b16 %v128
  %v307 = vunpack.c.l.b16 %v129
  %v308 = vunpack.c.l.b16 %v130
  %v309 = vunpack.c.l.b16 %v131
  %v310 = vunpack.c.l.b16 %v132
  %v311 = vunpack.c.l.b16 %v133
  %v312 = vunpack.c.l.b16 %v134
  %v313 = vunpack.c.l.b16 %v135
  %v314 = vunpack.c.l.b16 %v136
  %v315 = vunpack.c.l.b16 %v137
  %v316 = vunpack.c.l.b16 %v138
  %v317 = vunpack.c.l.b16 %v139
  %v318 = vunpack.c.l.b16 %v140
  %v319 = vunpack.c.l.b16 %v141
  %v320 = vunpack.c.l.b16 %v142
  %v321 = vunpack.c.l.b16 %v143
  %v322 = vunpack.c.l.b16 %v144
  %v323 = vunpack.c.l.b16 %v145
  %v324 = vunpack.c.l.b16 %v146
  %v325 = vunpack.c.l.b16 %v147
  %v326 = vunpack.c.l.b16 %v148
  %v327 = vunpack.c.l.b16 %v149
  %v328 = vunpack.c.l.b16 %v150
  %v329 = vunpack.c.l.b16 %v151
  %v330 = vunpack.c.l.b16 %v152
  %v331 = vunpack.c.l.b16 %v153
  %v332 = vunpack.c.l.b16 %v154
  %v333 = vunpack.c.l.b16 %v155
  %v334 = vunpack.c.l.b16 %v156
  %v335 = vunpack.c.l.b16 %v157
  %v336 = vunpack.c.l.b16 %v158
  %v337 = vunpack.c.l.b16 %v159
  %v338 = vunpack.c.l.b16 %v160
  %v339 = vunpack.c.l.b16 %v161
  %v340 = vunpack.c.l.b16 %v162
  %v341 = vunpack.c.l.b16 %v163
  %v342 = vunpack.c.l.b16 %v164
  %v343 = vunpack.c.l.b16 %v165
  %v344 = vunpack.c.l.b16 %v166
  %v345 = vunpack.c.l.b16 %v167
  %v346 = vunpack.c.l.b16 %v168
  %v347 = vunpack.c.l.b16 %v169
  %v348 = vunpack.c.l.b16 %v170
  %v349 = vunpack.c.l.b16 %v171
  %v350 = vunpack.c.l.b16 %v172
  %v351 = vunpack.c.l.b16 %v173
  %v352 = vunpack.c.l.b16 %v174
  %v353 = vunpack.c.l.b16 %v175
  %v354 = vunpack.c.l.b16 %v176
  %v355 = vunpack.c.l.b16 %v177
  %v356 = vunpack.c.l.b16 %v178
  %v357 = vunpack.c.l.b16 %v179
  %v358 = vunpack.c.l.b16 %v180
  %v359 = vunpack.c.l.b16 %v181
  %v360 = vunpack.c.l.b16 %v182
  %v361 = vunpack.c.l.b16 %v183
  %v362 = vunpack.c.l.b16 %v184
  %v363 = vunpack.c.l.b16 %v185
  %v364 = vunpack.c.l.b16 %v186
  %v365 = vunpack.c.l.b16 %v187
  %v366 = vunpack.c.l.b16 %v188
  %v367 = vunpack.c.l.b16 %v189
  %v368 = vunpack.c.l.b16 %v190
  %v369 = vunpack.c.l.b16 %v191
  %v370 = vunpack.c.l.b16 %v192
  %v371 = vunpack.c.l.b16 %v193
  %v372 = vunpack.c.l.b16 %v194
  %v373 = vunpack.c.l.b16 %v195
  %v374 = vunpack.c.l.b16 %v196
  %v375 = vunpack.c.l.b16 %v197
  %v376 = vunpack.c.l.b16 %v198
  %v377 = vunpack.c.l.b16 %v199
  %v378 = vunpack.c.l.b16 %v200
  %v379 = vpack.c.b16 %v299, %v298
  %v380 = vpack.c.b16 %v301, %v300
  %v381 = vpack.c.b16 %v303, %v302
  %v382 = vpack.c.b16 %v305, %v304
  %v383 = vpack.c.b16 %v307, %v306
  %v384 = vpack.c.b16 %v309, %v308
  %v385 = vpack.c.b16 %v311, %v310
  %v386 = vpack.c.b16 %v313, %v312
  %v387 = vpack.c.b16 %v315, %v314
  %v388 = vpack.c.b16 %v317, %v316
  %v389 = vpack.c.b16 %v319, %v318
  %v390 = vpack.c.b16 %v321, %v320
  %v391 = vpack.c.b16 %v323, %v322
  %v392 = vpack.c.b16 %v325, %v324
  %v393 = vpack.c.b16 %v327, %v326
  %v394 = vpack.c.b16 %v329, %v328
  %v395 = vpack.c.b16 %v331, %v330
  %v396 = vpack.c.b16 %v333, %v332
  %v397 = vpack.c.b16 %v335, %v334
  %v398 = vpack.c.b16 %v337, %v336
  %v399 = vpack.c.b16 %v339, %v338
  %v400 = vpack.c.b16 %v341, %v340
  %v401 = vpack.c.b16 %v343, %v342
  %v402 = vpack.c.b16 %v345, %v344
  %v403 = vpack.c.b16 %v347, %v346
  %v404 = vpack.c.b16 %v349, %v348
  %v405 = vpack.c.b16 %v351, %v350
  %v406 = vpack.c.b16 %v353, %v352
  %v407 = vpack.c.b16 %v355, %v354
  %v408 = vpack.c.b16 %v357, %v356
  %v409 = vpack.c.b16 %v359, %v358
  %v410 = vpack.c.b16 %v361, %v360
  %v411 = vpack.c.b16 %v363, %v362
  %v412 = vpack.c.b16 %v365, %v364
  %v413 = vpack.c.b16 %v367, %v366
  %v414 = vpack.c.b16 %v369, %v368
  %v415 = vpack.c.b16 %v371, %v370
  %v416 = vpack.c.b16 %v373, %v372
  %v417 = vpack.c.b16 %v375, %v374
  %v418 = vpack.c.b16 %v377, %v376
  %v419 = vpack.c.b16 %v378, %v378
  %v429 = vunpack.c.l.b16 %v201
  %v430 = vunpack.c.l.b16 %v202
  %v431 = vunpack.c.l.b16 %v203
  %v432 = vunpack.c.l.b16 %v204
  %v433 = vunpack.c.l.b16 %v205
  %v434 = vunpack.c.l.b16 %v206
  %v435 = vunpack.c.l.b16 %v207
  %v436 = vunpack.c.l.b16 %v208
  %v437 = vunpack.c.l.b16 %v209
  %v438 = vpack.c.b16 %v430, %v429
  %v439 = vpack.c.b16 %v432, %v431
  %v440 = vpack.c.b16 %v434, %v433
  %v441 = vpack.c.b16 %v436, %v435
  %v442 = vpack.c.b16 %v437, %v437
  %vm447 = vcmask 588800
  %v449 = vsel %vm447, %v379, 0
  %v452 = vsel %vm447, %v380, 0
  %v455 = vsel %vm447, %v381, 0
  %v458 = vsel %vm447, %v382, 0
  %v461 = vsel %vm447, %v383, 0
  %v464 = vsel %vm447, %v384, 0
  %v467 = vsel %vm447, %v385, 0
  %v470 = vsel %vm447, %v386, 0
  %v473 = vsel %vm447, %v387, 0
  %v476 = vsel %vm447, %v388, 0
  %v479 = vsel %vm447, %v389, 0
  %v482 = vsel %vm447, %v390, 0
  %v485 = vsel %vm447, %v391, 0
  %v488 = vsel %vm447, %v392, 0
  %v491 = vsel %vm447, %v393, 0
  %v494 = vsel %vm447, %v394, 0
  %v497 = vsel %vm447, %v395, 0
  %v500 = vsel %vm447, %v396, 0
  %v503 = vsel %vm447, %v397, 0
  %v506 = vsel %vm447, %v398, 0
  %v509 = vsel %vm447, %v399, 0
  %v512 = vsel %vm447, %v400, 0
  %v515 = vsel %vm447, %v401, 0
  %v518 = vsel %vm447, %v402, 0
  %v521 = vsel %vm447, %v403, 0
  %v524 = vsel %vm447, %v404, 0
  %v527 = vsel %vm447, %v405, 0
  %v530 = vsel %vm447, %v406, 0
  %v533 = vsel %vm447, %v407, 0
  %v536 = vsel %vm447, %v408, 0
  %v539 = vsel %vm447, %v409, 0
  %v542 = vsel %vm447, %v410, 0
  %v545 = vsel %vm447, %v411, 0
  %v548 = vsel %vm447, %v412, 0
  %v551 = vsel %vm447, %v413, 0
  %v554 = vsel %vm447, %v414, 0
  %v557 = vsel %vm447, %v415, 0
  %v560 = vsel %vm447, %v416, 0
  %v563 = vsel %vm447, %v417, 0
  %v566 = vsel %vm447, %v418, 0
  %v569 = vsel %vm447, %v419, 0
  %vm571 = vcmask 1043456
  %v573 = vsel %vm571, %v442, 0
  %575 = vmatprep.subr.bf16.mxu0 0
  %576 = vmatpush1.bf16.msra.mxu0 %v438
  %577 = vmatprep.subr.bf16.mxu0 0
  %578 = vmatpush1.bf16.msra.mxu0 %v439
  %579 = vmatprep.subr.bf16.mxu0 0
  %580 = vmatpush1.bf16.msra.mxu0 %v440
  %581 = vmatprep.subr.bf16.mxu0 0
  %582 = vmatpush1.bf16.msra.mxu0 %v441
  %583 = vmatprep.subr.bf16.mxu0 0
  %584 = vmatpush1.bf16.msra.mxu0 %v573
  %585 = vmatprep.subr.bf16.mxu0 0
  %586 = vmatpush1.bf16.msra.mxu0 0
  %587 = vmatprep.subr.bf16.mxu0 0
  %588 = vmatpush1.bf16.msra.mxu0 0
  %589 = vmatprep.subr.bf16.mxu0 0
  %590 = vmatpush1.bf16.msra.mxu0 0
  %591 = vmatprep.subr.bf16.mxu0 0
  %592 = vmatpush1.bf16.msra.mxu0 0
  %593 = vmatprep.subr.bf16.mxu0 0
  %594 = vmatpush1.bf16.msra.mxu0 0
  %595 = vmatprep.subr.bf16.mxu0 0
  %596 = vmatpush1.bf16.msra.mxu0 0
  %597 = vmatprep.subr.bf16.mxu0 0
  %598 = vmatpush1.bf16.msra.mxu0 0
  %599 = vmatprep.subr.bf16.mxu0 0
  %600 = vmatpush1.bf16.msra.mxu0 0
  %601 = vmatprep.subr.bf16.mxu0 0
  %602 = vmatpush1.bf16.msra.mxu0 0
  %603 = vmatprep.subr.bf16.mxu0 0
  %604 = vmatpush1.bf16.msra.mxu0 0
  %605 = vmatprep.subr.bf16.mxu0 0
  %606 = vmatpush1.bf16.msra.mxu0 0
  %607 = vmatprep.mubr.bf16.mxu0 0
  %608 = vmatmul.mubr.bf16.gmra.mrb[0].mxu0 %v449
  %v609 = vpop.f32.mrb[0].mxu0
  %v610 = vadd.f32 %v215, %v609
  %v611 = vpop.f32.mrb[0].mxu0
  %v612 = vpop.f32.mrb[0].mxu0
  %v613 = vadd.f32 %v215, %v612
  %v614 = vpop.f32.mrb[0].mxu0
  %615 = vmatprep.mubr.bf16.mxu0 0
  %616 = vmatmul.mubr.bf16.gmra.mrb[0].mxu0 %v452
  %v617 = vpop.f32.mrb[0].mxu0
  %v618 = vadd.f32 %v215, %v617
  %v619 = vpop.f32.mrb[0].mxu0
  %v620 = vpop.f32.mrb[0].mxu0
  %v621 = vadd.f32 %v215, %v620
  %v622 = vpop.f32.mrb[0].mxu0
  %623 = vmatprep.mubr.bf16.mxu0 0
  %624 = vmatmul.mubr.bf16.gmra.mrb[0].mxu0 %v455
  %v625 = vpop.f32.mrb[0].mxu0
  %v626 = vadd.f32 %v215, %v625
  %v627 = vpop.f32.mrb[0].mxu0
  %v628 = vpop.f32.mrb[0].mxu0
  %v629 = vadd.f32 %v215, %v628
  %v630 = vpop.f32.mrb[0].mxu0
  %631 = vmatprep.mubr.bf16.mxu0 0
  %632 = vmatmul.mubr.bf16.gmra.mrb[0].mxu0 %v458
  %v633 = vpop.f32.mrb[0].mxu0
  %v634 = vadd.f32 %v215, %v633
  %v635 = vpop.f32.mrb[0].mxu0
  %v636 = vpop.f32.mrb[0].mxu0
  %v637 = vadd.f32 %v215, %v636
  %v638 = vpop.f32.mrb[0].mxu0
  %639 = vmatprep.mubr.bf16.mxu0 0
  %640 = vmatmul.mubr.bf16.gmra.mrb[0].mxu0 %v461
  %v641 = vpop.f32.mrb[0].mxu0
  %v642 = vadd.f32 %v215, %v641
  %v643 = vpop.f32.mrb[0].mxu0
  %v644 = vpop.f32.mrb[0].mxu0
  %v645 = vadd.f32 %v215, %v644
  %v646 = vpop.f32.mrb[0].mxu0
  %647 = vmatprep.mubr.bf16.mxu0 0
  %648 = vmatmul.mubr.bf16.gmra.mrb[0].mxu0 %v464
  %v649 = vpop.f32.mrb[0].mxu0
  %v650 = vadd.f32 %v215, %v649
  %v651 = vpop.f32.mrb[0].mxu0
  %v652 = vpop.f32.mrb[0].mxu0
  %v653 = vadd.f32 %v215, %v652
  %v654 = vpop.f32.mrb[0].mxu0
  %655 = vmatprep.mubr.bf16.mxu0 0
  %656 = vmatmul.mubr.bf16.gmra.mrb[0].mxu0 %v467
  %v657 = vpop.f32.mrb[0].mxu0
  %v658 = vadd.f32 %v215, %v657
  %v659 = vpop.f32.mrb[0].mxu0
  %v660 = vpop.f32.mrb[0].mxu0
  %v661 = vadd.f32 %v215, %v660
  %v662 = vpop.f32.mrb[0].mxu0
  %663 = vmatprep.mubr.bf16.mxu0 0
  %664 = vmatmul.mubr.bf16.gmra.mrb[0].mxu0 %v470
  %v665 = vpop.f32.mrb[0].mxu0
  %v666 = vadd.f32 %v215, %v665
  %v667 = vpop.f32.mrb[0].mxu0
  %v668 = vpop.f32.mrb[0].mxu0
  %v669 = vadd.f32 %v215, %v668
  %v670 = vpop.f32.mrb[0].mxu0
  %671 = vmatprep.mubr.bf16.mxu0 0
  %672 = vmatmul.mubr.bf16.gmra.mrb[0].mxu0 %v473
  %v673 = vpop.f32.mrb[0].mxu0
  %v674 = vadd.f32 %v215, %v673
  %v675 = vpop.f32.mrb[0].mxu0
  %v676 = vpop.f32.mrb[0].mxu0
  %v677 = vadd.f32 %v215, %v676
  %v678 = vpop.f32.mrb[0].mxu0
  %679 = vmatprep.mubr.bf16.mxu0 0
  %680 = vmatmul.mubr.bf16.gmra.mrb[0].mxu0 %v476
  %v681 = vpop.f32.mrb[0].mxu0
  %v682 = vadd.f32 %v215, %v681
  %v683 = vpop.f32.mrb[0].mxu0
  %v684 = vpop.f32.mrb[0].mxu0
  %v685 = vadd.f32 %v215, %v684
  %v686 = vpop.f32.mrb[0].mxu0
  %687 = vmatprep.mubr.bf16.mxu0 0
  %688 = vmatmul.mubr.bf16.gmra.mrb[0].mxu0 %v479
  %v689 = vpop.f32.mrb[0].mxu0
  %v690 = vadd.f32 %v215, %v689
  %v691 = vpop.f32.mrb[0].mxu0
  %v692 = vpop.f32.mrb[0].mxu0
  %v693 = vadd.f32 %v215, %v692
  %v694 = vpop.f32.mrb[0].mxu0
  %695 = vmatprep.mubr.bf16.mxu0 0
  %696 = vmatmul.mubr.bf16.gmra.mrb[0].mxu0 %v482
  %v697 = vpop.f32.mrb[0].mxu0
  %v698 = vadd.f32 %v215, %v697
  %v699 = vpop.f32.mrb[0].mxu0
  %v700 = vpop.f32.mrb[0].mxu0
  %v701 = vadd.f32 %v215, %v700
  %v702 = vpop.f32.mrb[0].mxu0
  %703 = vmatprep.mubr.bf16.mxu0 0
  %704 = vmatmul.mubr.bf16.gmra.mrb[0].mxu0 %v485
  %v705 = vpop.f32.mrb[0].mxu0
  %v706 = vadd.f32 %v215, %v705
  %v707 = vpop.f32.mrb[0].mxu0
  %v708 = vpop.f32.mrb[0].mxu0
  %v709 = vadd.f32 %v215, %v708
  %v710 = vpop.f32.mrb[0].mxu0
  %711 = vmatprep.mubr.bf16.mxu0 0
  %712 = vmatmul.mubr.bf16.gmra.mrb[0].mxu0 %v488
  %v713 = vpop.f32.mrb[0].mxu0
  %v714 = vadd.f32 %v215, %v713
  %v715 = vpop.f32.mrb[0].mxu0
  %v716 = vpop.f32.mrb[0].mxu0
  %v717 = vadd.f32 %v215, %v716
  %v718 = vpop.f32.mrb[0].mxu0
  %719 = vmatprep.mubr.bf16.mxu0 0
  %720 = vmatmul.mubr.bf16.gmra.mrb[0].mxu0 %v491
  %v721 = vpop.f32.mrb[0].mxu0
  %v722 = vadd.f32 %v215, %v721
  %v723 = vpop.f32.mrb[0].mxu0
  %v724 = vpop.f32.mrb[0].mxu0
  %v725 = vadd.f32 %v215, %v724
  %v726 = vpop.f32.mrb[0].mxu0
  %727 = vmatprep.mubr.bf16.mxu0 0
  %728 = vmatmul.mubr.bf16.gmra.mrb[0].mxu0 %v494
  %v729 = vpop.f32.mrb[0].mxu0
  %v730 = vadd.f32 %v215, %v729
  %v731 = vpop.f32.mrb[0].mxu0
  %v732 = vpop.f32.mrb[0].mxu0
  %v733 = vadd.f32 %v215, %v732
  %v734 = vpop.f32.mrb[0].mxu0
  %735 = vmatprep.mubr.bf16.mxu0 0
  %736 = vmatmul.mubr.bf16.gmra.mrb[0].mxu0 %v497
  %v737 = vpop.f32.mrb[0].mxu0
  %v738 = vadd.f32 %v215, %v737
  %v739 = vpop.f32.mrb[0].mxu0
  %v740 = vpop.f32.mrb[0].mxu0
  %v741 = vadd.f32 %v215, %v740
  %v742 = vpop.f32.mrb[0].mxu0
  %743 = vmatprep.mubr.bf16.mxu0 0
  %744 = vmatmul.mubr.bf16.gmra.mrb[0].mxu0 %v500
  %v745 = vpop.f32.mrb[0].mxu0
  %v746 = vadd.f32 %v215, %v745
  %v747 = vpop.f32.mrb[0].mxu0
  %v748 = vpop.f32.mrb[0].mxu0
  %v749 = vadd.f32 %v215, %v748
  %v750 = vpop.f32.mrb[0].mxu0
  %751 = vmatprep.mubr.bf16.mxu0 0
  %752 = vmatmul.mubr.bf16.gmra.mrb[0].mxu0 %v503
  %v753 = vpop.f32.mrb[0].mxu0
  %v754 = vadd.f32 %v215, %v753
  %v755 = vpop.f32.mrb[0].mxu0
  %v756 = vpop.f32.mrb[0].mxu0
  %v757 = vadd.f32 %v215, %v756
  %v758 = vpop.f32.mrb[0].mxu0
  %759 = vmatprep.mubr.bf16.mxu0 0
  %760 = vmatmul.mubr.bf16.gmra.mrb[0].mxu0 %v506
  %v761 = vpop.f32.mrb[0].mxu0
  %v762 = vadd.f32 %v215, %v761
  %v763 = vpop.f32.mrb[0].mxu0
  %v764 = vpop.f32.mrb[0].mxu0
  %v765 = vadd.f32 %v215, %v764
  %v766 = vpop.f32.mrb[0].mxu0
  %767 = vmatprep.mubr.bf16.mxu0 0
  %768 = vmatmul.mubr.bf16.gmra.mrb[0].mxu0 %v509
  %v769 = vpop.f32.mrb[0].mxu0
  %v770 = vadd.f32 %v215, %v769
  %v771 = vpop.f32.mrb[0].mxu0
  %v772 = vpop.f32.mrb[0].mxu0
  %v773 = vadd.f32 %v215, %v772
  %v774 = vpop.f32.mrb[0].mxu0
  %775 = vmatprep.mubr.bf16.mxu0 0
  %776 = vmatmul.mubr.bf16.gmra.mrb[0].mxu0 %v512
  %v777 = vpop.f32.mrb[0].mxu0
  %v778 = vadd.f32 %v215, %v777
  %v779 = vpop.f32.mrb[0].mxu0
  %v780 = vpop.f32.mrb[0].mxu0
  %v781 = vadd.f32 %v215, %v780
  %v782 = vpop.f32.mrb[0].mxu0
  %783 = vmatprep.mubr.bf16.mxu0 0
  %784 = vmatmul.mubr.bf16.gmra.mrb[0].mxu0 %v515
  %v785 = vpop.f32.mrb[0].mxu0
  %v786 = vadd.f32 %v215, %v785
  %v787 = vpop.f32.mrb[0].mxu0
  %v788 = vpop.f32.mrb[0].mxu0
  %v789 = vadd.f32 %v215, %v788
  %v790 = vpop.f32.mrb[0].mxu0
  %791 = vmatprep.mubr.bf16.mxu0 0
  %792 = vmatmul.mubr.bf16.gmra.mrb[0].mxu0 %v518
  %v793 = vpop.f32.mrb[0].mxu0
  %v794 = vadd.f32 %v215, %v793
  %v795 = vpop.f32.mrb[0].mxu0
  %v796 = vpop.f32.mrb[0].mxu0
  %v797 = vadd.f32 %v215, %v796
  %v798 = vpop.f32.mrb[0].mxu0
  %799 = vmatprep.mubr.bf16.mxu0 0
  %800 = vmatmul.mubr.bf16.gmra.mrb[0].mxu0 %v521
  %v801 = vpop.f32.mrb[0].mxu0
  %v802 = vadd.f32 %v215, %v801
  %v803 = vpop.f32.mrb[0].mxu0
  %v804 = vpop.f32.mrb[0].mxu0
  %v805 = vadd.f32 %v215, %v804
  %v806 = vpop.f32.mrb[0].mxu0
  %807 = vmatprep.mubr.bf16.mxu0 0
  %808 = vmatmul.mubr.bf16.gmra.mrb[0].mxu0 %v524
  %v809 = vpop.f32.mrb[0].mxu0
  %v810 = vadd.f32 %v215, %v809
  %v811 = vpop.f32.mrb[0].mxu0
  %v812 = vpop.f32.mrb[0].mxu0
  %v813 = vadd.f32 %v215, %v812
  %v814 = vpop.f32.mrb[0].mxu0
  %815 = vmatprep.mubr.bf16.mxu0 0
  %816 = vmatmul.mubr.bf16.gmra.mrb[0].mxu0 %v527
  %v817 = vpop.f32.mrb[0].mxu0
  %v818 = vadd.f32 %v215, %v817
  %v819 = vpop.f32.mrb[0].mxu0
  %v820 = vpop.f32.mrb[0].mxu0
  %v821 = vadd.f32 %v215, %v820
  %v822 = vpop.f32.mrb[0].mxu0
  %823 = vmatprep.mubr.bf16.mxu0 0
  %824 = vmatmul.mubr.bf16.gmra.mrb[0].mxu0 %v530
  %v825 = vpop.f32.mrb[0].mxu0
  %v826 = vadd.f32 %v215, %v825
  %v827 = vpop.f32.mrb[0].mxu0
  %v828 = vpop.f32.mrb[0].mxu0
  %v829 = vadd.f32 %v215, %v828
  %v830 = vpop.f32.mrb[0].mxu0
  %831 = vmatprep.mubr.bf16.mxu0 0
  %832 = vmatmul.mubr.bf16.gmra.mrb[0].mxu0 %v533
  %v833 = vpop.f32.mrb[0].mxu0
  %v834 = vadd.f32 %v215, %v833
  %v835 = vpop.f32.mrb[0].mxu0
  %v836 = vpop.f32.mrb[0].mxu0
  %v837 = vadd.f32 %v215, %v836
  %v838 = vpop.f32.mrb[0].mxu0
  %839 = vmatprep.mubr.bf16.mxu0 0
  %840 = vmatmul.mubr.bf16.gmra.mrb[0].mxu0 %v536
  %v841 = vpop.f32.mrb[0].mxu0
  %v842 = vadd.f32 %v215, %v841
  %v843 = vpop.f32.mrb[0].mxu0
  %v844 = vpop.f32.mrb[0].mxu0
  %v845 = vadd.f32 %v215, %v844
  %v846 = vpop.f32.mrb[0].mxu0
  %847 = vmatprep.mubr.bf16.mxu0 0
  %848 = vmatmul.mubr.bf16.gmra.mrb[0].mxu0 %v539
  %v849 = vpop.f32.mrb[0].mxu0
  %v850 = vadd.f32 %v215, %v849
  %v851 = vpop.f32.mrb[0].mxu0
  %v852 = vpop.f32.mrb[0].mxu0
  %v853 = vadd.f32 %v215, %v852
  %v854 = vpop.f32.mrb[0].mxu0
  %855 = vmatprep.mubr.bf16.mxu0 0
  %856 = vmatmul.mubr.bf16.gmra.mrb[0].mxu0 %v542
  %v857 = vpop.f32.mrb[0].mxu0
  %v858 = vadd.f32 %v215, %v857
  %v859 = vpop.f32.mrb[0].mxu0
  %v860 = vpop.f32.mrb[0].mxu0
  %v861 = vadd.f32 %v215, %v860
  %v862 = vpop.f32.mrb[0].mxu0
  %863 = vmatprep.mubr.bf16.mxu0 0
  %864 = vmatmul.mubr.bf16.gmra.mrb[0].mxu0 %v545
  %v865 = vpop.f32.mrb[0].mxu0
  %v866 = vadd.f32 %v215, %v865
  %v867 = vpop.f32.mrb[0].mxu0
  %v868 = vpop.f32.mrb[0].mxu0
  %v869 = vadd.f32 %v215, %v868
  %v870 = vpop.f32.mrb[0].mxu0
  %871 = vmatprep.mubr.bf16.mxu0 0
  %872 = vmatmul.mubr.bf16.gmra.mrb[0].mxu0 %v548
  %v873 = vpop.f32.mrb[0].mxu0
  %v874 = vadd.f32 %v215, %v873
  %v875 = vpop.f32.mrb[0].mxu0
  %v876 = vpop.f32.mrb[0].mxu0
  %v877 = vadd.f32 %v215, %v876
  %v878 = vpop.f32.mrb[0].mxu0
  %879 = vmatprep.mubr.bf16.mxu0 0
  %880 = vmatmul.mubr.bf16.gmra.mrb[0].mxu0 %v551
  %v881 = vpop.f32.mrb[0].mxu0
  %v882 = vadd.f32 %v215, %v881
  %v883 = vpop.f32.mrb[0].mxu0
  %v884 = vpop.f32.mrb[0].mxu0
  %v885 = vadd.f32 %v215, %v884
  %v886 = vpop.f32.mrb[0].mxu0
  %887 = vmatprep.mubr.bf16.mxu0 0
  %888 = vmatmul.mubr.bf16.gmra.mrb[0].mxu0 %v554
  %v889 = vpop.f32.mrb[0].mxu0
  %v890 = vadd.f32 %v215, %v889
  %v891 = vpop.f32.mrb[0].mxu0
  %v892 = vpop.f32.mrb[0].mxu0
  %v893 = vadd.f32 %v215, %v892
  %v894 = vpop.f32.mrb[0].mxu0
  %895 = vmatprep.mubr.bf16.mxu0 0
  %896 = vmatmul.mubr.bf16.gmra.mrb[0].mxu0 %v557
  %v897 = vpop.f32.mrb[0].mxu0
  %v898 = vadd.f32 %v215, %v897
  %v899 = vpop.f32.mrb[0].mxu0
  %v900 = vpop.f32.mrb[0].mxu0
  %v901 = vadd.f32 %v215, %v900
  %v902 = vpop.f32.mrb[0].mxu0
  %903 = vmatprep.mubr.bf16.mxu0 0
  %904 = vmatmul.mubr.bf16.gmra.mrb[0].mxu0 %v560
  %v905 = vpop.f32.mrb[0].mxu0
  %v906 = vadd.f32 %v215, %v905
  %v907 = vpop.f32.mrb[0].mxu0
  %v908 = vpop.f32.mrb[0].mxu0
  %v909 = vadd.f32 %v215, %v908
  %v910 = vpop.f32.mrb[0].mxu0
  %911 = vmatprep.mubr.bf16.mxu0 0
  %912 = vmatmul.mubr.bf16.gmra.mrb[0].mxu0 %v563
  %v913 = vpop.f32.mrb[0].mxu0
  %v914 = vadd.f32 %v215, %v913
  %v915 = vpop.f32.mrb[0].mxu0
  %v916 = vpop.f32.mrb[0].mxu0
  %v917 = vadd.f32 %v215, %v916
  %v918 = vpop.f32.mrb[0].mxu0
  %919 = vmatprep.mubr.bf16.mxu0 0
  %920 = vmatmul.mubr.bf16.gmra.mrb[0].mxu0 %v566
  %v921 = vpop.f32.mrb[0].mxu0
  %v922 = vadd.f32 %v215, %v921
  %v923 = vpop.f32.mrb[0].mxu0
  %v924 = vpop.f32.mrb[0].mxu0
  %v925 = vadd.f32 %v215, %v924
  %v926 = vpop.f32.mrb[0].mxu0
  %927 = vmatprep.mubr.bf16.mxu0 0
  %928 = vmatmul.mubr.bf16.gmra.mrb[0].mxu0 %v569
  %v929 = vpop.f32.mrb[0].mxu0
  %v930 = vadd.f32 %v215, %v929
  %v931 = vpop.f32.mrb[0].mxu0
  %v932 = vpop.f32.mrb[0].mxu0
  %v933 = vpop.f32.mrb[0].mxu0
  %934 = vdwg.mxu0
  %1016 = vrot.lane.b32.xlu0 %v39, 13
  %v1017 = vpop.permute.xlu0 %1016
  %1018 = vrot.lane.b32.xlu0 %v40, 13
  %v1019 = vpop.permute.xlu0 %1018
  %1020 = vrot.lane.b32.xlu0 %v41, 13
  %v1021 = vpop.permute.xlu0 %1020
  %1022 = vrot.lane.b32.xlu0 %v42, 13
  %v1023 = vpop.permute.xlu0 %1022
  %1024 = vrot.lane.b32.xlu0 %v43, 13
  %v1025 = vpop.permute.xlu0 %1024
  %1026 = vrot.lane.b32.xlu0 %v44, 13
  %v1027 = vpop.permute.xlu0 %1026
  %1028 = vrot.lane.b32.xlu0 %v45, 13
  %v1029 = vpop.permute.xlu0 %1028
  %1030 = vrot.lane.b32.xlu0 %v46, 13
  %v1031 = vpop.permute.xlu0 %1030
  %1032 = vrot.lane.b32.xlu0 %v47, 13
  %v1033 = vpop.permute.xlu0 %1032
  %1034 = vrot.lane.b32.xlu0 %v48, 13
  %v1035 = vpop.permute.xlu0 %1034
  %1036 = vrot.lane.b32.xlu0 %v49, 13
  %v1037 = vpop.permute.xlu0 %1036
  %1038 = vrot.lane.b32.xlu0 %v50, 13
  %v1039 = vpop.permute.xlu0 %1038
  %1040 = vrot.lane.b32.xlu0 %v51, 13
  %v1041 = vpop.permute.xlu0 %1040
  %1042 = vrot.lane.b32.xlu0 %v52, 13
  %v1043 = vpop.permute.xlu0 %1042
  %1044 = vrot.lane.b32.xlu0 %v53, 13
  %v1045 = vpop.permute.xlu0 %1044
  %1046 = vrot.lane.b32.xlu0 %v54, 13
  %v1047 = vpop.permute.xlu0 %1046
  %1048 = vrot.lane.b32.xlu0 %v55, 13
  %v1049 = vpop.permute.xlu0 %1048
  %1050 = vrot.lane.b32.xlu0 %v56, 13
  %v1051 = vpop.permute.xlu0 %1050
  %1052 = vrot.lane.b32.xlu0 %v57, 13
  %v1053 = vpop.permute.xlu0 %1052
  %1054 = vrot.lane.b32.xlu0 %v58, 13
  %v1055 = vpop.permute.xlu0 %1054
  %1056 = vrot.lane.b32.xlu0 %v59, 13
  %v1057 = vpop.permute.xlu0 %1056
  %1058 = vrot.lane.b32.xlu0 %v60, 13
  %v1059 = vpop.permute.xlu0 %1058
  %1060 = vrot.lane.b32.xlu0 %v61, 13
  %v1061 = vpop.permute.xlu0 %1060
  %1062 = vrot.lane.b32.xlu0 %v62, 13
  %v1063 = vpop.permute.xlu0 %1062
  %1064 = vrot.lane.b32.xlu0 %v63, 13
  %v1065 = vpop.permute.xlu0 %1064
  %1066 = vrot.lane.b32.xlu0 %v64, 13
  %v1067 = vpop.permute.xlu0 %1066
  %1068 = vrot.lane.b32.xlu0 %v65, 13
  %v1069 = vpop.permute.xlu0 %1068
  %1070 = vrot.lane.b32.xlu0 %v66, 13
  %v1071 = vpop.permute.xlu0 %1070
  %1072 = vrot.lane.b32.xlu0 %v67, 13
  %v1073 = vpop.permute.xlu0 %1072
  %1074 = vrot.lane.b32.xlu0 %v68, 13
  %v1075 = vpop.permute.xlu0 %1074
  %1076 = vrot.lane.b32.xlu0 %v69, 13
  %v1077 = vpop.permute.xlu0 %1076
  %1078 = vrot.lane.b32.xlu0 %v70, 13
  %v1079 = vpop.permute.xlu0 %1078
  %1080 = vrot.lane.b32.xlu0 %v71, 13
  %v1081 = vpop.permute.xlu0 %1080
  %1082 = vrot.lane.b32.xlu0 %v72, 13
  %v1083 = vpop.permute.xlu0 %1082
  %1084 = vrot.lane.b32.xlu0 %v73, 13
  %v1085 = vpop.permute.xlu0 %1084
  %1086 = vrot.lane.b32.xlu0 %v74, 13
  %v1087 = vpop.permute.xlu0 %1086
  %1088 = vrot.lane.b32.xlu0 %v75, 13
  %v1089 = vpop.permute.xlu0 %1088
  %1090 = vrot.lane.b32.xlu0 %v76, 13
  %v1091 = vpop.permute.xlu0 %1090
  %1092 = vrot.lane.b32.xlu0 %v77, 13
  %v1093 = vpop.permute.xlu0 %1092
  %1094 = vrot.lane.b32.xlu0 %v78, 13
  %v1095 = vpop.permute.xlu0 %1094
  %1096 = vrot.lane.b32.xlu0 %v79, 13
  %v1097 = vpop.permute.xlu0 %1096
  %1098 = vrot.lane.b32.xlu0 %v80, 13
  %v1099 = vpop.permute.xlu0 %1098
  %1100 = vrot.lane.b32.xlu0 %v81, 13
  %v1101 = vpop.permute.xlu0 %1100
  %1102 = vrot.lane.b32.xlu0 %v82, 13
  %v1103 = vpop.permute.xlu0 %1102
  %1104 = vrot.lane.b32.xlu0 %v83, 13
  %v1105 = vpop.permute.xlu0 %1104
  %1106 = vrot.lane.b32.xlu0 %v84, 13
  %v1107 = vpop.permute.xlu0 %1106
  %1108 = vrot.lane.b32.xlu0 %v85, 13
  %v1109 = vpop.permute.xlu0 %1108
  %1110 = vrot.lane.b32.xlu0 %v86, 13
  %v1111 = vpop.permute.xlu0 %1110
  %1112 = vrot.lane.b32.xlu0 %v87, 13
  %v1113 = vpop.permute.xlu0 %1112
  %1114 = vrot.lane.b32.xlu0 %v88, 13
  %v1115 = vpop.permute.xlu0 %1114
  %1116 = vrot.lane.b32.xlu0 %v89, 13
  %v1117 = vpop.permute.xlu0 %1116
  %1118 = vrot.lane.b32.xlu0 %v90, 13
  %v1119 = vpop.permute.xlu0 %1118
  %1120 = vrot.lane.b32.xlu0 %v91, 13
  %v1121 = vpop.permute.xlu0 %1120
  %1122 = vrot.lane.b32.xlu0 %v92, 13
  %v1123 = vpop.permute.xlu0 %1122
  %1124 = vrot.lane.b32.xlu0 %v93, 13
  %v1125 = vpop.permute.xlu0 %1124
  %1126 = vrot.lane.b32.xlu0 %v94, 13
  %v1127 = vpop.permute.xlu0 %1126
  %1128 = vrot.lane.b32.xlu0 %v95, 13
  %v1129 = vpop.permute.xlu0 %1128
  %1130 = vrot.lane.b32.xlu0 %v96, 13
  %v1131 = vpop.permute.xlu0 %1130
  %1132 = vrot.lane.b32.xlu0 %v97, 13
  %v1133 = vpop.permute.xlu0 %1132
  %1134 = vrot.lane.b32.xlu0 %v98, 13
  %v1135 = vpop.permute.xlu0 %1134
  %1136 = vrot.lane.b32.xlu0 %v99, 13
  %v1137 = vpop.permute.xlu0 %1136
  %1138 = vrot.lane.b32.xlu0 %v100, 13
  %v1139 = vpop.permute.xlu0 %1138
  %1140 = vrot.lane.b32.xlu0 %v101, 13
  %v1141 = vpop.permute.xlu0 %1140
  %1142 = vrot.lane.b32.xlu0 %v102, 13
  %v1143 = vpop.permute.xlu0 %1142
  %1144 = vrot.lane.b32.xlu0 %v103, 13
  %v1145 = vpop.permute.xlu0 %1144
  %1146 = vrot.lane.b32.xlu0 %v104, 13
  %v1147 = vpop.permute.xlu0 %1146
  %1148 = vrot.lane.b32.xlu0 %v105, 13
  %v1149 = vpop.permute.xlu0 %1148
  %1150 = vrot.lane.b32.xlu0 %v106, 13
  %v1151 = vpop.permute.xlu0 %1150
  %1152 = vrot.lane.b32.xlu0 %v107, 13
  %v1153 = vpop.permute.xlu0 %1152
  %1154 = vrot.lane.b32.xlu0 %v108, 13
  %v1155 = vpop.permute.xlu0 %1154
  %1156 = vrot.lane.b32.xlu0 %v109, 13
  %v1157 = vpop.permute.xlu0 %1156
  %1158 = vrot.lane.b32.xlu0 %v110, 13
  %v1159 = vpop.permute.xlu0 %1158
  %1160 = vrot.lane.b32.xlu0 %v111, 13
  %v1161 = vpop.permute.xlu0 %1160
  %1162 = vrot.lane.b32.xlu0 %v112, 13
  %v1163 = vpop.permute.xlu0 %1162
  %1164 = vrot.lane.b32.xlu0 %v113, 13
  %v1165 = vpop.permute.xlu0 %1164
  %1166 = vrot.lane.b32.xlu0 %v114, 13
  %v1167 = vpop.permute.xlu0 %1166
  %1168 = vrot.lane.b32.xlu0 %v115, 13
  %v1169 = vpop.permute.xlu0 %1168
  %1170 = vrot.lane.b32.xlu0 %v116, 13
  %v1171 = vpop.permute.xlu0 %1170
  %1172 = vrot.lane.b32.xlu0 %v117, 13
  %v1173 = vpop.permute.xlu0 %1172
  %1174 = vrot.lane.b32.xlu0 %v118, 13
  %v1175 = vpop.permute.xlu0 %1174
  %1176 = vrot.lane.b32.xlu0 %v119, 13
  %v1177 = vpop.permute.xlu0 %1176
  %v1259 = vmul.f32 %v610, %v1017
  %v1260 = vmul.f32 %v613, %v1019
  %v1261 = vmul.f32 %v618, %v1021
  %v1262 = vmul.f32 %v621, %v1023
  %v1263 = vmul.f32 %v626, %v1025
  %v1264 = vmul.f32 %v629, %v1027
  %v1265 = vmul.f32 %v634, %v1029
  %v1266 = vmul.f32 %v637, %v1031
  %v1267 = vmul.f32 %v642, %v1033
  %v1268 = vmul.f32 %v645, %v1035
  %v1269 = vmul.f32 %v650, %v1037
  %v1270 = vmul.f32 %v653, %v1039
  %v1271 = vmul.f32 %v658, %v1041
  %v1272 = vmul.f32 %v661, %v1043
  %v1273 = vmul.f32 %v666, %v1045
  %v1274 = vmul.f32 %v669, %v1047
  %v1275 = vmul.f32 %v674, %v1049
  %v1276 = vmul.f32 %v677, %v1051
  %v1277 = vmul.f32 %v682, %v1053
  %v1278 = vmul.f32 %v685, %v1055
  %v1279 = vmul.f32 %v690, %v1057
  %v1280 = vmul.f32 %v693, %v1059
  %v1281 = vmul.f32 %v698, %v1061
  %v1282 = vmul.f32 %v701, %v1063
  %v1283 = vmul.f32 %v706, %v1065
  %v1284 = vmul.f32 %v709, %v1067
  %v1285 = vmul.f32 %v714, %v1069
  %v1286 = vmul.f32 %v717, %v1071
  %v1287 = vmul.f32 %v722, %v1073
  %v1288 = vmul.f32 %v725, %v1075
  %v1289 = vmul.f32 %v730, %v1077
  %v1290 = vmul.f32 %v733, %v1079
  %v1291 = vmul.f32 %v738, %v1081
  %v1292 = vmul.f32 %v741, %v1083
  %v1293 = vmul.f32 %v746, %v1085
  %v1294 = vmul.f32 %v749, %v1087
  %v1295 = vmul.f32 %v754, %v1089
  %v1296 = vmul.f32 %v757, %v1091
  %v1297 = vmul.f32 %v762, %v1093
  %v1298 = vmul.f32 %v765, %v1095
  %v1299 = vmul.f32 %v770, %v1097
  %v1300 = vmul.f32 %v773, %v1099
  %v1301 = vmul.f32 %v778, %v1101
  %v1302 = vmul.f32 %v781, %v1103
  %v1303 = vmul.f32 %v786, %v1105
  %v1304 = vmul.f32 %v789, %v1107
  %v1305 = vmul.f32 %v794, %v1109
  %v1306 = vmul.f32 %v797, %v1111
  %v1307 = vmul.f32 %v802, %v1113
  %v1308 = vmul.f32 %v805, %v1115
  %v1309 = vmul.f32 %v810, %v1117
  %v1310 = vmul.f32 %v813, %v1119
  %v1311 = vmul.f32 %v818, %v1121
  %v1312 = vmul.f32 %v821, %v1123
  %v1313 = vmul.f32 %v826, %v1125
  %v1314 = vmul.f32 %v829, %v1127
  %v1315 = vmul.f32 %v834, %v1129
  %v1316 = vmul.f32 %v837, %v1131
  %v1317 = vmul.f32 %v842, %v1133
  %v1318 = vmul.f32 %v845, %v1135
  %v1319 = vmul.f32 %v850, %v1137
  %v1320 = vmul.f32 %v853, %v1139
  %v1321 = vmul.f32 %v858, %v1141
  %v1322 = vmul.f32 %v861, %v1143
  %v1323 = vmul.f32 %v866, %v1145
  %v1324 = vmul.f32 %v869, %v1147
  %v1325 = vmul.f32 %v874, %v1149
  %v1326 = vmul.f32 %v877, %v1151
  %v1327 = vmul.f32 %v882, %v1153
  %v1328 = vmul.f32 %v885, %v1155
  %v1329 = vmul.f32 %v890, %v1157
  %v1330 = vmul.f32 %v893, %v1159
  %v1331 = vmul.f32 %v898, %v1161
  %v1332 = vmul.f32 %v901, %v1163
  %v1333 = vmul.f32 %v906, %v1165
  %v1334 = vmul.f32 %v909, %v1167
  %v1335 = vmul.f32 %v914, %v1169
  %v1336 = vmul.f32 %v917, %v1171
  %v1337 = vmul.f32 %v922, %v1173
  %v1338 = vmul.f32 %v925, %v1175
  %v1339 = vmul.f32 %v930, %v1177
  %v1340 = vand.u32 2147483647, %v1259
  %v1341 = vand.u32 2147483647, %v1260
  %v1342 = vand.u32 2147483647, %v1261
  %v1343 = vand.u32 2147483647, %v1262
  %v1344 = vand.u32 2147483647, %v1263
  %v1345 = vand.u32 2147483647, %v1264
  %v1346 = vand.u32 2147483647, %v1265
  %v1347 = vand.u32 2147483647, %v1266
  %v1348 = vand.u32 2147483647, %v1267
  %v1349 = vand.u32 2147483647, %v1268
  %v1350 = vand.u32 2147483647, %v1269
  %v1351 = vand.u32 2147483647, %v1270
  %v1352 = vand.u32 2147483647, %v1271
  %v1353 = vand.u32 2147483647, %v1272
  %v1354 = vand.u32 2147483647, %v1273
  %v1355 = vand.u32 2147483647, %v1274
  %v1356 = vand.u32 2147483647, %v1275
  %v1357 = vand.u32 2147483647, %v1276
  %v1358 = vand.u32 2147483647, %v1277
  %v1359 = vand.u32 2147483647, %v1278
  %v1360 = vand.u32 2147483647, %v1279
  %v1361 = vand.u32 2147483647, %v1280
  %v1362 = vand.u32 2147483647, %v1281
  %v1363 = vand.u32 2147483647, %v1282
  %v1364 = vand.u32 2147483647, %v1283
  %v1365 = vand.u32 2147483647, %v1284
  %v1366 = vand.u32 2147483647, %v1285
  %v1367 = vand.u32 2147483647, %v1286
  %v1368 = vand.u32 2147483647, %v1287
  %v1369 = vand.u32 2147483647, %v1288
  %v1370 = vand.u32 2147483647, %v1289
  %v1371 = vand.u32 2147483647, %v1290
  %v1372 = vand.u32 2147483647, %v1291
  %v1373 = vand.u32 2147483647, %v1292
  %v1374 = vand.u32 2147483647, %v1293
  %v1375 = vand.u32 2147483647, %v1294
  %v1376 = vand.u32 2147483647, %v1295
  %v1377 = vand.u32 2147483647, %v1296
  %v1378 = vand.u32 2147483647, %v1297
  %v1379 = vand.u32 2147483647, %v1298
  %v1380 = vand.u32 2147483647, %v1299
  %v1381 = vand.u32 2147483647, %v1300
  %v1382 = vand.u32 2147483647, %v1301
  %v1383 = vand.u32 2147483647, %v1302
  %v1384 = vand.u32 2147483647, %v1303
  %v1385 = vand.u32 2147483647, %v1304
  %v1386 = vand.u32 2147483647, %v1305
  %v1387 = vand.u32 2147483647, %v1306
  %v1388 = vand.u32 2147483647, %v1307
  %v1389 = vand.u32 2147483647, %v1308
  %v1390 = vand.u32 2147483647, %v1309
  %v1391 = vand.u32 2147483647, %v1310
  %v1392 = vand.u32 2147483647, %v1311
  %v1393 = vand.u32 2147483647, %v1312
  %v1394 = vand.u32 2147483647, %v1313
  %v1395 = vand.u32 2147483647, %v1314
  %v1396 = vand.u32 2147483647, %v1315
  %v1397 = vand.u32 2147483647, %v1316
  %v1398 = vand.u32 2147483647, %v1317
  %v1399 = vand.u32 2147483647, %v1318
  %v1400 = vand.u32 2147483647, %v1319
  %v1401 = vand.u32 2147483647, %v1320
  %v1402 = vand.u32 2147483647, %v1321
  %v1403 = vand.u32 2147483647, %v1322
  %v1404 = vand.u32 2147483647, %v1323
  %v1405 = vand.u32 2147483647, %v1324
  %v1406 = vand.u32 2147483647, %v1325
  %v1407 = vand.u32 2147483647, %v1326
  %v1408 = vand.u32 2147483647, %v1327
  %v1409 = vand.u32 2147483647, %v1328
  %v1410 = vand.u32 2147483647, %v1329
  %v1411 = vand.u32 2147483647, %v1330
  %v1412 = vand.u32 2147483647, %v1331
  %v1413 = vand.u32 2147483647, %v1332
  %v1414 = vand.u32 2147483647, %v1333
  %v1415 = vand.u32 2147483647, %v1334
  %v1416 = vand.u32 2147483647, %v1335
  %v1417 = vand.u32 2147483647, %v1336
  %v1418 = vand.u32 2147483647, %v1337
  %v1419 = vand.u32 2147483647, %v1338
  %v1420 = vand.u32 2147483647, %v1339
  %vm1421 = vcmask 113768
  %v1422 = vsel %vm1421, %v1340, -inf
  %v1423 = vsel %vm1421, %v1341, -inf
  %v1424 = vsel %vm1421, %v1342, -inf
  %v1425 = vsel %vm1421, %v1343, -inf
  %v1426 = vsel %vm1421, %v1344, -inf
  %v1427 = vmax.f32 %v1422, %v1426
  %v1428 = vsel %vm1421, %v1345, -inf
  %v1429 = vmax.f32 %v1423, %v1428
  %v1430 = vsel %vm1421, %v1346, -inf
  %v1431 = vmax.f32 %v1424, %v1430
  %v1432 = vsel %vm1421, %v1347, -inf
  %v1433 = vmax.f32 %v1425, %v1432
  %v1434 = vsel %vm1421, %v1348, -inf
  %v1435 = vmax.f32 %v1427, %v1434
  %v1436 = vsel %vm1421, %v1349, -inf
  %v1437 = vmax.f32 %v1429, %v1436
  %v1438 = vsel %vm1421, %v1350, -inf
  %v1439 = vmax.f32 %v1431, %v1438
  %v1440 = vsel %vm1421, %v1351, -inf
  %v1441 = vmax.f32 %v1433, %v1440
  %v1442 = vsel %vm1421, %v1352, -inf
  %v1443 = vmax.f32 %v1435, %v1442
  %v1444 = vsel %vm1421, %v1353, -inf
  %v1445 = vmax.f32 %v1437, %v1444
  %v1446 = vsel %vm1421, %v1354, -inf
  %v1447 = vmax.f32 %v1439, %v1446
  %v1448 = vsel %vm1421, %v1355, -inf
  %v1449 = vmax.f32 %v1441, %v1448
  %v1450 = vsel %vm1421, %v1356, -inf
  %v1451 = vmax.f32 %v1443, %v1450
  %v1452 = vsel %vm1421, %v1357, -inf
  %v1453 = vmax.f32 %v1445, %v1452
  %v1454 = vsel %vm1421, %v1358, -inf
  %v1455 = vmax.f32 %v1447, %v1454
  %v1456 = vsel %vm1421, %v1359, -inf
  %v1457 = vmax.f32 %v1449, %v1456
  %v1458 = vsel %vm1421, %v1360, -inf
  %v1459 = vmax.f32 %v1451, %v1458
  %v1460 = vsel %vm1421, %v1361, -inf
  %v1461 = vmax.f32 %v1453, %v1460
  %v1462 = vsel %vm1421, %v1362, -inf
  %v1463 = vmax.f32 %v1455, %v1462
  %v1464 = vsel %vm1421, %v1363, -inf
  %v1465 = vmax.f32 %v1457, %v1464
  %v1466 = vsel %vm1421, %v1364, -inf
  %v1467 = vmax.f32 %v1459, %v1466
  %v1468 = vsel %vm1421, %v1365, -inf
  %v1469 = vmax.f32 %v1461, %v1468
  %v1470 = vsel %vm1421, %v1366, -inf
  %v1471 = vmax.f32 %v1463, %v1470
  %v1472 = vsel %vm1421, %v1367, -inf
  %v1473 = vmax.f32 %v1465, %v1472
  %v1474 = vsel %vm1421, %v1368, -inf
  %v1475 = vmax.f32 %v1467, %v1474
  %v1476 = vsel %vm1421, %v1369, -inf
  %v1477 = vmax.f32 %v1469, %v1476
  %v1478 = vsel %vm1421, %v1370, -inf
  %v1479 = vmax.f32 %v1471, %v1478
  %v1480 = vsel %vm1421, %v1371, -inf
  %v1481 = vmax.f32 %v1473, %v1480
  %v1482 = vsel %vm1421, %v1372, -inf
  %v1483 = vmax.f32 %v1475, %v1482
  %v1484 = vsel %vm1421, %v1373, -inf
  %v1485 = vmax.f32 %v1477, %v1484
  %v1486 = vsel %vm1421, %v1374, -inf
  %v1487 = vmax.f32 %v1479, %v1486
  %v1488 = vsel %vm1421, %v1375, -inf
  %v1489 = vmax.f32 %v1481, %v1488
  %v1490 = vsel %vm1421, %v1376, -inf
  %v1491 = vmax.f32 %v1483, %v1490
  %v1492 = vsel %vm1421, %v1377, -inf
  %v1493 = vmax.f32 %v1485, %v1492
  %v1494 = vsel %vm1421, %v1378, -inf
  %v1495 = vmax.f32 %v1487, %v1494
  %v1496 = vsel %vm1421, %v1379, -inf
  %v1497 = vmax.f32 %v1489, %v1496
  %v1498 = vsel %vm1421, %v1380, -inf
  %v1499 = vmax.f32 %v1491, %v1498
  %v1500 = vsel %vm1421, %v1381, -inf
  %v1501 = vmax.f32 %v1493, %v1500
  %v1502 = vsel %vm1421, %v1382, -inf
  %v1503 = vmax.f32 %v1495, %v1502
  %v1504 = vsel %vm1421, %v1383, -inf
  %v1505 = vmax.f32 %v1497, %v1504
  %v1506 = vsel %vm1421, %v1384, -inf
  %v1507 = vmax.f32 %v1499, %v1506
  %v1508 = vsel %vm1421, %v1385, -inf
  %v1509 = vmax.f32 %v1501, %v1508
  %v1510 = vsel %vm1421, %v1386, -inf
  %v1511 = vmax.f32 %v1503, %v1510
  %v1512 = vsel %vm1421, %v1387, -inf
  %v1513 = vmax.f32 %v1505, %v1512
  %v1514 = vsel %vm1421, %v1388, -inf
  %v1515 = vmax.f32 %v1507, %v1514
  %v1516 = vsel %vm1421, %v1389, -inf
  %v1517 = vmax.f32 %v1509, %v1516
  %v1518 = vsel %vm1421, %v1390, -inf
  %v1519 = vmax.f32 %v1511, %v1518
  %v1520 = vsel %vm1421, %v1391, -inf
  %v1521 = vmax.f32 %v1513, %v1520
  %v1522 = vsel %vm1421, %v1392, -inf
  %v1523 = vmax.f32 %v1515, %v1522
  %v1524 = vsel %vm1421, %v1393, -inf
  %v1525 = vmax.f32 %v1517, %v1524
  %v1526 = vsel %vm1421, %v1394, -inf
  %v1527 = vmax.f32 %v1519, %v1526
  %v1528 = vsel %vm1421, %v1395, -inf
  %v1529 = vmax.f32 %v1521, %v1528
  %v1530 = vsel %vm1421, %v1396, -inf
  %v1531 = vmax.f32 %v1523, %v1530
  %v1532 = vsel %vm1421, %v1397, -inf
  %v1533 = vmax.f32 %v1525, %v1532
  %v1534 = vsel %vm1421, %v1398, -inf
  %v1535 = vmax.f32 %v1527, %v1534
  %v1536 = vsel %vm1421, %v1399, -inf
  %v1537 = vmax.f32 %v1529, %v1536
  %v1538 = vsel %vm1421, %v1400, -inf
  %v1539 = vmax.f32 %v1531, %v1538
  %v1540 = vsel %vm1421, %v1401, -inf
  %v1541 = vmax.f32 %v1533, %v1540
  %v1542 = vsel %vm1421, %v1402, -inf
  %v1543 = vmax.f32 %v1535, %v1542
  %v1544 = vsel %vm1421, %v1403, -inf
  %v1545 = vmax.f32 %v1537, %v1544
  %v1546 = vsel %vm1421, %v1404, -inf
  %v1547 = vmax.f32 %v1539, %v1546
  %v1548 = vsel %vm1421, %v1405, -inf
  %v1549 = vmax.f32 %v1541, %v1548
  %v1550 = vsel %vm1421, %v1406, -inf
  %v1551 = vmax.f32 %v1543, %v1550
  %v1552 = vsel %vm1421, %v1407, -inf
  %v1553 = vmax.f32 %v1545, %v1552
  %v1554 = vsel %vm1421, %v1408, -inf
  %v1555 = vmax.f32 %v1547, %v1554
  %v1556 = vsel %vm1421, %v1409, -inf
  %v1557 = vmax.f32 %v1549, %v1556
  %v1558 = vsel %vm1421, %v1410, -inf
  %v1559 = vmax.f32 %v1551, %v1558
  %v1560 = vsel %vm1421, %v1411, -inf
  %v1561 = vmax.f32 %v1553, %v1560
  %v1562 = vsel %vm1421, %v1412, -inf
  %v1563 = vmax.f32 %v1555, %v1562
  %v1564 = vsel %vm1421, %v1413, -inf
  %v1565 = vmax.f32 %v1557, %v1564
  %v1566 = vsel %vm1421, %v1414, -inf
  %v1567 = vmax.f32 %v1559, %v1566
  %v1568 = vsel %vm1421, %v1415, -inf
  %v1569 = vmax.f32 %v1561, %v1568
  %v1570 = vsel %vm1421, %v1416, -inf
  %v1571 = vmax.f32 %v1563, %v1570
  %v1572 = vsel %vm1421, %v1417, -inf
  %v1573 = vmax.f32 %v1565, %v1572
  %v1574 = vsel %vm1421, %v1418, -inf
  %v1575 = vmax.f32 %v1567, %v1574
  %v1576 = vsel %vm1421, %v1419, -inf
  %v1577 = vmax.f32 %v1569, %v1576
  %v1578 = vsel %vm1421, %v1420, -inf
  %v1579 = vmax.f32 %v1571, %v1578
  %v1580 = vmax.f32 %v1579, %v1573
  %v1581 = vmax.f32 %v1575, %v1577
  %v1582 = vmax.f32 %v1580, %v1581
  %1583 = vmax.xlane.f32.xlu0 %v1582
  %v1584 = vpop.xlane.xlu0 %1583
  %v1585 = vrot.slane %v1584, 4
  %v1586 = vmax.f32 %v1584, %v1585
  %v1587 = vrot.slane %v1586, 2
  %v1588 = vmax.f32 %v1586, %v1587
  %v1589 = vrot.slane %v1588, 1
  %v1590 = vmax.f32 %v1588, %v1589
  %s1591 = vtos %v1590
  %v1592 = vstv %s1591
  %v1593 = vmax.f32 %v610, 0.0
  %v1594 = vmax.f32 %v613, 0.0
  %v1595 = vmax.f32 %v618, 0.0
  %v1596 = vmax.f32 %v621, 0.0
  %v1597 = vmax.f32 %v626, 0.0
  %v1598 = vmax.f32 %v629, 0.0
  %v1599 = vmax.f32 %v634, 0.0
  %v1600 = vmax.f32 %v637, 0.0
  %v1601 = vmax.f32 %v642, 0.0
  %v1602 = vmax.f32 %v645, 0.0
  %v1603 = vmax.f32 %v650, 0.0
  %v1604 = vmax.f32 %v653, 0.0
  %v1605 = vmax.f32 %v658, 0.0
  %v1606 = vmax.f32 %v661, 0.0
  %v1607 = vmax.f32 %v666, 0.0
  %v1608 = vmax.f32 %v669, 0.0
  %v1609 = vmax.f32 %v674, 0.0
  %v1610 = vmax.f32 %v677, 0.0
  %v1611 = vmax.f32 %v682, 0.0
  %v1612 = vmax.f32 %v685, 0.0
  %v1613 = vmax.f32 %v690, 0.0
  %v1614 = vmax.f32 %v693, 0.0
  %v1615 = vmax.f32 %v698, 0.0
  %v1616 = vmax.f32 %v701, 0.0
  %v1617 = vmax.f32 %v706, 0.0
  %v1618 = vmax.f32 %v709, 0.0
  %v1619 = vmax.f32 %v714, 0.0
  %v1620 = vmax.f32 %v717, 0.0
  %v1621 = vmax.f32 %v722, 0.0
  %v1622 = vmax.f32 %v725, 0.0
  %v1623 = vmax.f32 %v730, 0.0
  %v1624 = vmax.f32 %v733, 0.0
  %v1625 = vmax.f32 %v738, 0.0
  %v1626 = vmax.f32 %v741, 0.0
  %v1627 = vmax.f32 %v746, 0.0
  %v1628 = vmax.f32 %v749, 0.0
  %v1629 = vmax.f32 %v754, 0.0
  %v1630 = vmax.f32 %v757, 0.0
  %v1631 = vmax.f32 %v762, 0.0
  %v1632 = vmax.f32 %v765, 0.0
  %v1633 = vmax.f32 %v770, 0.0
  %v1634 = vmax.f32 %v773, 0.0
  %v1635 = vmax.f32 %v778, 0.0
  %v1636 = vmax.f32 %v781, 0.0
  %v1637 = vmax.f32 %v786, 0.0
  %v1638 = vmax.f32 %v789, 0.0
  %v1639 = vmax.f32 %v794, 0.0
  %v1640 = vmax.f32 %v797, 0.0
  %v1641 = vmax.f32 %v802, 0.0
  %v1642 = vmax.f32 %v805, 0.0
  %v1643 = vmax.f32 %v810, 0.0
  %v1644 = vmax.f32 %v813, 0.0
  %v1645 = vmax.f32 %v818, 0.0
  %v1646 = vmax.f32 %v821, 0.0
  %v1647 = vmax.f32 %v826, 0.0
  %v1648 = vmax.f32 %v829, 0.0
  %v1649 = vmax.f32 %v834, 0.0
  %v1650 = vmax.f32 %v837, 0.0
  %v1651 = vmax.f32 %v842, 0.0
  %v1652 = vmax.f32 %v845, 0.0
  %v1653 = vmax.f32 %v850, 0.0
  %v1654 = vmax.f32 %v853, 0.0
  %v1655 = vmax.f32 %v858, 0.0
  %v1656 = vmax.f32 %v861, 0.0
  %v1657 = vmax.f32 %v866, 0.0
  %v1658 = vmax.f32 %v869, 0.0
  %v1659 = vmax.f32 %v874, 0.0
  %v1660 = vmax.f32 %v877, 0.0
  %v1661 = vmax.f32 %v882, 0.0
  %v1662 = vmax.f32 %v885, 0.0
  %v1663 = vmax.f32 %v890, 0.0
  %v1664 = vmax.f32 %v893, 0.0
  %v1665 = vmax.f32 %v898, 0.0
  %v1666 = vmax.f32 %v901, 0.0
  %v1667 = vmax.f32 %v906, 0.0
  %v1668 = vmax.f32 %v909, 0.0
  %v1669 = vmax.f32 %v914, 0.0
  %v1670 = vmax.f32 %v917, 0.0
  %v1671 = vmax.f32 %v922, 0.0
  %v1672 = vmax.f32 %v925, 0.0
  %v1673 = vmax.f32 %v930, 0.0
  %1674 = vset.pattern.permute.xlu0 0
  %1675 = vperm.xlu0 %1674, %v39
  %v1676 = vpop.permute.xlu0 %1675
  %1678 = vset.pattern.permute.xlu0 0
  %1679 = vperm.xlu0 %1678, %v40
  %v1680 = vpop.permute.xlu0 %1679
  %1682 = vset.pattern.permute.xlu0 0
  %1683 = vperm.xlu0 %1682, %v41
  %v1684 = vpop.permute.xlu0 %1683
  %1686 = vset.pattern.permute.xlu0 0
  %1687 = vperm.xlu0 %1686, %v42
  %v1688 = vpop.permute.xlu0 %1687
  %1690 = vset.pattern.permute.xlu0 0
  %1691 = vperm.xlu0 %1690, %v43
  %v1692 = vpop.permute.xlu0 %1691
  %1694 = vset.pattern.permute.xlu0 0
  %1695 = vperm.xlu0 %1694, %v44
  %v1696 = vpop.permute.xlu0 %1695
  %1698 = vset.pattern.permute.xlu0 0
  %1699 = vperm.xlu0 %1698, %v45
  %v1700 = vpop.permute.xlu0 %1699
  %1702 = vset.pattern.permute.xlu0 0
  %1703 = vperm.xlu0 %1702, %v46
  %v1704 = vpop.permute.xlu0 %1703
  %1706 = vset.pattern.permute.xlu0 0
  %1707 = vperm.xlu0 %1706, %v47
  %v1708 = vpop.permute.xlu0 %1707
  %1710 = vset.pattern.permute.xlu0 0
  %1711 = vperm.xlu0 %1710, %v48
  %v1712 = vpop.permute.xlu0 %1711
  %1714 = vset.pattern.permute.xlu0 0
  %1715 = vperm.xlu0 %1714, %v49
  %v1716 = vpop.permute.xlu0 %1715
  %1718 = vset.pattern.permute.xlu0 0
  %1719 = vperm.xlu0 %1718, %v50
  %v1720 = vpop.permute.xlu0 %1719
  %1722 = vset.pattern.permute.xlu0 0
  %1723 = vperm.xlu0 %1722, %v51
  %v1724 = vpop.permute.xlu0 %1723
  %1726 = vset.pattern.permute.xlu0 0
  %1727 = vperm.xlu0 %1726, %v52
  %v1728 = vpop.permute.xlu0 %1727
  %1730 = vset.pattern.permute.xlu0 0
  %1731 = vperm.xlu0 %1730, %v53
  %v1732 = vpop.permute.xlu0 %1731
  %1734 = vset.pattern.permute.xlu0 0
  %1735 = vperm.xlu0 %1734, %v54
  %v1736 = vpop.permute.xlu0 %1735
  %1738 = vset.pattern.permute.xlu0 0
  %1739 = vperm.xlu0 %1738, %v55
  %v1740 = vpop.permute.xlu0 %1739
  %1742 = vset.pattern.permute.xlu0 0
  %1743 = vperm.xlu0 %1742, %v56
  %v1744 = vpop.permute.xlu0 %1743
  %1746 = vset.pattern.permute.xlu0 0
  %1747 = vperm.xlu0 %1746, %v57
  %v1748 = vpop.permute.xlu0 %1747
  %1750 = vset.pattern.permute.xlu0 0
  %1751 = vperm.xlu0 %1750, %v58
  %v1752 = vpop.permute.xlu0 %1751
  %1754 = vset.pattern.permute.xlu0 0
  %1755 = vperm.xlu0 %1754, %v59
  %v1756 = vpop.permute.xlu0 %1755
  %1758 = vset.pattern.permute.xlu0 0
  %1759 = vperm.xlu0 %1758, %v60
  %v1760 = vpop.permute.xlu0 %1759
  %1762 = vset.pattern.permute.xlu0 0
  %1763 = vperm.xlu0 %1762, %v61
  %v1764 = vpop.permute.xlu0 %1763
  %1766 = vset.pattern.permute.xlu0 0
  %1767 = vperm.xlu0 %1766, %v62
  %v1768 = vpop.permute.xlu0 %1767
  %1770 = vset.pattern.permute.xlu0 0
  %1771 = vperm.xlu0 %1770, %v63
  %v1772 = vpop.permute.xlu0 %1771
  %1774 = vset.pattern.permute.xlu0 0
  %1775 = vperm.xlu0 %1774, %v64
  %v1776 = vpop.permute.xlu0 %1775
  %1778 = vset.pattern.permute.xlu0 0
  %1779 = vperm.xlu0 %1778, %v65
  %v1780 = vpop.permute.xlu0 %1779
  %1782 = vset.pattern.permute.xlu0 0
  %1783 = vperm.xlu0 %1782, %v66
  %v1784 = vpop.permute.xlu0 %1783
  %1786 = vset.pattern.permute.xlu0 0
  %1787 = vperm.xlu0 %1786, %v67
  %v1788 = vpop.permute.xlu0 %1787
  %1790 = vset.pattern.permute.xlu0 0
  %1791 = vperm.xlu0 %1790, %v68
  %v1792 = vpop.permute.xlu0 %1791
  %1794 = vset.pattern.permute.xlu0 0
  %1795 = vperm.xlu0 %1794, %v69
  %v1796 = vpop.permute.xlu0 %1795
  %1798 = vset.pattern.permute.xlu0 0
  %1799 = vperm.xlu0 %1798, %v70
  %v1800 = vpop.permute.xlu0 %1799
  %1802 = vset.pattern.permute.xlu0 0
  %1803 = vperm.xlu0 %1802, %v71
  %v1804 = vpop.permute.xlu0 %1803
  %1806 = vset.pattern.permute.xlu0 0
  %1807 = vperm.xlu0 %1806, %v72
  %v1808 = vpop.permute.xlu0 %1807
  %1810 = vset.pattern.permute.xlu0 0
  %1811 = vperm.xlu0 %1810, %v73
  %v1812 = vpop.permute.xlu0 %1811
  %1814 = vset.pattern.permute.xlu0 0
  %1815 = vperm.xlu0 %1814, %v74
  %v1816 = vpop.permute.xlu0 %1815
  %1818 = vset.pattern.permute.xlu0 0
  %1819 = vperm.xlu0 %1818, %v75
  %v1820 = vpop.permute.xlu0 %1819
  %1822 = vset.pattern.permute.xlu0 0
  %1823 = vperm.xlu0 %1822, %v76
  %v1824 = vpop.permute.xlu0 %1823
  %1826 = vset.pattern.permute.xlu0 0
  %1827 = vperm.xlu0 %1826, %v77
  %v1828 = vpop.permute.xlu0 %1827
  %1830 = vset.pattern.permute.xlu0 0
  %1831 = vperm.xlu0 %1830, %v78
  %v1832 = vpop.permute.xlu0 %1831
  %1834 = vset.pattern.permute.xlu0 0
  %1835 = vperm.xlu0 %1834, %v79
  %v1836 = vpop.permute.xlu0 %1835
  %1838 = vset.pattern.permute.xlu0 0
  %1839 = vperm.xlu0 %1838, %v80
  %v1840 = vpop.permute.xlu0 %1839
  %1842 = vset.pattern.permute.xlu0 0
  %1843 = vperm.xlu0 %1842, %v81
  %v1844 = vpop.permute.xlu0 %1843
  %1846 = vset.pattern.permute.xlu0 0
  %1847 = vperm.xlu0 %1846, %v82
  %v1848 = vpop.permute.xlu0 %1847
  %1850 = vset.pattern.permute.xlu0 0
  %1851 = vperm.xlu0 %1850, %v83
  %v1852 = vpop.permute.xlu0 %1851
  %1854 = vset.pattern.permute.xlu0 0
  %1855 = vperm.xlu0 %1854, %v84
  %v1856 = vpop.permute.xlu0 %1855
  %1858 = vset.pattern.permute.xlu0 0
  %1859 = vperm.xlu0 %1858, %v85
  %v1860 = vpop.permute.xlu0 %1859
  %1862 = vset.pattern.permute.xlu0 0
  %1863 = vperm.xlu0 %1862, %v86
  %v1864 = vpop.permute.xlu0 %1863
  %1866 = vset.pattern.permute.xlu0 0
  %1867 = vperm.xlu0 %1866, %v87
  %v1868 = vpop.permute.xlu0 %1867
  %1870 = vset.pattern.permute.xlu0 0
  %1871 = vperm.xlu0 %1870, %v88
  %v1872 = vpop.permute.xlu0 %1871
  %1874 = vset.pattern.permute.xlu0 0
  %1875 = vperm.xlu0 %1874, %v89
  %v1876 = vpop.permute.xlu0 %1875
  %1878 = vset.pattern.permute.xlu0 0
  %1879 = vperm.xlu0 %1878, %v90
  %v1880 = vpop.permute.xlu0 %1879
  %1882 = vset.pattern.permute.xlu0 0
  %1883 = vperm.xlu0 %1882, %v91
  %v1884 = vpop.permute.xlu0 %1883
  %1886 = vset.pattern.permute.xlu0 0
  %1887 = vperm.xlu0 %1886, %v92
  %v1888 = vpop.permute.xlu0 %1887
  %1890 = vset.pattern.permute.xlu0 0
  %1891 = vperm.xlu0 %1890, %v93
  %v1892 = vpop.permute.xlu0 %1891
  %1894 = vset.pattern.permute.xlu0 0
  %1895 = vperm.xlu0 %1894, %v94
  %v1896 = vpop.permute.xlu0 %1895
  %1898 = vset.pattern.permute.xlu0 0
  %1899 = vperm.xlu0 %1898, %v95
  %v1900 = vpop.permute.xlu0 %1899
  %1902 = vset.pattern.permute.xlu0 0
  %1903 = vperm.xlu0 %1902, %v96
  %v1904 = vpop.permute.xlu0 %1903
  %1906 = vset.pattern.permute.xlu0 0
  %1907 = vperm.xlu0 %1906, %v97
  %v1908 = vpop.permute.xlu0 %1907
  %1910 = vset.pattern.permute.xlu0 0
  %1911 = vperm.xlu0 %1910, %v98
  %v1912 = vpop.permute.xlu0 %1911
  %1914 = vset.pattern.permute.xlu0 0
  %1915 = vperm.xlu0 %1914, %v99
  %v1916 = vpop.permute.xlu0 %1915
  %1918 = vset.pattern.permute.xlu0 0
  %1919 = vperm.xlu0 %1918, %v100
  %v1920 = vpop.permute.xlu0 %1919
  %1922 = vset.pattern.permute.xlu0 0
  %1923 = vperm.xlu0 %1922, %v101
  %v1924 = vpop.permute.xlu0 %1923
  %1926 = vset.pattern.permute.xlu0 0
  %1927 = vperm.xlu0 %1926, %v102
  %v1928 = vpop.permute.xlu0 %1927
  %1930 = vset.pattern.permute.xlu0 0
  %1931 = vperm.xlu0 %1930, %v103
  %v1932 = vpop.permute.xlu0 %1931
  %1934 = vset.pattern.permute.xlu0 0
  %1935 = vperm.xlu0 %1934, %v104
  %v1936 = vpop.permute.xlu0 %1935
  %1938 = vset.pattern.permute.xlu0 0
  %1939 = vperm.xlu0 %1938, %v105
  %v1940 = vpop.permute.xlu0 %1939
  %1942 = vset.pattern.permute.xlu0 0
  %1943 = vperm.xlu0 %1942, %v106
  %v1944 = vpop.permute.xlu0 %1943
  %1946 = vset.pattern.permute.xlu0 0
  %1947 = vperm.xlu0 %1946, %v107
  %v1948 = vpop.permute.xlu0 %1947
  %1950 = vset.pattern.permute.xlu0 0
  %1951 = vperm.xlu0 %1950, %v108
  %v1952 = vpop.permute.xlu0 %1951
  %1954 = vset.pattern.permute.xlu0 0
  %1955 = vperm.xlu0 %1954, %v109
  %v1956 = vpop.permute.xlu0 %1955
  %1958 = vset.pattern.permute.xlu0 0
  %1959 = vperm.xlu0 %1958, %v110
  %v1960 = vpop.permute.xlu0 %1959
  %1962 = vset.pattern.permute.xlu0 0
  %1963 = vperm.xlu0 %1962, %v111
  %v1964 = vpop.permute.xlu0 %1963
  %1966 = vset.pattern.permute.xlu0 0
  %1967 = vperm.xlu0 %1966, %v112
  %v1968 = vpop.permute.xlu0 %1967
  %1970 = vset.pattern.permute.xlu0 0
  %1971 = vperm.xlu0 %1970, %v113
  %v1972 = vpop.permute.xlu0 %1971
  %1974 = vset.pattern.permute.xlu0 0
  %1975 = vperm.xlu0 %1974, %v114
  %v1976 = vpop.permute.xlu0 %1975
  %1978 = vset.pattern.permute.xlu0 0
  %1979 = vperm.xlu0 %1978, %v115
  %v1980 = vpop.permute.xlu0 %1979
  %1982 = vset.pattern.permute.xlu0 0
  %1983 = vperm.xlu0 %1982, %v116
  %v1984 = vpop.permute.xlu0 %1983
  %1986 = vset.pattern.permute.xlu0 0
  %1987 = vperm.xlu0 %1986, %v117
  %v1988 = vpop.permute.xlu0 %1987
  %1990 = vset.pattern.permute.xlu0 0
  %1991 = vperm.xlu0 %1990, %v118
  %v1992 = vpop.permute.xlu0 %1991
  %1994 = vset.pattern.permute.xlu0 0
  %1995 = vperm.xlu0 %1994, %v119
  %v1996 = vpop.permute.xlu0 %1995
  %v1998 = vmul.f32 %v1593, %v1676
  %v1999 = vmul.f32 %v1594, %v1680
  %v2000 = vmul.f32 %v1595, %v1684
  %v2001 = vmul.f32 %v1596, %v1688
  %v2002 = vmul.f32 %v1597, %v1692
  %v2003 = vmul.f32 %v1598, %v1696
  %v2004 = vmul.f32 %v1599, %v1700
  %v2005 = vmul.f32 %v1600, %v1704
  %v2006 = vmul.f32 %v1601, %v1708
  %v2007 = vmul.f32 %v1602, %v1712
  %v2008 = vmul.f32 %v1603, %v1716
  %v2009 = vmul.f32 %v1604, %v1720
  %v2010 = vmul.f32 %v1605, %v1724
  %v2011 = vmul.f32 %v1606, %v1728
  %v2012 = vmul.f32 %v1607, %v1732
  %v2013 = vmul.f32 %v1608, %v1736
  %v2014 = vmul.f32 %v1609, %v1740
  %v2015 = vmul.f32 %v1610, %v1744
  %v2016 = vmul.f32 %v1611, %v1748
  %v2017 = vmul.f32 %v1612, %v1752
  %v2018 = vmul.f32 %v1613, %v1756
  %v2019 = vmul.f32 %v1614, %v1760
  %v2020 = vmul.f32 %v1615, %v1764
  %v2021 = vmul.f32 %v1616, %v1768
  %v2022 = vmul.f32 %v1617, %v1772
  %v2023 = vmul.f32 %v1618, %v1776
  %v2024 = vmul.f32 %v1619, %v1780
  %v2025 = vmul.f32 %v1620, %v1784
  %v2026 = vmul.f32 %v1621, %v1788
  %v2027 = vmul.f32 %v1622, %v1792
  %v2028 = vmul.f32 %v1623, %v1796
  %v2029 = vmul.f32 %v1624, %v1800
  %v2030 = vmul.f32 %v1625, %v1804
  %v2031 = vmul.f32 %v1626, %v1808
  %v2032 = vmul.f32 %v1627, %v1812
  %v2033 = vmul.f32 %v1628, %v1816
  %v2034 = vmul.f32 %v1629, %v1820
  %v2035 = vmul.f32 %v1630, %v1824
  %v2036 = vmul.f32 %v1631, %v1828
  %v2037 = vmul.f32 %v1632, %v1832
  %v2038 = vmul.f32 %v1633, %v1836
  %v2039 = vmul.f32 %v1634, %v1840
  %v2040 = vmul.f32 %v1635, %v1844
  %v2041 = vmul.f32 %v1636, %v1848
  %v2042 = vmul.f32 %v1637, %v1852
  %v2043 = vmul.f32 %v1638, %v1856
  %v2044 = vmul.f32 %v1639, %v1860
  %v2045 = vmul.f32 %v1640, %v1864
  %v2046 = vmul.f32 %v1641, %v1868
  %v2047 = vmul.f32 %v1642, %v1872
  %v2048 = vmul.f32 %v1643, %v1876
  %v2049 = vmul.f32 %v1644, %v1880
  %v2050 = vmul.f32 %v1645, %v1884
  %v2051 = vmul.f32 %v1646, %v1888
  %v2052 = vmul.f32 %v1647, %v1892
  %v2053 = vmul.f32 %v1648, %v1896
  %v2054 = vmul.f32 %v1649, %v1900
  %v2055 = vmul.f32 %v1650, %v1904
  %v2056 = vmul.f32 %v1651, %v1908
  %v2057 = vmul.f32 %v1652, %v1912
  %v2058 = vmul.f32 %v1653, %v1916
  %v2059 = vmul.f32 %v1654, %v1920
  %v2060 = vmul.f32 %v1655, %v1924
  %v2061 = vmul.f32 %v1656, %v1928
  %v2062 = vmul.f32 %v1657, %v1932
  %v2063 = vmul.f32 %v1658, %v1936
  %v2064 = vmul.f32 %v1659, %v1940
  %v2065 = vmul.f32 %v1660, %v1944
  %v2066 = vmul.f32 %v1661, %v1948
  %v2067 = vmul.f32 %v1662, %v1952
  %v2068 = vmul.f32 %v1663, %v1956
  %v2069 = vmul.f32 %v1664, %v1960
  %v2070 = vmul.f32 %v1665, %v1964
  %v2071 = vmul.f32 %v1666, %v1968
  %v2072 = vmul.f32 %v1667, %v1972
  %v2073 = vmul.f32 %v1668, %v1976
  %v2074 = vmul.f32 %v1669, %v1980
  %v2075 = vmul.f32 %v1670, %v1984
  %v2076 = vmul.f32 %v1671, %v1988
  %v2077 = vmul.f32 %v1672, %v1992
  %v2078 = vmul.f32 %v1673, %v1996
  %v2079 = vpack.c.bf16 %v1999, %v1998
  %v2080 = vpack.c.bf16 %v2001, %v2000
  %v2081 = vpack.c.bf16 %v2003, %v2002
  %v2082 = vpack.c.bf16 %v2005, %v2004
  %v2083 = vpack.c.bf16 %v2007, %v2006
  %v2084 = vpack.c.bf16 %v2009, %v2008
  %v2085 = vpack.c.bf16 %v2011, %v2010
  %v2086 = vpack.c.bf16 %v2013, %v2012
  %v2087 = vpack.c.bf16 %v2015, %v2014
  %v2088 = vpack.c.bf16 %v2017, %v2016
  %v2089 = vpack.c.bf16 %v2019, %v2018
  %v2090 = vpack.c.bf16 %v2021, %v2020
  %v2091 = vpack.c.bf16 %v2023, %v2022
  %v2092 = vpack.c.bf16 %v2025, %v2024
  %v2093 = vpack.c.bf16 %v2027, %v2026
  %v2094 = vpack.c.bf16 %v2029, %v2028
  %v2095 = vpack.c.bf16 %v2031, %v2030
  %v2096 = vpack.c.bf16 %v2033, %v2032
  %v2097 = vpack.c.bf16 %v2035, %v2034
  %v2098 = vpack.c.bf16 %v2037, %v2036
  %v2099 = vpack.c.bf16 %v2039, %v2038
  %v2100 = vpack.c.bf16 %v2041, %v2040
  %v2101 = vpack.c.bf16 %v2043, %v2042
  %v2102 = vpack.c.bf16 %v2045, %v2044
  %v2103 = vpack.c.bf16 %v2047, %v2046
  %v2104 = vpack.c.bf16 %v2049, %v2048
  %v2105 = vpack.c.bf16 %v2051, %v2050
  %v2106 = vpack.c.bf16 %v2053, %v2052
  %v2107 = vpack.c.bf16 %v2055, %v2054
  %v2108 = vpack.c.bf16 %v2057, %v2056
  %v2109 = vpack.c.bf16 %v2059, %v2058
  %v2110 = vpack.c.bf16 %v2061, %v2060
  %v2111 = vpack.c.bf16 %v2063, %v2062
  %v2112 = vpack.c.bf16 %v2065, %v2064
  %v2113 = vpack.c.bf16 %v2067, %v2066
  %v2114 = vpack.c.bf16 %v2069, %v2068
  %v2115 = vpack.c.bf16 %v2071, %v2070
  %v2116 = vpack.c.bf16 %v2073, %v2072
  %v2117 = vpack.c.bf16 %v2075, %v2074
  %v2118 = vpack.c.bf16 %v2077, %v2076
  %v2119 = vpack.c.bf16 %v2078, %v2078
  %vm2120 = vcmask 125952
  %2121 = vst.msk [vmem:[#allocation2] sm:$0xf] %vm2120, 0
  %2122 = vst.msk [vmem:[#allocation2 + $0x4] sm:$0xf] %vm2120, 0
  %2123 = vst.msk [vmem:[#allocation2 + $0x8] sm:$0xf] %vm2120, 0
  %2124 = vst.msk [vmem:[#allocation2 + $0x150] sm:$0xf] %vm2120, 0
  %2125 = vst.msk [vmem:[#allocation2 + $0x154] sm:$0xf] %vm2120, 0
  %2126 = vst.msk [vmem:[#allocation2 + $0x158] sm:$0xf] %vm2120, 0
  %v2168 = vunpack.c.l.b16 %v2079
  %v2169 = vunpack.c.h.b16 %v2079
  %v2170 = vunpack.c.l.b16 %v2080
  %v2171 = vunpack.c.h.b16 %v2080
  %v2172 = vunpack.c.l.b16 %v2081
  %v2173 = vunpack.c.h.b16 %v2081
  %v2174 = vunpack.c.l.b16 %v2082
  %v2175 = vunpack.c.h.b16 %v2082
  %v2176 = vunpack.c.l.b16 %v2083
  %v2177 = vunpack.c.h.b16 %v2083
  %v2178 = vunpack.c.l.b16 %v2084
  %v2179 = vunpack.c.h.b16 %v2084
  %v2180 = vunpack.c.l.b16 %v2085
  %v2181 = vunpack.c.h.b16 %v2085
  %v2182 = vunpack.c.l.b16 %v2086
  %v2183 = vunpack.c.h.b16 %v2086
  %v2184 = vunpack.c.l.b16 %v2087
  %v2185 = vunpack.c.h.b16 %v2087
  %v2186 = vunpack.c.l.b16 %v2088
  %v2187 = vunpack.c.h.b16 %v2088
  %v2188 = vunpack.c.l.b16 %v2089
  %v2189 = vunpack.c.h.b16 %v2089
  %v2190 = vunpack.c.l.b16 %v2090
  %v2191 = vunpack.c.h.b16 %v2090
  %v2192 = vunpack.c.l.b16 %v2091
  %v2193 = vunpack.c.h.b16 %v2091
  %v2194 = vunpack.c.l.b16 %v2092
  %v2195 = vunpack.c.h.b16 %v2092
  %v2196 = vunpack.c.l.b16 %v2093
  %v2197 = vunpack.c.h.b16 %v2093
  %v2198 = vunpack.c.l.b16 %v2094
  %v2199 = vunpack.c.h.b16 %v2094
  %v2200 = vunpack.c.l.b16 %v2095
  %v2201 = vunpack.c.h.b16 %v2095
  %v2202 = vunpack.c.l.b16 %v2096
  %v2203 = vunpack.c.h.b16 %v2096
  %v2204 = vunpack.c.l.b16 %v2097
  %v2205 = vunpack.c.h.b16 %v2097
  %v2206 = vunpack.c.l.b16 %v2098
  %v2207 = vunpack.c.h.b16 %v2098
  %v2208 = vunpack.c.l.b16 %v2099
  %v2209 = vunpack.c.h.b16 %v2099
  %v2210 = vunpack.c.l.b16 %v2100
  %v2211 = vunpack.c.h.b16 %v2100
  %v2212 = vunpack.c.l.b16 %v2101
  %v2213 = vunpack.c.h.b16 %v2101
  %v2214 = vunpack.c.l.b16 %v2102
  %v2215 = vunpack.c.h.b16 %v2102
  %v2216 = vunpack.c.l.b16 %v2103
  %v2217 = vunpack.c.h.b16 %v2103
  %v2218 = vunpack.c.l.b16 %v2104
  %v2219 = vunpack.c.h.b16 %v2104
  %v2220 = vunpack.c.l.b16 %v2105
  %v2221 = vunpack.c.h.b16 %v2105
  %v2222 = vunpack.c.l.b16 %v2106
  %v2223 = vunpack.c.h.b16 %v2106
  %v2224 = vunpack.c.l.b16 %v2107
  %v2225 = vunpack.c.h.b16 %v2107
  %v2226 = vunpack.c.l.b16 %v2108
  %v2227 = vunpack.c.h.b16 %v2108
  %v2228 = vunpack.c.l.b16 %v2109
  %v2229 = vunpack.c.h.b16 %v2109
  %v2230 = vunpack.c.l.b16 %v2110
  %v2231 = vunpack.c.h.b16 %v2110
  %v2232 = vunpack.c.l.b16 %v2111
  %v2233 = vunpack.c.h.b16 %v2111
  %v2234 = vunpack.c.l.b16 %v2112
  %v2235 = vunpack.c.h.b16 %v2112
  %v2236 = vunpack.c.l.b16 %v2113
  %v2237 = vunpack.c.h.b16 %v2113
  %v2238 = vunpack.c.l.b16 %v2114
  %v2239 = vunpack.c.h.b16 %v2114
  %v2240 = vunpack.c.l.b16 %v2115
  %v2241 = vunpack.c.h.b16 %v2115
  %v2242 = vunpack.c.l.b16 %v2116
  %v2243 = vunpack.c.h.b16 %v2116
  %v2244 = vunpack.c.l.b16 %v2117
  %v2245 = vunpack.c.h.b16 %v2117
  %v2246 = vunpack.c.l.b16 %v2118
  %v2247 = vunpack.c.h.b16 %v2118
  %v2248 = vunpack.c.l.b16 %v2119
  %v2249 = vpack.c.b16 %v2168, %v2168
  %v2250 = vpack.c.b16 %v2169, %v2169
  %v2251 = vpack.c.b16 %v2170, %v2170
  %v2252 = vpack.c.b16 %v2171, %v2171
  %v2253 = vpack.c.b16 %v2172, %v2172
  %v2254 = vpack.c.b16 %v2173, %v2173
  %v2255 = vpack.c.b16 %v2174, %v2174
  %v2256 = vpack.c.b16 %v2175, %v2175
  %v2257 = vpack.c.b16 %v2176, %v2176
  %v2258 = vpack.c.b16 %v2177, %v2177
  %v2259 = vpack.c.b16 %v2178, %v2178
  %v2260 = vpack.c.b16 %v2179, %v2179
  %v2261 = vpack.c.b16 %v2180, %v2180
  %v2262 = vpack.c.b16 %v2181, %v2181
  %v2263 = vpack.c.b16 %v2182, %v2182
  %v2264 = vpack.c.b16 %v2183, %v2183
  %v2265 = vpack.c.b16 %v2184, %v2184
  %v2266 = vpack.c.b16 %v2185, %v2185
  %v2267 = vpack.c.b16 %v2186, %v2186
  %v2268 = vpack.c.b16 %v2187, %v2187
  %v2269 = vpack.c.b16 %v2188, %v2188
  %v2270 = vpack.c.b16 %v2189, %v2189
  %v2271 = vpack.c.b16 %v2190, %v2190
  %v2272 = vpack.c.b16 %v2191, %v2191
  %v2273 = vpack.c.b16 %v2192, %v2192
  %v2274 = vpack.c.b16 %v2193, %v2193
  %v2275 = vpack.c.b16 %v2194, %v2194
  %v2276 = vpack.c.b16 %v2195, %v2195
  %v2277 = vpack.c.b16 %v2196, %v2196
  %v2278 = vpack.c.b16 %v2197, %v2197
  %v2279 = vpack.c.b16 %v2198, %v2198
  %v2280 = vpack.c.b16 %v2199, %v2199
  %v2281 = vpack.c.b16 %v2200, %v2200
  %v2282 = vpack.c.b16 %v2201, %v2201
  %v2283 = vpack.c.b16 %v2202, %v2202
  %v2284 = vpack.c.b16 %v2203, %v2203
  %v2285 = vpack.c.b16 %v2204, %v2204
  %v2286 = vpack.c.b16 %v2205, %v2205
  %v2287 = vpack.c.b16 %v2206, %v2206
  %v2288 = vpack.c.b16 %v2207, %v2207
  %v2289 = vpack.c.b16 %v2208, %v2208
  %v2290 = vpack.c.b16 %v2209, %v2209
  %v2291 = vpack.c.b16 %v2210, %v2210
  %v2292 = vpack.c.b16 %v2211, %v2211
  %v2293 = vpack.c.b16 %v2212, %v2212
  %v2294 = vpack.c.b16 %v2213, %v2213
  %v2295 = vpack.c.b16 %v2214, %v2214
  %v2296 = vpack.c.b16 %v2215, %v2215
  %v2297 = vpack.c.b16 %v2216, %v2216
  %v2298 = vpack.c.b16 %v2217, %v2217
  %v2299 = vpack.c.b16 %v2218, %v2218
  %v2300 = vpack.c.b16 %v2219, %v2219
  %v2301 = vpack.c.b16 %v2220, %v2220
  %v2302 = vpack.c.b16 %v2221, %v2221
  %v2303 = vpack.c.b16 %v2222, %v2222
  %v2304 = vpack.c.b16 %v2223, %v2223
  %v2305 = vpack.c.b16 %v2224, %v2224
  %v2306 = vpack.c.b16 %v2225, %v2225
  %v2307 = vpack.c.b16 %v2226, %v2226
  %v2308 = vpack.c.b16 %v2227, %v2227
  %v2309 = vpack.c.b16 %v2228, %v2228
  %v2310 = vpack.c.b16 %v2229, %v2229
  %v2311 = vpack.c.b16 %v2230, %v2230
  %v2312 = vpack.c.b16 %v2231, %v2231
  %v2313 = vpack.c.b16 %v2232, %v2232
  %v2314 = vpack.c.b16 %v2233, %v2233
  %v2315 = vpack.c.b16 %v2234, %v2234
  %v2316 = vpack.c.b16 %v2235, %v2235
  %v2317 = vpack.c.b16 %v2236, %v2236
  %v2318 = vpack.c.b16 %v2237, %v2237
  %v2319 = vpack.c.b16 %v2238, %v2238
  %v2320 = vpack.c.b16 %v2239, %v2239
  %v2321 = vpack.c.b16 %v2240, %v2240
  %v2322 = vpack.c.b16 %v2241, %v2241
  %v2323 = vpack.c.b16 %v2242, %v2242
  %v2324 = vpack.c.b16 %v2243, %v2243
  %v2325 = vpack.c.b16 %v2244, %v2244
  %v2326 = vpack.c.b16 %v2245, %v2245
  %v2327 = vpack.c.b16 %v2246, %v2246
  %v2328 = vpack.c.b16 %v2247, %v2247
  %v2329 = vpack.c.b16 %v2248, %v2248
  %2411 = vst.msk [vmem:[#allocation2 + $0xc] sm:$0xf] %vm2120, %v2249
  %2412 = vst.msk [vmem:[#allocation2 + $0x10] sm:$0xf] %vm2120, %v2250
  %2413 = vst.msk [vmem:[#allocation2 + $0x14] sm:$0xf] %vm2120, %v2251
  %2414 = vst.msk [vmem:[#allocation2 + $0x18] sm:$0xf] %vm2120, %v2252
  %2415 = vst.msk [vmem:[#allocation2 + $0x1c] sm:$0xf] %vm2120, %v2253
  %2416 = vst.msk [vmem:[#allocation2 + $0x20] sm:$0xf] %vm2120, %v2254
  %2417 = vst.msk [vmem:[#allocation2 + $0x24] sm:$0xf] %vm2120, %v2255
  %2418 = vst.msk [vmem:[#allocation2 + $0x28] sm:$0xf] %vm2120, %v2256
  %2419 = vst.msk [vmem:[#allocation2 + $0x2c] sm:$0xf] %vm2120, %v2257
  %2420 = vst.msk [vmem:[#allocation2 + $0x30] sm:$0xf] %vm2120, %v2258
  %2421 = vst.msk [vmem:[#allocation2 + $0x34] sm:$0xf] %vm2120, %v2259
  %2422 = vst.msk [vmem:[#allocation2 + $0x38] sm:$0xf] %vm2120, %v2260
  %2423 = vst.msk [vmem:[#allocation2 + $0x3c] sm:$0xf] %vm2120, %v2261
  %2424 = vst.msk [vmem:[#allocation2 + $0x40] sm:$0xf] %vm2120, %v2262
  %2425 = vst.msk [vmem:[#allocation2 + $0x44] sm:$0xf] %vm2120, %v2263
  %2426 = vst.msk [vmem:[#allocation2 + $0x48] sm:$0xf] %vm2120, %v2264
  %2427 = vst.msk [vmem:[#allocation2 + $0x4c] sm:$0xf] %vm2120, %v2265
  %2428 = vst.msk [vmem:[#allocation2 + $0x50] sm:$0xf] %vm2120, %v2266
  %2429 = vst.msk [vmem:[#allocation2 + $0x54] sm:$0xf] %vm2120, %v2267
  %2430 = vst.msk [vmem:[#allocation2 + $0x58] sm:$0xf] %vm2120, %v2268
  %2431 = vst.msk [vmem:[#allocation2 + $0x5c] sm:$0xf] %vm2120, %v2269
  %2432 = vst.msk [vmem:[#allocation2 + $0x60] sm:$0xf] %vm2120, %v2270
  %2433 = vst.msk [vmem:[#allocation2 + $0x64] sm:$0xf] %vm2120, %v2271
  %2434 = vst.msk [vmem:[#allocation2 + $0x68] sm:$0xf] %vm2120, %v2272
  %2435 = vst.msk [vmem:[#allocation2 + $0x6c] sm:$0xf] %vm2120, %v2273
  %2436 = vst.msk [vmem:[#allocation2 + $0x70] sm:$0xf] %vm2120, %v2274
  %2437 = vst.msk [vmem:[#allocation2 + $0x74] sm:$0xf] %vm2120, %v2275
  %2438 = vst.msk [vmem:[#allocation2 + $0x78] sm:$0xf] %vm2120, %v2276
  %2439 = vst.msk [vmem:[#allocation2 + $0x7c] sm:$0xf] %vm2120, %v2277
  %2440 = vst.msk [vmem:[#allocation2 + $0x80] sm:$0xf] %vm2120, %v2278
  %2441 = vst.msk [vmem:[#allocation2 + $0x84] sm:$0xf] %vm2120, %v2279
  %2442 = vst.msk [vmem:[#allocation2 + $0x88] sm:$0xf] %vm2120, %v2280
  %2443 = vst.msk [vmem:[#allocation2 + $0x8c] sm:$0xf] %vm2120, %v2281
  %2444 = vst.msk [vmem:[#allocation2 + $0x90] sm:$0xf] %vm2120, %v2282
  %2445 = vst.msk [vmem:[#allocation2 + $0x94] sm:$0xf] %vm2120, %v2283
  %2446 = vst.msk [vmem:[#allocation2 + $0x98] sm:$0xf] %vm2120, %v2284
  %2447 = vst.msk [vmem:[#allocation2 + $0x9c] sm:$0xf] %vm2120, %v2285
  %2448 = vst.msk [vmem:[#allocation2 + $0xa0] sm:$0xf] %vm2120, %v2286
  %2449 = vst.msk [vmem:[#allocation2 + $0xa4] sm:$0xf] %vm2120, %v2287
  %2450 = vst.msk [vmem:[#allocation2 + $0xa8] sm:$0xf] %vm2120, %v2288
  %2451 = vst.msk [vmem:[#allocation2 + $0xac] sm:$0xf] %vm2120, %v2289
  %2452 = vst.msk [vmem:[#allocation2 + $0xb0] sm:$0xf] %vm2120, %v2290
  %2453 = vst.msk [vmem:[#allocation2 + $0xb4] sm:$0xf] %vm2120, %v2291
  %2454 = vst.msk [vmem:[#allocation2 + $0xb8] sm:$0xf] %vm2120, %v2292
  %2455 = vst.msk [vmem:[#allocation2 + $0xbc] sm:$0xf] %vm2120, %v2293
  %2456 = vst.msk [vmem:[#allocation2 + $0xc0] sm:$0xf] %vm2120, %v2294
  %2457 = vst.msk [vmem:[#allocation2 + $0xc4] sm:$0xf] %vm2120, %v2295
  %2458 = vst.msk [vmem:[#allocation2 + $0xc8] sm:$0xf] %vm2120, %v2296
  %2459 = vst.msk [vmem:[#allocation2 + $0xcc] sm:$0xf] %vm2120, %v2297
  %2460 = vst.msk [vmem:[#allocation2 + $0xd0] sm:$0xf] %vm2120, %v2298
  %2461 = vst.msk [vmem:[#allocation2 + $0xd4] sm:$0xf] %vm2120, %v2299
  %2462 = vst.msk [vmem:[#allocation2 + $0xd8] sm:$0xf] %vm2120, %v2300
  %2463 = vst.msk [vmem:[#allocation2 + $0xdc] sm:$0xf] %vm2120, %v2301
  %2464 = vst.msk [vmem:[#allocation2 + $0xe0] sm:$0xf] %vm2120, %v2302
  %2465 = vst.msk [vmem:[#allocation2 + $0xe4] sm:$0xf] %vm2120, %v2303
  %2466 = vst.msk [vmem:[#allocation2 + $0xe8] sm:$0xf] %vm2120, %v2304
  %2467 = vst.msk [vmem:[#allocation2 + $0xec] sm:$0xf] %vm2120, %v2305
  %2468 = vst.msk [vmem:[#allocation2 + $0xf0] sm:$0xf] %vm2120, %v2306
  %2469 = vst.msk [vmem:[#allocation2 + $0xf4] sm:$0xf] %vm2120, %v2307
  %2470 = vst.msk [vmem:[#allocation2 + $0xf8] sm:$0xf] %vm2120, %v2308
  %2471 = vst.msk [vmem:[#allocation2 + $0xfc] sm:$0xf] %vm2120, %v2309
  %2472 = vst.msk [vmem:[#allocation2 + $0x100] sm:$0xf] %vm2120, %v2310
  %2473 = vst.msk [vmem:[#allocation2 + $0x104] sm:$0xf] %vm2120, %v2311
  %2474 = vst.msk [vmem:[#allocation2 + $0x108] sm:$0xf] %vm2120, %v2312
  %2475 = vst.msk [vmem:[#allocation2 + $0x10c] sm:$0xf] %vm2120, %v2313
  %2476 = vst.msk [vmem:[#allocation2 + $0x110] sm:$0xf] %vm2120, %v2314
  %2477 = vst.msk [vmem:[#allocation2 + $0x114] sm:$0xf] %vm2120, %v2315
  %2478 = vst.msk [vmem:[#allocation2 + $0x118] sm:$0xf] %vm2120, %v2316
  %2479 = vst.msk [vmem:[#allocation2 + $0x11c] sm:$0xf] %vm2120, %v2317
  %2480 = vst.msk [vmem:[#allocation2 + $0x120] sm:$0xf] %vm2120, %v2318
  %2481 = vst.msk [vmem:[#allocation2 + $0x124] sm:$0xf] %vm2120, %v2319
  %2482 = vst.msk [vmem:[#allocation2 + $0x128] sm:$0xf] %vm2120, %v2320
  %2483 = vst.msk [vmem:[#allocation2 + $0x12c] sm:$0xf] %vm2120, %v2321
  %2484 = vst.msk [vmem:[#allocation2 + $0x130] sm:$0xf] %vm2120, %v2322
  %2485 = vst.msk [vmem:[#allocation2 + $0x134] sm:$0xf] %vm2120, %v2323
  %2486 = vst.msk [vmem:[#allocation2 + $0x138] sm:$0xf] %vm2120, %v2324
  %2487 = vst.msk [vmem:[#allocation2 + $0x13c] sm:$0xf] %vm2120, %v2325
  %2488 = vst.msk [vmem:[#allocation2 + $0x140] sm:$0xf] %vm2120, %v2326
  %2489 = vst.msk [vmem:[#allocation2 + $0x144] sm:$0xf] %vm2120, %v2327
  %2490 = vst.msk [vmem:[#allocation2 + $0x148] sm:$0xf] %vm2120, %v2328
  %2491 = vst.msk [vmem:[#allocation2 + $0x14c] sm:$0xf] %vm2120, %v2329
  %v2492 = vld [vmem:[#allocation2] sm:$0xc]
  %v2493 = vld [vmem:[#allocation2 + $0x4] sm:$0xf]
  %v2494 = vld [vmem:[#allocation2 + $0x8] sm:$0xf]
  %v2495 = vld [vmem:[#allocation2 + $0xc] sm:$0xf]
  %v2496 = vld [vmem:[#allocation2 + $0x10] sm:$0xf]
  %v2497 = vld [vmem:[#allocation2 + $0x14] sm:$0xf]
  %v2498 = vld [vmem:[#allocation2 + $0x18] sm:$0xf]
  %v2499 = vld [vmem:[#allocation2 + $0x1c] sm:$0xf]
  %v2500 = vld [vmem:[#allocation2 + $0x20] sm:$0xf]
  %v2501 = vld [vmem:[#allocation2 + $0x24] sm:$0xf]
  %v2502 = vld [vmem:[#allocation2 + $0x28] sm:$0xf]
  %v2503 = vld [vmem:[#allocation2 + $0x2c] sm:$0xf]
  %v2504 = vld [vmem:[#allocation2 + $0x30] sm:$0xf]
  %v2505 = vld [vmem:[#allocation2 + $0x34] sm:$0xf]
  %v2506 = vld [vmem:[#allocation2 + $0x38] sm:$0xf]
  %v2507 = vld [vmem:[#allocation2 + $0x3c] sm:$0xf]
  %v2508 = vld [vmem:[#allocation2 + $0x40] sm:$0xf]
  %v2509 = vld [vmem:[#allocation2 + $0x44] sm:$0xf]
  %v2510 = vld [vmem:[#allocation2 + $0x48] sm:$0xf]
  %v2511 = vld [vmem:[#allocation2 + $0x4c] sm:$0xf]
  %v2512 = vld [vmem:[#allocation2 + $0x50] sm:$0xf]
  %v2513 = vld [vmem:[#allocation2 + $0x54] sm:$0xf]
  %v2514 = vld [vmem:[#allocation2 + $0x58] sm:$0xf]
  %v2515 = vld [vmem:[#allocation2 + $0x5c] sm:$0xf]
  %v2516 = vld [vmem:[#allocation2 + $0x60] sm:$0xf]
  %v2517 = vld [vmem:[#allocation2 + $0x64] sm:$0xf]
  %v2518 = vld [vmem:[#allocation2 + $0x68] sm:$0xf]
  %v2519 = vld [vmem:[#allocation2 + $0x6c] sm:$0xf]
  %v2520 = vld [vmem:[#allocation2 + $0x70] sm:$0xf]
  %v2521 = vld [vmem:[#allocation2 + $0x74] sm:$0xf]
  %v2522 = vld [vmem:[#allocation2 + $0x78] sm:$0xf]
  %v2523 = vld [vmem:[#allocation2 + $0x7c] sm:$0xf]
  %v2524 = vld [vmem:[#allocation2 + $0x80] sm:$0xf]
  %v2525 = vld [vmem:[#allocation2 + $0x84] sm:$0xf]
  %v2526 = vld [vmem:[#allocation2 + $0x88] sm:$0xf]
  %v2527 = vld [vmem:[#allocation2 + $0x8c] sm:$0xf]
  %v2528 = vld [vmem:[#allocation2 + $0x90] sm:$0xf]
  %v2529 = vld [vmem:[#allocation2 + $0x94] sm:$0xf]
  %v2530 = vld [vmem:[#allocation2 + $0x98] sm:$0xf]
  %v2531 = vld [vmem:[#allocation2 + $0x9c] sm:$0xf]
  %v2532 = vld [vmem:[#allocation2 + $0xa0] sm:$0xf]
  %v2533 = vld [vmem:[#allocation2 + $0xa4] sm:$0xf]
  %v2534 = vld [vmem:[#allocation2 + $0xa8] sm:$0xf]
  %v2535 = vld [vmem:[#allocation2 + $0xac] sm:$0xf]
  %v2536 = vld [vmem:[#allocation2 + $0xb0] sm:$0xf]
  %v2537 = vld [vmem:[#allocation2 + $0xb4] sm:$0xf]
  %v2538 = vld [vmem:[#allocation2 + $0xb8] sm:$0xf]
  %v2539 = vld [vmem:[#allocation2 + $0xbc] sm:$0xf]
  %v2540 = vld [vmem:[#allocation2 + $0xc0] sm:$0xf]
  %v2541 = vld [vmem:[#allocation2 + $0xc4] sm:$0xf]
  %v2542 = vld [vmem:[#allocation2 + $0xc8] sm:$0xf]
  %v2543 = vld [vmem:[#allocation2 + $0xcc] sm:$0xf]
  %v2544 = vld [vmem:[#allocation2 + $0xd0] sm:$0xf]
  %v2545 = vld [vmem:[#allocation2 + $0xd4] sm:$0xf]
  %v2546 = vld [vmem:[#allocation2 + $0xd8] sm:$0xf]
  %v2547 = vld [vmem:[#allocation2 + $0xdc] sm:$0xf]
  %v2548 = vld [vmem:[#allocation2 + $0xe0] sm:$0xf]
  %v2549 = vld [vmem:[#allocation2 + $0xe4] sm:$0xf]
  %v2550 = vld [vmem:[#allocation2 + $0xe8] sm:$0xf]
  %v2551 = vld [vmem:[#allocation2 + $0xec] sm:$0xf]
  %v2552 = vld [vmem:[#allocation2 + $0xf0] sm:$0xf]
  %v2553 = vld [vmem:[#allocation2 + $0xf4] sm:$0xf]
  %v2554 = vld [vmem:[#allocation2 + $0xf8] sm:$0xf]
  %v2555 = vld [vmem:[#allocation2 + $0xfc] sm:$0xf]
  %v2556 = vld [vmem:[#allocation2 + $0x100] sm:$0xf]
  %v2557 = vld [vmem:[#allocation2 + $0x104] sm:$0xf]
  %v2558 = vld [vmem:[#allocation2 + $0x108] sm:$0xf]
  %v2559 = vld [vmem:[#allocation2 + $0x10c] sm:$0xf]
  %v2560 = vld [vmem:[#allocation2 + $0x110] sm:$0xf]
  %v2561 = vld [vmem:[#allocation2 + $0x114] sm:$0xf]
  %v2562 = vld [vmem:[#allocation2 + $0x118] sm:$0xf]
  %v2563 = vld [vmem:[#allocation2 + $0x11c] sm:$0xf]
  %v2564 = vld [vmem:[#allocation2 + $0x120] sm:$0xf]
  %v2565 = vld [vmem:[#allocation2 + $0x124] sm:$0xf]
  %v2566 = vld [vmem:[#allocation2 + $0x128] sm:$0xf]
  %v2567 = vld [vmem:[#allocation2 + $0x12c] sm:$0xf]
  %v2568 = vld [vmem:[#allocation2 + $0x130] sm:$0xf]
  %v2569 = vld [vmem:[#allocation2 + $0x134] sm:$0xf]
  %v2570 = vld [vmem:[#allocation2 + $0x138] sm:$0xf]
  %v2571 = vld [vmem:[#allocation2 + $0x13c] sm:$0xf]
  %v2572 = vld [vmem:[#allocation2 + $0x140] sm:$0xf]
  %v2573 = vld [vmem:[#allocation2 + $0x144] sm:$0x7]
  %vm2574 = vsmask.f32 1280
  %vm2575 = vsmask.f32 5392
  %vm2576 = vmor %vm2574, %vm2575
  %v2578 = vshrl.u32 %v2492, 16
  %v2580 = vrot.slane %v2578, 6
  %v2581 = vshll.u32 %v2492, 16
  %v2583 = vrot.slane %v2581, 7
  %v2584 = vor.u32 %v2580, %v2583
  %v2585 = vrot.slane %v2584, 4
  %v2587 = vshrl.u32 %v2493, 16
  %v2589 = vrot.slane %v2587, 6
  %v2590 = vshll.u32 %v2493, 16
  %v2592 = vrot.slane %v2590, 7
  %v2593 = vor.u32 %v2589, %v2592
  %v2594 = vsel %vm2576, %v2585, %v2593
  %v2595 = vrot.slane %v2593, 4
  %v2597 = vshrl.u32 %v2494, 16
  %v2599 = vrot.slane %v2597, 6
  %v2600 = vshll.u32 %v2494, 16
  %v2602 = vrot.slane %v2600, 7
  %v2603 = vor.u32 %v2599, %v2602
  %v2604 = vsel %vm2576, %v2595, %v2603
  %v2605 = vrot.slane %v2603, 4
  %v2607 = vshrl.u32 %v2495, 16
  %v2609 = vrot.slane %v2607, 6
  %v2610 = vshll.u32 %v2495, 16
  %v2612 = vrot.slane %v2610, 7
  %v2613 = vor.u32 %v2609, %v2612
  %v2614 = vsel %vm2576, %v2605, %v2613
  %v2615 = vrot.slane %v2613, 4
  %v2617 = vshrl.u32 %v2496, 16
  %v2619 = vrot.slane %v2617, 6
  %v2620 = vshll.u32 %v2496, 16
  %v2622 = vrot.slane %v2620, 7
  %v2623 = vor.u32 %v2619, %v2622
  %v2624 = vsel %vm2576, %v2615, %v2623
  %v2625 = vrot.slane %v2623, 4
  %v2627 = vshrl.u32 %v2497, 16
  %v2629 = vrot.slane %v2627, 6
  %v2630 = vshll.u32 %v2497, 16
  %v2632 = vrot.slane %v2630, 7
  %v2633 = vor.u32 %v2629, %v2632
  %v2634 = vsel %vm2576, %v2625, %v2633
  %v2635 = vrot.slane %v2633, 4
  %v2637 = vshrl.u32 %v2498, 16
  %v2639 = vrot.slane %v2637, 6
  %v2640 = vshll.u32 %v2498, 16
  %v2642 = vrot.slane %v2640, 7
  %v2643 = vor.u32 %v2639, %v2642
  %v2644 = vsel %vm2576, %v2635, %v2643
  %v2645 = vrot.slane %v2643, 4
  %v2647 = vshrl.u32 %v2499, 16
  %v2649 = vrot.slane %v2647, 6
  %v2650 = vshll.u32 %v2499, 16
  %v2652 = vrot.slane %v2650, 7
  %v2653 = vor.u32 %v2649, %v2652
  %v2654 = vsel %vm2576, %v2645, %v2653
  %v2655 = vrot.slane %v2653, 4
  %v2657 = vshrl.u32 %v2500, 16
  %v2659 = vrot.slane %v2657, 6
  %v2660 = vshll.u32 %v2500, 16
  %v2662 = vrot.slane %v2660, 7
  %v2663 = vor.u32 %v2659, %v2662
  %v2664 = vsel %vm2576, %v2655, %v2663
  %v2665 = vrot.slane %v2663, 4
  %v2667 = vshrl.u32 %v2501, 16
  %v2669 = vrot.slane %v2667, 6
  %v2670 = vshll.u32 %v2501, 16
  %v2672 = vrot.slane %v2670, 7
  %v2673 = vor.u32 %v2669, %v2672
  %v2674 = vsel %vm2576, %v2665, %v2673
  %v2675 = vrot.slane %v2673, 4
  %v2677 = vshrl.u32 %v2502, 16
  %v2679 = vrot.slane %v2677, 6
  %v2680 = vshll.u32 %v2502, 16
  %v2682 = vrot.slane %v2680, 7
  %v2683 = vor.u32 %v2679, %v2682
  %v2684 = vsel %vm2576, %v2675, %v2683
  %v2685 = vrot.slane %v2683, 4
  %v2687 = vshrl.u32 %v2503, 16
  %v2689 = vrot.slane %v2687, 6
  %v2690 = vshll.u32 %v2503, 16
  %v2692 = vrot.slane %v2690, 7
  %v2693 = vor.u32 %v2689, %v2692
  %v2694 = vsel %vm2576, %v2685, %v2693
  %v2695 = vrot.slane %v2693, 4
  %v2697 = vshrl.u32 %v2504, 16
  %v2699 = vrot.slane %v2697, 6
  %v2700 = vshll.u32 %v2504, 16
  %v2702 = vrot.slane %v2700, 7
  %v2703 = vor.u32 %v2699, %v2702
  %v2704 = vsel %vm2576, %v2695, %v2703
  %v2705 = vrot.slane %v2703, 4
  %v2707 = vshrl.u32 %v2505, 16
  %v2709 = vrot.slane %v2707, 6
  %v2710 = vshll.u32 %v2505, 16
  %v2712 = vrot.slane %v2710, 7
  %v2713 = vor.u32 %v2709, %v2712
  %v2714 = vsel %vm2576, %v2705, %v2713
  %v2715 = vrot.slane %v2713, 4
  %v2717 = vshrl.u32 %v2506, 16
  %v2719 = vrot.slane %v2717, 6
  %v2720 = vshll.u32 %v2506, 16
  %v2722 = vrot.slane %v2720, 7
  %v2723 = vor.u32 %v2719, %v2722
  %v2724 = vsel %vm2576, %v2715, %v2723
  %v2725 = vrot.slane %v2723, 4
  %v2727 = vshrl.u32 %v2507, 16
  %v2729 = vrot.slane %v2727, 6
  %v2730 = vshll.u32 %v2507, 16
  %v2732 = vrot.slane %v2730, 7
  %v2733 = vor.u32 %v2729, %v2732
  %v2734 = vsel %vm2576, %v2725, %v2733
  %v2735 = vrot.slane %v2733, 4
  %v2737 = vshrl.u32 %v2508, 16
  %v2739 = vrot.slane %v2737, 6
  %v2740 = vshll.u32 %v2508, 16
  %v2742 = vrot.slane %v2740, 7
  %v2743 = vor.u32 %v2739, %v2742
  %v2744 = vsel %vm2576, %v2735, %v2743
  %v2745 = vrot.slane %v2743, 4
  %v2747 = vshrl.u32 %v2509, 16
  %v2749 = vrot.slane %v2747, 6
  %v2750 = vshll.u32 %v2509, 16
  %v2752 = vrot.slane %v2750, 7
  %v2753 = vor.u32 %v2749, %v2752
  %v2754 = vsel %vm2576, %v2745, %v2753
  %v2755 = vrot.slane %v2753, 4
  %v2757 = vshrl.u32 %v2510, 16
  %v2759 = vrot.slane %v2757, 6
  %v2760 = vshll.u32 %v2510, 16
  %v2762 = vrot.slane %v2760, 7
  %v2763 = vor.u32 %v2759, %v2762
  %v2764 = vsel %vm2576, %v2755, %v2763
  %v2765 = vrot.slane %v2763, 4
  %v2767 = vshrl.u32 %v2511, 16
  %v2769 = vrot.slane %v2767, 6
  %v2770 = vshll.u32 %v2511, 16
  %v2772 = vrot.slane %v2770, 7
  %v2773 = vor.u32 %v2769, %v2772
  %v2774 = vsel %vm2576, %v2765, %v2773
  %v2775 = vrot.slane %v2773, 4
  %v2777 = vshrl.u32 %v2512, 16
  %v2779 = vrot.slane %v2777, 6
  %v2780 = vshll.u32 %v2512, 16
  %v2782 = vrot.slane %v2780, 7
  %v2783 = vor.u32 %v2779, %v2782
  %v2784 = vsel %vm2576, %v2775, %v2783
  %v2785 = vrot.slane %v2783, 4
  %v2787 = vshrl.u32 %v2513, 16
  %v2789 = vrot.slane %v2787, 6
  %v2790 = vshll.u32 %v2513, 16
  %v2792 = vrot.slane %v2790, 7
  %v2793 = vor.u32 %v2789, %v2792
  %v2794 = vsel %vm2576, %v2785, %v2793
  %v2795 = vrot.slane %v2793, 4
  %v2797 = vshrl.u32 %v2514, 16
  %v2799 = vrot.slane %v2797, 6
  %v2800 = vshll.u32 %v2514, 16
  %v2802 = vrot.slane %v2800, 7
  %v2803 = vor.u32 %v2799, %v2802
  %v2804 = vsel %vm2576, %v2795, %v2803
  %v2805 = vrot.slane %v2803, 4
  %v2807 = vshrl.u32 %v2515, 16
  %v2809 = vrot.slane %v2807, 6
  %v2810 = vshll.u32 %v2515, 16
  %v2812 = vrot.slane %v2810, 7
  %v2813 = vor.u32 %v2809, %v2812
  %v2814 = vsel %vm2576, %v2805, %v2813
  %v2815 = vrot.slane %v2813, 4
  %v2817 = vshrl.u32 %v2516, 16
  %v2819 = vrot.slane %v2817, 6
  %v2820 = vshll.u32 %v2516, 16
  %v2822 = vrot.slane %v2820, 7
  %v2823 = vor.u32 %v2819, %v2822
  %v2824 = vsel %vm2576, %v2815, %v2823
  %v2825 = vrot.slane %v2823, 4
  %v2827 = vshrl.u32 %v2517, 16
  %v2829 = vrot.slane %v2827, 6
  %v2830 = vshll.u32 %v2517, 16
  %v2832 = vrot.slane %v2830, 7
  %v2833 = vor.u32 %v2829, %v2832
  %v2834 = vsel %vm2576, %v2825, %v2833
  %v2835 = vrot.slane %v2833, 4
  %v2837 = vshrl.u32 %v2518, 16
  %v2839 = vrot.slane %v2837, 6
  %v2840 = vshll.u32 %v2518, 16
  %v2842 = vrot.slane %v2840, 7
  %v2843 = vor.u32 %v2839, %v2842
  %v2844 = vsel %vm2576, %v2835, %v2843
  %v2845 = vrot.slane %v2843, 4
  %v2847 = vshrl.u32 %v2519, 16
  %v2849 = vrot.slane %v2847, 6
  %v2850 = vshll.u32 %v2519, 16
  %v2852 = vrot.slane %v2850, 7
  %v2853 = vor.u32 %v2849, %v2852
  %v2854 = vsel %vm2576, %v2845, %v2853
  %v2855 = vrot.slane %v2853, 4
  %v2857 = vshrl.u32 %v2520, 16
  %v2859 = vrot.slane %v2857, 6
  %v2860 = vshll.u32 %v2520, 16
  %v2862 = vrot.slane %v2860, 7
  %v2863 = vor.u32 %v2859, %v2862
  %v2864 = vsel %vm2576, %v2855, %v2863
  %v2865 = vrot.slane %v2863, 4
  %v2867 = vshrl.u32 %v2521, 16
  %v2869 = vrot.slane %v2867, 6
  %v2870 = vshll.u32 %v2521, 16
  %v2872 = vrot.slane %v2870, 7
  %v2873 = vor.u32 %v2869, %v2872
  %v2874 = vsel %vm2576, %v2865, %v2873
  %v2875 = vrot.slane %v2873, 4
  %v2877 = vshrl.u32 %v2522, 16
  %v2879 = vrot.slane %v2877, 6
  %v2880 = vshll.u32 %v2522, 16
  %v2882 = vrot.slane %v2880, 7
  %v2883 = vor.u32 %v2879, %v2882
  %v2884 = vsel %vm2576, %v2875, %v2883
  %v2885 = vrot.slane %v2883, 4
  %v2887 = vshrl.u32 %v2523, 16
  %v2889 = vrot.slane %v2887, 6
  %v2890 = vshll.u32 %v2523, 16
  %v2892 = vrot.slane %v2890, 7
  %v2893 = vor.u32 %v2889, %v2892
  %v2894 = vsel %vm2576, %v2885, %v2893
  %v2895 = vrot.slane %v2893, 4
  %v2897 = vshrl.u32 %v2524, 16
  %v2899 = vrot.slane %v2897, 6
  %v2900 = vshll.u32 %v2524, 16
  %v2902 = vrot.slane %v2900, 7
  %v2903 = vor.u32 %v2899, %v2902
  %v2904 = vsel %vm2576, %v2895, %v2903
  %v2905 = vrot.slane %v2903, 4
  %v2907 = vshrl.u32 %v2525, 16
  %v2909 = vrot.slane %v2907, 6
  %v2910 = vshll.u32 %v2525, 16
  %v2912 = vrot.slane %v2910, 7
  %v2913 = vor.u32 %v2909, %v2912
  %v2914 = vsel %vm2576, %v2905, %v2913
  %v2915 = vrot.slane %v2913, 4
  %v2917 = vshrl.u32 %v2526, 16
  %v2919 = vrot.slane %v2917, 6
  %v2920 = vshll.u32 %v2526, 16
  %v2922 = vrot.slane %v2920, 7
  %v2923 = vor.u32 %v2919, %v2922
  %v2924 = vsel %vm2576, %v2915, %v2923
  %v2925 = vrot.slane %v2923, 4
  %v2927 = vshrl.u32 %v2527, 16
  %v2929 = vrot.slane %v2927, 6
  %v2930 = vshll.u32 %v2527, 16
  %v2932 = vrot.slane %v2930, 7
  %v2933 = vor.u32 %v2929, %v2932
  %v2934 = vsel %vm2576, %v2925, %v2933
  %v2935 = vrot.slane %v2933, 4
  %v2937 = vshrl.u32 %v2528, 16
  %v2939 = vrot.slane %v2937, 6
  %v2940 = vshll.u32 %v2528, 16
  %v2942 = vrot.slane %v2940, 7
  %v2943 = vor.u32 %v2939, %v2942
  %v2944 = vsel %vm2576, %v2935, %v2943
  %v2945 = vrot.slane %v2943, 4
  %v2947 = vshrl.u32 %v2529, 16
  %v2949 = vrot.slane %v2947, 6
  %v2950 = vshll.u32 %v2529, 16
  %v2952 = vrot.slane %v2950, 7
  %v2953 = vor.u32 %v2949, %v2952
  %v2954 = vsel %vm2576, %v2945, %v2953
  %v2955 = vrot.slane %v2953, 4
  %v2957 = vshrl.u32 %v2530, 16
  %v2959 = vrot.slane %v2957, 6
  %v2960 = vshll.u32 %v2530, 16
  %v2962 = vrot.slane %v2960, 7
  %v2963 = vor.u32 %v2959, %v2962
  %v2964 = vsel %vm2576, %v2955, %v2963
  %v2965 = vrot.slane %v2963, 4
  %v2967 = vshrl.u32 %v2531, 16
  %v2969 = vrot.slane %v2967, 6
  %v2970 = vshll.u32 %v2531, 16
  %v2972 = vrot.slane %v2970, 7
  %v2973 = vor.u32 %v2969, %v2972
  %v2974 = vsel %vm2576, %v2965, %v2973
  %v2975 = vrot.slane %v2973, 4
  %v2977 = vshrl.u32 %v2532, 16
  %v2979 = vrot.slane %v2977, 6
  %v2980 = vshll.u32 %v2532, 16
  %v2982 = vrot.slane %v2980, 7
  %v2983 = vor.u32 %v2979, %v2982
  %v2984 = vsel %vm2576, %v2975, %v2983
  %v2985 = vrot.slane %v2983, 4
  %v2987 = vshrl.u32 %v2533, 16
  %v2989 = vrot.slane %v2987, 6
  %v2990 = vshll.u32 %v2533, 16
  %v2992 = vrot.slane %v2990, 7
  %v2993 = vor.u32 %v2989, %v2992
  %v2994 = vsel %vm2576, %v2985, %v2993
  %v2995 = vrot.slane %v2993, 4
  %v2997 = vshrl.u32 %v2534, 16
  %v2999 = vrot.slane %v2997, 6
  %v3000 = vshll.u32 %v2534, 16
  %v3002 = vrot.slane %v3000, 7
  %v3003 = vor.u32 %v2999, %v3002
  %v3004 = vsel %vm2576, %v2995, %v3003
  %v3005 = vrot.slane %v3003, 4
  %v3007 = vshrl.u32 %v2535, 16
  %v3009 = vrot.slane %v3007, 6
  %v3010 = vshll.u32 %v2535, 16
  %v3012 = vrot.slane %v3010, 7
  %v3013 = vor.u32 %v3009, %v3012
  %v3014 = vsel %vm2576, %v3005, %v3013
  %v3015 = vrot.slane %v3013, 4
  %v3017 = vshrl.u32 %v2536, 16
  %v3019 = vrot.slane %v3017, 6
  %v3020 = vshll.u32 %v2536, 16
  %v3022 = vrot.slane %v3020, 7
  %v3023 = vor.u32 %v3019, %v3022
  %v3024 = vsel %vm2576, %v3015, %v3023
  %v3025 = vrot.slane %v3023, 4
  %v3027 = vshrl.u32 %v2537, 16
  %v3029 = vrot.slane %v3027, 6
  %v3030 = vshll.u32 %v2537, 16
  %v3032 = vrot.slane %v3030, 7
  %v3033 = vor.u32 %v3029, %v3032
  %v3034 = vsel %vm2576, %v3025, %v3033
  %v3035 = vrot.slane %v3033, 4
  %v3037 = vshrl.u32 %v2538, 16
  %v3039 = vrot.slane %v3037, 6
  %v3040 = vshll.u32 %v2538, 16
  %v3042 = vrot.slane %v3040, 7
  %v3043 = vor.u32 %v3039, %v3042
  %v3044 = vsel %vm2576, %v3035, %v3043
  %v3045 = vrot.slane %v3043, 4
  %v3047 = vshrl.u32 %v2539, 16
  %v3049 = vrot.slane %v3047, 6
  %v3050 = vshll.u32 %v2539, 16
  %v3052 = vrot.slane %v3050, 7
  %v3053 = vor.u32 %v3049, %v3052
  %v3054 = vsel %vm2576, %v3045, %v3053
  %v3055 = vrot.slane %v3053, 4
  %v3057 = vshrl.u32 %v2540, 16
  %v3059 = vrot.slane %v3057, 6
  %v3060 = vshll.u32 %v2540, 16
  %v3062 = vrot.slane %v3060, 7
  %v3063 = vor.u32 %v3059, %v3062
  %v3064 = vsel %vm2576, %v3055, %v3063
  %v3065 = vrot.slane %v3063, 4
  %v3067 = vshrl.u32 %v2541, 16
  %v3069 = vrot.slane %v3067, 6
  %v3070 = vshll.u32 %v2541, 16
  %v3072 = vrot.slane %v3070, 7
  %v3073 = vor.u32 %v3069, %v3072
  %v3074 = vsel %vm2576, %v3065, %v3073
  %v3075 = vrot.slane %v3073, 4
  %v3077 = vshrl.u32 %v2542, 16
  %v3079 = vrot.slane %v3077, 6
  %v3080 = vshll.u32 %v2542, 16
  %v3082 = vrot.slane %v3080, 7
  %v3083 = vor.u32 %v3079, %v3082
  %v3084 = vsel %vm2576, %v3075, %v3083
  %v3085 = vrot.slane %v3083, 4
  %v3087 = vshrl.u32 %v2543, 16
  %v3089 = vrot.slane %v3087, 6
  %v3090 = vshll.u32 %v2543, 16
  %v3092 = vrot.slane %v3090, 7
  %v3093 = vor.u32 %v3089, %v3092
  %v3094 = vsel %vm2576, %v3085, %v3093
  %v3095 = vrot.slane %v3093, 4
  %v3097 = vshrl.u32 %v2544, 16
  %v3099 = vrot.slane %v3097, 6
  %v3100 = vshll.u32 %v2544, 16
  %v3102 = vrot.slane %v3100, 7
  %v3103 = vor.u32 %v3099, %v3102
  %v3104 = vsel %vm2576, %v3095, %v3103
  %v3105 = vrot.slane %v3103, 4
  %v3107 = vshrl.u32 %v2545, 16
  %v3109 = vrot.slane %v3107, 6
  %v3110 = vshll.u32 %v2545, 16
  %v3112 = vrot.slane %v3110, 7
  %v3113 = vor.u32 %v3109, %v3112
  %v3114 = vsel %vm2576, %v3105, %v3113
  %v3115 = vrot.slane %v3113, 4
  %v3117 = vshrl.u32 %v2546, 16
  %v3119 = vrot.slane %v3117, 6
  %v3120 = vshll.u32 %v2546, 16
  %v3122 = vrot.slane %v3120, 7
  %v3123 = vor.u32 %v3119, %v3122
  %v3124 = vsel %vm2576, %v3115, %v3123
  %v3125 = vrot.slane %v3123, 4
  %v3127 = vshrl.u32 %v2547, 16
  %v3129 = vrot.slane %v3127, 6
  %v3130 = vshll.u32 %v2547, 16
  %v3132 = vrot.slane %v3130, 7
  %v3133 = vor.u32 %v3129, %v3132
  %v3134 = vsel %vm2576, %v3125, %v3133
  %v3135 = vrot.slane %v3133, 4
  %v3137 = vshrl.u32 %v2548, 16
  %v3139 = vrot.slane %v3137, 6
  %v3140 = vshll.u32 %v2548, 16
  %v3142 = vrot.slane %v3140, 7
  %v3143 = vor.u32 %v3139, %v3142
  %v3144 = vsel %vm2576, %v3135, %v3143
  %v3145 = vrot.slane %v3143, 4
  %v3147 = vshrl.u32 %v2549, 16
  %v3149 = vrot.slane %v3147, 6
  %v3150 = vshll.u32 %v2549, 16
  %v3152 = vrot.slane %v3150, 7
  %v3153 = vor.u32 %v3149, %v3152
  %v3154 = vsel %vm2576, %v3145, %v3153
  %v3155 = vrot.slane %v3153, 4
  %v3157 = vshrl.u32 %v2550, 16
  %v3159 = vrot.slane %v3157, 6
  %v3160 = vshll.u32 %v2550, 16
  %v3162 = vrot.slane %v3160, 7
  %v3163 = vor.u32 %v3159, %v3162
  %v3164 = vsel %vm2576, %v3155, %v3163
  %v3165 = vrot.slane %v3163, 4
  %v3167 = vshrl.u32 %v2551, 16
  %v3169 = vrot.slane %v3167, 6
  %v3170 = vshll.u32 %v2551, 16
  %v3172 = vrot.slane %v3170, 7
  %v3173 = vor.u32 %v3169, %v3172
  %v3174 = vsel %vm2576, %v3165, %v3173
  %v3175 = vrot.slane %v3173, 4
  %v3177 = vshrl.u32 %v2552, 16
  %v3179 = vrot.slane %v3177, 6
  %v3180 = vshll.u32 %v2552, 16
  %v3182 = vrot.slane %v3180, 7
  %v3183 = vor.u32 %v3179, %v3182
  %v3184 = vsel %vm2576, %v3175, %v3183
  %v3185 = vrot.slane %v3183, 4
  %v3187 = vshrl.u32 %v2553, 16
  %v3189 = vrot.slane %v3187, 6
  %v3190 = vshll.u32 %v2553, 16
  %v3192 = vrot.slane %v3190, 7
  %v3193 = vor.u32 %v3189, %v3192
  %v3194 = vsel %vm2576, %v3185, %v3193
  %v3195 = vrot.slane %v3193, 4
  %v3197 = vshrl.u32 %v2554, 16
  %v3199 = vrot.slane %v3197, 6
  %v3200 = vshll.u32 %v2554, 16
  %v3202 = vrot.slane %v3200, 7
  %v3203 = vor.u32 %v3199, %v3202
  %v3204 = vsel %vm2576, %v3195, %v3203
  %v3205 = vrot.slane %v3203, 4
  %v3207 = vshrl.u32 %v2555, 16
  %v3209 = vrot.slane %v3207, 6
  %v3210 = vshll.u32 %v2555, 16
  %v3212 = vrot.slane %v3210, 7
  %v3213 = vor.u32 %v3209, %v3212
  %v3214 = vsel %vm2576, %v3205, %v3213
  %v3215 = vrot.slane %v3213, 4
  %v3217 = vshrl.u32 %v2556, 16
  %v3219 = vrot.slane %v3217, 6
  %v3220 = vshll.u32 %v2556, 16
  %v3222 = vrot.slane %v3220, 7
  %v3223 = vor.u32 %v3219, %v3222
  %v3224 = vsel %vm2576, %v3215, %v3223
  %v3225 = vrot.slane %v3223, 4
  %v3227 = vshrl.u32 %v2557, 16
  %v3229 = vrot.slane %v3227, 6
  %v3230 = vshll.u32 %v2557, 16
  %v3232 = vrot.slane %v3230, 7
  %v3233 = vor.u32 %v3229, %v3232
  %v3234 = vsel %vm2576, %v3225, %v3233
  %v3235 = vrot.slane %v3233, 4
  %v3237 = vshrl.u32 %v2558, 16
  %v3239 = vrot.slane %v3237, 6
  %v3240 = vshll.u32 %v2558, 16
  %v3242 = vrot.slane %v3240, 7
  %v3243 = vor.u32 %v3239, %v3242
  %v3244 = vsel %vm2576, %v3235, %v3243
  %v3245 = vrot.slane %v3243, 4
  %v3247 = vshrl.u32 %v2559, 16
  %v3249 = vrot.slane %v3247, 6
  %v3250 = vshll.u32 %v2559, 16
  %v3252 = vrot.slane %v3250, 7
  %v3253 = vor.u32 %v3249, %v3252
  %v3254 = vsel %vm2576, %v3245, %v3253
  %v3255 = vrot.slane %v3253, 4
  %v3257 = vshrl.u32 %v2560, 16
  %v3259 = vrot.slane %v3257, 6
  %v3260 = vshll.u32 %v2560, 16
  %v3262 = vrot.slane %v3260, 7
  %v3263 = vor.u32 %v3259, %v3262
  %v3264 = vsel %vm2576, %v3255, %v3263
  %v3265 = vrot.slane %v3263, 4
  %v3267 = vshrl.u32 %v2561, 16
  %v3269 = vrot.slane %v3267, 6
  %v3270 = vshll.u32 %v2561, 16
  %v3272 = vrot.slane %v3270, 7
  %v3273 = vor.u32 %v3269, %v3272
  %v3274 = vsel %vm2576, %v3265, %v3273
  %v3275 = vrot.slane %v3273, 4
  %v3277 = vshrl.u32 %v2562, 16
  %v3279 = vrot.slane %v3277, 6
  %v3280 = vshll.u32 %v2562, 16
  %v3282 = vrot.slane %v3280, 7
  %v3283 = vor.u32 %v3279, %v3282
  %v3284 = vsel %vm2576, %v3275, %v3283
  %v3285 = vrot.slane %v3283, 4
  %v3287 = vshrl.u32 %v2563, 16
  %v3289 = vrot.slane %v3287, 6
  %v3290 = vshll.u32 %v2563, 16
  %v3292 = vrot.slane %v3290, 7
  %v3293 = vor.u32 %v3289, %v3292
  %v3294 = vsel %vm2576, %v3285, %v3293
  %v3295 = vrot.slane %v3293, 4
  %v3297 = vshrl.u32 %v2564, 16
  %v3299 = vrot.slane %v3297, 6
  %v3300 = vshll.u32 %v2564, 16
  %v3302 = vrot.slane %v3300, 7
  %v3303 = vor.u32 %v3299, %v3302
  %v3304 = vsel %vm2576, %v3295, %v3303
  %v3305 = vrot.slane %v3303, 4
  %v3307 = vshrl.u32 %v2565, 16
  %v3309 = vrot.slane %v3307, 6
  %v3310 = vshll.u32 %v2565, 16
  %v3312 = vrot.slane %v3310, 7
  %v3313 = vor.u32 %v3309, %v3312
  %v3314 = vsel %vm2576, %v3305, %v3313
  %v3315 = vrot.slane %v3313, 4
  %v3317 = vshrl.u32 %v2566, 16
  %v3319 = vrot.slane %v3317, 6
  %v3320 = vshll.u32 %v2566, 16
  %v3322 = vrot.slane %v3320, 7
  %v3323 = vor.u32 %v3319, %v3322
  %v3324 = vsel %vm2576, %v3315, %v3323
  %v3325 = vrot.slane %v3323, 4
  %v3327 = vshrl.u32 %v2567, 16
  %v3329 = vrot.slane %v3327, 6
  %v3330 = vshll.u32 %v2567, 16
  %v3332 = vrot.slane %v3330, 7
  %v3333 = vor.u32 %v3329, %v3332
  %v3334 = vsel %vm2576, %v3325, %v3333
  %v3335 = vrot.slane %v3333, 4
  %v3337 = vshrl.u32 %v2568, 16
  %v3339 = vrot.slane %v3337, 6
  %v3340 = vshll.u32 %v2568, 16
  %v3342 = vrot.slane %v3340, 7
  %v3343 = vor.u32 %v3339, %v3342
  %v3344 = vsel %vm2576, %v3335, %v3343
  %v3345 = vrot.slane %v3343, 4
  %v3347 = vshrl.u32 %v2569, 16
  %v3349 = vrot.slane %v3347, 6
  %v3350 = vshll.u32 %v2569, 16
  %v3352 = vrot.slane %v3350, 7
  %v3353 = vor.u32 %v3349, %v3352
  %v3354 = vsel %vm2576, %v3345, %v3353
  %v3355 = vrot.slane %v3353, 4
  %v3357 = vshrl.u32 %v2570, 16
  %v3359 = vrot.slane %v3357, 6
  %v3360 = vshll.u32 %v2570, 16
  %v3362 = vrot.slane %v3360, 7
  %v3363 = vor.u32 %v3359, %v3362
  %v3364 = vsel %vm2576, %v3355, %v3363
  %v3365 = vrot.slane %v3363, 4
  %v3367 = vshrl.u32 %v2571, 16
  %v3369 = vrot.slane %v3367, 6
  %v3370 = vshll.u32 %v2571, 16
  %v3372 = vrot.slane %v3370, 7
  %v3373 = vor.u32 %v3369, %v3372
  %v3374 = vsel %vm2576, %v3365, %v3373
  %v3375 = vrot.slane %v3373, 4
  %v3377 = vshrl.u32 %v2572, 16
  %v3379 = vrot.slane %v3377, 6
  %v3380 = vshll.u32 %v2572, 16
  %v3382 = vrot.slane %v3380, 7
  %v3383 = vor.u32 %v3379, %v3382
  %v3384 = vsel %vm2576, %v3375, %v3383
  %v3385 = vrot.slane %v3383, 4
  %v3387 = vshrl.u32 %v2573, 16
  %v3389 = vrot.slane %v3387, 6
  %v3390 = vshll.u32 %v2573, 16
  %v3392 = vrot.slane %v3390, 7
  %v3393 = vor.u32 %v3389, %v3392
  %v3394 = vsel %vm2576, %v3385, %v3393
  %3476 = vst.msk [vmem:[#allocation3] sm:$0xf] %vm2120, %v2594
  %3477 = vst.msk [vmem:[#allocation3 + $0x8] sm:$0xf] %vm2120, %v2604
  %3478 = vst.msk [vmem:[#allocation3 + $0x10] sm:$0xf] %vm2120, %v2614
  %3479 = vst.msk [vmem:[#allocation3 + $0x18] sm:$0xf] %vm2120, %v2624
  %3480 = vst.msk [vmem:[#allocation3 + $0x20] sm:$0xf] %vm2120, %v2634
  %3481 = vst.msk [vmem:[#allocation3 + $0x28] sm:$0xf] %vm2120, %v2644
  %3482 = vst.msk [vmem:[#allocation3 + $0x30] sm:$0xf] %vm2120, %v2654
  %3483 = vst.msk [vmem:[#allocation3 + $0x38] sm:$0xf] %vm2120, %v2664
  %3484 = vst.msk [vmem:[#allocation3 + $0x40] sm:$0xf] %vm2120, %v2674
  %3485 = vst.msk [vmem:[#allocation3 + $0x48] sm:$0xf] %vm2120, %v2684
  %3486 = vst.msk [vmem:[#allocation3 + $0x50] sm:$0xf] %vm2120, %v2694
  %3487 = vst.msk [vmem:[#allocation3 + $0x58] sm:$0xf] %vm2120, %v2704
  %3488 = vst.msk [vmem:[#allocation3 + $0x60] sm:$0xf] %vm2120, %v2714
  %3489 = vst.msk [vmem:[#allocation3 + $0x68] sm:$0xf] %vm2120, %v2724
  %3490 = vst.msk [vmem:[#allocation3 + $0x70] sm:$0xf] %vm2120, %v2734
  %3491 = vst.msk [vmem:[#allocation3 + $0x78] sm:$0xf] %vm2120, %v2744
  %3492 = vst.msk [vmem:[#allocation3 + $0x80] sm:$0xf] %vm2120, %v2754
  %3493 = vst.msk [vmem:[#allocation3 + $0x88] sm:$0xf] %vm2120, %v2764
  %3494 = vst.msk [vmem:[#allocation3 + $0x90] sm:$0xf] %vm2120, %v2774
  %3495 = vst.msk [vmem:[#allocation3 + $0x98] sm:$0xf] %vm2120, %v2784
  %3496 = vst.msk [vmem:[#allocation3 + $0xa0] sm:$0xf] %vm2120, %v2794
  %3497 = vst.msk [vmem:[#allocation3 + $0xa8] sm:$0xf] %vm2120, %v2804
  %3498 = vst.msk [vmem:[#allocation3 + $0xb0] sm:$0xf] %vm2120, %v2814
  %3499 = vst.msk [vmem:[#allocation3 + $0xb8] sm:$0xf] %vm2120, %v2824
  %3500 = vst.msk [vmem:[#allocation3 + $0xc0] sm:$0xf] %vm2120, %v2834
  %3501 = vst.msk [vmem:[#allocation3 + $0xc8] sm:$0xf] %vm2120, %v2844
  %3502 = vst.msk [vmem:[#allocation3 + $0xd0] sm:$0xf] %vm2120, %v2854
  %3503 = vst.msk [vmem:[#allocation3 + $0xd8] sm:$0xf] %vm2120, %v2864
  %3504 = vst.msk [vmem:[#allocation3 + $0xe0] sm:$0xf] %vm2120, %v2874
  %3505 = vst.msk [vmem:[#allocation3 + $0xe8] sm:$0xf] %vm2120, %v2884
  %3506 = vst.msk [vmem:[#allocation3 + $0xf0] sm:$0xf] %vm2120, %v2894
  %3507 = vst.msk [vmem:[#allocation3 + $0xf8] sm:$0xf] %vm2120, %v2904
  %3508 = vst.msk [vmem:[#allocation3 + $0x100] sm:$0xf] %vm2120, %v2914
  %3509 = vst.msk [vmem:[#allocation3 + $0x108] sm:$0xf] %vm2120, %v2924
  %3510 = vst.msk [vmem:[#allocation3 + $0x110] sm:$0xf] %vm2120, %v2934
  %3511 = vst.msk [vmem:[#allocation3 + $0x118] sm:$0xf] %vm2120, %v2944
  %3512 = vst.msk [vmem:[#allocation3 + $0x120] sm:$0xf] %vm2120, %v2954
  %3513 = vst.msk [vmem:[#allocation3 + $0x128] sm:$0xf] %vm2120, %v2964
  %3514 = vst.msk [vmem:[#allocation3 + $0x130] sm:$0xf] %vm2120, %v2974
  %3515 = vst.msk [vmem:[#allocation3 + $0x138] sm:$0xf] %vm2120, %v2984
  %3516 = vst.msk [vmem:[#allocation3 + $0x140] sm:$0xf] %vm2120, %v2994
  %3517 = vst.msk [vmem:[#allocation3 + $0x148] sm:$0xf] %vm2120, %v3004
  %3518 = vst.msk [vmem:[#allocation3 + $0x150] sm:$0xf] %vm2120, %v3014
  %3519 = vst.msk [vmem:[#allocation3 + $0x158] sm:$0xf] %vm2120, %v3024
  %3520 = vst.msk [vmem:[#allocation3 + $0x160] sm:$0xf] %vm2120, %v3034
  %3521 = vst.msk [vmem:[#allocation3 + $0x168] sm:$0xf] %vm2120, %v3044
  %3522 = vst.msk [vmem:[#allocation3 + $0x170] sm:$0xf] %vm2120, %v3054
  %3523 = vst.msk [vmem:[#allocation3 + $0x178] sm:$0xf] %vm2120, %v3064
  %3524 = vst.msk [vmem:[#allocation3 + $0x180] sm:$0xf] %vm2120, %v3074
  %3525 = vst.msk [vmem:[#allocation3 + $0x188] sm:$0xf] %vm2120, %v3084
  %3526 = vst.msk [vmem:[#allocation3 + $0x190] sm:$0xf] %vm2120, %v3094
  %3527 = vst.msk [vmem:[#allocation3 + $0x198] sm:$0xf] %vm2120, %v3104
  %3528 = vst.msk [vmem:[#allocation3 + $0x1a0] sm:$0xf] %vm2120, %v3114
  %3529 = vst.msk [vmem:[#allocation3 + $0x1a8] sm:$0xf] %vm2120, %v3124
  %3530 = vst.msk [vmem:[#allocation3 + $0x1b0] sm:$0xf] %vm2120, %v3134
  %3531 = vst.msk [vmem:[#allocation3 + $0x1b8] sm:$0xf] %vm2120, %v3144
  %3532 = vst.msk [vmem:[#allocation3 + $0x1c0] sm:$0xf] %vm2120, %v3154
  %3533 = vst.msk [vmem:[#allocation3 + $0x1c8] sm:$0xf] %vm2120, %v3164
  %3534 = vst.msk [vmem:[#allocation3 + $0x1d0] sm:$0xf] %vm2120, %v3174
  %3535 = vst.msk [vmem:[#allocation3 + $0x1d8] sm:$0xf] %vm2120, %v3184
  %3536 = vst.msk [vmem:[#allocation3 + $0x1e0] sm:$0xf] %vm2120, %v3194
  %3537 = vst.msk [vmem:[#allocation3 + $0x1e8] sm:$0xf] %vm2120, %v3204
  %3538 = vst.msk [vmem:[#allocation3 + $0x1f0] sm:$0xf] %vm2120, %v3214
  %3539 = vst.msk [vmem:[#allocation3 + $0x1f8] sm:$0xf] %vm2120, %v3224
  %3540 = vst.msk [vmem:[#allocation3 + $0x200] sm:$0xf] %vm2120, %v3234
  %3541 = vst.msk [vmem:[#allocation3 + $0x208] sm:$0xf] %vm2120, %v3244
  %3542 = vst.msk [vmem:[#allocation3 + $0x210] sm:$0xf] %vm2120, %v3254
  %3543 = vst.msk [vmem:[#allocation3 + $0x218] sm:$0xf] %vm2120, %v3264
  %3544 = vst.msk [vmem:[#allocation3 + $0x220] sm:$0xf] %vm2120, %v3274
  %3545 = vst.msk [vmem:[#allocation3 + $0x228] sm:$0xf] %vm2120, %v3284
  %3546 = vst.msk [vmem:[#allocation3 + $0x230] sm:$0xf] %vm2120, %v3294
  %3547 = vst.msk [vmem:[#allocation3 + $0x238] sm:$0xf] %vm2120, %v3304
  %3548 = vst.msk [vmem:[#allocation3 + $0x240] sm:$0xf] %vm2120, %v3314
  %3549 = vst.msk [vmem:[#allocation3 + $0x248] sm:$0xf] %vm2120, %v3324
  %3550 = vst.msk [vmem:[#allocation3 + $0x250] sm:$0xf] %vm2120, %v3334
  %3551 = vst.msk [vmem:[#allocation3 + $0x258] sm:$0xf] %vm2120, %v3344
  %3552 = vst.msk [vmem:[#allocation3 + $0x260] sm:$0xf] %vm2120, %v3354
  %3553 = vst.msk [vmem:[#allocation3 + $0x268] sm:$0xf] %vm2120, %v3364
  %3554 = vst.msk [vmem:[#allocation3 + $0x270] sm:$0xf] %vm2120, %v3374
  %3555 = vst.msk [vmem:[#allocation3 + $0x278] sm:$0xf] %vm2120, %v3384
  %3556 = vst.msk [vmem:[#allocation3 + $0x280] sm:$0xf] %vm2120, %v3394
  %v3557 = vld [vmem:[#allocation2] sm:$0x8]
  %v3558 = vld [vmem:[#allocation2 + $0x4] sm:$0xf]
  %v3559 = vld [vmem:[#allocation2 + $0x8] sm:$0xf]
  %v3560 = vld [vmem:[#allocation2 + $0xc] sm:$0xf]
  %v3561 = vld [vmem:[#allocation2 + $0x10] sm:$0xf]
  %v3562 = vld [vmem:[#allocation2 + $0x14] sm:$0xf]
  %v3563 = vld [vmem:[#allocation2 + $0x18] sm:$0xf]
  %v3564 = vld [vmem:[#allocation2 + $0x1c] sm:$0xf]
  %v3565 = vld [vmem:[#allocation2 + $0x20] sm:$0xf]
  %v3566 = vld [vmem:[#allocation2 + $0x24] sm:$0xf]
  %v3567 = vld [vmem:[#allocation2 + $0x28] sm:$0xf]
  %v3568 = vld [vmem:[#allocation2 + $0x2c] sm:$0xf]
  %v3569 = vld [vmem:[#allocation2 + $0x30] sm:$0xf]
  %v3570 = vld [vmem:[#allocation2 + $0x34] sm:$0xf]
  %v3571 = vld [vmem:[#allocation2 + $0x38] sm:$0xf]
  %v3572 = vld [vmem:[#allocation2 + $0x3c] sm:$0xf]
  %v3573 = vld [vmem:[#allocation2 + $0x40] sm:$0xf]
  %v3574 = vld [vmem:[#allocation2 + $0x44] sm:$0xf]
  %v3575 = vld [vmem:[#allocation2 + $0x48] sm:$0xf]
  %v3576 = vld [vmem:[#allocation2 + $0x4c] sm:$0xf]
  %v3577 = vld [vmem:[#allocation2 + $0x50] sm:$0xf]
  %v3578 = vld [vmem:[#allocation2 + $0x54] sm:$0xf]
  %v3579 = vld [vmem:[#allocation2 + $0x58] sm:$0xf]
  %v3580 = vld [vmem:[#allocation2 + $0x5c] sm:$0xf]
  %v3581 = vld [vmem:[#allocation2 + $0x60] sm:$0xf]
  %v3582 = vld [vmem:[#allocation2 + $0x64] sm:$0xf]
  %v3583 = vld [vmem:[#allocation2 + $0x68] sm:$0xf]
  %v3584 = vld [vmem:[#allocation2 + $0x6c] sm:$0xf]
  %v3585 = vld [vmem:[#allocation2 + $0x70] sm:$0xf]
  %v3586 = vld [vmem:[#allocation2 + $0x74] sm:$0xf]
  %v3587 = vld [vmem:[#allocation2 + $0x78] sm:$0xf]
  %v3588 = vld [vmem:[#allocation2 + $0x7c] sm:$0xf]
  %v3589 = vld [vmem:[#allocation2 + $0x80] sm:$0xf]
  %v3590 = vld [vmem:[#allocation2 + $0x84] sm:$0xf]
  %v3591 = vld [vmem:[#allocation2 + $0x88] sm:$0xf]
  %v3592 = vld [vmem:[#allocation2 + $0x8c] sm:$0xf]
  %v3593 = vld [vmem:[#allocation2 + $0x90] sm:$0xf]
  %v3594 = vld [vmem:[#allocation2 + $0x94] sm:$0xf]
  %v3595 = vld [vmem:[#allocation2 + $0x98] sm:$0xf]
  %v3596 = vld [vmem:[#allocation2 + $0x9c] sm:$0xf]
  %v3597 = vld [vmem:[#allocation2 + $0xa0] sm:$0xf]
  %v3598 = vld [vmem:[#allocation2 + $0xa4] sm:$0xf]
  %v3599 = vld [vmem:[#allocation2 + $0xa8] sm:$0xf]
  %v3600 = vld [vmem:[#allocation2 + $0xac] sm:$0xf]
  %v3601 = vld [vmem:[#allocation2 + $0xb0] sm:$0xf]
  %v3602 = vld [vmem:[#allocation2 + $0xb4] sm:$0xf]
  %v3603 = vld [vmem:[#allocation2 + $0xb8] sm:$0xf]
  %v3604 = vld [vmem:[#allocation2 + $0xbc] sm:$0xf]
  %v3605 = vld [vmem:[#allocation2 + $0xc0] sm:$0xf]
  %v3606 = vld [vmem:[#allocation2 + $0xc4] sm:$0xf]
  %v3607 = vld [vmem:[#allocation2 + $0xc8] sm:$0xf]
  %v3608 = vld [vmem:[#allocation2 + $0xcc] sm:$0xf]
  %v3609 = vld [vmem:[#allocation2 + $0xd0] sm:$0xf]
  %v3610 = vld [vmem:[#allocation2 + $0xd4] sm:$0xf]
  %v3611 = vld [vmem:[#allocation2 + $0xd8] sm:$0xf]
  %v3612 = vld [vmem:[#allocation2 + $0xdc] sm:$0xf]
  %v3613 = vld [vmem:[#allocation2 + $0xe0] sm:$0xf]
  %v3614 = vld [vmem:[#allocation2 + $0xe4] sm:$0xf]
  %v3615 = vld [vmem:[#allocation2 + $0xe8] sm:$0xf]
  %v3616 = vld [vmem:[#allocation2 + $0xec] sm:$0xf]
  %v3617 = vld [vmem:[#allocation2 + $0xf0] sm:$0xf]
  %v3618 = vld [vmem:[#allocation2 + $0xf4] sm:$0xf]
  %v3619 = vld [vmem:[#allocation2 + $0xf8] sm:$0xf]
  %v3620 = vld [vmem:[#allocation2 + $0xfc] sm:$0xf]
  %v3621 = vld [vmem:[#allocation2 + $0x100] sm:$0xf]
  %v3622 = vld [vmem:[#allocation2 + $0x104] sm:$0xf]
  %v3623 = vld [vmem:[#allocation2 + $0x108] sm:$0xf]
  %v3624 = vld [vmem:[#allocation2 + $0x10c] sm:$0xf]
  %v3625 = vld [vmem:[#allocation2 + $0x110] sm:$0xf]
  %v3626 = vld [vmem:[#allocation2 + $0x114] sm:$0xf]
  %v3627 = vld [vmem:[#allocation2 + $0x118] sm:$0xf]
  %v3628 = vld [vmem:[#allocation2 + $0x11c] sm:$0xf]
  %v3629 = vld [vmem:[#allocation2 + $0x120] sm:$0xf]
  %v3630 = vld [vmem:[#allocation2 + $0x124] sm:$0xf]
  %v3631 = vld [vmem:[#allocation2 + $0x128] sm:$0xf]
  %v3632 = vld [vmem:[#allocation2 + $0x12c] sm:$0xf]
  %v3633 = vld [vmem:[#allocation2 + $0x130] sm:$0xf]
  %v3634 = vld [vmem:[#allocation2 + $0x134] sm:$0xf]
  %v3635 = vld [vmem:[#allocation2 + $0x138] sm:$0xf]
  %v3636 = vld [vmem:[#allocation2 + $0x13c] sm:$0xf]
  %v3637 = vld [vmem:[#allocation2 + $0x140] sm:$0xf]
  %v3638 = vld [vmem:[#allocation2 + $0x144] sm:$0x7]
  %vm3721 = vcmask 1040384
  %vm3722 = vcmask 1044484
  %vm3723 = vmor %vm3721, %vm3722
  %v3724 = vrot.slane %v3557, 7
  %v3725 = vrot.slane %v3724, 4
  %v3726 = vrot.slane %v3558, 7
  %v3727 = vsel %vm3723, %v3725, %v3726
  %v3728 = vrot.slane %v3726, 4
  %v3729 = vrot.slane %v3559, 7
  %v3730 = vsel %vm3723, %v3728, %v3729
  %v3731 = vrot.slane %v3729, 4
  %v3732 = vrot.slane %v3560, 7
  %v3733 = vsel %vm3723, %v3731, %v3732
  %v3734 = vrot.slane %v3732, 4
  %v3735 = vrot.slane %v3561, 7
  %v3736 = vsel %vm3723, %v3734, %v3735
  %v3737 = vrot.slane %v3735, 4
  %v3738 = vrot.slane %v3562, 7
  %v3739 = vsel %vm3723, %v3737, %v3738
  %v3740 = vrot.slane %v3738, 4
  %v3741 = vrot.slane %v3563, 7
  %v3742 = vsel %vm3723, %v3740, %v3741
  %v3743 = vrot.slane %v3741, 4
  %v3744 = vrot.slane %v3564, 7
  %v3745 = vsel %vm3723, %v3743, %v3744
  %v3746 = vrot.slane %v3744, 4
  %v3747 = vrot.slane %v3565, 7
  %v3748 = vsel %vm3723, %v3746, %v3747
  %v3749 = vrot.slane %v3747, 4
  %v3750 = vrot.slane %v3566, 7
  %v3751 = vsel %vm3723, %v3749, %v3750
  %v3752 = vrot.slane %v3750, 4
  %v3753 = vrot.slane %v3567, 7
  %v3754 = vsel %vm3723, %v3752, %v3753
  %v3755 = vrot.slane %v3753, 4
  %v3756 = vrot.slane %v3568, 7
  %v3757 = vsel %vm3723, %v3755, %v3756
  %v3758 = vrot.slane %v3756, 4
  %v3759 = vrot.slane %v3569, 7
  %v3760 = vsel %vm3723, %v3758, %v3759
  %v3761 = vrot.slane %v3759, 4
  %v3762 = vrot.slane %v3570, 7
  %v3763 = vsel %vm3723, %v3761, %v3762
  %v3764 = vrot.slane %v3762, 4
  %v3765 = vrot.slane %v3571, 7
  %v3766 = vsel %vm3723, %v3764, %v3765
  %v3767 = vrot.slane %v3765, 4
  %v3768 = vrot.slane %v3572, 7
  %v3769 = vsel %vm3723, %v3767, %v3768
  %v3770 = vrot.slane %v3768, 4
  %v3771 = vrot.slane %v3573, 7
  %v3772 = vsel %vm3723, %v3770, %v3771
  %v3773 = vrot.slane %v3771, 4
  %v3774 = vrot.slane %v3574, 7
  %v3775 = vsel %vm3723, %v3773, %v3774
  %v3776 = vrot.slane %v3774, 4
  %v3777 = vrot.slane %v3575, 7
  %v3778 = vsel %vm3723, %v3776, %v3777
  %v3779 = vrot.slane %v3777, 4
  %v3780 = vrot.slane %v3576, 7
  %v3781 = vsel %vm3723, %v3779, %v3780
  %v3782 = vrot.slane %v3780, 4
  %v3783 = vrot.slane %v3577, 7
  %v3784 = vsel %vm3723, %v3782, %v3783
  %v3785 = vrot.slane %v3783, 4
  %v3786 = vrot.slane %v3578, 7
  %v3787 = vsel %vm3723, %v3785, %v3786
  %v3788 = vrot.slane %v3786, 4
  %v3789 = vrot.slane %v3579, 7
  %v3790 = vsel %vm3723, %v3788, %v3789
  %v3791 = vrot.slane %v3789, 4
  %v3792 = vrot.slane %v3580, 7
  %v3793 = vsel %vm3723, %v3791, %v3792
  %v3794 = vrot.slane %v3792, 4
  %v3795 = vrot.slane %v3581, 7
  %v3796 = vsel %vm3723, %v3794, %v3795
  %v3797 = vrot.slane %v3795, 4
  %v3798 = vrot.slane %v3582, 7
  %v3799 = vsel %vm3723, %v3797, %v3798
  %v3800 = vrot.slane %v3798, 4
  %v3801 = vrot.slane %v3583, 7
  %v3802 = vsel %vm3723, %v3800, %v3801
  %v3803 = vrot.slane %v3801, 4
  %v3804 = vrot.slane %v3584, 7
  %v3805 = vsel %vm3723, %v3803, %v3804
  %v3806 = vrot.slane %v3804, 4
  %v3807 = vrot.slane %v3585, 7
  %v3808 = vsel %vm3723, %v3806, %v3807
  %v3809 = vrot.slane %v3807, 4
  %v3810 = vrot.slane %v3586, 7
  %v3811 = vsel %vm3723, %v3809, %v3810
  %v3812 = vrot.slane %v3810, 4
  %v3813 = vrot.slane %v3587, 7
  %v3814 = vsel %vm3723, %v3812, %v3813
  %v3815 = vrot.slane %v3813, 4
  %v3816 = vrot.slane %v3588, 7
  %v3817 = vsel %vm3723, %v3815, %v3816
  %v3818 = vrot.slane %v3816, 4
  %v3819 = vrot.slane %v3589, 7
  %v3820 = vsel %vm3723, %v3818, %v3819
  %v3821 = vrot.slane %v3819, 4
  %v3822 = vrot.slane %v3590, 7
  %v3823 = vsel %vm3723, %v3821, %v3822
  %v3824 = vrot.slane %v3822, 4
  %v3825 = vrot.slane %v3591, 7
  %v3826 = vsel %vm3723, %v3824, %v3825
  %v3827 = vrot.slane %v3825, 4
  %v3828 = vrot.slane %v3592, 7
  %v3829 = vsel %vm3723, %v3827, %v3828
  %v3830 = vrot.slane %v3828, 4
  %v3831 = vrot.slane %v3593, 7
  %v3832 = vsel %vm3723, %v3830, %v3831
  %v3833 = vrot.slane %v3831, 4
  %v3834 = vrot.slane %v3594, 7
  %v3835 = vsel %vm3723, %v3833, %v3834
  %v3836 = vrot.slane %v3834, 4
  %v3837 = vrot.slane %v3595, 7
  %v3838 = vsel %vm3723, %v3836, %v3837
  %v3839 = vrot.slane %v3837, 4
  %v3840 = vrot.slane %v3596, 7
  %v3841 = vsel %vm3723, %v3839, %v3840
  %v3842 = vrot.slane %v3840, 4
  %v3843 = vrot.slane %v3597, 7
  %v3844 = vsel %vm3723, %v3842, %v3843
  %v3845 = vrot.slane %v3843, 4
  %v3846 = vrot.slane %v3598, 7
  %v3847 = vsel %vm3723, %v3845, %v3846
  %v3848 = vrot.slane %v3846, 4
  %v3849 = vrot.slane %v3599, 7
  %v3850 = vsel %vm3723, %v3848, %v3849
  %v3851 = vrot.slane %v3849, 4
  %v3852 = vrot.slane %v3600, 7
  %v3853 = vsel %vm3723, %v3851, %v3852
  %v3854 = vrot.slane %v3852, 4
  %v3855 = vrot.slane %v3601, 7
  %v3856 = vsel %vm3723, %v3854, %v3855
  %v3857 = vrot.slane %v3855, 4
  %v3858 = vrot.slane %v3602, 7
  %v3859 = vsel %vm3723, %v3857, %v3858
  %v3860 = vrot.slane %v3858, 4
  %v3861 = vrot.slane %v3603, 7
  %v3862 = vsel %vm3723, %v3860, %v3861
  %v3863 = vrot.slane %v3861, 4
  %v3864 = vrot.slane %v3604, 7
  %v3865 = vsel %vm3723, %v3863, %v3864
  %v3866 = vrot.slane %v3864, 4
  %v3867 = vrot.slane %v3605, 7
  %v3868 = vsel %vm3723, %v3866, %v3867
  %v3869 = vrot.slane %v3867, 4
  %v3870 = vrot.slane %v3606, 7
  %v3871 = vsel %vm3723, %v3869, %v3870
  %v3872 = vrot.slane %v3870, 4
  %v3873 = vrot.slane %v3607, 7
  %v3874 = vsel %vm3723, %v3872, %v3873
  %v3875 = vrot.slane %v3873, 4
  %v3876 = vrot.slane %v3608, 7
  %v3877 = vsel %vm3723, %v3875, %v3876
  %v3878 = vrot.slane %v3876, 4
  %v3879 = vrot.slane %v3609, 7
  %v3880 = vsel %vm3723, %v3878, %v3879
  %v3881 = vrot.slane %v3879, 4
  %v3882 = vrot.slane %v3610, 7
  %v3883 = vsel %vm3723, %v3881, %v3882
  %v3884 = vrot.slane %v3882, 4
  %v3885 = vrot.slane %v3611, 7
  %v3886 = vsel %vm3723, %v3884, %v3885
  %v3887 = vrot.slane %v3885, 4
  %v3888 = vrot.slane %v3612, 7
  %v3889 = vsel %vm3723, %v3887, %v3888
  %v3890 = vrot.slane %v3888, 4
  %v3891 = vrot.slane %v3613, 7
  %v3892 = vsel %vm3723, %v3890, %v3891
  %v3893 = vrot.slane %v3891, 4
  %v3894 = vrot.slane %v3614, 7
  %v3895 = vsel %vm3723, %v3893, %v3894
  %v3896 = vrot.slane %v3894, 4
  %v3897 = vrot.slane %v3615, 7
  %v3898 = vsel %vm3723, %v3896, %v3897
  %v3899 = vrot.slane %v3897, 4
  %v3900 = vrot.slane %v3616, 7
  %v3901 = vsel %vm3723, %v3899, %v3900
  %v3902 = vrot.slane %v3900, 4
  %v3903 = vrot.slane %v3617, 7
  %v3904 = vsel %vm3723, %v3902, %v3903
  %v3905 = vrot.slane %v3903, 4
  %v3906 = vrot.slane %v3618, 7
  %v3907 = vsel %vm3723, %v3905, %v3906
  %v3908 = vrot.slane %v3906, 4
  %v3909 = vrot.slane %v3619, 7
  %v3910 = vsel %vm3723, %v3908, %v3909
  %v3911 = vrot.slane %v3909, 4
  %v3912 = vrot.slane %v3620, 7
  %v3913 = vsel %vm3723, %v3911, %v3912
  %v3914 = vrot.slane %v3912, 4
  %v3915 = vrot.slane %v3621, 7
  %v3916 = vsel %vm3723, %v3914, %v3915
  %v3917 = vrot.slane %v3915, 4
  %v3918 = vrot.slane %v3622, 7
  %v3919 = vsel %vm3723, %v3917, %v3918
  %v3920 = vrot.slane %v3918, 4
  %v3921 = vrot.slane %v3623, 7
  %v3922 = vsel %vm3723, %v3920, %v3921
  %v3923 = vrot.slane %v3921, 4
  %v3924 = vrot.slane %v3624, 7
  %v3925 = vsel %vm3723, %v3923, %v3924
  %v3926 = vrot.slane %v3924, 4
  %v3927 = vrot.slane %v3625, 7
  %v3928 = vsel %vm3723, %v3926, %v3927
  %v3929 = vrot.slane %v3927, 4
  %v3930 = vrot.slane %v3626, 7
  %v3931 = vsel %vm3723, %v3929, %v3930
  %v3932 = vrot.slane %v3930, 4
  %v3933 = vrot.slane %v3627, 7
  %v3934 = vsel %vm3723, %v3932, %v3933
  %v3935 = vrot.slane %v3933, 4
  %v3936 = vrot.slane %v3628, 7
  %v3937 = vsel %vm3723, %v3935, %v3936
  %v3938 = vrot.slane %v3936, 4
  %v3939 = vrot.slane %v3629, 7
  %v3940 = vsel %vm3723, %v3938, %v3939
  %v3941 = vrot.slane %v3939, 4
  %v3942 = vrot.slane %v3630, 7
  %v3943 = vsel %vm3723, %v3941, %v3942
  %v3944 = vrot.slane %v3942, 4
  %v3945 = vrot.slane %v3631, 7
  %v3946 = vsel %vm3723, %v3944, %v3945
  %v3947 = vrot.slane %v3945, 4
  %v3948 = vrot.slane %v3632, 7
  %v3949 = vsel %vm3723, %v3947, %v3948
  %v3950 = vrot.slane %v3948, 4
  %v3951 = vrot.slane %v3633, 7
  %v3952 = vsel %vm3723, %v3950, %v3951
  %v3953 = vrot.slane %v3951, 4
  %v3954 = vrot.slane %v3634, 7
  %v3955 = vsel %vm3723, %v3953, %v3954
  %v3956 = vrot.slane %v3954, 4
  %v3957 = vrot.slane %v3635, 7
  %v3958 = vsel %vm3723, %v3956, %v3957
  %v3959 = vrot.slane %v3957, 4
  %v3960 = vrot.slane %v3636, 7
  %v3961 = vsel %vm3723, %v3959, %v3960
  %v3962 = vrot.slane %v3960, 4
  %v3963 = vrot.slane %v3637, 7
  %v3964 = vsel %vm3723, %v3962, %v3963
  %v3965 = vrot.slane %v3963, 4
  %v3966 = vrot.slane %v3638, 7
  %v3967 = vsel %vm3723, %v3965, %v3966
  %3968 = vrot.lane.b32.xlu0 %v3727, 16
  %v3969 = vpop.permute.xlu0 %3968
  %3970 = vrot.lane.b32.xlu0 %v3730, 16
  %v3971 = vpop.permute.xlu0 %3970
  %3972 = vrot.lane.b32.xlu0 %v3733, 16
  %v3973 = vpop.permute.xlu0 %3972
  %3974 = vrot.lane.b32.xlu0 %v3736, 16
  %v3975 = vpop.permute.xlu0 %3974
  %3976 = vrot.lane.b32.xlu0 %v3739, 16
  %v3977 = vpop.permute.xlu0 %3976
  %3978 = vrot.lane.b32.xlu0 %v3742, 16
  %v3979 = vpop.permute.xlu0 %3978
  %3980 = vrot.lane.b32.xlu0 %v3745, 16
  %v3981 = vpop.permute.xlu0 %3980
  %3982 = vrot.lane.b32.xlu0 %v3748, 16
  %v3983 = vpop.permute.xlu0 %3982
  %3984 = vrot.lane.b32.xlu0 %v3751, 16
  %v3985 = vpop.permute.xlu0 %3984
  %3986 = vrot.lane.b32.xlu0 %v3754, 16
  %v3987 = vpop.permute.xlu0 %3986
  %3988 = vrot.lane.b32.xlu0 %v3757, 16
  %v3989 = vpop.permute.xlu0 %3988
  %3990 = vrot.lane.b32.xlu0 %v3760, 16
  %v3991 = vpop.permute.xlu0 %3990
  %3992 = vrot.lane.b32.xlu0 %v3763, 16
  %v3993 = vpop.permute.xlu0 %3992
  %3994 = vrot.lane.b32.xlu0 %v3766, 16
  %v3995 = vpop.permute.xlu0 %3994
  %3996 = vrot.lane.b32.xlu0 %v3769, 16
  %v3997 = vpop.permute.xlu0 %3996
  %3998 = vrot.lane.b32.xlu0 %v3772, 16
  %v3999 = vpop.permute.xlu0 %3998
  %4000 = vrot.lane.b32.xlu0 %v3775, 16
  %v4001 = vpop.permute.xlu0 %4000
  %4002 = vrot.lane.b32.xlu0 %v3778, 16
  %v4003 = vpop.permute.xlu0 %4002
  %4004 = vrot.lane.b32.xlu0 %v3781, 16
  %v4005 = vpop.permute.xlu0 %4004
  %4006 = vrot.lane.b32.xlu0 %v3784, 16
  %v4007 = vpop.permute.xlu0 %4006
  %4008 = vrot.lane.b32.xlu0 %v3787, 16
  %v4009 = vpop.permute.xlu0 %4008
  %4010 = vrot.lane.b32.xlu0 %v3790, 16
  %v4011 = vpop.permute.xlu0 %4010
  %4012 = vrot.lane.b32.xlu0 %v3793, 16
  %v4013 = vpop.permute.xlu0 %4012
  %4014 = vrot.lane.b32.xlu0 %v3796, 16
  %v4015 = vpop.permute.xlu0 %4014
  %4016 = vrot.lane.b32.xlu0 %v3799, 16
  %v4017 = vpop.permute.xlu0 %4016
  %4018 = vrot.lane.b32.xlu0 %v3802, 16
  %v4019 = vpop.permute.xlu0 %4018
  %4020 = vrot.lane.b32.xlu0 %v3805, 16
  %v4021 = vpop.permute.xlu0 %4020
  %4022 = vrot.lane.b32.xlu0 %v3808, 16
  %v4023 = vpop.permute.xlu0 %4022
  %4024 = vrot.lane.b32.xlu0 %v3811, 16
  %v4025 = vpop.permute.xlu0 %4024
  %4026 = vrot.lane.b32.xlu0 %v3814, 16
  %v4027 = vpop.permute.xlu0 %4026
  %4028 = vrot.lane.b32.xlu0 %v3817, 16
  %v4029 = vpop.permute.xlu0 %4028
  %4030 = vrot.lane.b32.xlu0 %v3820, 16
  %v4031 = vpop.permute.xlu0 %4030
  %4032 = vrot.lane.b32.xlu0 %v3823, 16
  %v4033 = vpop.permute.xlu0 %4032
  %4034 = vrot.lane.b32.xlu0 %v3826, 16
  %v4035 = vpop.permute.xlu0 %4034
  %4036 = vrot.lane.b32.xlu0 %v3829, 16
  %v4037 = vpop.permute.xlu0 %4036
  %4038 = vrot.lane.b32.xlu0 %v3832, 16
  %v4039 = vpop.permute.xlu0 %4038
  %4040 = vrot.lane.b32.xlu0 %v3835, 16
  %v4041 = vpop.permute.xlu0 %4040
  %4042 = vrot.lane.b32.xlu0 %v3838, 16
  %v4043 = vpop.permute.xlu0 %4042
  %4044 = vrot.lane.b32.xlu0 %v3841, 16
  %v4045 = vpop.permute.xlu0 %4044
  %4046 = vrot.lane.b32.xlu0 %v3844, 16
  %v4047 = vpop.permute.xlu0 %4046
  %4048 = vrot.lane.b32.xlu0 %v3847, 16
  %v4049 = vpop.permute.xlu0 %4048
  %4050 = vrot.lane.b32.xlu0 %v3850, 16
  %v4051 = vpop.permute.xlu0 %4050
  %4052 = vrot.lane.b32.xlu0 %v3853, 16
  %v4053 = vpop.permute.xlu0 %4052
  %4054 = vrot.lane.b32.xlu0 %v3856, 16
  %v4055 = vpop.permute.xlu0 %4054
  %4056 = vrot.lane.b32.xlu0 %v3859, 16
  %v4057 = vpop.permute.xlu0 %4056
  %4058 = vrot.lane.b32.xlu0 %v3862, 16
  %v4059 = vpop.permute.xlu0 %4058
  %4060 = vrot.lane.b32.xlu0 %v3865, 16
  %v4061 = vpop.permute.xlu0 %4060
  %4062 = vrot.lane.b32.xlu0 %v3868, 16
  %v4063 = vpop.permute.xlu0 %4062
  %4064 = vrot.lane.b32.xlu0 %v3871, 16
  %v4065 = vpop.permute.xlu0 %4064
  %4066 = vrot.lane.b32.xlu0 %v3874, 16
  %v4067 = vpop.permute.xlu0 %4066
  %4068 = vrot.lane.b32.xlu0 %v3877, 16
  %v4069 = vpop.permute.xlu0 %4068
  %4070 = vrot.lane.b32.xlu0 %v3880, 16
  %v4071 = vpop.permute.xlu0 %4070
  %4072 = vrot.lane.b32.xlu0 %v3883, 16
  %v4073 = vpop.permute.xlu0 %4072
  %4074 = vrot.lane.b32.xlu0 %v3886, 16
  %v4075 = vpop.permute.xlu0 %4074
  %4076 = vrot.lane.b32.xlu0 %v3889, 16
  %v4077 = vpop.permute.xlu0 %4076
  %4078 = vrot.lane.b32.xlu0 %v3892, 16
  %v4079 = vpop.permute.xlu0 %4078
  %4080 = vrot.lane.b32.xlu0 %v3895, 16
  %v4081 = vpop.permute.xlu0 %4080
  %4082 = vrot.lane.b32.xlu0 %v3898, 16
  %v4083 = vpop.permute.xlu0 %4082
  %4084 = vrot.lane.b32.xlu0 %v3901, 16
  %v4085 = vpop.permute.xlu0 %4084
  %4086 = vrot.lane.b32.xlu0 %v3904, 16
  %v4087 = vpop.permute.xlu0 %4086
  %4088 = vrot.lane.b32.xlu0 %v3907, 16
  %v4089 = vpop.permute.xlu0 %4088
  %4090 = vrot.lane.b32.xlu0 %v3910, 16
  %v4091 = vpop.permute.xlu0 %4090
  %4092 = vrot.lane.b32.xlu0 %v3913, 16
  %v4093 = vpop.permute.xlu0 %4092
  %4094 = vrot.lane.b32.xlu0 %v3916, 16
  %v4095 = vpop.permute.xlu0 %4094
  %4096 = vrot.lane.b32.xlu0 %v3919, 16
  %v4097 = vpop.permute.xlu0 %4096
  %4098 = vrot.lane.b32.xlu0 %v3922, 16
  %v4099 = vpop.permute.xlu0 %4098
  %4100 = vrot.lane.b32.xlu0 %v3925, 16
  %v4101 = vpop.permute.xlu0 %4100
  %4102 = vrot.lane.b32.xlu0 %v3928, 16
  %v4103 = vpop.permute.xlu0 %4102
  %4104 = vrot.lane.b32.xlu0 %v3931, 16
  %v4105 = vpop.permute.xlu0 %4104
  %4106 = vrot.lane.b32.xlu0 %v3934, 16
  %v4107 = vpop.permute.xlu0 %4106
  %4108 = vrot.lane.b32.xlu0 %v3937, 16
  %v4109 = vpop.permute.xlu0 %4108
  %4110 = vrot.lane.b32.xlu0 %v3940, 16
  %v4111 = vpop.permute.xlu0 %4110
  %4112 = vrot.lane.b32.xlu0 %v3943, 16
  %v4113 = vpop.permute.xlu0 %4112
  %4114 = vrot.lane.b32.xlu0 %v3946, 16
  %v4115 = vpop.permute.xlu0 %4114
  %4116 = vrot.lane.b32.xlu0 %v3949, 16
  %v4117 = vpop.permute.xlu0 %4116
  %4118 = vrot.lane.b32.xlu0 %v3952, 16
  %v4119 = vpop.permute.xlu0 %4118
  %4120 = vrot.lane.b32.xlu0 %v3955, 16
  %v4121 = vpop.permute.xlu0 %4120
  %4122 = vrot.lane.b32.xlu0 %v3958, 16
  %v4123 = vpop.permute.xlu0 %4122
  %4124 = vrot.lane.b32.xlu0 %v3961, 16
  %v4125 = vpop.permute.xlu0 %4124
  %4126 = vrot.lane.b32.xlu0 %v3964, 16
  %v4127 = vpop.permute.xlu0 %4126
  %4128 = vrot.lane.b32.xlu0 %v3967, 16
  %v4129 = vpop.permute.xlu0 %4128
  %vm4211 = vcmask 257152
  %4212 = vst.msk [vmem:[#allocation3] sm:$0xf] %vm4211, %v3969
  %4213 = vst.msk [vmem:[#allocation3 + $0x8] sm:$0xf] %vm4211, %v3971
  %4214 = vst.msk [vmem:[#allocation3 + $0x10] sm:$0xf] %vm4211, %v3973
  %4215 = vst.msk [vmem:[#allocation3 + $0x18] sm:$0xf] %vm4211, %v3975
  %4216 = vst.msk [vmem:[#allocation3 + $0x20] sm:$0xf] %vm4211, %v3977
  %4217 = vst.msk [vmem:[#allocation3 + $0x28] sm:$0xf] %vm4211, %v3979
  %4218 = vst.msk [vmem:[#allocation3 + $0x30] sm:$0xf] %vm4211, %v3981
  %4219 = vst.msk [vmem:[#allocation3 + $0x38] sm:$0xf] %vm4211, %v3983
  %4220 = vst.msk [vmem:[#allocation3 + $0x40] sm:$0xf] %vm4211, %v3985
  %4221 = vst.msk [vmem:[#allocation3 + $0x48] sm:$0xf] %vm4211, %v3987
  %4222 = vst.msk [vmem:[#allocation3 + $0x50] sm:$0xf] %vm4211, %v3989
  %4223 = vst.msk [vmem:[#allocation3 + $0x58] sm:$0xf] %vm4211, %v3991
  %4224 = vst.msk [vmem:[#allocation3 + $0x60] sm:$0xf] %vm4211, %v3993
  %4225 = vst.msk [vmem:[#allocation3 + $0x68] sm:$0xf] %vm4211, %v3995
  %4226 = vst.msk [vmem:[#allocation3 + $0x70] sm:$0xf] %vm4211, %v3997
  %4227 = vst.msk [vmem:[#allocation3 + $0x78] sm:$0xf] %vm4211, %v3999
  %4228 = vst.msk [vmem:[#allocation3 + $0x80] sm:$0xf] %vm4211, %v4001
  %4229 = vst.msk [vmem:[#allocation3 + $0x88] sm:$0xf] %vm4211, %v4003
  %4230 = vst.msk [vmem:[#allocation3 + $0x90] sm:$0xf] %vm4211, %v4005
  %4231 = vst.msk [vmem:[#allocation3 + $0x98] sm:$0xf] %vm4211, %v4007
  %4232 = vst.msk [vmem:[#allocation3 + $0xa0] sm:$0xf] %vm4211, %v4009
  %4233 = vst.msk [vmem:[#allocation3 + $0xa8] sm:$0xf] %vm4211, %v4011
  %4234 = vst.msk [vmem:[#allocation3 + $0xb0] sm:$0xf] %vm4211, %v4013
  %4235 = vst.msk [vmem:[#allocation3 + $0xb8] sm:$0xf] %vm4211, %v4015
  %4236 = vst.msk [vmem:[#allocation3 + $0xc0] sm:$0xf] %vm4211, %v4017
  %4237 = vst.msk [vmem:[#allocation3 + $0xc8] sm:$0xf] %vm4211, %v4019
  %4238 = vst.msk [vmem:[#allocation3 + $0xd0] sm:$0xf] %vm4211, %v4021
  %4239 = vst.msk [vmem:[#allocation3 + $0xd8] sm:$0xf] %vm4211, %v4023
  %4240 = vst.msk [vmem:[#allocation3 + $0xe0] sm:$0xf] %vm4211, %v4025
  %4241 = vst.msk [vmem:[#allocation3 + $0xe8] sm:$0xf] %vm4211, %v4027
  %4242 = vst.msk [vmem:[#allocation3 + $0xf0] sm:$0xf] %vm4211, %v4029
  %4243 = vst.msk [vmem:[#allocation3 + $0xf8] sm:$0xf] %vm4211, %v4031
  %4244 = vst.msk [vmem:[#allocation3 + $0x100] sm:$0xf] %vm4211, %v4033
  %4245 = vst.msk [vmem:[#allocation3 + $0x108] sm:$0xf] %vm4211, %v4035
  %4246 = vst.msk [vmem:[#allocation3 + $0x110] sm:$0xf] %vm4211, %v4037
  %4247 = vst.msk [vmem:[#allocation3 + $0x118] sm:$0xf] %vm4211, %v4039
  %4248 = vst.msk [vmem:[#allocation3 + $0x120] sm:$0xf] %vm4211, %v4041
  %4249 = vst.msk [vmem:[#allocation3 + $0x128] sm:$0xf] %vm4211, %v4043
  %4250 = vst.msk [vmem:[#allocation3 + $0x130] sm:$0xf] %vm4211, %v4045
  %4251 = vst.msk [vmem:[#allocation3 + $0x138] sm:$0xf] %vm4211, %v4047
  %4252 = vst.msk [vmem:[#allocation3 + $0x140] sm:$0xf] %vm4211, %v4049
  %4253 = vst.msk [vmem:[#allocation3 + $0x148] sm:$0xf] %vm4211, %v4051
  %4254 = vst.msk [vmem:[#allocation3 + $0x150] sm:$0xf] %vm4211, %v4053
  %4255 = vst.msk [vmem:[#allocation3 + $0x158] sm:$0xf] %vm4211, %v4055
  %4256 = vst.msk [vmem:[#allocation3 + $0x160] sm:$0xf] %vm4211, %v4057
  %4257 = vst.msk [vmem:[#allocation3 + $0x168] sm:$0xf] %vm4211, %v4059
  %4258 = vst.msk [vmem:[#allocation3 + $0x170] sm:$0xf] %vm4211, %v4061
  %4259 = vst.msk [vmem:[#allocation3 + $0x178] sm:$0xf] %vm4211, %v4063
  %4260 = vst.msk [vmem:[#allocation3 + $0x180] sm:$0xf] %vm4211, %v4065
  %4261 = vst.msk [vmem:[#allocation3 + $0x188] sm:$0xf] %vm4211, %v4067
  %4262 = vst.msk [vmem:[#allocation3 + $0x190] sm:$0xf] %vm4211, %v4069
  %4263 = vst.msk [vmem:[#allocation3 + $0x198] sm:$0xf] %vm4211, %v4071
  %4264 = vst.msk [vmem:[#allocation3 + $0x1a0] sm:$0xf] %vm4211, %v4073
  %4265 = vst.msk [vmem:[#allocation3 + $0x1a8] sm:$0xf] %vm4211, %v4075
  %4266 = vst.msk [vmem:[#allocation3 + $0x1b0] sm:$0xf] %vm4211, %v4077
  %4267 = vst.msk [vmem:[#allocation3 + $0x1b8] sm:$0xf] %vm4211, %v4079
  %4268 = vst.msk [vmem:[#allocation3 + $0x1c0] sm:$0xf] %vm4211, %v4081
  %4269 = vst.msk [vmem:[#allocation3 + $0x1c8] sm:$0xf] %vm4211, %v4083
  %4270 = vst.msk [vmem:[#allocation3 + $0x1d0] sm:$0xf] %vm4211, %v4085
  %4271 = vst.msk [vmem:[#allocation3 + $0x1d8] sm:$0xf] %vm4211, %v4087
  %4272 = vst.msk [vmem:[#allocation3 + $0x1e0] sm:$0xf] %vm4211, %v4089
  %4273 = vst.msk [vmem:[#allocation3 + $0x1e8] sm:$0xf] %vm4211, %v4091
  %4274 = vst.msk [vmem:[#allocation3 + $0x1f0] sm:$0xf] %vm4211, %v4093
  %4275 = vst.msk [vmem:[#allocation3 + $0x1f8] sm:$0xf] %vm4211, %v4095
  %4276 = vst.msk [vmem:[#allocation3 + $0x200] sm:$0xf] %vm4211, %v4097
  %4277 = vst.msk [vmem:[#allocation3 + $0x208] sm:$0xf] %vm4211, %v4099
  %4278 = vst.msk [vmem:[#allocation3 + $0x210] sm:$0xf] %vm4211, %v4101
  %4279 = vst.msk [vmem:[#allocation3 + $0x218] sm:$0xf] %vm4211, %v4103
  %4280 = vst.msk [vmem:[#allocation3 + $0x220] sm:$0xf] %vm4211, %v4105
  %4281 = vst.msk [vmem:[#allocation3 + $0x228] sm:$0xf] %vm4211, %v4107
  %4282 = vst.msk [vmem:[#allocation3 + $0x230] sm:$0xf] %vm4211, %v4109
  %4283 = vst.msk [vmem:[#allocation3 + $0x238] sm:$0xf] %vm4211, %v4111
  %4284 = vst.msk [vmem:[#allocation3 + $0x240] sm:$0xf] %vm4211, %v4113
  %4285 = vst.msk [vmem:[#allocation3 + $0x248] sm:$0xf] %vm4211, %v4115
  %4286 = vst.msk [vmem:[#allocation3 + $0x250] sm:$0xf] %vm4211, %v4117
  %4287 = vst.msk [vmem:[#allocation3 + $0x258] sm:$0xf] %vm4211, %v4119
  %4288 = vst.msk [vmem:[#allocation3 + $0x260] sm:$0xf] %vm4211, %v4121
  %4289 = vst.msk [vmem:[#allocation3 + $0x268] sm:$0xf] %vm4211, %v4123
  %4290 = vst.msk [vmem:[#allocation3 + $0x270] sm:$0xf] %vm4211, %v4125
  %4291 = vst.msk [vmem:[#allocation3 + $0x278] sm:$0xf] %vm4211, %v4127
  %4292 = vst.msk [vmem:[#allocation3 + $0x280] sm:$0xf] %vm4211, %v4129
  %v4293 = vld [vmem:[#allocation2] sm:$0x8]
  %v4294 = vld [vmem:[#allocation2 + $0x4] sm:$0xf]
  %v4295 = vld [vmem:[#allocation2 + $0x8] sm:$0xf]
  %v4296 = vld [vmem:[#allocation2 + $0xc] sm:$0xf]
  %v4297 = vld [vmem:[#allocation2 + $0x10] sm:$0xf]
  %v4298 = vld [vmem:[#allocation2 + $0x14] sm:$0xf]
  %v4299 = vld [vmem:[#allocation2 + $0x18] sm:$0xf]
  %v4300 = vld [vmem:[#allocation2 + $0x1c] sm:$0xf]
  %v4301 = vld [vmem:[#allocation2 + $0x20] sm:$0xf]
  %v4302 = vld [vmem:[#allocation2 + $0x24] sm:$0xf]
  %v4303 = vld [vmem:[#allocation2 + $0x28] sm:$0xf]
  %v4304 = vld [vmem:[#allocation2 + $0x2c] sm:$0xf]
  %v4305 = vld [vmem:[#allocation2 + $0x30] sm:$0xf]
  %v4306 = vld [vmem:[#allocation2 + $0x34] sm:$0xf]
  %v4307 = vld [vmem:[#allocation2 + $0x38] sm:$0xf]
  %v4308 = vld [vmem:[#allocation2 + $0x3c] sm:$0xf]
  %v4309 = vld [vmem:[#allocation2 + $0x40] sm:$0xf]
  %v4310 = vld [vmem:[#allocation2 + $0x44] sm:$0xf]
  %v4311 = vld [vmem:[#allocation2 + $0x48] sm:$0xf]
  %v4312 = vld [vmem:[#allocation2 + $0x4c] sm:$0xf]
  %v4313 = vld [vmem:[#allocation2 + $0x50] sm:$0xf]
  %v4314 = vld [vmem:[#allocation2 + $0x54] sm:$0xf]
  %v4315 = vld [vmem:[#allocation2 + $0x58] sm:$0xf]
  %v4316 = vld [vmem:[#allocation2 + $0x5c] sm:$0xf]
  %v4317 = vld [vmem:[#allocation2 + $0x60] sm:$0xf]
  %v4318 = vld [vmem:[#allocation2 + $0x64] sm:$0xf]
  %v4319 = vld [vmem:[#allocation2 + $0x68] sm:$0xf]
  %v4320 = vld [vmem:[#allocation2 + $0x6c] sm:$0xf]
  %v4321 = vld [vmem:[#allocation2 + $0x70] sm:$0xf]
  %v4322 = vld [vmem:[#allocation2 + $0x74] sm:$0xf]
  %v4323 = vld [vmem:[#allocation2 + $0x78] sm:$0xf]
  %v4324 = vld [vmem:[#allocation2 + $0x7c] sm:$0xf]
  %v4325 = vld [vmem:[#allocation2 + $0x80] sm:$0xf]
  %v4326 = vld [vmem:[#allocation2 + $0x84] sm:$0xf]
  %v4327 = vld [vmem:[#allocation2 + $0x88] sm:$0xf]
  %v4328 = vld [vmem:[#allocation2 + $0x8c] sm:$0xf]
  %v4329 = vld [vmem:[#allocation2 + $0x90] sm:$0xf]
  %v4330 = vld [vmem:[#allocation2 + $0x94] sm:$0xf]
  %v4331 = vld [vmem:[#allocation2 + $0x98] sm:$0xf]
  %v4332 = vld [vmem:[#allocation2 + $0x9c] sm:$0xf]
  %v4333 = vld [vmem:[#allocation2 + $0xa0] sm:$0xf]
  %v4334 = vld [vmem:[#allocation2 + $0xa4] sm:$0xf]
  %v4335 = vld [vmem:[#allocation2 + $0xa8] sm:$0xf]
  %v4336 = vld [vmem:[#allocation2 + $0xac] sm:$0xf]
  %v4337 = vld [vmem:[#allocation2 + $0xb0] sm:$0xf]
  %v4338 = vld [vmem:[#allocation2 + $0xb4] sm:$0xf]
  %v4339 = vld [vmem:[#allocation2 + $0xb8] sm:$0xf]
  %v4340 = vld [vmem:[#allocation2 + $0xbc] sm:$0xf]
  %v4341 = vld [vmem:[#allocation2 + $0xc0] sm:$0xf]
  %v4342 = vld [vmem:[#allocation2 + $0xc4] sm:$0xf]
  %v4343 = vld [vmem:[#allocation2 + $0xc8] sm:$0xf]
  %v4344 = vld [vmem:[#allocation2 + $0xcc] sm:$0xf]
  %v4345 = vld [vmem:[#allocation2 + $0xd0] sm:$0xf]
  %v4346 = vld [vmem:[#allocation2 + $0xd4] sm:$0xf]
  %v4347 = vld [vmem:[#allocation2 + $0xd8] sm:$0xf]
  %v4348 = vld [vmem:[#allocation2 + $0xdc] sm:$0xf]
  %v4349 = vld [vmem:[#allocation2 + $0xe0] sm:$0xf]
  %v4350 = vld [vmem:[#allocation2 + $0xe4] sm:$0xf]
  %v4351 = vld [vmem:[#allocation2 + $0xe8] sm:$0xf]
  %v4352 = vld [vmem:[#allocation2 + $0xec] sm:$0xf]
  %v4353 = vld [vmem:[#allocation2 + $0xf0] sm:$0xf]
  %v4354 = vld [vmem:[#allocation2 + $0xf4] sm:$0xf]
  %v4355 = vld [vmem:[#allocation2 + $0xf8] sm:$0xf]
  %v4356 = vld [vmem:[#allocation2 + $0xfc] sm:$0xf]
  %v4357 = vld [vmem:[#allocation2 + $0x100] sm:$0xf]
  %v4358 = vld [vmem:[#allocation2 + $0x104] sm:$0xf]
  %v4359 = vld [vmem:[#allocation2 + $0x108] sm:$0xf]
  %v4360 = vld [vmem:[#allocation2 + $0x10c] sm:$0xf]
  %v4361 = vld [vmem:[#allocation2 + $0x110] sm:$0xf]
  %v4362 = vld [vmem:[#allocation2 + $0x114] sm:$0xf]
  %v4363 = vld [vmem:[#allocation2 + $0x118] sm:$0xf]
  %v4364 = vld [vmem:[#allocation2 + $0x11c] sm:$0xf]
  %v4365 = vld [vmem:[#allocation2 + $0x120] sm:$0xf]
  %v4366 = vld [vmem:[#allocation2 + $0x124] sm:$0xf]
  %v4367 = vld [vmem:[#allocation2 + $0x128] sm:$0xf]
  %v4368 = vld [vmem:[#allocation2 + $0x12c] sm:$0xf]
  %v4369 = vld [vmem:[#allocation2 + $0x130] sm:$0xf]
  %v4370 = vld [vmem:[#allocation2 + $0x134] sm:$0xf]
  %v4371 = vld [vmem:[#allocation2 + $0x138] sm:$0xf]
  %v4372 = vld [vmem:[#allocation2 + $0x13c] sm:$0xf]
  %v4373 = vld [vmem:[#allocation2 + $0x140] sm:$0xf]
  %v4374 = vld [vmem:[#allocation2 + $0x144] sm:$0xf]
  %vm4375 = vsmask.f32 256
  %vm4376 = vsmask.f32 4368
  %vm4377 = vmor %vm4375, %vm4376
  %v4379 = vshrl.u32 %v4293, 16
  %v4381 = vrot.slane %v4379, 7
  %v4382 = vrot.slane %v4381, 4
  %v4384 = vshrl.u32 %v4294, 16
  %v4386 = vrot.slane %v4384, 7
  %v4387 = vshll.u32 %v4294, 16
  %v4389 = vor.u32 %v4386, %v4387
  %v4390 = vsel %vm4377, %v4382, %v4389
  %v4391 = vrot.slane %v4386, 4
  %v4393 = vshrl.u32 %v4295, 16
  %v4395 = vrot.slane %v4393, 7
  %v4396 = vshll.u32 %v4295, 16
  %v4398 = vor.u32 %v4395, %v4396
  %v4399 = vsel %vm4377, %v4391, %v4398
  %v4400 = vrot.slane %v4395, 4
  %v4402 = vshrl.u32 %v4296, 16
  %v4404 = vrot.slane %v4402, 7
  %v4405 = vshll.u32 %v4296, 16
  %v4407 = vor.u32 %v4404, %v4405
  %v4408 = vsel %vm4377, %v4400, %v4407
  %v4409 = vrot.slane %v4404, 4
  %v4411 = vshrl.u32 %v4297, 16
  %v4413 = vrot.slane %v4411, 7
  %v4414 = vshll.u32 %v4297, 16
  %v4416 = vor.u32 %v4413, %v4414
  %v4417 = vsel %vm4377, %v4409, %v4416
  %v4418 = vrot.slane %v4413, 4
  %v4420 = vshrl.u32 %v4298, 16
  %v4422 = vrot.slane %v4420, 7
  %v4423 = vshll.u32 %v4298, 16
  %v4425 = vor.u32 %v4422, %v4423
  %v4426 = vsel %vm4377, %v4418, %v4425
  %v4427 = vrot.slane %v4422, 4
  %v4429 = vshrl.u32 %v4299, 16
  %v4431 = vrot.slane %v4429, 7
  %v4432 = vshll.u32 %v4299, 16
  %v4434 = vor.u32 %v4431, %v4432
  %v4435 = vsel %vm4377, %v4427, %v4434
  %v4436 = vrot.slane %v4431, 4
  %v4438 = vshrl.u32 %v4300, 16
  %v4440 = vrot.slane %v4438, 7
  %v4441 = vshll.u32 %v4300, 16
  %v4443 = vor.u32 %v4440, %v4441
  %v4444 = vsel %vm4377, %v4436, %v4443
  %v4445 = vrot.slane %v4440, 4
  %v4447 = vshrl.u32 %v4301, 16
  %v4449 = vrot.slane %v4447, 7
  %v4450 = vshll.u32 %v4301, 16
  %v4452 = vor.u32 %v4449, %v4450
  %v4453 = vsel %vm4377, %v4445, %v4452
  %v4454 = vrot.slane %v4449, 4
  %v4456 = vshrl.u32 %v4302, 16
  %v4458 = vrot.slane %v4456, 7
  %v4459 = vshll.u32 %v4302, 16
  %v4461 = vor.u32 %v4458, %v4459
  %v4462 = vsel %vm4377, %v4454, %v4461
  %v4463 = vrot.slane %v4458, 4
  %v4465 = vshrl.u32 %v4303, 16
  %v4467 = vrot.slane %v4465, 7
  %v4468 = vshll.u32 %v4303, 16
  %v4470 = vor.u32 %v4467, %v4468
  %v4471 = vsel %vm4377, %v4463, %v4470
  %v4472 = vrot.slane %v4467, 4
  %v4474 = vshrl.u32 %v4304, 16
  %v4476 = vrot.slane %v4474, 7
  %v4477 = vshll.u32 %v4304, 16
  %v4479 = vor.u32 %v4476, %v4477
  %v4480 = vsel %vm4377, %v4472, %v4479
  %v4481 = vrot.slane %v4476, 4
  %v4483 = vshrl.u32 %v4305, 16
  %v4485 = vrot.slane %v4483, 7
  %v4486 = vshll.u32 %v4305, 16
  %v4488 = vor.u32 %v4485, %v4486
  %v4489 = vsel %vm4377, %v4481, %v4488
  %v4490 = vrot.slane %v4485, 4
  %v4492 = vshrl.u32 %v4306, 16
  %v4494 = vrot.slane %v4492, 7
  %v4495 = vshll.u32 %v4306, 16
  %v4497 = vor.u32 %v4494, %v4495
  %v4498 = vsel %vm4377, %v4490, %v4497
  %v4499 = vrot.slane %v4494, 4
  %v4501 = vshrl.u32 %v4307, 16
  %v4503 = vrot.slane %v4501, 7
  %v4504 = vshll.u32 %v4307, 16
  %v4506 = vor.u32 %v4503, %v4504
  %v4507 = vsel %vm4377, %v4499, %v4506
  %v4508 = vrot.slane %v4503, 4
  %v4510 = vshrl.u32 %v4308, 16
  %v4512 = vrot.slane %v4510, 7
  %v4513 = vshll.u32 %v4308, 16
  %v4515 = vor.u32 %v4512, %v4513
  %v4516 = vsel %vm4377, %v4508, %v4515
  %v4517 = vrot.slane %v4512, 4
  %v4519 = vshrl.u32 %v4309, 16
  %v4521 = vrot.slane %v4519, 7
  %v4522 = vshll.u32 %v4309, 16
  %v4524 = vor.u32 %v4521, %v4522
  %v4525 = vsel %vm4377, %v4517, %v4524
  %v4526 = vrot.slane %v4521, 4
  %v4528 = vshrl.u32 %v4310, 16
  %v4530 = vrot.slane %v4528, 7
  %v4531 = vshll.u32 %v4310, 16
  %v4533 = vor.u32 %v4530, %v4531
  %v4534 = vsel %vm4377, %v4526, %v4533
  %v4535 = vrot.slane %v4530, 4
  %v4537 = vshrl.u32 %v4311, 16
  %v4539 = vrot.slane %v4537, 7
  %v4540 = vshll.u32 %v4311, 16
  %v4542 = vor.u32 %v4539, %v4540
  %v4543 = vsel %vm4377, %v4535, %v4542
  %v4544 = vrot.slane %v4539, 4
  %v4546 = vshrl.u32 %v4312, 16
  %v4548 = vrot.slane %v4546, 7
  %v4549 = vshll.u32 %v4312, 16
  %v4551 = vor.u32 %v4548, %v4549
  %v4552 = vsel %vm4377, %v4544, %v4551
  %v4553 = vrot.slane %v4548, 4
  %v4555 = vshrl.u32 %v4313, 16
  %v4557 = vrot.slane %v4555, 7
  %v4558 = vshll.u32 %v4313, 16
  %v4560 = vor.u32 %v4557, %v4558
  %v4561 = vsel %vm4377, %v4553, %v4560
  %v4562 = vrot.slane %v4557, 4
  %v4564 = vshrl.u32 %v4314, 16
  %v4566 = vrot.slane %v4564, 7
  %v4567 = vshll.u32 %v4314, 16
  %v4569 = vor.u32 %v4566, %v4567
  %v4570 = vsel %vm4377, %v4562, %v4569
  %v4571 = vrot.slane %v4566, 4
  %v4573 = vshrl.u32 %v4315, 16
  %v4575 = vrot.slane %v4573, 7
  %v4576 = vshll.u32 %v4315, 16
  %v4578 = vor.u32 %v4575, %v4576
  %v4579 = vsel %vm4377, %v4571, %v4578
  %v4580 = vrot.slane %v4575, 4
  %v4582 = vshrl.u32 %v4316, 16
  %v4584 = vrot.slane %v4582, 7
  %v4585 = vshll.u32 %v4316, 16
  %v4587 = vor.u32 %v4584, %v4585
  %v4588 = vsel %vm4377, %v4580, %v4587
  %v4589 = vrot.slane %v4584, 4
  %v4591 = vshrl.u32 %v4317, 16
  %v4593 = vrot.slane %v4591, 7
  %v4594 = vshll.u32 %v4317, 16
  %v4596 = vor.u32 %v4593, %v4594
  %v4597 = vsel %vm4377, %v4589, %v4596
  %v4598 = vrot.slane %v4593, 4
  %v4600 = vshrl.u32 %v4318, 16
  %v4602 = vrot.slane %v4600, 7
  %v4603 = vshll.u32 %v4318, 16
  %v4605 = vor.u32 %v4602, %v4603
  %v4606 = vsel %vm4377, %v4598, %v4605
  %v4607 = vrot.slane %v4602, 4
  %v4609 = vshrl.u32 %v4319, 16
  %v4611 = vrot.slane %v4609, 7
  %v4612 = vshll.u32 %v4319, 16
  %v4614 = vor.u32 %v4611, %v4612
  %v4615 = vsel %vm4377, %v4607, %v4614
  %v4616 = vrot.slane %v4611, 4
  %v4618 = vshrl.u32 %v4320, 16
  %v4620 = vrot.slane %v4618, 7
  %v4621 = vshll.u32 %v4320, 16
  %v4623 = vor.u32 %v4620, %v4621
  %v4624 = vsel %vm4377, %v4616, %v4623
  %v4625 = vrot.slane %v4620, 4
  %v4627 = vshrl.u32 %v4321, 16
  %v4629 = vrot.slane %v4627, 7
  %v4630 = vshll.u32 %v4321, 16
  %v4632 = vor.u32 %v4629, %v4630
  %v4633 = vsel %vm4377, %v4625, %v4632
  %v4634 = vrot.slane %v4629, 4
  %v4636 = vshrl.u32 %v4322, 16
  %v4638 = vrot.slane %v4636, 7
  %v4639 = vshll.u32 %v4322, 16
  %v4641 = vor.u32 %v4638, %v4639
  %v4642 = vsel %vm4377, %v4634, %v4641
  %v4643 = vrot.slane %v4638, 4
  %v4645 = vshrl.u32 %v4323, 16
  %v4647 = vrot.slane %v4645, 7
  %v4648 = vshll.u32 %v4323, 16
  %v4650 = vor.u32 %v4647, %v4648
  %v4651 = vsel %vm4377, %v4643, %v4650
  %v4652 = vrot.slane %v4647, 4
  %v4654 = vshrl.u32 %v4324, 16
  %v4656 = vrot.slane %v4654, 7
  %v4657 = vshll.u32 %v4324, 16
  %v4659 = vor.u32 %v4656, %v4657
  %v4660 = vsel %vm4377, %v4652, %v4659
  %v4661 = vrot.slane %v4656, 4
  %v4663 = vshrl.u32 %v4325, 16
  %v4665 = vrot.slane %v4663, 7
  %v4666 = vshll.u32 %v4325, 16
  %v4668 = vor.u32 %v4665, %v4666
  %v4669 = vsel %vm4377, %v4661, %v4668
  %v4670 = vrot.slane %v4665, 4
  %v4672 = vshrl.u32 %v4326, 16
  %v4674 = vrot.slane %v4672, 7
  %v4675 = vshll.u32 %v4326, 16
  %v4677 = vor.u32 %v4674, %v4675
  %v4678 = vsel %vm4377, %v4670, %v4677
  %v4679 = vrot.slane %v4674, 4
  %v4681 = vshrl.u32 %v4327, 16
  %v4683 = vrot.slane %v4681, 7
  %v4684 = vshll.u32 %v4327, 16
  %v4686 = vor.u32 %v4683, %v4684
  %v4687 = vsel %vm4377, %v4679, %v4686
  %v4688 = vrot.slane %v4683, 4
  %v4690 = vshrl.u32 %v4328, 16
  %v4692 = vrot.slane %v4690, 7
  %v4693 = vshll.u32 %v4328, 16
  %v4695 = vor.u32 %v4692, %v4693
  %v4696 = vsel %vm4377, %v4688, %v4695
  %v4697 = vrot.slane %v4692, 4
  %v4699 = vshrl.u32 %v4329, 16
  %v4701 = vrot.slane %v4699, 7
  %v4702 = vshll.u32 %v4329, 16
  %v4704 = vor.u32 %v4701, %v4702
  %v4705 = vsel %vm4377, %v4697, %v4704
  %v4706 = vrot.slane %v4701, 4
  %v4708 = vshrl.u32 %v4330, 16
  %v4710 = vrot.slane %v4708, 7
  %v4711 = vshll.u32 %v4330, 16
  %v4713 = vor.u32 %v4710, %v4711
  %v4714 = vsel %vm4377, %v4706, %v4713
  %v4715 = vrot.slane %v4710, 4
  %v4717 = vshrl.u32 %v4331, 16
  %v4719 = vrot.slane %v4717, 7
  %v4720 = vshll.u32 %v4331, 16
  %v4722 = vor.u32 %v4719, %v4720
  %v4723 = vsel %vm4377, %v4715, %v4722
  %v4724 = vrot.slane %v4719, 4
  %v4726 = vshrl.u32 %v4332, 16
  %v4728 = vrot.slane %v4726, 7
  %v4729 = vshll.u32 %v4332, 16
  %v4731 = vor.u32 %v4728, %v4729
  %v4732 = vsel %vm4377, %v4724, %v4731
  %v4733 = vrot.slane %v4728, 4
  %v4735 = vshrl.u32 %v4333, 16
  %v4737 = vrot.slane %v4735, 7
  %v4738 = vshll.u32 %v4333, 16
  %v4740 = vor.u32 %v4737, %v4738
  %v4741 = vsel %vm4377, %v4733, %v4740
  %v4742 = vrot.slane %v4737, 4
  %v4744 = vshrl.u32 %v4334, 16
  %v4746 = vrot.slane %v4744, 7
  %v4747 = vshll.u32 %v4334, 16
  %v4749 = vor.u32 %v4746, %v4747
  %v4750 = vsel %vm4377, %v4742, %v4749
  %v4751 = vrot.slane %v4746, 4
  %v4753 = vshrl.u32 %v4335, 16
  %v4755 = vrot.slane %v4753, 7
  %v4756 = vshll.u32 %v4335, 16
  %v4758 = vor.u32 %v4755, %v4756
  %v4759 = vsel %vm4377, %v4751, %v4758
  %v4760 = vrot.slane %v4755, 4
  %v4762 = vshrl.u32 %v4336, 16
  %v4764 = vrot.slane %v4762, 7
  %v4765 = vshll.u32 %v4336, 16
  %v4767 = vor.u32 %v4764, %v4765
  %v4768 = vsel %vm4377, %v4760, %v4767
  %v4769 = vrot.slane %v4764, 4
  %v4771 = vshrl.u32 %v4337, 16
  %v4773 = vrot.slane %v4771, 7
  %v4774 = vshll.u32 %v4337, 16
  %v4776 = vor.u32 %v4773, %v4774
  %v4777 = vsel %vm4377, %v4769, %v4776
  %v4778 = vrot.slane %v4773, 4
  %v4780 = vshrl.u32 %v4338, 16
  %v4782 = vrot.slane %v4780, 7
  %v4783 = vshll.u32 %v4338, 16
  %v4785 = vor.u32 %v4782, %v4783
  %v4786 = vsel %vm4377, %v4778, %v4785
  %v4787 = vrot.slane %v4782, 4
  %v4789 = vshrl.u32 %v4339, 16
  %v4791 = vrot.slane %v4789, 7
  %v4792 = vshll.u32 %v4339, 16
  %v4794 = vor.u32 %v4791, %v4792
  %v4795 = vsel %vm4377, %v4787, %v4794
  %v4796 = vrot.slane %v4791, 4
  %v4798 = vshrl.u32 %v4340, 16
  %v4800 = vrot.slane %v4798, 7
  %v4801 = vshll.u32 %v4340, 16
  %v4803 = vor.u32 %v4800, %v4801
  %v4804 = vsel %vm4377, %v4796, %v4803
  %v4805 = vrot.slane %v4800, 4
  %v4807 = vshrl.u32 %v4341, 16
  %v4809 = vrot.slane %v4807, 7
  %v4810 = vshll.u32 %v4341, 16
  %v4812 = vor.u32 %v4809, %v4810
  %v4813 = vsel %vm4377, %v4805, %v4812
  %v4814 = vrot.slane %v4809, 4
  %v4816 = vshrl.u32 %v4342, 16
  %v4818 = vrot.slane %v4816, 7
  %v4819 = vshll.u32 %v4342, 16
  %v4821 = vor.u32 %v4818, %v4819
  %v4822 = vsel %vm4377, %v4814, %v4821
  %v4823 = vrot.slane %v4818, 4
  %v4825 = vshrl.u32 %v4343, 16
  %v4827 = vrot.slane %v4825, 7
  %v4828 = vshll.u32 %v4343, 16
  %v4830 = vor.u32 %v4827, %v4828
  %v4831 = vsel %vm4377, %v4823, %v4830
  %v4832 = vrot.slane %v4827, 4
  %v4834 = vshrl.u32 %v4344, 16
  %v4836 = vrot.slane %v4834, 7
  %v4837 = vshll.u32 %v4344, 16
  %v4839 = vor.u32 %v4836, %v4837
  %v4840 = vsel %vm4377, %v4832, %v4839
  %v4841 = vrot.slane %v4836, 4
  %v4843 = vshrl.u32 %v4345, 16
  %v4845 = vrot.slane %v4843, 7
  %v4846 = vshll.u32 %v4345, 16
  %v4848 = vor.u32 %v4845, %v4846
  %v4849 = vsel %vm4377, %v4841, %v4848
  %v4850 = vrot.slane %v4845, 4
  %v4852 = vshrl.u32 %v4346, 16
  %v4854 = vrot.slane %v4852, 7
  %v4855 = vshll.u32 %v4346, 16
  %v4857 = vor.u32 %v4854, %v4855
  %v4858 = vsel %vm4377, %v4850, %v4857
  %v4859 = vrot.slane %v4854, 4
  %v4861 = vshrl.u32 %v4347, 16
  %v4863 = vrot.slane %v4861, 7
  %v4864 = vshll.u32 %v4347, 16
  %v4866 = vor.u32 %v4863, %v4864
  %v4867 = vsel %vm4377, %v4859, %v4866
  %v4868 = vrot.slane %v4863, 4
  %v4870 = vshrl.u32 %v4348, 16
  %v4872 = vrot.slane %v4870, 7
  %v4873 = vshll.u32 %v4348, 16
  %v4875 = vor.u32 %v4872, %v4873
  %v4876 = vsel %vm4377, %v4868, %v4875
  %v4877 = vrot.slane %v4872, 4
  %v4879 = vshrl.u32 %v4349, 16
  %v4881 = vrot.slane %v4879, 7
  %v4882 = vshll.u32 %v4349, 16
  %v4884 = vor.u32 %v4881, %v4882
  %v4885 = vsel %vm4377, %v4877, %v4884
  %v4886 = vrot.slane %v4881, 4
  %v4888 = vshrl.u32 %v4350, 16
  %v4890 = vrot.slane %v4888, 7
  %v4891 = vshll.u32 %v4350, 16
  %v4893 = vor.u32 %v4890, %v4891
  %v4894 = vsel %vm4377, %v4886, %v4893
  %v4895 = vrot.slane %v4890, 4
  %v4897 = vshrl.u32 %v4351, 16
  %v4899 = vrot.slane %v4897, 7
  %v4900 = vshll.u32 %v4351, 16
  %v4902 = vor.u32 %v4899, %v4900
  %v4903 = vsel %vm4377, %v4895, %v4902
  %v4904 = vrot.slane %v4899, 4
  %v4906 = vshrl.u32 %v4352, 16
  %v4908 = vrot.slane %v4906, 7
  %v4909 = vshll.u32 %v4352, 16
  %v4911 = vor.u32 %v4908, %v4909
  %v4912 = vsel %vm4377, %v4904, %v4911
  %v4913 = vrot.slane %v4908, 4
  %v4915 = vshrl.u32 %v4353, 16
  %v4917 = vrot.slane %v4915, 7
  %v4918 = vshll.u32 %v4353, 16
  %v4920 = vor.u32 %v4917, %v4918
  %v4921 = vsel %vm4377, %v4913, %v4920
  %v4922 = vrot.slane %v4917, 4
  %v4924 = vshrl.u32 %v4354, 16
  %v4926 = vrot.slane %v4924, 7
  %v4927 = vshll.u32 %v4354, 16
  %v4929 = vor.u32 %v4926, %v4927
  %v4930 = vsel %vm4377, %v4922, %v4929
  %v4931 = vrot.slane %v4926, 4
  %v4933 = vshrl.u32 %v4355, 16
  %v4935 = vrot.slane %v4933, 7
  %v4936 = vshll.u32 %v4355, 16
  %v4938 = vor.u32 %v4935, %v4936
  %v4939 = vsel %vm4377, %v4931, %v4938
  %v4940 = vrot.slane %v4935, 4
  %v4942 = vshrl.u32 %v4356, 16
  %v4944 = vrot.slane %v4942, 7
  %v4945 = vshll.u32 %v4356, 16
  %v4947 = vor.u32 %v4944, %v4945
  %v4948 = vsel %vm4377, %v4940, %v4947
  %v4949 = vrot.slane %v4944, 4
  %v4951 = vshrl.u32 %v4357, 16
  %v4953 = vrot.slane %v4951, 7
  %v4954 = vshll.u32 %v4357, 16
  %v4956 = vor.u32 %v4953, %v4954
  %v4957 = vsel %vm4377, %v4949, %v4956
  %v4958 = vrot.slane %v4953, 4
  %v4960 = vshrl.u32 %v4358, 16
  %v4962 = vrot.slane %v4960, 7
  %v4963 = vshll.u32 %v4358, 16
  %v4965 = vor.u32 %v4962, %v4963
  %v4966 = vsel %vm4377, %v4958, %v4965
  %v4967 = vrot.slane %v4962, 4
  %v4969 = vshrl.u32 %v4359, 16
  %v4971 = vrot.slane %v4969, 7
  %v4972 = vshll.u32 %v4359, 16
  %v4974 = vor.u32 %v4971, %v4972
  %v4975 = vsel %vm4377, %v4967, %v4974
  %v4976 = vrot.slane %v4971, 4
  %v4978 = vshrl.u32 %v4360, 16
  %v4980 = vrot.slane %v4978, 7
  %v4981 = vshll.u32 %v4360, 16
  %v4983 = vor.u32 %v4980, %v4981
  %v4984 = vsel %vm4377, %v4976, %v4983
  %v4985 = vrot.slane %v4980, 4
  %v4987 = vshrl.u32 %v4361, 16
  %v4989 = vrot.slane %v4987, 7
  %v4990 = vshll.u32 %v4361, 16
  %v4992 = vor.u32 %v4989, %v4990
  %v4993 = vsel %vm4377, %v4985, %v4992
  %v4994 = vrot.slane %v4989, 4
  %v4996 = vshrl.u32 %v4362, 16
  %v4998 = vrot.slane %v4996, 7
  %v4999 = vshll.u32 %v4362, 16
  %v5001 = vor.u32 %v4998, %v4999
  %v5002 = vsel %vm4377, %v4994, %v5001
  %v5003 = vrot.slane %v4998, 4
  %v5005 = vshrl.u32 %v4363, 16
  %v5007 = vrot.slane %v5005, 7
  %v5008 = vshll.u32 %v4363, 16
  %v5010 = vor.u32 %v5007, %v5008
  %v5011 = vsel %vm4377, %v5003, %v5010
  %v5012 = vrot.slane %v5007, 4
  %v5014 = vshrl.u32 %v4364, 16
  %v5016 = vrot.slane %v5014, 7
  %v5017 = vshll.u32 %v4364, 16
  %v5019 = vor.u32 %v5016, %v5017
  %v5020 = vsel %vm4377, %v5012, %v5019
  %v5021 = vrot.slane %v5016, 4
  %v5023 = vshrl.u32 %v4365, 16
  %v5025 = vrot.slane %v5023, 7
  %v5026 = vshll.u32 %v4365, 16
  %v5028 = vor.u32 %v5025, %v5026
  %v5029 = vsel %vm4377, %v5021, %v5028
  %v5030 = vrot.slane %v5025, 4
  %v5032 = vshrl.u32 %v4366, 16
  %v5034 = vrot.slane %v5032, 7
  %v5035 = vshll.u32 %v4366, 16
  %v5037 = vor.u32 %v5034, %v5035
  %v5038 = vsel %vm4377, %v5030, %v5037
  %v5039 = vrot.slane %v5034, 4
  %v5041 = vshrl.u32 %v4367, 16
  %v5043 = vrot.slane %v5041, 7
  %v5044 = vshll.u32 %v4367, 16
  %v5046 = vor.u32 %v5043, %v5044
  %v5047 = vsel %vm4377, %v5039, %v5046
  %v5048 = vrot.slane %v5043, 4
  %v5050 = vshrl.u32 %v4368, 16
  %v5052 = vrot.slane %v5050, 7
  %v5053 = vshll.u32 %v4368, 16
  %v5055 = vor.u32 %v5052, %v5053
  %v5056 = vsel %vm4377, %v5048, %v5055
  %v5057 = vrot.slane %v5052, 4
  %v5059 = vshrl.u32 %v4369, 16
  %v5061 = vrot.slane %v5059, 7
  %v5062 = vshll.u32 %v4369, 16
  %v5064 = vor.u32 %v5061, %v5062
  %v5065 = vsel %vm4377, %v5057, %v5064
  %v5066 = vrot.slane %v5061, 4
  %v5068 = vshrl.u32 %v4370, 16
  %v5070 = vrot.slane %v5068, 7
  %v5071 = vshll.u32 %v4370, 16
  %v5073 = vor.u32 %v5070, %v5071
  %v5074 = vsel %vm4377, %v5066, %v5073
  %v5075 = vrot.slane %v5070, 4
  %v5077 = vshrl.u32 %v4371, 16
  %v5079 = vrot.slane %v5077, 7
  %v5080 = vshll.u32 %v4371, 16
  %v5082 = vor.u32 %v5079, %v5080
  %v5083 = vsel %vm4377, %v5075, %v5082
  %v5084 = vrot.slane %v5079, 4
  %v5086 = vshrl.u32 %v4372, 16
  %v5088 = vrot.slane %v5086, 7
  %v5089 = vshll.u32 %v4372, 16
  %v5091 = vor.u32 %v5088, %v5089
  %v5092 = vsel %vm4377, %v5084, %v5091
  %v5093 = vrot.slane %v5088, 4
  %v5095 = vshrl.u32 %v4373, 16
  %v5097 = vrot.slane %v5095, 7
  %v5098 = vshll.u32 %v4373, 16
  %v5100 = vor.u32 %v5097, %v5098
  %v5101 = vsel %vm4377, %v5093, %v5100
  %v5102 = vrot.slane %v5097, 4
  %v5104 = vshrl.u32 %v4374, 16
  %v5106 = vrot.slane %v5104, 7
  %v5107 = vshll.u32 %v4374, 16
  %v5109 = vor.u32 %v5106, %v5107
  %v5110 = vsel %vm4377, %v5102, %v5109
  %5111 = vrot.lane.b32.xlu0 %v4390, 32
  %v5112 = vpop.permute.xlu0 %5111
  %5113 = vrot.lane.b32.xlu0 %v4399, 32
  %v5114 = vpop.permute.xlu0 %5113
  %5115 = vrot.lane.b32.xlu0 %v4408, 32
  %v5116 = vpop.permute.xlu0 %5115
  %5117 = vrot.lane.b32.xlu0 %v4417, 32
  %v5118 = vpop.permute.xlu0 %5117
  %5119 = vrot.lane.b32.xlu0 %v4426, 32
  %v5120 = vpop.permute.xlu0 %5119
  %5121 = vrot.lane.b32.xlu0 %v4435, 32
  %v5122 = vpop.permute.xlu0 %5121
  %5123 = vrot.lane.b32.xlu0 %v4444, 32
  %v5124 = vpop.permute.xlu0 %5123
  %5125 = vrot.lane.b32.xlu0 %v4453, 32
  %v5126 = vpop.permute.xlu0 %5125
  %5127 = vrot.lane.b32.xlu0 %v4462, 32
  %v5128 = vpop.permute.xlu0 %5127
  %5129 = vrot.lane.b32.xlu0 %v4471, 32
  %v5130 = vpop.permute.xlu0 %5129
  %5131 = vrot.lane.b32.xlu0 %v4480, 32
  %v5132 = vpop.permute.xlu0 %5131
  %5133 = vrot.lane.b32.xlu0 %v4489, 32
  %v5134 = vpop.permute.xlu0 %5133
  %5135 = vrot.lane.b32.xlu0 %v4498, 32
  %v5136 = vpop.permute.xlu0 %5135
  %5137 = vrot.lane.b32.xlu0 %v4507, 32
  %v5138 = vpop.permute.xlu0 %5137
  %5139 = vrot.lane.b32.xlu0 %v4516, 32
  %v5140 = vpop.permute.xlu0 %5139
  %5141 = vrot.lane.b32.xlu0 %v4525, 32
  %v5142 = vpop.permute.xlu0 %5141
  %5143 = vrot.lane.b32.xlu0 %v4534, 32
  %v5144 = vpop.permute.xlu0 %5143
  %5145 = vrot.lane.b32.xlu0 %v4543, 32
  %v5146 = vpop.permute.xlu0 %5145
  %5147 = vrot.lane.b32.xlu0 %v4552, 32
  %v5148 = vpop.permute.xlu0 %5147
  %5149 = vrot.lane.b32.xlu0 %v4561, 32
  %v5150 = vpop.permute.xlu0 %5149
  %5151 = vrot.lane.b32.xlu0 %v4570, 32
  %v5152 = vpop.permute.xlu0 %5151
  %5153 = vrot.lane.b32.xlu0 %v4579, 32
  %v5154 = vpop.permute.xlu0 %5153
  %5155 = vrot.lane.b32.xlu0 %v4588, 32
  %v5156 = vpop.permute.xlu0 %5155
  %5157 = vrot.lane.b32.xlu0 %v4597, 32
  %v5158 = vpop.permute.xlu0 %5157
  %5159 = vrot.lane.b32.xlu0 %v4606, 32
  %v5160 = vpop.permute.xlu0 %5159
  %5161 = vrot.lane.b32.xlu0 %v4615, 32
  %v5162 = vpop.permute.xlu0 %5161
  %5163 = vrot.lane.b32.xlu0 %v4624, 32
  %v5164 = vpop.permute.xlu0 %5163
  %5165 = vrot.lane.b32.xlu0 %v4633, 32
  %v5166 = vpop.permute.xlu0 %5165
  %5167 = vrot.lane.b32.xlu0 %v4642, 32
  %v5168 = vpop.permute.xlu0 %5167
  %5169 = vrot.lane.b32.xlu0 %v4651, 32
  %v5170 = vpop.permute.xlu0 %5169
  %5171 = vrot.lane.b32.xlu0 %v4660, 32
  %v5172 = vpop.permute.xlu0 %5171
  %5173 = vrot.lane.b32.xlu0 %v4669, 32
  %v5174 = vpop.permute.xlu0 %5173
  %5175 = vrot.lane.b32.xlu0 %v4678, 32
  %v5176 = vpop.permute.xlu0 %5175
  %5177 = vrot.lane.b32.xlu0 %v4687, 32
  %v5178 = vpop.permute.xlu0 %5177
  %5179 = vrot.lane.b32.xlu0 %v4696, 32
  %v5180 = vpop.permute.xlu0 %5179
  %5181 = vrot.lane.b32.xlu0 %v4705, 32
  %v5182 = vpop.permute.xlu0 %5181
  %5183 = vrot.lane.b32.xlu0 %v4714, 32
  %v5184 = vpop.permute.xlu0 %5183
  %5185 = vrot.lane.b32.xlu0 %v4723, 32
  %v5186 = vpop.permute.xlu0 %5185
  %5187 = vrot.lane.b32.xlu0 %v4732, 32
  %v5188 = vpop.permute.xlu0 %5187
  %5189 = vrot.lane.b32.xlu0 %v4741, 32
  %v5190 = vpop.permute.xlu0 %5189
  %5191 = vrot.lane.b32.xlu0 %v4750, 32
  %v5192 = vpop.permute.xlu0 %5191
  %5193 = vrot.lane.b32.xlu0 %v4759, 32
  %v5194 = vpop.permute.xlu0 %5193
  %5195 = vrot.lane.b32.xlu0 %v4768, 32
  %v5196 = vpop.permute.xlu0 %5195
  %5197 = vrot.lane.b32.xlu0 %v4777, 32
  %v5198 = vpop.permute.xlu0 %5197
  %5199 = vrot.lane.b32.xlu0 %v4786, 32
  %v5200 = vpop.permute.xlu0 %5199
  %5201 = vrot.lane.b32.xlu0 %v4795, 32
  %v5202 = vpop.permute.xlu0 %5201
  %5203 = vrot.lane.b32.xlu0 %v4804, 32
  %v5204 = vpop.permute.xlu0 %5203
  %5205 = vrot.lane.b32.xlu0 %v4813, 32
  %v5206 = vpop.permute.xlu0 %5205
  %5207 = vrot.lane.b32.xlu0 %v4822, 32
  %v5208 = vpop.permute.xlu0 %5207
  %5209 = vrot.lane.b32.xlu0 %v4831, 32
  %v5210 = vpop.permute.xlu0 %5209
  %5211 = vrot.lane.b32.xlu0 %v4840, 32
  %v5212 = vpop.permute.xlu0 %5211
  %5213 = vrot.lane.b32.xlu0 %v4849, 32
  %v5214 = vpop.permute.xlu0 %5213
  %5215 = vrot.lane.b32.xlu0 %v4858, 32
  %v5216 = vpop.permute.xlu0 %5215
  %5217 = vrot.lane.b32.xlu0 %v4867, 32
  %v5218 = vpop.permute.xlu0 %5217
  %5219 = vrot.lane.b32.xlu0 %v4876, 32
  %v5220 = vpop.permute.xlu0 %5219
  %5221 = vrot.lane.b32.xlu0 %v4885, 32
  %v5222 = vpop.permute.xlu0 %5221
  %5223 = vrot.lane.b32.xlu0 %v4894, 32
  %v5224 = vpop.permute.xlu0 %5223
  %5225 = vrot.lane.b32.xlu0 %v4903, 32
  %v5226 = vpop.permute.xlu0 %5225
  %5227 = vrot.lane.b32.xlu0 %v4912, 32
  %v5228 = vpop.permute.xlu0 %5227
  %5229 = vrot.lane.b32.xlu0 %v4921, 32
  %v5230 = vpop.permute.xlu0 %5229
  %5231 = vrot.lane.b32.xlu0 %v4930, 32
  %v5232 = vpop.permute.xlu0 %5231
  %5233 = vrot.lane.b32.xlu0 %v4939, 32
  %v5234 = vpop.permute.xlu0 %5233
  %5235 = vrot.lane.b32.xlu0 %v4948, 32
  %v5236 = vpop.permute.xlu0 %5235
  %5237 = vrot.lane.b32.xlu0 %v4957, 32
  %v5238 = vpop.permute.xlu0 %5237
  %5239 = vrot.lane.b32.xlu0 %v4966, 32
  %v5240 = vpop.permute.xlu0 %5239
  %5241 = vrot.lane.b32.xlu0 %v4975, 32
  %v5242 = vpop.permute.xlu0 %5241
  %5243 = vrot.lane.b32.xlu0 %v4984, 32
  %v5244 = vpop.permute.xlu0 %5243
  %5245 = vrot.lane.b32.xlu0 %v4993, 32
  %v5246 = vpop.permute.xlu0 %5245
  %5247 = vrot.lane.b32.xlu0 %v5002, 32
  %v5248 = vpop.permute.xlu0 %5247
  %5249 = vrot.lane.b32.xlu0 %v5011, 32
  %v5250 = vpop.permute.xlu0 %5249
  %5251 = vrot.lane.b32.xlu0 %v5020, 32
  %v5252 = vpop.permute.xlu0 %5251
  %5253 = vrot.lane.b32.xlu0 %v5029, 32
  %v5254 = vpop.permute.xlu0 %5253
  %5255 = vrot.lane.b32.xlu0 %v5038, 32
  %v5256 = vpop.permute.xlu0 %5255
  %5257 = vrot.lane.b32.xlu0 %v5047, 32
  %v5258 = vpop.permute.xlu0 %5257
  %5259 = vrot.lane.b32.xlu0 %v5056, 32
  %v5260 = vpop.permute.xlu0 %5259
  %5261 = vrot.lane.b32.xlu0 %v5065, 32
  %v5262 = vpop.permute.xlu0 %5261
  %5263 = vrot.lane.b32.xlu0 %v5074, 32
  %v5264 = vpop.permute.xlu0 %5263
  %5265 = vrot.lane.b32.xlu0 %v5083, 32
  %v5266 = vpop.permute.xlu0 %5265
  %5267 = vrot.lane.b32.xlu0 %v5092, 32
  %v5268 = vpop.permute.xlu0 %5267
  %5269 = vrot.lane.b32.xlu0 %v5101, 32
  %v5270 = vpop.permute.xlu0 %5269
  %5271 = vrot.lane.b32.xlu0 %v5110, 32
  %v5272 = vpop.permute.xlu0 %5271
  %vm5354 = vcmask 388352
  %5355 = vst.msk [vmem:[#allocation3] sm:$0xf] %vm5354, %v5112
  %5356 = vst.msk [vmem:[#allocation3 + $0x8] sm:$0xf] %vm5354, %v5114
  %5357 = vst.msk [vmem:[#allocation3 + $0x10] sm:$0xf] %vm5354, %v5116
  %5358 = vst.msk [vmem:[#allocation3 + $0x18] sm:$0xf] %vm5354, %v5118
  %5359 = vst.msk [vmem:[#allocation3 + $0x20] sm:$0xf] %vm5354, %v5120
  %5360 = vst.msk [vmem:[#allocation3 + $0x28] sm:$0xf] %vm5354, %v5122
  %5361 = vst.msk [vmem:[#allocation3 + $0x30] sm:$0xf] %vm5354, %v5124
  %5362 = vst.msk [vmem:[#allocation3 + $0x38] sm:$0xf] %vm5354, %v5126
  %5363 = vst.msk [vmem:[#allocation3 + $0x40] sm:$0xf] %vm5354, %v5128
  %5364 = vst.msk [vmem:[#allocation3 + $0x48] sm:$0xf] %vm5354, %v5130
  %5365 = vst.msk [vmem:[#allocation3 + $0x50] sm:$0xf] %vm5354, %v5132
  %5366 = vst.msk [vmem:[#allocation3 + $0x58] sm:$0xf] %vm5354, %v5134
  %5367 = vst.msk [vmem:[#allocation3 + $0x60] sm:$0xf] %vm5354, %v5136
  %5368 = vst.msk [vmem:[#allocation3 + $0x68] sm:$0xf] %vm5354, %v5138
  %5369 = vst.msk [vmem:[#allocation3 + $0x70] sm:$0xf] %vm5354, %v5140
  %5370 = vst.msk [vmem:[#allocation3 + $0x78] sm:$0xf] %vm5354, %v5142
  %5371 = vst.msk [vmem:[#allocation3 + $0x80] sm:$0xf] %vm5354, %v5144
  %5372 = vst.msk [vmem:[#allocation3 + $0x88] sm:$0xf] %vm5354, %v5146
  %5373 = vst.msk [vmem:[#allocation3 + $0x90] sm:$0xf] %vm5354, %v5148
  %5374 = vst.msk [vmem:[#allocation3 + $0x98] sm:$0xf] %vm5354, %v5150
  %5375 = vst.msk [vmem:[#allocation3 + $0xa0] sm:$0xf] %vm5354, %v5152
  %5376 = vst.msk [vmem:[#allocation3 + $0xa8] sm:$0xf] %vm5354, %v5154
  %5377 = vst.msk [vmem:[#allocation3 + $0xb0] sm:$0xf] %vm5354, %v5156
  %5378 = vst.msk [vmem:[#allocation3 + $0xb8] sm:$0xf] %vm5354, %v5158
  %5379 = vst.msk [vmem:[#allocation3 + $0xc0] sm:$0xf] %vm5354, %v5160
  %5380 = vst.msk [vmem:[#allocation3 + $0xc8] sm:$0xf] %vm5354, %v5162
  %5381 = vst.msk [vmem:[#allocation3 + $0xd0] sm:$0xf] %vm5354, %v5164
  %5382 = vst.msk [vmem:[#allocation3 + $0xd8] sm:$0xf] %vm5354, %v5166
  %5383 = vst.msk [vmem:[#allocation3 + $0xe0] sm:$0xf] %vm5354, %v5168
  %5384 = vst.msk [vmem:[#allocation3 + $0xe8] sm:$0xf] %vm5354, %v5170
  %5385 = vst.msk [vmem:[#allocation3 + $0xf0] sm:$0xf] %vm5354, %v5172
  %5386 = vst.msk [vmem:[#allocation3 + $0xf8] sm:$0xf] %vm5354, %v5174
  %5387 = vst.msk [vmem:[#allocation3 + $0x100] sm:$0xf] %vm5354, %v5176
  %5388 = vst.msk [vmem:[#allocation3 + $0x108] sm:$0xf] %vm5354, %v5178
  %5389 = vst.msk [vmem:[#allocation3 + $0x110] sm:$0xf] %vm5354, %v5180
  %5390 = vst.msk [vmem:[#allocation3 + $0x118] sm:$0xf] %vm5354, %v5182
  %5391 = vst.msk [vmem:[#allocation3 + $0x120] sm:$0xf] %vm5354, %v5184
  %5392 = vst.msk [vmem:[#allocation3 + $0x128] sm:$0xf] %vm5354, %v5186
  %5393 = vst.msk [vmem:[#allocation3 + $0x130] sm:$0xf] %vm5354, %v5188
  %5394 = vst.msk [vmem:[#allocation3 + $0x138] sm:$0xf] %vm5354, %v5190
  %5395 = vst.msk [vmem:[#allocation3 + $0x140] sm:$0xf] %vm5354, %v5192
  %5396 = vst.msk [vmem:[#allocation3 + $0x148] sm:$0xf] %vm5354, %v5194
  %5397 = vst.msk [vmem:[#allocation3 + $0x150] sm:$0xf] %vm5354, %v5196
  %5398 = vst.msk [vmem:[#allocation3 + $0x158] sm:$0xf] %vm5354, %v5198
  %5399 = vst.msk [vmem:[#allocation3 + $0x160] sm:$0xf] %vm5354, %v5200
  %5400 = vst.msk [vmem:[#allocation3 + $0x168] sm:$0xf] %vm5354, %v5202
  %5401 = vst.msk [vmem:[#allocation3 + $0x170] sm:$0xf] %vm5354, %v5204
  %5402 = vst.msk [vmem:[#allocation3 + $0x178] sm:$0xf] %vm5354, %v5206
  %5403 = vst.msk [vmem:[#allocation3 + $0x180] sm:$0xf] %vm5354, %v5208
  %5404 = vst.msk [vmem:[#allocation3 + $0x188] sm:$0xf] %vm5354, %v5210
  %5405 = vst.msk [vmem:[#allocation3 + $0x190] sm:$0xf] %vm5354, %v5212
  %5406 = vst.msk [vmem:[#allocation3 + $0x198] sm:$0xf] %vm5354, %v5214
  %5407 = vst.msk [vmem:[#allocation3 + $0x1a0] sm:$0xf] %vm5354, %v5216
  %5408 = vst.msk [vmem:[#allocation3 + $0x1a8] sm:$0xf] %vm5354, %v5218
  %5409 = vst.msk [vmem:[#allocation3 + $0x1b0] sm:$0xf] %vm5354, %v5220
  %5410 = vst.msk [vmem:[#allocation3 + $0x1b8] sm:$0xf] %vm5354, %v5222
  %5411 = vst.msk [vmem:[#allocation3 + $0x1c0] sm:$0xf] %vm5354, %v5224
  %5412 = vst.msk [vmem:[#allocation3 + $0x1c8] sm:$0xf] %vm5354, %v5226
  %5413 = vst.msk [vmem:[#allocation3 + $0x1d0] sm:$0xf] %vm5354, %v5228
  %5414 = vst.msk [vmem:[#allocation3 + $0x1d8] sm:$0xf] %vm5354, %v5230
  %5415 = vst.msk [vmem:[#allocation3 + $0x1e0] sm:$0xf] %vm5354, %v5232
  %5416 = vst.msk [vmem:[#allocation3 + $0x1e8] sm:$0xf] %vm5354, %v5234
  %5417 = vst.msk [vmem:[#allocation3 + $0x1f0] sm:$0xf] %vm5354, %v5236
  %5418 = vst.msk [vmem:[#allocation3 + $0x1f8] sm:$0xf] %vm5354, %v5238
  %5419 = vst.msk [vmem:[#allocation3 + $0x200] sm:$0xf] %vm5354, %v5240
  %5420 = vst.msk [vmem:[#allocation3 + $0x208] sm:$0xf] %vm5354, %v5242
  %5421 = vst.msk [vmem:[#allocation3 + $0x210] sm:$0xf] %vm5354, %v5244
  %5422 = vst.msk [vmem:[#allocation3 + $0x218] sm:$0xf] %vm5354, %v5246
  %5423 = vst.msk [vmem:[#allocation3 + $0x220] sm:$0xf] %vm5354, %v5248
  %5424 = vst.msk [vmem:[#allocation3 + $0x228] sm:$0xf] %vm5354, %v5250
  %5425 = vst.msk [vmem:[#allocation3 + $0x230] sm:$0xf] %vm5354, %v5252
  %5426 = vst.msk [vmem:[#allocation3 + $0x238] sm:$0xf] %vm5354, %v5254
  %5427 = vst.msk [vmem:[#allocation3 + $0x240] sm:$0xf] %vm5354, %v5256
  %5428 = vst.msk [vmem:[#allocation3 + $0x248] sm:$0xf] %vm5354, %v5258
  %5429 = vst.msk [vmem:[#allocation3 + $0x250] sm:$0xf] %vm5354, %v5260
  %5430 = vst.msk [vmem:[#allocation3 + $0x258] sm:$0xf] %vm5354, %v5262
  %5431 = vst.msk [vmem:[#allocation3 + $0x260] sm:$0xf] %vm5354, %v5264
  %5432 = vst.msk [vmem:[#allocation3 + $0x268] sm:$0xf] %vm5354, %v5266
  %5433 = vst.msk [vmem:[#allocation3 + $0x270] sm:$0xf] %vm5354, %v5268
  %5434 = vst.msk [vmem:[#allocation3 + $0x278] sm:$0xf] %vm5354, %v5270
  %5435 = vst.msk [vmem:[#allocation3 + $0x280] sm:$0xf] %vm5354, %v5272
  %v5436 = vld [vmem:[#allocation2 + $0x8] sm:$0x8]
  %v5437 = vld [vmem:[#allocation2 + $0xc] sm:$0xf]
  %v5438 = vld [vmem:[#allocation2 + $0x10] sm:$0xf]
  %v5439 = vld [vmem:[#allocation2 + $0x14] sm:$0xf]
  %v5440 = vld [vmem:[#allocation2 + $0x18] sm:$0xf]
  %v5441 = vld [vmem:[#allocation2 + $0x1c] sm:$0xf]
  %v5442 = vld [vmem:[#allocation2 + $0x20] sm:$0xf]
  %v5443 = vld [vmem:[#allocation2 + $0x24] sm:$0xf]
  %v5444 = vld [vmem:[#allocation2 + $0x28] sm:$0xf]
  %v5445 = vld [vmem:[#allocation2 + $0x2c] sm:$0xf]
  %v5446 = vld [vmem:[#allocation2 + $0x30] sm:$0xf]
  %v5447 = vld [vmem:[#allocation2 + $0x34] sm:$0xf]
  %v5448 = vld [vmem:[#allocation2 + $0x38] sm:$0xf]
  %v5449 = vld [vmem:[#allocation2 + $0x3c] sm:$0xf]
  %v5450 = vld [vmem:[#allocation2 + $0x40] sm:$0xf]
  %v5451 = vld [vmem:[#allocation2 + $0x44] sm:$0xf]
  %v5452 = vld [vmem:[#allocation2 + $0x48] sm:$0xf]
  %v5453 = vld [vmem:[#allocation2 + $0x4c] sm:$0xf]
  %v5454 = vld [vmem:[#allocation2 + $0x50] sm:$0xf]
  %v5455 = vld [vmem:[#allocation2 + $0x54] sm:$0xf]
  %v5456 = vld [vmem:[#allocation2 + $0x58] sm:$0xf]
  %v5457 = vld [vmem:[#allocation2 + $0x5c] sm:$0xf]
  %v5458 = vld [vmem:[#allocation2 + $0x60] sm:$0xf]
  %v5459 = vld [vmem:[#allocation2 + $0x64] sm:$0xf]
  %v5460 = vld [vmem:[#allocation2 + $0x68] sm:$0xf]
  %v5461 = vld [vmem:[#allocation2 + $0x6c] sm:$0xf]
  %v5462 = vld [vmem:[#allocation2 + $0x70] sm:$0xf]
  %v5463 = vld [vmem:[#allocation2 + $0x74] sm:$0xf]
  %v5464 = vld [vmem:[#allocation2 + $0x78] sm:$0xf]
  %v5465 = vld [vmem:[#allocation2 + $0x7c] sm:$0xf]
  %v5466 = vld [vmem:[#allocation2 + $0x80] sm:$0xf]
  %v5467 = vld [vmem:[#allocation2 + $0x84] sm:$0xf]
  %v5468 = vld [vmem:[#allocation2 + $0x88] sm:$0xf]
  %v5469 = vld [vmem:[#allocation2 + $0x8c] sm:$0xf]
  %v5470 = vld [vmem:[#allocation2 + $0x90] sm:$0xf]
  %v5471 = vld [vmem:[#allocation2 + $0x94] sm:$0xf]
  %v5472 = vld [vmem:[#allocation2 + $0x98] sm:$0xf]
  %v5473 = vld [vmem:[#allocation2 + $0x9c] sm:$0xf]
  %v5474 = vld [vmem:[#allocation2 + $0xa0] sm:$0xf]
  %v5475 = vld [vmem:[#allocation2 + $0xa4] sm:$0xf]
  %v5476 = vld [vmem:[#allocation2 + $0xa8] sm:$0xf]
  %v5477 = vld [vmem:[#allocation2 + $0xac] sm:$0xf]
  %v5478 = vld [vmem:[#allocation2 + $0xb0] sm:$0xf]
  %v5479 = vld [vmem:[#allocation2 + $0xb4] sm:$0xf]
  %v5480 = vld [vmem:[#allocation2 + $0xb8] sm:$0xf]
  %v5481 = vld [vmem:[#allocation2 + $0xbc] sm:$0xf]
  %v5482 = vld [vmem:[#allocation2 + $0xc0] sm:$0xf]
  %v5483 = vld [vmem:[#allocation2 + $0xc4] sm:$0xf]
  %v5484 = vld [vmem:[#allocation2 + $0xc8] sm:$0xf]
  %v5485 = vld [vmem:[#allocation2 + $0xcc] sm:$0xf]
  %v5486 = vld [vmem:[#allocation2 + $0xd0] sm:$0xf]
  %v5487 = vld [vmem:[#allocation2 + $0xd4] sm:$0xf]
  %v5488 = vld [vmem:[#allocation2 + $0xd8] sm:$0xf]
  %v5489 = vld [vmem:[#allocation2 + $0xdc] sm:$0xf]
  %v5490 = vld [vmem:[#allocation2 + $0xe0] sm:$0xf]
  %v5491 = vld [vmem:[#allocation2 + $0xe4] sm:$0xf]
  %v5492 = vld [vmem:[#allocation2 + $0xe8] sm:$0xf]
  %v5493 = vld [vmem:[#allocation2 + $0xec] sm:$0xf]
  %v5494 = vld [vmem:[#allocation2 + $0xf0] sm:$0xf]
  %v5495 = vld [vmem:[#allocation2 + $0xf4] sm:$0xf]
  %v5496 = vld [vmem:[#allocation2 + $0xf8] sm:$0xf]
  %v5497 = vld [vmem:[#allocation2 + $0xfc] sm:$0xf]
  %v5498 = vld [vmem:[#allocation2 + $0x100] sm:$0xf]
  %v5499 = vld [vmem:[#allocation2 + $0x104] sm:$0xf]
  %v5500 = vld [vmem:[#allocation2 + $0x108] sm:$0xf]
  %v5501 = vld [vmem:[#allocation2 + $0x10c] sm:$0xf]
  %v5502 = vld [vmem:[#allocation2 + $0x110] sm:$0xf]
  %v5503 = vld [vmem:[#allocation2 + $0x114] sm:$0xf]
  %v5504 = vld [vmem:[#allocation2 + $0x118] sm:$0xf]
  %v5505 = vld [vmem:[#allocation2 + $0x11c] sm:$0xf]
  %v5506 = vld [vmem:[#allocation2 + $0x120] sm:$0xf]
  %v5507 = vld [vmem:[#allocation2 + $0x124] sm:$0xf]
  %v5508 = vld [vmem:[#allocation2 + $0x128] sm:$0xf]
  %v5509 = vld [vmem:[#allocation2 + $0x12c] sm:$0xf]
  %v5510 = vld [vmem:[#allocation2 + $0x130] sm:$0xf]
  %v5511 = vld [vmem:[#allocation2 + $0x134] sm:$0xf]
  %v5512 = vld [vmem:[#allocation2 + $0x138] sm:$0xf]
  %v5513 = vld [vmem:[#allocation2 + $0x13c] sm:$0xf]
  %v5514 = vld [vmem:[#allocation2 + $0x140] sm:$0xf]
  %v5515 = vld [vmem:[#allocation2 + $0x144] sm:$0xf]
  %v5516 = vld [vmem:[#allocation2 + $0x148] sm:$0xf]
  %v5517 = vld [vmem:[#allocation2 + $0x14c] sm:$0xf]
  %v5519 = vshrl.u32 %v5436, 16
  %v5521 = vrot.slane %v5519, 7
  %v5522 = vrot.slane %v5521, 4
  %v5524 = vshrl.u32 %v5437, 16
  %v5526 = vrot.slane %v5524, 7
  %v5527 = vshll.u32 %v5437, 16
  %v5529 = vor.u32 %v5526, %v5527
  %v5530 = vsel %vm4377, %v5522, %v5529
  %v5531 = vrot.slane %v5526, 4
  %v5533 = vshrl.u32 %v5438, 16
  %v5535 = vrot.slane %v5533, 7
  %v5536 = vshll.u32 %v5438, 16
  %v5538 = vor.u32 %v5535, %v5536
  %v5539 = vsel %vm4377, %v5531, %v5538
  %v5540 = vrot.slane %v5535, 4
  %v5542 = vshrl.u32 %v5439, 16
  %v5544 = vrot.slane %v5542, 7
  %v5545 = vshll.u32 %v5439, 16
  %v5547 = vor.u32 %v5544, %v5545
  %v5548 = vsel %vm4377, %v5540, %v5547
  %v5549 = vrot.slane %v5544, 4
  %v5551 = vshrl.u32 %v5440, 16
  %v5553 = vrot.slane %v5551, 7
  %v5554 = vshll.u32 %v5440, 16
  %v5556 = vor.u32 %v5553, %v5554
  %v5557 = vsel %vm4377, %v5549, %v5556
  %v5558 = vrot.slane %v5553, 4
  %v5560 = vshrl.u32 %v5441, 16
  %v5562 = vrot.slane %v5560, 7
  %v5563 = vshll.u32 %v5441, 16
  %v5565 = vor.u32 %v5562, %v5563
  %v5566 = vsel %vm4377, %v5558, %v5565
  %v5567 = vrot.slane %v5562, 4
  %v5569 = vshrl.u32 %v5442, 16
  %v5571 = vrot.slane %v5569, 7
  %v5572 = vshll.u32 %v5442, 16
  %v5574 = vor.u32 %v5571, %v5572
  %v5575 = vsel %vm4377, %v5567, %v5574
  %v5576 = vrot.slane %v5571, 4
  %v5578 = vshrl.u32 %v5443, 16
  %v5580 = vrot.slane %v5578, 7
  %v5581 = vshll.u32 %v5443, 16
  %v5583 = vor.u32 %v5580, %v5581
  %v5584 = vsel %vm4377, %v5576, %v5583
  %v5585 = vrot.slane %v5580, 4
  %v5587 = vshrl.u32 %v5444, 16
  %v5589 = vrot.slane %v5587, 7
  %v5590 = vshll.u32 %v5444, 16
  %v5592 = vor.u32 %v5589, %v5590
  %v5593 = vsel %vm4377, %v5585, %v5592
  %v5594 = vrot.slane %v5589, 4
  %v5596 = vshrl.u32 %v5445, 16
  %v5598 = vrot.slane %v5596, 7
  %v5599 = vshll.u32 %v5445, 16
  %v5601 = vor.u32 %v5598, %v5599
  %v5602 = vsel %vm4377, %v5594, %v5601
  %v5603 = vrot.slane %v5598, 4
  %v5605 = vshrl.u32 %v5446, 16
  %v5607 = vrot.slane %v5605, 7
  %v5608 = vshll.u32 %v5446, 16
  %v5610 = vor.u32 %v5607, %v5608
  %v5611 = vsel %vm4377, %v5603, %v5610
  %v5612 = vrot.slane %v5607, 4
  %v5614 = vshrl.u32 %v5447, 16
  %v5616 = vrot.slane %v5614, 7
  %v5617 = vshll.u32 %v5447, 16
  %v5619 = vor.u32 %v5616, %v5617
  %v5620 = vsel %vm4377, %v5612, %v5619
  %v5621 = vrot.slane %v5616, 4
  %v5623 = vshrl.u32 %v5448, 16
  %v5625 = vrot.slane %v5623, 7
  %v5626 = vshll.u32 %v5448, 16
  %v5628 = vor.u32 %v5625, %v5626
  %v5629 = vsel %vm4377, %v5621, %v5628
  %v5630 = vrot.slane %v5625, 4
  %v5632 = vshrl.u32 %v5449, 16
  %v5634 = vrot.slane %v5632, 7
  %v5635 = vshll.u32 %v5449, 16
  %v5637 = vor.u32 %v5634, %v5635
  %v5638 = vsel %vm4377, %v5630, %v5637
  %v5639 = vrot.slane %v5634, 4
  %v5641 = vshrl.u32 %v5450, 16
  %v5643 = vrot.slane %v5641, 7
  %v5644 = vshll.u32 %v5450, 16
  %v5646 = vor.u32 %v5643, %v5644
  %v5647 = vsel %vm4377, %v5639, %v5646
  %v5648 = vrot.slane %v5643, 4
  %v5650 = vshrl.u32 %v5451, 16
  %v5652 = vrot.slane %v5650, 7
  %v5653 = vshll.u32 %v5451, 16
  %v5655 = vor.u32 %v5652, %v5653
  %v5656 = vsel %vm4377, %v5648, %v5655
  %v5657 = vrot.slane %v5652, 4
  %v5659 = vshrl.u32 %v5452, 16
  %v5661 = vrot.slane %v5659, 7
  %v5662 = vshll.u32 %v5452, 16
  %v5664 = vor.u32 %v5661, %v5662
  %v5665 = vsel %vm4377, %v5657, %v5664
  %v5666 = vrot.slane %v5661, 4
  %v5668 = vshrl.u32 %v5453, 16
  %v5670 = vrot.slane %v5668, 7
  %v5671 = vshll.u32 %v5453, 16
  %v5673 = vor.u32 %v5670, %v5671
  %v5674 = vsel %vm4377, %v5666, %v5673
  %v5675 = vrot.slane %v5670, 4
  %v5677 = vshrl.u32 %v5454, 16
  %v5679 = vrot.slane %v5677, 7
  %v5680 = vshll.u32 %v5454, 16
  %v5682 = vor.u32 %v5679, %v5680
  %v5683 = vsel %vm4377, %v5675, %v5682
  %v5684 = vrot.slane %v5679, 4
  %v5686 = vshrl.u32 %v5455, 16
  %v5688 = vrot.slane %v5686, 7
  %v5689 = vshll.u32 %v5455, 16
  %v5691 = vor.u32 %v5688, %v5689
  %v5692 = vsel %vm4377, %v5684, %v5691
  %v5693 = vrot.slane %v5688, 4
  %v5695 = vshrl.u32 %v5456, 16
  %v5697 = vrot.slane %v5695, 7
  %v5698 = vshll.u32 %v5456, 16
  %v5700 = vor.u32 %v5697, %v5698
  %v5701 = vsel %vm4377, %v5693, %v5700
  %v5702 = vrot.slane %v5697, 4
  %v5704 = vshrl.u32 %v5457, 16
  %v5706 = vrot.slane %v5704, 7
  %v5707 = vshll.u32 %v5457, 16
  %v5709 = vor.u32 %v5706, %v5707
  %v5710 = vsel %vm4377, %v5702, %v5709
  %v5711 = vrot.slane %v5706, 4
  %v5713 = vshrl.u32 %v5458, 16
  %v5715 = vrot.slane %v5713, 7
  %v5716 = vshll.u32 %v5458, 16
  %v5718 = vor.u32 %v5715, %v5716
  %v5719 = vsel %vm4377, %v5711, %v5718
  %v5720 = vrot.slane %v5715, 4
  %v5722 = vshrl.u32 %v5459, 16
  %v5724 = vrot.slane %v5722, 7
  %v5725 = vshll.u32 %v5459, 16
  %v5727 = vor.u32 %v5724, %v5725
  %v5728 = vsel %vm4377, %v5720, %v5727
  %v5729 = vrot.slane %v5724, 4
  %v5731 = vshrl.u32 %v5460, 16
  %v5733 = vrot.slane %v5731, 7
  %v5734 = vshll.u32 %v5460, 16
  %v5736 = vor.u32 %v5733, %v5734
  %v5737 = vsel %vm4377, %v5729, %v5736
  %v5738 = vrot.slane %v5733, 4
  %v5740 = vshrl.u32 %v5461, 16
  %v5742 = vrot.slane %v5740, 7
  %v5743 = vshll.u32 %v5461, 16
  %v5745 = vor.u32 %v5742, %v5743
  %v5746 = vsel %vm4377, %v5738, %v5745
  %v5747 = vrot.slane %v5742, 4
  %v5749 = vshrl.u32 %v5462, 16
  %v5751 = vrot.slane %v5749, 7
  %v5752 = vshll.u32 %v5462, 16
  %v5754 = vor.u32 %v5751, %v5752
  %v5755 = vsel %vm4377, %v5747, %v5754
  %v5756 = vrot.slane %v5751, 4
  %v5758 = vshrl.u32 %v5463, 16
  %v5760 = vrot.slane %v5758, 7
  %v5761 = vshll.u32 %v5463, 16
  %v5763 = vor.u32 %v5760, %v5761
  %v5764 = vsel %vm4377, %v5756, %v5763
  %v5765 = vrot.slane %v5760, 4
  %v5767 = vshrl.u32 %v5464, 16
  %v5769 = vrot.slane %v5767, 7
  %v5770 = vshll.u32 %v5464, 16
  %v5772 = vor.u32 %v5769, %v5770
  %v5773 = vsel %vm4377, %v5765, %v5772
  %v5774 = vrot.slane %v5769, 4
  %v5776 = vshrl.u32 %v5465, 16
  %v5778 = vrot.slane %v5776, 7
  %v5779 = vshll.u32 %v5465, 16
  %v5781 = vor.u32 %v5778, %v5779
  %v5782 = vsel %vm4377, %v5774, %v5781
  %v5783 = vrot.slane %v5778, 4
  %v5785 = vshrl.u32 %v5466, 16
  %v5787 = vrot.slane %v5785, 7
  %v5788 = vshll.u32 %v5466, 16
  %v5790 = vor.u32 %v5787, %v5788
  %v5791 = vsel %vm4377, %v5783, %v5790
  %v5792 = vrot.slane %v5787, 4
  %v5794 = vshrl.u32 %v5467, 16
  %v5796 = vrot.slane %v5794, 7
  %v5797 = vshll.u32 %v5467, 16
  %v5799 = vor.u32 %v5796, %v5797
  %v5800 = vsel %vm4377, %v5792, %v5799
  %v5801 = vrot.slane %v5796, 4
  %v5803 = vshrl.u32 %v5468, 16
  %v5805 = vrot.slane %v5803, 7
  %v5806 = vshll.u32 %v5468, 16
  %v5808 = vor.u32 %v5805, %v5806
  %v5809 = vsel %vm4377, %v5801, %v5808
  %v5810 = vrot.slane %v5805, 4
  %v5812 = vshrl.u32 %v5469, 16
  %v5814 = vrot.slane %v5812, 7
  %v5815 = vshll.u32 %v5469, 16
  %v5817 = vor.u32 %v5814, %v5815
  %v5818 = vsel %vm4377, %v5810, %v5817
  %v5819 = vrot.slane %v5814, 4
  %v5821 = vshrl.u32 %v5470, 16
  %v5823 = vrot.slane %v5821, 7
  %v5824 = vshll.u32 %v5470, 16
  %v5826 = vor.u32 %v5823, %v5824
  %v5827 = vsel %vm4377, %v5819, %v5826
  %v5828 = vrot.slane %v5823, 4
  %v5830 = vshrl.u32 %v5471, 16
  %v5832 = vrot.slane %v5830, 7
  %v5833 = vshll.u32 %v5471, 16
  %v5835 = vor.u32 %v5832, %v5833
  %v5836 = vsel %vm4377, %v5828, %v5835
  %v5837 = vrot.slane %v5832, 4
  %v5839 = vshrl.u32 %v5472, 16
  %v5841 = vrot.slane %v5839, 7
  %v5842 = vshll.u32 %v5472, 16
  %v5844 = vor.u32 %v5841, %v5842
  %v5845 = vsel %vm4377, %v5837, %v5844
  %v5846 = vrot.slane %v5841, 4
  %v5848 = vshrl.u32 %v5473, 16
  %v5850 = vrot.slane %v5848, 7
  %v5851 = vshll.u32 %v5473, 16
  %v5853 = vor.u32 %v5850, %v5851
  %v5854 = vsel %vm4377, %v5846, %v5853
  %v5855 = vrot.slane %v5850, 4
  %v5857 = vshrl.u32 %v5474, 16
  %v5859 = vrot.slane %v5857, 7
  %v5860 = vshll.u32 %v5474, 16
  %v5862 = vor.u32 %v5859, %v5860
  %v5863 = vsel %vm4377, %v5855, %v5862
  %v5864 = vrot.slane %v5859, 4
  %v5866 = vshrl.u32 %v5475, 16
  %v5868 = vrot.slane %v5866, 7
  %v5869 = vshll.u32 %v5475, 16
  %v5871 = vor.u32 %v5868, %v5869
  %v5872 = vsel %vm4377, %v5864, %v5871
  %v5873 = vrot.slane %v5868, 4
  %v5875 = vshrl.u32 %v5476, 16
  %v5877 = vrot.slane %v5875, 7
  %v5878 = vshll.u32 %v5476, 16
  %v5880 = vor.u32 %v5877, %v5878
  %v5881 = vsel %vm4377, %v5873, %v5880
  %v5882 = vrot.slane %v5877, 4
  %v5884 = vshrl.u32 %v5477, 16
  %v5886 = vrot.slane %v5884, 7
  %v5887 = vshll.u32 %v5477, 16
  %v5889 = vor.u32 %v5886, %v5887
  %v5890 = vsel %vm4377, %v5882, %v5889
  %v5891 = vrot.slane %v5886, 4
  %v5893 = vshrl.u32 %v5478, 16
  %v5895 = vrot.slane %v5893, 7
  %v5896 = vshll.u32 %v5478, 16
  %v5898 = vor.u32 %v5895, %v5896
  %v5899 = vsel %vm4377, %v5891, %v5898
  %v5900 = vrot.slane %v5895, 4
  %v5902 = vshrl.u32 %v5479, 16
  %v5904 = vrot.slane %v5902, 7
  %v5905 = vshll.u32 %v5479, 16
  %v5907 = vor.u32 %v5904, %v5905
  %v5908 = vsel %vm4377, %v5900, %v5907
  %v5909 = vrot.slane %v5904, 4
  %v5911 = vshrl.u32 %v5480, 16
  %v5913 = vrot.slane %v5911, 7
  %v5914 = vshll.u32 %v5480, 16
  %v5916 = vor.u32 %v5913, %v5914
  %v5917 = vsel %vm4377, %v5909, %v5916
  %v5918 = vrot.slane %v5913, 4
  %v5920 = vshrl.u32 %v5481, 16
  %v5922 = vrot.slane %v5920, 7
  %v5923 = vshll.u32 %v5481, 16
  %v5925 = vor.u32 %v5922, %v5923
  %v5926 = vsel %vm4377, %v5918, %v5925
  %v5927 = vrot.slane %v5922, 4
  %v5929 = vshrl.u32 %v5482, 16
  %v5931 = vrot.slane %v5929, 7
  %v5932 = vshll.u32 %v5482, 16
  %v5934 = vor.u32 %v5931, %v5932
  %v5935 = vsel %vm4377, %v5927, %v5934
  %v5936 = vrot.slane %v5931, 4
  %v5938 = vshrl.u32 %v5483, 16
  %v5940 = vrot.slane %v5938, 7
  %v5941 = vshll.u32 %v5483, 16
  %v5943 = vor.u32 %v5940, %v5941
  %v5944 = vsel %vm4377, %v5936, %v5943
  %v5945 = vrot.slane %v5940, 4
  %v5947 = vshrl.u32 %v5484, 16
  %v5949 = vrot.slane %v5947, 7
  %v5950 = vshll.u32 %v5484, 16
  %v5952 = vor.u32 %v5949, %v5950
  %v5953 = vsel %vm4377, %v5945, %v5952
  %v5954 = vrot.slane %v5949, 4
  %v5956 = vshrl.u32 %v5485, 16
  %v5958 = vrot.slane %v5956, 7
  %v5959 = vshll.u32 %v5485, 16
  %v5961 = vor.u32 %v5958, %v5959
  %v5962 = vsel %vm4377, %v5954, %v5961
  %v5963 = vrot.slane %v5958, 4
  %v5965 = vshrl.u32 %v5486, 16
  %v5967 = vrot.slane %v5965, 7
  %v5968 = vshll.u32 %v5486, 16
  %v5970 = vor.u32 %v5967, %v5968
  %v5971 = vsel %vm4377, %v5963, %v5970
  %v5972 = vrot.slane %v5967, 4
  %v5974 = vshrl.u32 %v5487, 16
  %v5976 = vrot.slane %v5974, 7
  %v5977 = vshll.u32 %v5487, 16
  %v5979 = vor.u32 %v5976, %v5977
  %v5980 = vsel %vm4377, %v5972, %v5979
  %v5981 = vrot.slane %v5976, 4
  %v5983 = vshrl.u32 %v5488, 16
  %v5985 = vrot.slane %v5983, 7
  %v5986 = vshll.u32 %v5488, 16
  %v5988 = vor.u32 %v5985, %v5986
  %v5989 = vsel %vm4377, %v5981, %v5988
  %v5990 = vrot.slane %v5985, 4
  %v5992 = vshrl.u32 %v5489, 16
  %v5994 = vrot.slane %v5992, 7
  %v5995 = vshll.u32 %v5489, 16
  %v5997 = vor.u32 %v5994, %v5995
  %v5998 = vsel %vm4377, %v5990, %v5997
  %v5999 = vrot.slane %v5994, 4
  %v6001 = vshrl.u32 %v5490, 16
  %v6003 = vrot.slane %v6001, 7
  %v6004 = vshll.u32 %v5490, 16
  %v6006 = vor.u32 %v6003, %v6004
  %v6007 = vsel %vm4377, %v5999, %v6006
  %v6008 = vrot.slane %v6003, 4
  %v6010 = vshrl.u32 %v5491, 16
  %v6012 = vrot.slane %v6010, 7
  %v6013 = vshll.u32 %v5491, 16
  %v6015 = vor.u32 %v6012, %v6013
  %v6016 = vsel %vm4377, %v6008, %v6015
  %v6017 = vrot.slane %v6012, 4
  %v6019 = vshrl.u32 %v5492, 16
  %v6021 = vrot.slane %v6019, 7
  %v6022 = vshll.u32 %v5492, 16
  %v6024 = vor.u32 %v6021, %v6022
  %v6025 = vsel %vm4377, %v6017, %v6024
  %v6026 = vrot.slane %v6021, 4
  %v6028 = vshrl.u32 %v5493, 16
  %v6030 = vrot.slane %v6028, 7
  %v6031 = vshll.u32 %v5493, 16
  %v6033 = vor.u32 %v6030, %v6031
  %v6034 = vsel %vm4377, %v6026, %v6033
  %v6035 = vrot.slane %v6030, 4
  %v6037 = vshrl.u32 %v5494, 16
  %v6039 = vrot.slane %v6037, 7
  %v6040 = vshll.u32 %v5494, 16
  %v6042 = vor.u32 %v6039, %v6040
  %v6043 = vsel %vm4377, %v6035, %v6042
  %v6044 = vrot.slane %v6039, 4
  %v6046 = vshrl.u32 %v5495, 16
  %v6048 = vrot.slane %v6046, 7
  %v6049 = vshll.u32 %v5495, 16
  %v6051 = vor.u32 %v6048, %v6049
  %v6052 = vsel %vm4377, %v6044, %v6051
  %v6053 = vrot.slane %v6048, 4
  %v6055 = vshrl.u32 %v5496, 16
  %v6057 = vrot.slane %v6055, 7
  %v6058 = vshll.u32 %v5496, 16
  %v6060 = vor.u32 %v6057, %v6058
  %v6061 = vsel %vm4377, %v6053, %v6060
  %v6062 = vrot.slane %v6057, 4
  %v6064 = vshrl.u32 %v5497, 16
  %v6066 = vrot.slane %v6064, 7
  %v6067 = vshll.u32 %v5497, 16
  %v6069 = vor.u32 %v6066, %v6067
  %v6070 = vsel %vm4377, %v6062, %v6069
  %v6071 = vrot.slane %v6066, 4
  %v6073 = vshrl.u32 %v5498, 16
  %v6075 = vrot.slane %v6073, 7
  %v6076 = vshll.u32 %v5498, 16
  %v6078 = vor.u32 %v6075, %v6076
  %v6079 = vsel %vm4377, %v6071, %v6078
  %v6080 = vrot.slane %v6075, 4
  %v6082 = vshrl.u32 %v5499, 16
  %v6084 = vrot.slane %v6082, 7
  %v6085 = vshll.u32 %v5499, 16
  %v6087 = vor.u32 %v6084, %v6085
  %v6088 = vsel %vm4377, %v6080, %v6087
  %v6089 = vrot.slane %v6084, 4
  %v6091 = vshrl.u32 %v5500, 16
  %v6093 = vrot.slane %v6091, 7
  %v6094 = vshll.u32 %v5500, 16
  %v6096 = vor.u32 %v6093, %v6094
  %v6097 = vsel %vm4377, %v6089, %v6096
  %v6098 = vrot.slane %v6093, 4
  %v6100 = vshrl.u32 %v5501, 16
  %v6102 = vrot.slane %v6100, 7
  %v6103 = vshll.u32 %v5501, 16
  %v6105 = vor.u32 %v6102, %v6103
  %v6106 = vsel %vm4377, %v6098, %v6105
  %v6107 = vrot.slane %v6102, 4
  %v6109 = vshrl.u32 %v5502, 16
  %v6111 = vrot.slane %v6109, 7
  %v6112 = vshll.u32 %v5502, 16
  %v6114 = vor.u32 %v6111, %v6112
  %v6115 = vsel %vm4377, %v6107, %v6114
  %v6116 = vrot.slane %v6111, 4
  %v6118 = vshrl.u32 %v5503, 16
  %v6120 = vrot.slane %v6118, 7
  %v6121 = vshll.u32 %v5503, 16
  %v6123 = vor.u32 %v6120, %v6121
  %v6124 = vsel %vm4377, %v6116, %v6123
  %v6125 = vrot.slane %v6120, 4
  %v6127 = vshrl.u32 %v5504, 16
  %v6129 = vrot.slane %v6127, 7
  %v6130 = vshll.u32 %v5504, 16
  %v6132 = vor.u32 %v6129, %v6130
  %v6133 = vsel %vm4377, %v6125, %v6132
  %v6134 = vrot.slane %v6129, 4
  %v6136 = vshrl.u32 %v5505, 16
  %v6138 = vrot.slane %v6136, 7
  %v6139 = vshll.u32 %v5505, 16
  %v6141 = vor.u32 %v6138, %v6139
  %v6142 = vsel %vm4377, %v6134, %v6141
  %v6143 = vrot.slane %v6138, 4
  %v6145 = vshrl.u32 %v5506, 16
  %v6147 = vrot.slane %v6145, 7
  %v6148 = vshll.u32 %v5506, 16
  %v6150 = vor.u32 %v6147, %v6148
  %v6151 = vsel %vm4377, %v6143, %v6150
  %v6152 = vrot.slane %v6147, 4
  %v6154 = vshrl.u32 %v5507, 16
  %v6156 = vrot.slane %v6154, 7
  %v6157 = vshll.u32 %v5507, 16
  %v6159 = vor.u32 %v6156, %v6157
  %v6160 = vsel %vm4377, %v6152, %v6159
  %v6161 = vrot.slane %v6156, 4
  %v6163 = vshrl.u32 %v5508, 16
  %v6165 = vrot.slane %v6163, 7
  %v6166 = vshll.u32 %v5508, 16
  %v6168 = vor.u32 %v6165, %v6166
  %v6169 = vsel %vm4377, %v6161, %v6168
  %v6170 = vrot.slane %v6165, 4
  %v6172 = vshrl.u32 %v5509, 16
  %v6174 = vrot.slane %v6172, 7
  %v6175 = vshll.u32 %v5509, 16
  %v6177 = vor.u32 %v6174, %v6175
  %v6178 = vsel %vm4377, %v6170, %v6177
  %v6179 = vrot.slane %v6174, 4
  %v6181 = vshrl.u32 %v5510, 16
  %v6183 = vrot.slane %v6181, 7
  %v6184 = vshll.u32 %v5510, 16
  %v6186 = vor.u32 %v6183, %v6184
  %v6187 = vsel %vm4377, %v6179, %v6186
  %v6188 = vrot.slane %v6183, 4
  %v6190 = vshrl.u32 %v5511, 16
  %v6192 = vrot.slane %v6190, 7
  %v6193 = vshll.u32 %v5511, 16
  %v6195 = vor.u32 %v6192, %v6193
  %v6196 = vsel %vm4377, %v6188, %v6195
  %v6197 = vrot.slane %v6192, 4
  %v6199 = vshrl.u32 %v5512, 16
  %v6201 = vrot.slane %v6199, 7
  %v6202 = vshll.u32 %v5512, 16
  %v6204 = vor.u32 %v6201, %v6202
  %v6205 = vsel %vm4377, %v6197, %v6204
  %v6206 = vrot.slane %v6201, 4
  %v6208 = vshrl.u32 %v5513, 16
  %v6210 = vrot.slane %v6208, 7
  %v6211 = vshll.u32 %v5513, 16
  %v6213 = vor.u32 %v6210, %v6211
  %v6214 = vsel %vm4377, %v6206, %v6213
  %v6215 = vrot.slane %v6210, 4
  %v6217 = vshrl.u32 %v5514, 16
  %v6219 = vrot.slane %v6217, 7
  %v6220 = vshll.u32 %v5514, 16
  %v6222 = vor.u32 %v6219, %v6220
  %v6223 = vsel %vm4377, %v6215, %v6222
  %v6224 = vrot.slane %v6219, 4
  %v6226 = vshrl.u32 %v5515, 16
  %v6228 = vrot.slane %v6226, 7
  %v6229 = vshll.u32 %v5515, 16
  %v6231 = vor.u32 %v6228, %v6229
  %v6232 = vsel %vm4377, %v6224, %v6231
  %v6233 = vrot.slane %v6228, 4
  %v6235 = vshrl.u32 %v5516, 16
  %v6237 = vrot.slane %v6235, 7
  %v6238 = vshll.u32 %v5516, 16
  %v6240 = vor.u32 %v6237, %v6238
  %v6241 = vsel %vm4377, %v6233, %v6240
  %v6242 = vrot.slane %v6237, 4
  %v6244 = vshrl.u32 %v5517, 16
  %v6246 = vrot.slane %v6244, 7
  %v6247 = vshll.u32 %v5517, 16
  %v6249 = vor.u32 %v6246, %v6247
  %v6250 = vsel %vm4377, %v6242, %v6249
  %6251 = vrot.lane.b32.xlu0 %v5530, 48
  %v6252 = vpop.permute.xlu0 %6251
  %6253 = vrot.lane.b32.xlu0 %v5539, 48
  %v6254 = vpop.permute.xlu0 %6253
  %6255 = vrot.lane.b32.xlu0 %v5548, 48
  %v6256 = vpop.permute.xlu0 %6255
  %6257 = vrot.lane.b32.xlu0 %v5557, 48
  %v6258 = vpop.permute.xlu0 %6257
  %6259 = vrot.lane.b32.xlu0 %v5566, 48
  %v6260 = vpop.permute.xlu0 %6259
  %6261 = vrot.lane.b32.xlu0 %v5575, 48
  %v6262 = vpop.permute.xlu0 %6261
  %6263 = vrot.lane.b32.xlu0 %v5584, 48
  %v6264 = vpop.permute.xlu0 %6263
  %6265 = vrot.lane.b32.xlu0 %v5593, 48
  %v6266 = vpop.permute.xlu0 %6265
  %6267 = vrot.lane.b32.xlu0 %v5602, 48
  %v6268 = vpop.permute.xlu0 %6267
  %6269 = vrot.lane.b32.xlu0 %v5611, 48
  %v6270 = vpop.permute.xlu0 %6269
  %6271 = vrot.lane.b32.xlu0 %v5620, 48
  %v6272 = vpop.permute.xlu0 %6271
  %6273 = vrot.lane.b32.xlu0 %v5629, 48
  %v6274 = vpop.permute.xlu0 %6273
  %6275 = vrot.lane.b32.xlu0 %v5638, 48
  %v6276 = vpop.permute.xlu0 %6275
  %6277 = vrot.lane.b32.xlu0 %v5647, 48
  %v6278 = vpop.permute.xlu0 %6277
  %6279 = vrot.lane.b32.xlu0 %v5656, 48
  %v6280 = vpop.permute.xlu0 %6279
  %6281 = vrot.lane.b32.xlu0 %v5665, 48
  %v6282 = vpop.permute.xlu0 %6281
  %6283 = vrot.lane.b32.xlu0 %v5674, 48
  %v6284 = vpop.permute.xlu0 %6283
  %6285 = vrot.lane.b32.xlu0 %v5683, 48
  %v6286 = vpop.permute.xlu0 %6285
  %6287 = vrot.lane.b32.xlu0 %v5692, 48
  %v6288 = vpop.permute.xlu0 %6287
  %6289 = vrot.lane.b32.xlu0 %v5701, 48
  %v6290 = vpop.permute.xlu0 %6289
  %6291 = vrot.lane.b32.xlu0 %v5710, 48
  %v6292 = vpop.permute.xlu0 %6291
  %6293 = vrot.lane.b32.xlu0 %v5719, 48
  %v6294 = vpop.permute.xlu0 %6293
  %6295 = vrot.lane.b32.xlu0 %v5728, 48
  %v6296 = vpop.permute.xlu0 %6295
  %6297 = vrot.lane.b32.xlu0 %v5737, 48
  %v6298 = vpop.permute.xlu0 %6297
  %6299 = vrot.lane.b32.xlu0 %v5746, 48
  %v6300 = vpop.permute.xlu0 %6299
  %6301 = vrot.lane.b32.xlu0 %v5755, 48
  %v6302 = vpop.permute.xlu0 %6301
  %6303 = vrot.lane.b32.xlu0 %v5764, 48
  %v6304 = vpop.permute.xlu0 %6303
  %6305 = vrot.lane.b32.xlu0 %v5773, 48
  %v6306 = vpop.permute.xlu0 %6305
  %6307 = vrot.lane.b32.xlu0 %v5782, 48
  %v6308 = vpop.permute.xlu0 %6307
  %6309 = vrot.lane.b32.xlu0 %v5791, 48
  %v6310 = vpop.permute.xlu0 %6309
  %6311 = vrot.lane.b32.xlu0 %v5800, 48
  %v6312 = vpop.permute.xlu0 %6311
  %6313 = vrot.lane.b32.xlu0 %v5809, 48
  %v6314 = vpop.permute.xlu0 %6313
  %6315 = vrot.lane.b32.xlu0 %v5818, 48
  %v6316 = vpop.permute.xlu0 %6315
  %6317 = vrot.lane.b32.xlu0 %v5827, 48
  %v6318 = vpop.permute.xlu0 %6317
  %6319 = vrot.lane.b32.xlu0 %v5836, 48
  %v6320 = vpop.permute.xlu0 %6319
  %6321 = vrot.lane.b32.xlu0 %v5845, 48
  %v6322 = vpop.permute.xlu0 %6321
  %6323 = vrot.lane.b32.xlu0 %v5854, 48
  %v6324 = vpop.permute.xlu0 %6323
  %6325 = vrot.lane.b32.xlu0 %v5863, 48
  %v6326 = vpop.permute.xlu0 %6325
  %6327 = vrot.lane.b32.xlu0 %v5872, 48
  %v6328 = vpop.permute.xlu0 %6327
  %6329 = vrot.lane.b32.xlu0 %v5881, 48
  %v6330 = vpop.permute.xlu0 %6329
  %6331 = vrot.lane.b32.xlu0 %v5890, 48
  %v6332 = vpop.permute.xlu0 %6331
  %6333 = vrot.lane.b32.xlu0 %v5899, 48
  %v6334 = vpop.permute.xlu0 %6333
  %6335 = vrot.lane.b32.xlu0 %v5908, 48
  %v6336 = vpop.permute.xlu0 %6335
  %6337 = vrot.lane.b32.xlu0 %v5917, 48
  %v6338 = vpop.permute.xlu0 %6337
  %6339 = vrot.lane.b32.xlu0 %v5926, 48
  %v6340 = vpop.permute.xlu0 %6339
  %6341 = vrot.lane.b32.xlu0 %v5935, 48
  %v6342 = vpop.permute.xlu0 %6341
  %6343 = vrot.lane.b32.xlu0 %v5944, 48
  %v6344 = vpop.permute.xlu0 %6343
  %6345 = vrot.lane.b32.xlu0 %v5953, 48
  %v6346 = vpop.permute.xlu0 %6345
  %6347 = vrot.lane.b32.xlu0 %v5962, 48
  %v6348 = vpop.permute.xlu0 %6347
  %6349 = vrot.lane.b32.xlu0 %v5971, 48
  %v6350 = vpop.permute.xlu0 %6349
  %6351 = vrot.lane.b32.xlu0 %v5980, 48
  %v6352 = vpop.permute.xlu0 %6351
  %6353 = vrot.lane.b32.xlu0 %v5989, 48
  %v6354 = vpop.permute.xlu0 %6353
  %6355 = vrot.lane.b32.xlu0 %v5998, 48
  %v6356 = vpop.permute.xlu0 %6355
  %6357 = vrot.lane.b32.xlu0 %v6007, 48
  %v6358 = vpop.permute.xlu0 %6357
  %6359 = vrot.lane.b32.xlu0 %v6016, 48
  %v6360 = vpop.permute.xlu0 %6359
  %6361 = vrot.lane.b32.xlu0 %v6025, 48
  %v6362 = vpop.permute.xlu0 %6361
  %6363 = vrot.lane.b32.xlu0 %v6034, 48
  %v6364 = vpop.permute.xlu0 %6363
  %6365 = vrot.lane.b32.xlu0 %v6043, 48
  %v6366 = vpop.permute.xlu0 %6365
  %6367 = vrot.lane.b32.xlu0 %v6052, 48
  %v6368 = vpop.permute.xlu0 %6367
  %6369 = vrot.lane.b32.xlu0 %v6061, 48
  %v6370 = vpop.permute.xlu0 %6369
  %6371 = vrot.lane.b32.xlu0 %v6070, 48
  %v6372 = vpop.permute.xlu0 %6371
  %6373 = vrot.lane.b32.xlu0 %v6079, 48
  %v6374 = vpop.permute.xlu0 %6373
  %6375 = vrot.lane.b32.xlu0 %v6088, 48
  %v6376 = vpop.permute.xlu0 %6375
  %6377 = vrot.lane.b32.xlu0 %v6097, 48
  %v6378 = vpop.permute.xlu0 %6377
  %6379 = vrot.lane.b32.xlu0 %v6106, 48
  %v6380 = vpop.permute.xlu0 %6379
  %6381 = vrot.lane.b32.xlu0 %v6115, 48
  %v6382 = vpop.permute.xlu0 %6381
  %6383 = vrot.lane.b32.xlu0 %v6124, 48
  %v6384 = vpop.permute.xlu0 %6383
  %6385 = vrot.lane.b32.xlu0 %v6133, 48
  %v6386 = vpop.permute.xlu0 %6385
  %6387 = vrot.lane.b32.xlu0 %v6142, 48
  %v6388 = vpop.permute.xlu0 %6387
  %6389 = vrot.lane.b32.xlu0 %v6151, 48
  %v6390 = vpop.permute.xlu0 %6389
  %6391 = vrot.lane.b32.xlu0 %v6160, 48
  %v6392 = vpop.permute.xlu0 %6391
  %6393 = vrot.lane.b32.xlu0 %v6169, 48
  %v6394 = vpop.permute.xlu0 %6393
  %6395 = vrot.lane.b32.xlu0 %v6178, 48
  %v6396 = vpop.permute.xlu0 %6395
  %6397 = vrot.lane.b32.xlu0 %v6187, 48
  %v6398 = vpop.permute.xlu0 %6397
  %6399 = vrot.lane.b32.xlu0 %v6196, 48
  %v6400 = vpop.permute.xlu0 %6399
  %6401 = vrot.lane.b32.xlu0 %v6205, 48
  %v6402 = vpop.permute.xlu0 %6401
  %6403 = vrot.lane.b32.xlu0 %v6214, 48
  %v6404 = vpop.permute.xlu0 %6403
  %6405 = vrot.lane.b32.xlu0 %v6223, 48
  %v6406 = vpop.permute.xlu0 %6405
  %6407 = vrot.lane.b32.xlu0 %v6232, 48
  %v6408 = vpop.permute.xlu0 %6407
  %6409 = vrot.lane.b32.xlu0 %v6241, 48
  %v6410 = vpop.permute.xlu0 %6409
  %6411 = vrot.lane.b32.xlu0 %v6250, 48
  %v6412 = vpop.permute.xlu0 %6411
  %vm6494 = vcmask 519552
  %6495 = vst.msk [vmem:[#allocation3] sm:$0xf] %vm6494, %v6252
  %6496 = vst.msk [vmem:[#allocation3 + $0x8] sm:$0xf] %vm6494, %v6254
  %6497 = vst.msk [vmem:[#allocation3 + $0x10] sm:$0xf] %vm6494, %v6256
  %6498 = vst.msk [vmem:[#allocation3 + $0x18] sm:$0xf] %vm6494, %v6258
  %6499 = vst.msk [vmem:[#allocation3 + $0x20] sm:$0xf] %vm6494, %v6260
  %6500 = vst.msk [vmem:[#allocation3 + $0x28] sm:$0xf] %vm6494, %v6262
  %6501 = vst.msk [vmem:[#allocation3 + $0x30] sm:$0xf] %vm6494, %v6264
  %6502 = vst.msk [vmem:[#allocation3 + $0x38] sm:$0xf] %vm6494, %v6266
  %6503 = vst.msk [vmem:[#allocation3 + $0x40] sm:$0xf] %vm6494, %v6268
  %6504 = vst.msk [vmem:[#allocation3 + $0x48] sm:$0xf] %vm6494, %v6270
  %6505 = vst.msk [vmem:[#allocation3 + $0x50] sm:$0xf] %vm6494, %v6272
  %6506 = vst.msk [vmem:[#allocation3 + $0x58] sm:$0xf] %vm6494, %v6274
  %6507 = vst.msk [vmem:[#allocation3 + $0x60] sm:$0xf] %vm6494, %v6276
  %6508 = vst.msk [vmem:[#allocation3 + $0x68] sm:$0xf] %vm6494, %v6278
  %6509 = vst.msk [vmem:[#allocation3 + $0x70] sm:$0xf] %vm6494, %v6280
  %6510 = vst.msk [vmem:[#allocation3 + $0x78] sm:$0xf] %vm6494, %v6282
  %6511 = vst.msk [vmem:[#allocation3 + $0x80] sm:$0xf] %vm6494, %v6284
  %6512 = vst.msk [vmem:[#allocation3 + $0x88] sm:$0xf] %vm6494, %v6286
  %6513 = vst.msk [vmem:[#allocation3 + $0x90] sm:$0xf] %vm6494, %v6288
  %6514 = vst.msk [vmem:[#allocation3 + $0x98] sm:$0xf] %vm6494, %v6290
  %6515 = vst.msk [vmem:[#allocation3 + $0xa0] sm:$0xf] %vm6494, %v6292
  %6516 = vst.msk [vmem:[#allocation3 + $0xa8] sm:$0xf] %vm6494, %v6294
  %6517 = vst.msk [vmem:[#allocation3 + $0xb0] sm:$0xf] %vm6494, %v6296
  %6518 = vst.msk [vmem:[#allocation3 + $0xb8] sm:$0xf] %vm6494, %v6298
  %6519 = vst.msk [vmem:[#allocation3 + $0xc0] sm:$0xf] %vm6494, %v6300
  %6520 = vst.msk [vmem:[#allocation3 + $0xc8] sm:$0xf] %vm6494, %v6302
  %6521 = vst.msk [vmem:[#allocation3 + $0xd0] sm:$0xf] %vm6494, %v6304
  %6522 = vst.msk [vmem:[#allocation3 + $0xd8] sm:$0xf] %vm6494, %v6306
  %6523 = vst.msk [vmem:[#allocation3 + $0xe0] sm:$0xf] %vm6494, %v6308
  %6524 = vst.msk [vmem:[#allocation3 + $0xe8] sm:$0xf] %vm6494, %v6310
  %6525 = vst.msk [vmem:[#allocation3 + $0xf0] sm:$0xf] %vm6494, %v6312
  %6526 = vst.msk [vmem:[#allocation3 + $0xf8] sm:$0xf] %vm6494, %v6314
  %6527 = vst.msk [vmem:[#allocation3 + $0x100] sm:$0xf] %vm6494, %v6316
  %6528 = vst.msk [vmem:[#allocation3 + $0x108] sm:$0xf] %vm6494, %v6318
  %6529 = vst.msk [vmem:[#allocation3 + $0x110] sm:$0xf] %vm6494, %v6320
  %6530 = vst.msk [vmem:[#allocation3 + $0x118] sm:$0xf] %vm6494, %v6322
  %6531 = vst.msk [vmem:[#allocation3 + $0x120] sm:$0xf] %vm6494, %v6324
  %6532 = vst.msk [vmem:[#allocation3 + $0x128] sm:$0xf] %vm6494, %v6326
  %6533 = vst.msk [vmem:[#allocation3 + $0x130] sm:$0xf] %vm6494, %v6328
  %6534 = vst.msk [vmem:[#allocation3 + $0x138] sm:$0xf] %vm6494, %v6330
  %6535 = vst.msk [vmem:[#allocation3 + $0x140] sm:$0xf] %vm6494, %v6332
  %6536 = vst.msk [vmem:[#allocation3 + $0x148] sm:$0xf] %vm6494, %v6334
  %6537 = vst.msk [vmem:[#allocation3 + $0x150] sm:$0xf] %vm6494, %v6336
  %6538 = vst.msk [vmem:[#allocation3 + $0x158] sm:$0xf] %vm6494, %v6338
  %6539 = vst.msk [vmem:[#allocation3 + $0x160] sm:$0xf] %vm6494, %v6340
  %6540 = vst.msk [vmem:[#allocation3 + $0x168] sm:$0xf] %vm6494, %v6342
  %6541 = vst.msk [vmem:[#allocation3 + $0x170] sm:$0xf] %vm6494, %v6344
  %6542 = vst.msk [vmem:[#allocation3 + $0x178] sm:$0xf] %vm6494, %v6346
  %6543 = vst.msk [vmem:[#allocation3 + $0x180] sm:$0xf] %vm6494, %v6348
  %6544 = vst.msk [vmem:[#allocation3 + $0x188] sm:$0xf] %vm6494, %v6350
  %6545 = vst.msk [vmem:[#allocation3 + $0x190] sm:$0xf] %vm6494, %v6352
  %6546 = vst.msk [vmem:[#allocation3 + $0x198] sm:$0xf] %vm6494, %v6354
  %6547 = vst.msk [vmem:[#allocation3 + $0x1a0] sm:$0xf] %vm6494, %v6356
  %6548 = vst.msk [vmem:[#allocation3 + $0x1a8] sm:$0xf] %vm6494, %v6358
  %6549 = vst.msk [vmem:[#allocation3 + $0x1b0] sm:$0xf] %vm6494, %v6360
  %6550 = vst.msk [vmem:[#allocation3 + $0x1b8] sm:$0xf] %vm6494, %v6362
  %6551 = vst.msk [vmem:[#allocation3 + $0x1c0] sm:$0xf] %vm6494, %v6364
  %6552 = vst.msk [vmem:[#allocation3 + $0x1c8] sm:$0xf] %vm6494, %v6366
  %6553 = vst.msk [vmem:[#allocation3 + $0x1d0] sm:$0xf] %vm6494, %v6368
  %6554 = vst.msk [vmem:[#allocation3 + $0x1d8] sm:$0xf] %vm6494, %v6370
  %6555 = vst.msk [vmem:[#allocation3 + $0x1e0] sm:$0xf] %vm6494, %v6372
  %6556 = vst.msk [vmem:[#allocation3 + $0x1e8] sm:$0xf] %vm6494, %v6374
  %6557 = vst.msk [vmem:[#allocation3 + $0x1f0] sm:$0xf] %vm6494, %v6376
  %6558 = vst.msk [vmem:[#allocation3 + $0x1f8] sm:$0xf] %vm6494, %v6378
  %6559 = vst.msk [vmem:[#allocation3 + $0x200] sm:$0xf] %vm6494, %v6380
  %6560 = vst.msk [vmem:[#allocation3 + $0x208] sm:$0xf] %vm6494, %v6382
  %6561 = vst.msk [vmem:[#allocation3 + $0x210] sm:$0xf] %vm6494, %v6384
  %6562 = vst.msk [vmem:[#allocation3 + $0x218] sm:$0xf] %vm6494, %v6386
  %6563 = vst.msk [vmem:[#allocation3 + $0x220] sm:$0xf] %vm6494, %v6388
  %6564 = vst.msk [vmem:[#allocation3 + $0x228] sm:$0xf] %vm6494, %v6390
  %6565 = vst.msk [vmem:[#allocation3 + $0x230] sm:$0xf] %vm6494, %v6392
  %6566 = vst.msk [vmem:[#allocation3 + $0x238] sm:$0xf] %vm6494, %v6394
  %6567 = vst.msk [vmem:[#allocation3 + $0x240] sm:$0xf] %vm6494, %v6396
  %6568 = vst.msk [vmem:[#allocation3 + $0x248] sm:$0xf] %vm6494, %v6398
  %6569 = vst.msk [vmem:[#allocation3 + $0x250] sm:$0xf] %vm6494, %v6400
  %6570 = vst.msk [vmem:[#allocation3 + $0x258] sm:$0xf] %vm6494, %v6402
  %6571 = vst.msk [vmem:[#allocation3 + $0x260] sm:$0xf] %vm6494, %v6404
  %6572 = vst.msk [vmem:[#allocation3 + $0x268] sm:$0xf] %vm6494, %v6406
  %6573 = vst.msk [vmem:[#allocation3 + $0x270] sm:$0xf] %vm6494, %v6408
  %6574 = vst.msk [vmem:[#allocation3 + $0x278] sm:$0xf] %vm6494, %v6410
  %6575 = vst.msk [vmem:[#allocation3 + $0x280] sm:$0xf] %vm6494, %v6412
  %v6576 = vld [vmem:[#allocation2 + $0xc] sm:$0xf]
  %v6577 = vld [vmem:[#allocation2 + $0x10] sm:$0xf]
  %v6578 = vld [vmem:[#allocation2 + $0x14] sm:$0xf]
  %v6579 = vld [vmem:[#allocation2 + $0x18] sm:$0xf]
  %v6580 = vld [vmem:[#allocation2 + $0x1c] sm:$0xf]
  %v6581 = vld [vmem:[#allocation2 + $0x20] sm:$0xf]
  %v6582 = vld [vmem:[#allocation2 + $0x24] sm:$0xf]
  %v6583 = vld [vmem:[#allocation2 + $0x28] sm:$0xf]
  %v6584 = vld [vmem:[#allocation2 + $0x2c] sm:$0xf]
  %v6585 = vld [vmem:[#allocation2 + $0x30] sm:$0xf]
  %v6586 = vld [vmem:[#allocation2 + $0x34] sm:$0xf]
  %v6587 = vld [vmem:[#allocation2 + $0x38] sm:$0xf]
  %v6588 = vld [vmem:[#allocation2 + $0x3c] sm:$0xf]
  %v6589 = vld [vmem:[#allocation2 + $0x40] sm:$0xf]
  %v6590 = vld [vmem:[#allocation2 + $0x44] sm:$0xf]
  %v6591 = vld [vmem:[#allocation2 + $0x48] sm:$0xf]
  %v6592 = vld [vmem:[#allocation2 + $0x4c] sm:$0xf]
  %v6593 = vld [vmem:[#allocation2 + $0x50] sm:$0xf]
  %v6594 = vld [vmem:[#allocation2 + $0x54] sm:$0xf]
  %v6595 = vld [vmem:[#allocation2 + $0x58] sm:$0xf]
  %v6596 = vld [vmem:[#allocation2 + $0x5c] sm:$0xf]
  %v6597 = vld [vmem:[#allocation2 + $0x60] sm:$0xf]
  %v6598 = vld [vmem:[#allocation2 + $0x64] sm:$0xf]
  %v6599 = vld [vmem:[#allocation2 + $0x68] sm:$0xf]
  %v6600 = vld [vmem:[#allocation2 + $0x6c] sm:$0xf]
  %v6601 = vld [vmem:[#allocation2 + $0x70] sm:$0xf]
  %v6602 = vld [vmem:[#allocation2 + $0x74] sm:$0xf]
  %v6603 = vld [vmem:[#allocation2 + $0x78] sm:$0xf]
  %v6604 = vld [vmem:[#allocation2 + $0x7c] sm:$0xf]
  %v6605 = vld [vmem:[#allocation2 + $0x80] sm:$0xf]
  %v6606 = vld [vmem:[#allocation2 + $0x84] sm:$0xf]
  %v6607 = vld [vmem:[#allocation2 + $0x88] sm:$0xf]
  %v6608 = vld [vmem:[#allocation2 + $0x8c] sm:$0xf]
  %v6609 = vld [vmem:[#allocation2 + $0x90] sm:$0xf]
  %v6610 = vld [vmem:[#allocation2 + $0x94] sm:$0xf]
  %v6611 = vld [vmem:[#allocation2 + $0x98] sm:$0xf]
  %v6612 = vld [vmem:[#allocation2 + $0x9c] sm:$0xf]
  %v6613 = vld [vmem:[#allocation2 + $0xa0] sm:$0xf]
  %v6614 = vld [vmem:[#allocation2 + $0xa4] sm:$0xf]
  %v6615 = vld [vmem:[#allocation2 + $0xa8] sm:$0xf]
  %v6616 = vld [vmem:[#allocation2 + $0xac] sm:$0xf]
  %v6617 = vld [vmem:[#allocation2 + $0xb0] sm:$0xf]
  %v6618 = vld [vmem:[#allocation2 + $0xb4] sm:$0xf]
  %v6619 = vld [vmem:[#allocation2 + $0xb8] sm:$0xf]
  %v6620 = vld [vmem:[#allocation2 + $0xbc] sm:$0xf]
  %v6621 = vld [vmem:[#allocation2 + $0xc0] sm:$0xf]
  %v6622 = vld [vmem:[#allocation2 + $0xc4] sm:$0xf]
  %v6623 = vld [vmem:[#allocation2 + $0xc8] sm:$0xf]
  %v6624 = vld [vmem:[#allocation2 + $0xcc] sm:$0xf]
  %v6625 = vld [vmem:[#allocation2 + $0xd0] sm:$0xf]
  %v6626 = vld [vmem:[#allocation2 + $0xd4] sm:$0xf]
  %v6627 = vld [vmem:[#allocation2 + $0xd8] sm:$0xf]
  %v6628 = vld [vmem:[#allocation2 + $0xdc] sm:$0xf]
  %v6629 = vld [vmem:[#allocation2 + $0xe0] sm:$0xf]
  %v6630 = vld [vmem:[#allocation2 + $0xe4] sm:$0xf]
  %v6631 = vld [vmem:[#allocation2 + $0xe8] sm:$0xf]
  %v6632 = vld [vmem:[#allocation2 + $0xec] sm:$0xf]
  %v6633 = vld [vmem:[#allocation2 + $0xf0] sm:$0xf]
  %v6634 = vld [vmem:[#allocation2 + $0xf4] sm:$0xf]
  %v6635 = vld [vmem:[#allocation2 + $0xf8] sm:$0xf]
  %v6636 = vld [vmem:[#allocation2 + $0xfc] sm:$0xf]
  %v6637 = vld [vmem:[#allocation2 + $0x100] sm:$0xf]
  %v6638 = vld [vmem:[#allocation2 + $0x104] sm:$0xf]
  %v6639 = vld [vmem:[#allocation2 + $0x108] sm:$0xf]
  %v6640 = vld [vmem:[#allocation2 + $0x10c] sm:$0xf]
  %v6641 = vld [vmem:[#allocation2 + $0x110] sm:$0xf]
  %v6642 = vld [vmem:[#allocation2 + $0x114] sm:$0xf]
  %v6643 = vld [vmem:[#allocation2 + $0x118] sm:$0xf]
  %v6644 = vld [vmem:[#allocation2 + $0x11c] sm:$0xf]
  %v6645 = vld [vmem:[#allocation2 + $0x120] sm:$0xf]
  %v6646 = vld [vmem:[#allocation2 + $0x124] sm:$0xf]
  %v6647 = vld [vmem:[#allocation2 + $0x128] sm:$0xf]
  %v6648 = vld [vmem:[#allocation2 + $0x12c] sm:$0xf]
  %v6649 = vld [vmem:[#allocation2 + $0x130] sm:$0xf]
  %v6650 = vld [vmem:[#allocation2 + $0x134] sm:$0xf]
  %v6651 = vld [vmem:[#allocation2 + $0x138] sm:$0xf]
  %v6652 = vld [vmem:[#allocation2 + $0x13c] sm:$0xf]
  %v6653 = vld [vmem:[#allocation2 + $0x140] sm:$0xf]
  %v6654 = vld [vmem:[#allocation2 + $0x144] sm:$0xf]
  %v6655 = vld [vmem:[#allocation2 + $0x148] sm:$0xf]
  %v6656 = vld [vmem:[#allocation2 + $0x14c] sm:$0xf]
  %6738 = vrot.lane.b32.xlu0 %v6576, 64
  %v6739 = vpop.permute.xlu0 %6738
  %6740 = vrot.lane.b32.xlu0 %v6577, 64
  %v6741 = vpop.permute.xlu0 %6740
  %6742 = vrot.lane.b32.xlu0 %v6578, 64
  %v6743 = vpop.permute.xlu0 %6742
  %6744 = vrot.lane.b32.xlu0 %v6579, 64
  %v6745 = vpop.permute.xlu0 %6744
  %6746 = vrot.lane.b32.xlu0 %v6580, 64
  %v6747 = vpop.permute.xlu0 %6746
  %6748 = vrot.lane.b32.xlu0 %v6581, 64
  %v6749 = vpop.permute.xlu0 %6748
  %6750 = vrot.lane.b32.xlu0 %v6582, 64
  %v6751 = vpop.permute.xlu0 %6750
  %6752 = vrot.lane.b32.xlu0 %v6583, 64
  %v6753 = vpop.permute.xlu0 %6752
  %6754 = vrot.lane.b32.xlu0 %v6584, 64
  %v6755 = vpop.permute.xlu0 %6754
  %6756 = vrot.lane.b32.xlu0 %v6585, 64
  %v6757 = vpop.permute.xlu0 %6756
  %6758 = vrot.lane.b32.xlu0 %v6586, 64
  %v6759 = vpop.permute.xlu0 %6758
  %6760 = vrot.lane.b32.xlu0 %v6587, 64
  %v6761 = vpop.permute.xlu0 %6760
  %6762 = vrot.lane.b32.xlu0 %v6588, 64
  %v6763 = vpop.permute.xlu0 %6762
  %6764 = vrot.lane.b32.xlu0 %v6589, 64
  %v6765 = vpop.permute.xlu0 %6764
  %6766 = vrot.lane.b32.xlu0 %v6590, 64
  %v6767 = vpop.permute.xlu0 %6766
  %6768 = vrot.lane.b32.xlu0 %v6591, 64
  %v6769 = vpop.permute.xlu0 %6768
  %6770 = vrot.lane.b32.xlu0 %v6592, 64
  %v6771 = vpop.permute.xlu0 %6770
  %6772 = vrot.lane.b32.xlu0 %v6593, 64
  %v6773 = vpop.permute.xlu0 %6772
  %6774 = vrot.lane.b32.xlu0 %v6594, 64
  %v6775 = vpop.permute.xlu0 %6774
  %6776 = vrot.lane.b32.xlu0 %v6595, 64
  %v6777 = vpop.permute.xlu0 %6776
  %6778 = vrot.lane.b32.xlu0 %v6596, 64
  %v6779 = vpop.permute.xlu0 %6778
  %6780 = vrot.lane.b32.xlu0 %v6597, 64
  %v6781 = vpop.permute.xlu0 %6780
  %6782 = vrot.lane.b32.xlu0 %v6598, 64
  %v6783 = vpop.permute.xlu0 %6782
  %6784 = vrot.lane.b32.xlu0 %v6599, 64
  %v6785 = vpop.permute.xlu0 %6784
  %6786 = vrot.lane.b32.xlu0 %v6600, 64
  %v6787 = vpop.permute.xlu0 %6786
  %6788 = vrot.lane.b32.xlu0 %v6601, 64
  %v6789 = vpop.permute.xlu0 %6788
  %6790 = vrot.lane.b32.xlu0 %v6602, 64
  %v6791 = vpop.permute.xlu0 %6790
  %6792 = vrot.lane.b32.xlu0 %v6603, 64
  %v6793 = vpop.permute.xlu0 %6792
  %6794 = vrot.lane.b32.xlu0 %v6604, 64
  %v6795 = vpop.permute.xlu0 %6794
  %6796 = vrot.lane.b32.xlu0 %v6605, 64
  %v6797 = vpop.permute.xlu0 %6796
  %6798 = vrot.lane.b32.xlu0 %v6606, 64
  %v6799 = vpop.permute.xlu0 %6798
  %6800 = vrot.lane.b32.xlu0 %v6607, 64
  %v6801 = vpop.permute.xlu0 %6800
  %6802 = vrot.lane.b32.xlu0 %v6608, 64
  %v6803 = vpop.permute.xlu0 %6802
  %6804 = vrot.lane.b32.xlu0 %v6609, 64
  %v6805 = vpop.permute.xlu0 %6804
  %6806 = vrot.lane.b32.xlu0 %v6610, 64
  %v6807 = vpop.permute.xlu0 %6806
  %6808 = vrot.lane.b32.xlu0 %v6611, 64
  %v6809 = vpop.permute.xlu0 %6808
  %6810 = vrot.lane.b32.xlu0 %v6612, 64
  %v6811 = vpop.permute.xlu0 %6810
  %6812 = vrot.lane.b32.xlu0 %v6613, 64
  %v6813 = vpop.permute.xlu0 %6812
  %6814 = vrot.lane.b32.xlu0 %v6614, 64
  %v6815 = vpop.permute.xlu0 %6814
  %6816 = vrot.lane.b32.xlu0 %v6615, 64
  %v6817 = vpop.permute.xlu0 %6816
  %6818 = vrot.lane.b32.xlu0 %v6616, 64
  %v6819 = vpop.permute.xlu0 %6818
  %6820 = vrot.lane.b32.xlu0 %v6617, 64
  %v6821 = vpop.permute.xlu0 %6820
  %6822 = vrot.lane.b32.xlu0 %v6618, 64
  %v6823 = vpop.permute.xlu0 %6822
  %6824 = vrot.lane.b32.xlu0 %v6619, 64
  %v6825 = vpop.permute.xlu0 %6824
  %6826 = vrot.lane.b32.xlu0 %v6620, 64
  %v6827 = vpop.permute.xlu0 %6826
  %6828 = vrot.lane.b32.xlu0 %v6621, 64
  %v6829 = vpop.permute.xlu0 %6828
  %6830 = vrot.lane.b32.xlu0 %v6622, 64
  %v6831 = vpop.permute.xlu0 %6830
  %6832 = vrot.lane.b32.xlu0 %v6623, 64
  %v6833 = vpop.permute.xlu0 %6832
  %6834 = vrot.lane.b32.xlu0 %v6624, 64
  %v6835 = vpop.permute.xlu0 %6834
  %6836 = vrot.lane.b32.xlu0 %v6625, 64
  %v6837 = vpop.permute.xlu0 %6836
  %6838 = vrot.lane.b32.xlu0 %v6626, 64
  %v6839 = vpop.permute.xlu0 %6838
  %6840 = vrot.lane.b32.xlu0 %v6627, 64
  %v6841 = vpop.permute.xlu0 %6840
  %6842 = vrot.lane.b32.xlu0 %v6628, 64
  %v6843 = vpop.permute.xlu0 %6842
  %6844 = vrot.lane.b32.xlu0 %v6629, 64
  %v6845 = vpop.permute.xlu0 %6844
  %6846 = vrot.lane.b32.xlu0 %v6630, 64
  %v6847 = vpop.permute.xlu0 %6846
  %6848 = vrot.lane.b32.xlu0 %v6631, 64
  %v6849 = vpop.permute.xlu0 %6848
  %6850 = vrot.lane.b32.xlu0 %v6632, 64
  %v6851 = vpop.permute.xlu0 %6850
  %6852 = vrot.lane.b32.xlu0 %v6633, 64
  %v6853 = vpop.permute.xlu0 %6852
  %6854 = vrot.lane.b32.xlu0 %v6634, 64
  %v6855 = vpop.permute.xlu0 %6854
  %6856 = vrot.lane.b32.xlu0 %v6635, 64
  %v6857 = vpop.permute.xlu0 %6856
  %6858 = vrot.lane.b32.xlu0 %v6636, 64
  %v6859 = vpop.permute.xlu0 %6858
  %6860 = vrot.lane.b32.xlu0 %v6637, 64
  %v6861 = vpop.permute.xlu0 %6860
  %6862 = vrot.lane.b32.xlu0 %v6638, 64
  %v6863 = vpop.permute.xlu0 %6862
  %6864 = vrot.lane.b32.xlu0 %v6639, 64
  %v6865 = vpop.permute.xlu0 %6864
  %6866 = vrot.lane.b32.xlu0 %v6640, 64
  %v6867 = vpop.permute.xlu0 %6866
  %6868 = vrot.lane.b32.xlu0 %v6641, 64
  %v6869 = vpop.permute.xlu0 %6868
  %6870 = vrot.lane.b32.xlu0 %v6642, 64
  %v6871 = vpop.permute.xlu0 %6870
  %6872 = vrot.lane.b32.xlu0 %v6643, 64
  %v6873 = vpop.permute.xlu0 %6872
  %6874 = vrot.lane.b32.xlu0 %v6644, 64
  %v6875 = vpop.permute.xlu0 %6874
  %6876 = vrot.lane.b32.xlu0 %v6645, 64
  %v6877 = vpop.permute.xlu0 %6876
  %6878 = vrot.lane.b32.xlu0 %v6646, 64
  %v6879 = vpop.permute.xlu0 %6878
  %6880 = vrot.lane.b32.xlu0 %v6647, 64
  %v6881 = vpop.permute.xlu0 %6880
  %6882 = vrot.lane.b32.xlu0 %v6648, 64
  %v6883 = vpop.permute.xlu0 %6882
  %6884 = vrot.lane.b32.xlu0 %v6649, 64
  %v6885 = vpop.permute.xlu0 %6884
  %6886 = vrot.lane.b32.xlu0 %v6650, 64
  %v6887 = vpop.permute.xlu0 %6886
  %6888 = vrot.lane.b32.xlu0 %v6651, 64
  %v6889 = vpop.permute.xlu0 %6888
  %6890 = vrot.lane.b32.xlu0 %v6652, 64
  %v6891 = vpop.permute.xlu0 %6890
  %6892 = vrot.lane.b32.xlu0 %v6653, 64
  %v6893 = vpop.permute.xlu0 %6892
  %6894 = vrot.lane.b32.xlu0 %v6654, 64
  %v6895 = vpop.permute.xlu0 %6894
  %6896 = vrot.lane.b32.xlu0 %v6655, 64
  %v6897 = vpop.permute.xlu0 %6896
  %6898 = vrot.lane.b32.xlu0 %v6656, 64
  %v6899 = vpop.permute.xlu0 %6898
  %vm6981 = vcmask 650752
  %6982 = vst.msk [vmem:[#allocation3] sm:$0xf] %vm6981, %v6739
  %6983 = vst.msk [vmem:[#allocation3 + $0x8] sm:$0xf] %vm6981, %v6741
  %6984 = vst.msk [vmem:[#allocation3 + $0x10] sm:$0xf] %vm6981, %v6743
  %6985 = vst.msk [vmem:[#allocation3 + $0x18] sm:$0xf] %vm6981, %v6745
  %6986 = vst.msk [vmem:[#allocation3 + $0x20] sm:$0xf] %vm6981, %v6747
  %6987 = vst.msk [vmem:[#allocation3 + $0x28] sm:$0xf] %vm6981, %v6749
  %6988 = vst.msk [vmem:[#allocation3 + $0x30] sm:$0xf] %vm6981, %v6751
  %6989 = vst.msk [vmem:[#allocation3 + $0x38] sm:$0xf] %vm6981, %v6753
  %6990 = vst.msk [vmem:[#allocation3 + $0x40] sm:$0xf] %vm6981, %v6755
  %6991 = vst.msk [vmem:[#allocation3 + $0x48] sm:$0xf] %vm6981, %v6757
  %6992 = vst.msk [vmem:[#allocation3 + $0x50] sm:$0xf] %vm6981, %v6759
  %6993 = vst.msk [vmem:[#allocation3 + $0x58] sm:$0xf] %vm6981, %v6761
  %6994 = vst.msk [vmem:[#allocation3 + $0x60] sm:$0xf] %vm6981, %v6763
  %6995 = vst.msk [vmem:[#allocation3 + $0x68] sm:$0xf] %vm6981, %v6765
  %6996 = vst.msk [vmem:[#allocation3 + $0x70] sm:$0xf] %vm6981, %v6767
  %6997 = vst.msk [vmem:[#allocation3 + $0x78] sm:$0xf] %vm6981, %v6769
  %6998 = vst.msk [vmem:[#allocation3 + $0x80] sm:$0xf] %vm6981, %v6771
  %6999 = vst.msk [vmem:[#allocation3 + $0x88] sm:$0xf] %vm6981, %v6773
  %7000 = vst.msk [vmem:[#allocation3 + $0x90] sm:$0xf] %vm6981, %v6775
  %7001 = vst.msk [vmem:[#allocation3 + $0x98] sm:$0xf] %vm6981, %v6777
  %7002 = vst.msk [vmem:[#allocation3 + $0xa0] sm:$0xf] %vm6981, %v6779
  %7003 = vst.msk [vmem:[#allocation3 + $0xa8] sm:$0xf] %vm6981, %v6781
  %7004 = vst.msk [vmem:[#allocation3 + $0xb0] sm:$0xf] %vm6981, %v6783
  %7005 = vst.msk [vmem:[#allocation3 + $0xb8] sm:$0xf] %vm6981, %v6785
  %7006 = vst.msk [vmem:[#allocation3 + $0xc0] sm:$0xf] %vm6981, %v6787
  %7007 = vst.msk [vmem:[#allocation3 + $0xc8] sm:$0xf] %vm6981, %v6789
  %7008 = vst.msk [vmem:[#allocation3 + $0xd0] sm:$0xf] %vm6981, %v6791
  %7009 = vst.msk [vmem:[#allocation3 + $0xd8] sm:$0xf] %vm6981, %v6793
  %7010 = vst.msk [vmem:[#allocation3 + $0xe0] sm:$0xf] %vm6981, %v6795
  %7011 = vst.msk [vmem:[#allocation3 + $0xe8] sm:$0xf] %vm6981, %v6797
  %7012 = vst.msk [vmem:[#allocation3 + $0xf0] sm:$0xf] %vm6981, %v6799
  %7013 = vst.msk [vmem:[#allocation3 + $0xf8] sm:$0xf] %vm6981, %v6801
  %7014 = vst.msk [vmem:[#allocation3 + $0x100] sm:$0xf] %vm6981, %v6803
  %7015 = vst.msk [vmem:[#allocation3 + $0x108] sm:$0xf] %vm6981, %v6805
  %7016 = vst.msk [vmem:[#allocation3 + $0x110] sm:$0xf] %vm6981, %v6807
  %7017 = vst.msk [vmem:[#allocation3 + $0x118] sm:$0xf] %vm6981, %v6809
  %7018 = vst.msk [vmem:[#allocation3 + $0x120] sm:$0xf] %vm6981, %v6811
  %7019 = vst.msk [vmem:[#allocation3 + $0x128] sm:$0xf] %vm6981, %v6813
  %7020 = vst.msk [vmem:[#allocation3 + $0x130] sm:$0xf] %vm6981, %v6815
  %7021 = vst.msk [vmem:[#allocation3 + $0x138] sm:$0xf] %vm6981, %v6817
  %7022 = vst.msk [vmem:[#allocation3 + $0x140] sm:$0xf] %vm6981, %v6819
  %7023 = vst.msk [vmem:[#allocation3 + $0x148] sm:$0xf] %vm6981, %v6821
  %7024 = vst.msk [vmem:[#allocation3 + $0x150] sm:$0xf] %vm6981, %v6823
  %7025 = vst.msk [vmem:[#allocation3 + $0x158] sm:$0xf] %vm6981, %v6825
  %7026 = vst.msk [vmem:[#allocation3 + $0x160] sm:$0xf] %vm6981, %v6827
  %7027 = vst.msk [vmem:[#allocation3 + $0x168] sm:$0xf] %vm6981, %v6829
  %7028 = vst.msk [vmem:[#allocation3 + $0x170] sm:$0xf] %vm6981, %v6831
  %7029 = vst.msk [vmem:[#allocation3 + $0x178] sm:$0xf] %vm6981, %v6833
  %7030 = vst.msk [vmem:[#allocation3 + $0x180] sm:$0xf] %vm6981, %v6835
  %7031 = vst.msk [vmem:[#allocation3 + $0x188] sm:$0xf] %vm6981, %v6837
  %7032 = vst.msk [vmem:[#allocation3 + $0x190] sm:$0xf] %vm6981, %v6839
  %7033 = vst.msk [vmem:[#allocation3 + $0x198] sm:$0xf] %vm6981, %v6841
  %7034 = vst.msk [vmem:[#allocation3 + $0x1a0] sm:$0xf] %vm6981, %v6843
  %7035 = vst.msk [vmem:[#allocation3 + $0x1a8] sm:$0xf] %vm6981, %v6845
  %7036 = vst.msk [vmem:[#allocation3 + $0x1b0] sm:$0xf] %vm6981, %v6847
  %7037 = vst.msk [vmem:[#allocation3 + $0x1b8] sm:$0xf] %vm6981, %v6849
  %7038 = vst.msk [vmem:[#allocation3 + $0x1c0] sm:$0xf] %vm6981, %v6851
  %7039 = vst.msk [vmem:[#allocation3 + $0x1c8] sm:$0xf] %vm6981, %v6853
  %7040 = vst.msk [vmem:[#allocation3 + $0x1d0] sm:$0xf] %vm6981, %v6855
  %7041 = vst.msk [vmem:[#allocation3 + $0x1d8] sm:$0xf] %vm6981, %v6857
  %7042 = vst.msk [vmem:[#allocation3 + $0x1e0] sm:$0xf] %vm6981, %v6859
  %7043 = vst.msk [vmem:[#allocation3 + $0x1e8] sm:$0xf] %vm6981, %v6861
  %7044 = vst.msk [vmem:[#allocation3 + $0x1f0] sm:$0xf] %vm6981, %v6863
  %7045 = vst.msk [vmem:[#allocation3 + $0x1f8] sm:$0xf] %vm6981, %v6865
  %7046 = vst.msk [vmem:[#allocation3 + $0x200] sm:$0xf] %vm6981, %v6867
  %7047 = vst.msk [vmem:[#allocation3 + $0x208] sm:$0xf] %vm6981, %v6869
  %7048 = vst.msk [vmem:[#allocation3 + $0x210] sm:$0xf] %vm6981, %v6871
  %7049 = vst.msk [vmem:[#allocation3 + $0x218] sm:$0xf] %vm6981, %v6873
  %7050 = vst.msk [vmem:[#allocation3 + $0x220] sm:$0xf] %vm6981, %v6875
  %7051 = vst.msk [vmem:[#allocation3 + $0x228] sm:$0xf] %vm6981, %v6877
  %7052 = vst.msk [vmem:[#allocation3 + $0x230] sm:$0xf] %vm6981, %v6879
  %7053 = vst.msk [vmem:[#allocation3 + $0x238] sm:$0xf] %vm6981, %v6881
  %7054 = vst.msk [vmem:[#allocation3 + $0x240] sm:$0xf] %vm6981, %v6883
  %7055 = vst.msk [vmem:[#allocation3 + $0x248] sm:$0xf] %vm6981, %v6885
  %7056 = vst.msk [vmem:[#allocation3 + $0x250] sm:$0xf] %vm6981, %v6887
  %7057 = vst.msk [vmem:[#allocation3 + $0x258] sm:$0xf] %vm6981, %v6889
  %7058 = vst.msk [vmem:[#allocation3 + $0x260] sm:$0xf] %vm6981, %v6891
  %7059 = vst.msk [vmem:[#allocation3 + $0x268] sm:$0xf] %vm6981, %v6893
  %7060 = vst.msk [vmem:[#allocation3 + $0x270] sm:$0xf] %vm6981, %v6895
  %7061 = vst.msk [vmem:[#allocation3 + $0x278] sm:$0xf] %vm6981, %v6897
  %7062 = vst.msk [vmem:[#allocation3 + $0x280] sm:$0xf] %vm6981, %v6899
  %v7063 = vld [vmem:[#allocation2 + $0xc] sm:$0xf]
  %v7064 = vld [vmem:[#allocation2 + $0x10] sm:$0xf]
  %v7065 = vld [vmem:[#allocation2 + $0x14] sm:$0xf]
  %v7066 = vld [vmem:[#allocation2 + $0x18] sm:$0xf]
  %v7067 = vld [vmem:[#allocation2 + $0x1c] sm:$0xf]
  %v7068 = vld [vmem:[#allocation2 + $0x20] sm:$0xf]
  %v7069 = vld [vmem:[#allocation2 + $0x24] sm:$0xf]
  %v7070 = vld [vmem:[#allocation2 + $0x28] sm:$0xf]
  %v7071 = vld [vmem:[#allocation2 + $0x2c] sm:$0xf]
  %v7072 = vld [vmem:[#allocation2 + $0x30] sm:$0xf]
  %v7073 = vld [vmem:[#allocation2 + $0x34] sm:$0xf]
  %v7074 = vld [vmem:[#allocation2 + $0x38] sm:$0xf]
  %v7075 = vld [vmem:[#allocation2 + $0x3c] sm:$0xf]
  %v7076 = vld [vmem:[#allocation2 + $0x40] sm:$0xf]
  %v7077 = vld [vmem:[#allocation2 + $0x44] sm:$0xf]
  %v7078 = vld [vmem:[#allocation2 + $0x48] sm:$0xf]
  %v7079 = vld [vmem:[#allocation2 + $0x4c] sm:$0xf]
  %v7080 = vld [vmem:[#allocation2 + $0x50] sm:$0xf]
  %v7081 = vld [vmem:[#allocation2 + $0x54] sm:$0xf]
  %v7082 = vld [vmem:[#allocation2 + $0x58] sm:$0xf]
  %v7083 = vld [vmem:[#allocation2 + $0x5c] sm:$0xf]
  %v7084 = vld [vmem:[#allocation2 + $0x60] sm:$0xf]
  %v7085 = vld [vmem:[#allocation2 + $0x64] sm:$0xf]
  %v7086 = vld [vmem:[#allocation2 + $0x68] sm:$0xf]
  %v7087 = vld [vmem:[#allocation2 + $0x6c] sm:$0xf]
  %v7088 = vld [vmem:[#allocation2 + $0x70] sm:$0xf]
  %v7089 = vld [vmem:[#allocation2 + $0x74] sm:$0xf]
  %v7090 = vld [vmem:[#allocation2 + $0x78] sm:$0xf]
  %v7091 = vld [vmem:[#allocation2 + $0x7c] sm:$0xf]
  %v7092 = vld [vmem:[#allocation2 + $0x80] sm:$0xf]
  %v7093 = vld [vmem:[#allocation2 + $0x84] sm:$0xf]
  %v7094 = vld [vmem:[#allocation2 + $0x88] sm:$0xf]
  %v7095 = vld [vmem:[#allocation2 + $0x8c] sm:$0xf]
  %v7096 = vld [vmem:[#allocation2 + $0x90] sm:$0xf]
  %v7097 = vld [vmem:[#allocation2 + $0x94] sm:$0xf]
  %v7098 = vld [vmem:[#allocation2 + $0x98] sm:$0xf]
  %v7099 = vld [vmem:[#allocation2 + $0x9c] sm:$0xf]
  %v7100 = vld [vmem:[#allocation2 + $0xa0] sm:$0xf]
  %v7101 = vld [vmem:[#allocation2 + $0xa4] sm:$0xf]
  %v7102 = vld [vmem:[#allocation2 + $0xa8] sm:$0xf]
  %v7103 = vld [vmem:[#allocation2 + $0xac] sm:$0xf]
  %v7104 = vld [vmem:[#allocation2 + $0xb0] sm:$0xf]
  %v7105 = vld [vmem:[#allocation2 + $0xb4] sm:$0xf]
  %v7106 = vld [vmem:[#allocation2 + $0xb8] sm:$0xf]
  %v7107 = vld [vmem:[#allocation2 + $0xbc] sm:$0xf]
  %v7108 = vld [vmem:[#allocation2 + $0xc0] sm:$0xf]
  %v7109 = vld [vmem:[#allocation2 + $0xc4] sm:$0xf]
  %v7110 = vld [vmem:[#allocation2 + $0xc8] sm:$0xf]
  %v7111 = vld [vmem:[#allocation2 + $0xcc] sm:$0xf]
  %v7112 = vld [vmem:[#allocation2 + $0xd0] sm:$0xf]
  %v7113 = vld [vmem:[#allocation2 + $0xd4] sm:$0xf]
  %v7114 = vld [vmem:[#allocation2 + $0xd8] sm:$0xf]
  %v7115 = vld [vmem:[#allocation2 + $0xdc] sm:$0xf]
  %v7116 = vld [vmem:[#allocation2 + $0xe0] sm:$0xf]
  %v7117 = vld [vmem:[#allocation2 + $0xe4] sm:$0xf]
  %v7118 = vld [vmem:[#allocation2 + $0xe8] sm:$0xf]
  %v7119 = vld [vmem:[#allocation2 + $0xec] sm:$0xf]
  %v7120 = vld [vmem:[#allocation2 + $0xf0] sm:$0xf]
  %v7121 = vld [vmem:[#allocation2 + $0xf4] sm:$0xf]
  %v7122 = vld [vmem:[#allocation2 + $0xf8] sm:$0xf]
  %v7123 = vld [vmem:[#allocation2 + $0xfc] sm:$0xf]
  %v7124 = vld [vmem:[#allocation2 + $0x100] sm:$0xf]
  %v7125 = vld [vmem:[#allocation2 + $0x104] sm:$0xf]
  %v7126 = vld [vmem:[#allocation2 + $0x108] sm:$0xf]
  %v7127 = vld [vmem:[#allocation2 + $0x10c] sm:$0xf]
  %v7128 = vld [vmem:[#allocation2 + $0x110] sm:$0xf]
  %v7129 = vld [vmem:[#allocation2 + $0x114] sm:$0xf]
  %v7130 = vld [vmem:[#allocation2 + $0x118] sm:$0xf]
  %v7131 = vld [vmem:[#allocation2 + $0x11c] sm:$0xf]
  %v7132 = vld [vmem:[#allocation2 + $0x120] sm:$0xf]
  %v7133 = vld [vmem:[#allocation2 + $0x124] sm:$0xf]
  %v7134 = vld [vmem:[#allocation2 + $0x128] sm:$0xf]
  %v7135 = vld [vmem:[#allocation2 + $0x12c] sm:$0xf]
  %v7136 = vld [vmem:[#allocation2 + $0x130] sm:$0xf]
  %v7137 = vld [vmem:[#allocation2 + $0x134] sm:$0xf]
  %v7138 = vld [vmem:[#allocation2 + $0x138] sm:$0xf]
  %v7139 = vld [vmem:[#allocation2 + $0x13c] sm:$0xf]
  %v7140 = vld [vmem:[#allocation2 + $0x140] sm:$0xf]
  %v7141 = vld [vmem:[#allocation2 + $0x144] sm:$0xf]
  %v7142 = vld [vmem:[#allocation2 + $0x148] sm:$0xf]
  %v7143 = vld [vmem:[#allocation2 + $0x14c] sm:$0xf]
  %v7144 = vld [vmem:[#allocation2 + $0x150] sm:$0x1]
  %vm7145 = vsmask.f32 3328
  %vm7146 = vsmask.f32 7440
  %vm7147 = vmor %vm7145, %vm7146
  %v7149 = vshrl.u32 %v7063, 16
  %v7151 = vrot.slane %v7149, 4
  %v7152 = vshll.u32 %v7063, 16
  %v7154 = vrot.slane %v7152, 5
  %v7155 = vor.u32 %v7151, %v7154
  %v7156 = vrot.slane %v7155, 4
  %v7158 = vshll.u32 %v7064, 16
  %v7160 = vrot.slane %v7158, 5
  %v7161 = vsel %vm7147, %v7156, %v7160
  %v7162 = vshrl.u32 %v7064, 16
  %v7164 = vrot.slane %v7162, 4
  %v7165 = vor.u32 %v7164, %v7160
  %v7166 = vrot.slane %v7165, 4
  %v7168 = vshll.u32 %v7065, 16
  %v7170 = vrot.slane %v7168, 5
  %v7171 = vsel %vm7147, %v7166, %v7170
  %v7172 = vshrl.u32 %v7065, 16
  %v7174 = vrot.slane %v7172, 4
  %v7175 = vor.u32 %v7174, %v7170
  %v7176 = vrot.slane %v7175, 4
  %v7178 = vshll.u32 %v7066, 16
  %v7180 = vrot.slane %v7178, 5
  %v7181 = vsel %vm7147, %v7176, %v7180
  %v7182 = vshrl.u32 %v7066, 16
  %v7184 = vrot.slane %v7182, 4
  %v7185 = vor.u32 %v7184, %v7180
  %v7186 = vrot.slane %v7185, 4
  %v7188 = vshll.u32 %v7067, 16
  %v7190 = vrot.slane %v7188, 5
  %v7191 = vsel %vm7147, %v7186, %v7190
  %v7192 = vshrl.u32 %v7067, 16
  %v7194 = vrot.slane %v7192, 4
  %v7195 = vor.u32 %v7194, %v7190
  %v7196 = vrot.slane %v7195, 4
  %v7198 = vshll.u32 %v7068, 16
  %v7200 = vrot.slane %v7198, 5
  %v7201 = vsel %vm7147, %v7196, %v7200
  %v7202 = vshrl.u32 %v7068, 16
  %v7204 = vrot.slane %v7202, 4
  %v7205 = vor.u32 %v7204, %v7200
  %v7206 = vrot.slane %v7205, 4
  %v7208 = vshll.u32 %v7069, 16
  %v7210 = vrot.slane %v7208, 5
  %v7211 = vsel %vm7147, %v7206, %v7210
  %v7212 = vshrl.u32 %v7069, 16
  %v7214 = vrot.slane %v7212, 4
  %v7215 = vor.u32 %v7214, %v7210
  %v7216 = vrot.slane %v7215, 4
  %v7218 = vshll.u32 %v7070, 16
  %v7220 = vrot.slane %v7218, 5
  %v7221 = vsel %vm7147, %v7216, %v7220
  %v7222 = vshrl.u32 %v7070, 16
  %v7224 = vrot.slane %v7222, 4
  %v7225 = vor.u32 %v7224, %v7220
  %v7226 = vrot.slane %v7225, 4
  %v7228 = vshll.u32 %v7071, 16
  %v7230 = vrot.slane %v7228, 5
  %v7231 = vsel %vm7147, %v7226, %v7230
  %v7232 = vshrl.u32 %v7071, 16
  %v7234 = vrot.slane %v7232, 4
  %v7235 = vor.u32 %v7234, %v7230
  %v7236 = vrot.slane %v7235, 4
  %v7238 = vshll.u32 %v7072, 16
  %v7240 = vrot.slane %v7238, 5
  %v7241 = vsel %vm7147, %v7236, %v7240
  %v7242 = vshrl.u32 %v7072, 16
  %v7244 = vrot.slane %v7242, 4
  %v7245 = vor.u32 %v7244, %v7240
  %v7246 = vrot.slane %v7245, 4
  %v7248 = vshll.u32 %v7073, 16
  %v7250 = vrot.slane %v7248, 5
  %v7251 = vsel %vm7147, %v7246, %v7250
  %v7252 = vshrl.u32 %v7073, 16
  %v7254 = vrot.slane %v7252, 4
  %v7255 = vor.u32 %v7254, %v7250
  %v7256 = vrot.slane %v7255, 4
  %v7258 = vshll.u32 %v7074, 16
  %v7260 = vrot.slane %v7258, 5
  %v7261 = vsel %vm7147, %v7256, %v7260
  %v7262 = vshrl.u32 %v7074, 16
  %v7264 = vrot.slane %v7262, 4
  %v7265 = vor.u32 %v7264, %v7260
  %v7266 = vrot.slane %v7265, 4
  %v7268 = vshll.u32 %v7075, 16
  %v7270 = vrot.slane %v7268, 5
  %v7271 = vsel %vm7147, %v7266, %v7270
  %v7272 = vshrl.u32 %v7075, 16
  %v7274 = vrot.slane %v7272, 4
  %v7275 = vor.u32 %v7274, %v7270
  %v7276 = vrot.slane %v7275, 4
  %v7278 = vshll.u32 %v7076, 16
  %v7280 = vrot.slane %v7278, 5
  %v7281 = vsel %vm7147, %v7276, %v7280
  %v7282 = vshrl.u32 %v7076, 16
  %v7284 = vrot.slane %v7282, 4
  %v7285 = vor.u32 %v7284, %v7280
  %v7286 = vrot.slane %v7285, 4
  %v7288 = vshll.u32 %v7077, 16
  %v7290 = vrot.slane %v7288, 5
  %v7291 = vsel %vm7147, %v7286, %v7290
  %v7292 = vshrl.u32 %v7077, 16
  %v7294 = vrot.slane %v7292, 4
  %v7295 = vor.u32 %v7294, %v7290
  %v7296 = vrot.slane %v7295, 4
  %v7298 = vshll.u32 %v7078, 16
  %v7300 = vrot.slane %v7298, 5
  %v7301 = vsel %vm7147, %v7296, %v7300
  %v7302 = vshrl.u32 %v7078, 16
  %v7304 = vrot.slane %v7302, 4
  %v7305 = vor.u32 %v7304, %v7300
  %v7306 = vrot.slane %v7305, 4
  %v7308 = vshll.u32 %v7079, 16
  %v7310 = vrot.slane %v7308, 5
  %v7311 = vsel %vm7147, %v7306, %v7310
  %v7312 = vshrl.u32 %v7079, 16
  %v7314 = vrot.slane %v7312, 4
  %v7315 = vor.u32 %v7314, %v7310
  %v7316 = vrot.slane %v7315, 4
  %v7318 = vshll.u32 %v7080, 16
  %v7320 = vrot.slane %v7318, 5
  %v7321 = vsel %vm7147, %v7316, %v7320
  %v7322 = vshrl.u32 %v7080, 16
  %v7324 = vrot.slane %v7322, 4
  %v7325 = vor.u32 %v7324, %v7320
  %v7326 = vrot.slane %v7325, 4
  %v7328 = vshll.u32 %v7081, 16
  %v7330 = vrot.slane %v7328, 5
  %v7331 = vsel %vm7147, %v7326, %v7330
  %v7332 = vshrl.u32 %v7081, 16
  %v7334 = vrot.slane %v7332, 4
  %v7335 = vor.u32 %v7334, %v7330
  %v7336 = vrot.slane %v7335, 4
  %v7338 = vshll.u32 %v7082, 16
  %v7340 = vrot.slane %v7338, 5
  %v7341 = vsel %vm7147, %v7336, %v7340
  %v7342 = vshrl.u32 %v7082, 16
  %v7344 = vrot.slane %v7342, 4
  %v7345 = vor.u32 %v7344, %v7340
  %v7346 = vrot.slane %v7345, 4
  %v7348 = vshll.u32 %v7083, 16
  %v7350 = vrot.slane %v7348, 5
  %v7351 = vsel %vm7147, %v7346, %v7350
  %v7352 = vshrl.u32 %v7083, 16
  %v7354 = vrot.slane %v7352, 4
  %v7355 = vor.u32 %v7354, %v7350
  %v7356 = vrot.slane %v7355, 4
  %v7358 = vshll.u32 %v7084, 16
  %v7360 = vrot.slane %v7358, 5
  %v7361 = vsel %vm7147, %v7356, %v7360
  %v7362 = vshrl.u32 %v7084, 16
  %v7364 = vrot.slane %v7362, 4
  %v7365 = vor.u32 %v7364, %v7360
  %v7366 = vrot.slane %v7365, 4
  %v7368 = vshll.u32 %v7085, 16
  %v7370 = vrot.slane %v7368, 5
  %v7371 = vsel %vm7147, %v7366, %v7370
  %v7372 = vshrl.u32 %v7085, 16
  %v7374 = vrot.slane %v7372, 4
  %v7375 = vor.u32 %v7374, %v7370
  %v7376 = vrot.slane %v7375, 4
  %v7378 = vshll.u32 %v7086, 16
  %v7380 = vrot.slane %v7378, 5
  %v7381 = vsel %vm7147, %v7376, %v7380
  %v7382 = vshrl.u32 %v7086, 16
  %v7384 = vrot.slane %v7382, 4
  %v7385 = vor.u32 %v7384, %v7380
  %v7386 = vrot.slane %v7385, 4
  %v7388 = vshll.u32 %v7087, 16
  %v7390 = vrot.slane %v7388, 5
  %v7391 = vsel %vm7147, %v7386, %v7390
  %v7392 = vshrl.u32 %v7087, 16
  %v7394 = vrot.slane %v7392, 4
  %v7395 = vor.u32 %v7394, %v7390
  %v7396 = vrot.slane %v7395, 4
  %v7398 = vshll.u32 %v7088, 16
  %v7400 = vrot.slane %v7398, 5
  %v7401 = vsel %vm7147, %v7396, %v7400
  %v7402 = vshrl.u32 %v7088, 16
  %v7404 = vrot.slane %v7402, 4
  %v7405 = vor.u32 %v7404, %v7400
  %v7406 = vrot.slane %v7405, 4
  %v7408 = vshll.u32 %v7089, 16
  %v7410 = vrot.slane %v7408, 5
  %v7411 = vsel %vm7147, %v7406, %v7410
  %v7412 = vshrl.u32 %v7089, 16
  %v7414 = vrot.slane %v7412, 4
  %v7415 = vor.u32 %v7414, %v7410
  %v7416 = vrot.slane %v7415, 4
  %v7418 = vshll.u32 %v7090, 16
  %v7420 = vrot.slane %v7418, 5
  %v7421 = vsel %vm7147, %v7416, %v7420
  %v7422 = vshrl.u32 %v7090, 16
  %v7424 = vrot.slane %v7422, 4
  %v7425 = vor.u32 %v7424, %v7420
  %v7426 = vrot.slane %v7425, 4
  %v7428 = vshll.u32 %v7091, 16
  %v7430 = vrot.slane %v7428, 5
  %v7431 = vsel %vm7147, %v7426, %v7430
  %v7432 = vshrl.u32 %v7091, 16
  %v7434 = vrot.slane %v7432, 4
  %v7435 = vor.u32 %v7434, %v7430
  %v7436 = vrot.slane %v7435, 4
  %v7438 = vshll.u32 %v7092, 16
  %v7440 = vrot.slane %v7438, 5
  %v7441 = vsel %vm7147, %v7436, %v7440
  %v7442 = vshrl.u32 %v7092, 16
  %v7444 = vrot.slane %v7442, 4
  %v7445 = vor.u32 %v7444, %v7440
  %v7446 = vrot.slane %v7445, 4
  %v7448 = vshll.u32 %v7093, 16
  %v7450 = vrot.slane %v7448, 5
  %v7451 = vsel %vm7147, %v7446, %v7450
  %v7452 = vshrl.u32 %v7093, 16
  %v7454 = vrot.slane %v7452, 4
  %v7455 = vor.u32 %v7454, %v7450
  %v7456 = vrot.slane %v7455, 4
  %v7458 = vshll.u32 %v7094, 16
  %v7460 = vrot.slane %v7458, 5
  %v7461 = vsel %vm7147, %v7456, %v7460
  %v7462 = vshrl.u32 %v7094, 16
  %v7464 = vrot.slane %v7462, 4
  %v7465 = vor.u32 %v7464, %v7460
  %v7466 = vrot.slane %v7465, 4
  %v7468 = vshll.u32 %v7095, 16
  %v7470 = vrot.slane %v7468, 5
  %v7471 = vsel %vm7147, %v7466, %v7470
  %v7472 = vshrl.u32 %v7095, 16
  %v7474 = vrot.slane %v7472, 4
  %v7475 = vor.u32 %v7474, %v7470
  %v7476 = vrot.slane %v7475, 4
  %v7478 = vshll.u32 %v7096, 16
  %v7480 = vrot.slane %v7478, 5
  %v7481 = vsel %vm7147, %v7476, %v7480
  %v7482 = vshrl.u32 %v7096, 16
  %v7484 = vrot.slane %v7482, 4
  %v7485 = vor.u32 %v7484, %v7480
  %v7486 = vrot.slane %v7485, 4
  %v7488 = vshll.u32 %v7097, 16
  %v7490 = vrot.slane %v7488, 5
  %v7491 = vsel %vm7147, %v7486, %v7490
  %v7492 = vshrl.u32 %v7097, 16
  %v7494 = vrot.slane %v7492, 4
  %v7495 = vor.u32 %v7494, %v7490
  %v7496 = vrot.slane %v7495, 4
  %v7498 = vshll.u32 %v7098, 16
  %v7500 = vrot.slane %v7498, 5
  %v7501 = vsel %vm7147, %v7496, %v7500
  %v7502 = vshrl.u32 %v7098, 16
  %v7504 = vrot.slane %v7502, 4
  %v7505 = vor.u32 %v7504, %v7500
  %v7506 = vrot.slane %v7505, 4
  %v7508 = vshll.u32 %v7099, 16
  %v7510 = vrot.slane %v7508, 5
  %v7511 = vsel %vm7147, %v7506, %v7510
  %v7512 = vshrl.u32 %v7099, 16
  %v7514 = vrot.slane %v7512, 4
  %v7515 = vor.u32 %v7514, %v7510
  %v7516 = vrot.slane %v7515, 4
  %v7518 = vshll.u32 %v7100, 16
  %v7520 = vrot.slane %v7518, 5
  %v7521 = vsel %vm7147, %v7516, %v7520
  %v7522 = vshrl.u32 %v7100, 16
  %v7524 = vrot.slane %v7522, 4
  %v7525 = vor.u32 %v7524, %v7520
  %v7526 = vrot.slane %v7525, 4
  %v7528 = vshll.u32 %v7101, 16
  %v7530 = vrot.slane %v7528, 5
  %v7531 = vsel %vm7147, %v7526, %v7530
  %v7532 = vshrl.u32 %v7101, 16
  %v7534 = vrot.slane %v7532, 4
  %v7535 = vor.u32 %v7534, %v7530
  %v7536 = vrot.slane %v7535, 4
  %v7538 = vshll.u32 %v7102, 16
  %v7540 = vrot.slane %v7538, 5
  %v7541 = vsel %vm7147, %v7536, %v7540
  %v7542 = vshrl.u32 %v7102, 16
  %v7544 = vrot.slane %v7542, 4
  %v7545 = vor.u32 %v7544, %v7540
  %v7546 = vrot.slane %v7545, 4
  %v7548 = vshll.u32 %v7103, 16
  %v7550 = vrot.slane %v7548, 5
  %v7551 = vsel %vm7147, %v7546, %v7550
  %v7552 = vshrl.u32 %v7103, 16
  %v7554 = vrot.slane %v7552, 4
  %v7555 = vor.u32 %v7554, %v7550
  %v7556 = vrot.slane %v7555, 4
  %v7558 = vshll.u32 %v7104, 16
  %v7560 = vrot.slane %v7558, 5
  %v7561 = vsel %vm7147, %v7556, %v7560
  %v7562 = vshrl.u32 %v7104, 16
  %v7564 = vrot.slane %v7562, 4
  %v7565 = vor.u32 %v7564, %v7560
  %v7566 = vrot.slane %v7565, 4
  %v7568 = vshll.u32 %v7105, 16
  %v7570 = vrot.slane %v7568, 5
  %v7571 = vsel %vm7147, %v7566, %v7570
  %v7572 = vshrl.u32 %v7105, 16
  %v7574 = vrot.slane %v7572, 4
  %v7575 = vor.u32 %v7574, %v7570
  %v7576 = vrot.slane %v7575, 4
  %v7578 = vshll.u32 %v7106, 16
  %v7580 = vrot.slane %v7578, 5
  %v7581 = vsel %vm7147, %v7576, %v7580
  %v7582 = vshrl.u32 %v7106, 16
  %v7584 = vrot.slane %v7582, 4
  %v7585 = vor.u32 %v7584, %v7580
  %v7586 = vrot.slane %v7585, 4
  %v7588 = vshll.u32 %v7107, 16
  %v7590 = vrot.slane %v7588, 5
  %v7591 = vsel %vm7147, %v7586, %v7590
  %v7592 = vshrl.u32 %v7107, 16
  %v7594 = vrot.slane %v7592, 4
  %v7595 = vor.u32 %v7594, %v7590
  %v7596 = vrot.slane %v7595, 4
  %v7598 = vshll.u32 %v7108, 16
  %v7600 = vrot.slane %v7598, 5
  %v7601 = vsel %vm7147, %v7596, %v7600
  %v7602 = vshrl.u32 %v7108, 16
  %v7604 = vrot.slane %v7602, 4
  %v7605 = vor.u32 %v7604, %v7600
  %v7606 = vrot.slane %v7605, 4
  %v7608 = vshll.u32 %v7109, 16
  %v7610 = vrot.slane %v7608, 5
  %v7611 = vsel %vm7147, %v7606, %v7610
  %v7612 = vshrl.u32 %v7109, 16
  %v7614 = vrot.slane %v7612, 4
  %v7615 = vor.u32 %v7614, %v7610
  %v7616 = vrot.slane %v7615, 4
  %v7618 = vshll.u32 %v7110, 16
  %v7620 = vrot.slane %v7618, 5
  %v7621 = vsel %vm7147, %v7616, %v7620
  %v7622 = vshrl.u32 %v7110, 16
  %v7624 = vrot.slane %v7622, 4
  %v7625 = vor.u32 %v7624, %v7620
  %v7626 = vrot.slane %v7625, 4
  %v7628 = vshll.u32 %v7111, 16
  %v7630 = vrot.slane %v7628, 5
  %v7631 = vsel %vm7147, %v7626, %v7630
  %v7632 = vshrl.u32 %v7111, 16
  %v7634 = vrot.slane %v7632, 4
  %v7635 = vor.u32 %v7634, %v7630
  %v7636 = vrot.slane %v7635, 4
  %v7638 = vshll.u32 %v7112, 16
  %v7640 = vrot.slane %v7638, 5
  %v7641 = vsel %vm7147, %v7636, %v7640
  %v7642 = vshrl.u32 %v7112, 16
  %v7644 = vrot.slane %v7642, 4
  %v7645 = vor.u32 %v7644, %v7640
  %v7646 = vrot.slane %v7645, 4
  %v7648 = vshll.u32 %v7113, 16
  %v7650 = vrot.slane %v7648, 5
  %v7651 = vsel %vm7147, %v7646, %v7650
  %v7652 = vshrl.u32 %v7113, 16
  %v7654 = vrot.slane %v7652, 4
  %v7655 = vor.u32 %v7654, %v7650
  %v7656 = vrot.slane %v7655, 4
  %v7658 = vshll.u32 %v7114, 16
  %v7660 = vrot.slane %v7658, 5
  %v7661 = vsel %vm7147, %v7656, %v7660
  %v7662 = vshrl.u32 %v7114, 16
  %v7664 = vrot.slane %v7662, 4
  %v7665 = vor.u32 %v7664, %v7660
  %v7666 = vrot.slane %v7665, 4
  %v7668 = vshll.u32 %v7115, 16
  %v7670 = vrot.slane %v7668, 5
  %v7671 = vsel %vm7147, %v7666, %v7670
  %v7672 = vshrl.u32 %v7115, 16
  %v7674 = vrot.slane %v7672, 4
  %v7675 = vor.u32 %v7674, %v7670
  %v7676 = vrot.slane %v7675, 4
  %v7678 = vshll.u32 %v7116, 16
  %v7680 = vrot.slane %v7678, 5
  %v7681 = vsel %vm7147, %v7676, %v7680
  %v7682 = vshrl.u32 %v7116, 16
  %v7684 = vrot.slane %v7682, 4
  %v7685 = vor.u32 %v7684, %v7680
  %v7686 = vrot.slane %v7685, 4
  %v7688 = vshll.u32 %v7117, 16
  %v7690 = vrot.slane %v7688, 5
  %v7691 = vsel %vm7147, %v7686, %v7690
  %v7692 = vshrl.u32 %v7117, 16
  %v7694 = vrot.slane %v7692, 4
  %v7695 = vor.u32 %v7694, %v7690
  %v7696 = vrot.slane %v7695, 4
  %v7698 = vshll.u32 %v7118, 16
  %v7700 = vrot.slane %v7698, 5
  %v7701 = vsel %vm7147, %v7696, %v7700
  %v7702 = vshrl.u32 %v7118, 16
  %v7704 = vrot.slane %v7702, 4
  %v7705 = vor.u32 %v7704, %v7700
  %v7706 = vrot.slane %v7705, 4
  %v7708 = vshll.u32 %v7119, 16
  %v7710 = vrot.slane %v7708, 5
  %v7711 = vsel %vm7147, %v7706, %v7710
  %v7712 = vshrl.u32 %v7119, 16
  %v7714 = vrot.slane %v7712, 4
  %v7715 = vor.u32 %v7714, %v7710
  %v7716 = vrot.slane %v7715, 4
  %v7718 = vshll.u32 %v7120, 16
  %v7720 = vrot.slane %v7718, 5
  %v7721 = vsel %vm7147, %v7716, %v7720
  %v7722 = vshrl.u32 %v7120, 16
  %v7724 = vrot.slane %v7722, 4
  %v7725 = vor.u32 %v7724, %v7720
  %v7726 = vrot.slane %v7725, 4
  %v7728 = vshll.u32 %v7121, 16
  %v7730 = vrot.slane %v7728, 5
  %v7731 = vsel %vm7147, %v7726, %v7730
  %v7732 = vshrl.u32 %v7121, 16
  %v7734 = vrot.slane %v7732, 4
  %v7735 = vor.u32 %v7734, %v7730
  %v7736 = vrot.slane %v7735, 4
  %v7738 = vshll.u32 %v7122, 16
  %v7740 = vrot.slane %v7738, 5
  %v7741 = vsel %vm7147, %v7736, %v7740
  %v7742 = vshrl.u32 %v7122, 16
  %v7744 = vrot.slane %v7742, 4
  %v7745 = vor.u32 %v7744, %v7740
  %v7746 = vrot.slane %v7745, 4
  %v7748 = vshll.u32 %v7123, 16
  %v7750 = vrot.slane %v7748, 5
  %v7751 = vsel %vm7147, %v7746, %v7750
  %v7752 = vshrl.u32 %v7123, 16
  %v7754 = vrot.slane %v7752, 4
  %v7755 = vor.u32 %v7754, %v7750
  %v7756 = vrot.slane %v7755, 4
  %v7758 = vshll.u32 %v7124, 16
  %v7760 = vrot.slane %v7758, 5
  %v7761 = vsel %vm7147, %v7756, %v7760
  %v7762 = vshrl.u32 %v7124, 16
  %v7764 = vrot.slane %v7762, 4
  %v7765 = vor.u32 %v7764, %v7760
  %v7766 = vrot.slane %v7765, 4
  %v7768 = vshll.u32 %v7125, 16
  %v7770 = vrot.slane %v7768, 5
  %v7771 = vsel %vm7147, %v7766, %v7770
  %v7772 = vshrl.u32 %v7125, 16
  %v7774 = vrot.slane %v7772, 4
  %v7775 = vor.u32 %v7774, %v7770
  %v7776 = vrot.slane %v7775, 4
  %v7778 = vshll.u32 %v7126, 16
  %v7780 = vrot.slane %v7778, 5
  %v7781 = vsel %vm7147, %v7776, %v7780
  %v7782 = vshrl.u32 %v7126, 16
  %v7784 = vrot.slane %v7782, 4
  %v7785 = vor.u32 %v7784, %v7780
  %v7786 = vrot.slane %v7785, 4
  %v7788 = vshll.u32 %v7127, 16
  %v7790 = vrot.slane %v7788, 5
  %v7791 = vsel %vm7147, %v7786, %v7790
  %v7792 = vshrl.u32 %v7127, 16
  %v7794 = vrot.slane %v7792, 4
  %v7795 = vor.u32 %v7794, %v7790
  %v7796 = vrot.slane %v7795, 4
  %v7798 = vshll.u32 %v7128, 16
  %v7800 = vrot.slane %v7798, 5
  %v7801 = vsel %vm7147, %v7796, %v7800
  %v7802 = vshrl.u32 %v7128, 16
  %v7804 = vrot.slane %v7802, 4
  %v7805 = vor.u32 %v7804, %v7800
  %v7806 = vrot.slane %v7805, 4
  %v7808 = vshll.u32 %v7129, 16
  %v7810 = vrot.slane %v7808, 5
  %v7811 = vsel %vm7147, %v7806, %v7810
  %v7812 = vshrl.u32 %v7129, 16
  %v7814 = vrot.slane %v7812, 4
  %v7815 = vor.u32 %v7814, %v7810
  %v7816 = vrot.slane %v7815, 4
  %v7818 = vshll.u32 %v7130, 16
  %v7820 = vrot.slane %v7818, 5
  %v7821 = vsel %vm7147, %v7816, %v7820
  %v7822 = vshrl.u32 %v7130, 16
  %v7824 = vrot.slane %v7822, 4
  %v7825 = vor.u32 %v7824, %v7820
  %v7826 = vrot.slane %v7825, 4
  %v7828 = vshll.u32 %v7131, 16
  %v7830 = vrot.slane %v7828, 5
  %v7831 = vsel %vm7147, %v7826, %v7830
  %v7832 = vshrl.u32 %v7131, 16
  %v7834 = vrot.slane %v7832, 4
  %v7835 = vor.u32 %v7834, %v7830
  %v7836 = vrot.slane %v7835, 4
  %v7838 = vshll.u32 %v7132, 16
  %v7840 = vrot.slane %v7838, 5
  %v7841 = vsel %vm7147, %v7836, %v7840
  %v7842 = vshrl.u32 %v7132, 16
  %v7844 = vrot.slane %v7842, 4
  %v7845 = vor.u32 %v7844, %v7840
  %v7846 = vrot.slane %v7845, 4
  %v7848 = vshll.u32 %v7133, 16
  %v7850 = vrot.slane %v7848, 5
  %v7851 = vsel %vm7147, %v7846, %v7850
  %v7852 = vshrl.u32 %v7133, 16
  %v7854 = vrot.slane %v7852, 4
  %v7855 = vor.u32 %v7854, %v7850
  %v7856 = vrot.slane %v7855, 4
  %v7858 = vshll.u32 %v7134, 16
  %v7860 = vrot.slane %v7858, 5
  %v7861 = vsel %vm7147, %v7856, %v7860
  %v7862 = vshrl.u32 %v7134, 16
  %v7864 = vrot.slane %v7862, 4
  %v7865 = vor.u32 %v7864, %v7860
  %v7866 = vrot.slane %v7865, 4
  %v7868 = vshll.u32 %v7135, 16
  %v7870 = vrot.slane %v7868, 5
  %v7871 = vsel %vm7147, %v7866, %v7870
  %v7872 = vshrl.u32 %v7135, 16
  %v7874 = vrot.slane %v7872, 4
  %v7875 = vor.u32 %v7874, %v7870
  %v7876 = vrot.slane %v7875, 4
  %v7878 = vshll.u32 %v7136, 16
  %v7880 = vrot.slane %v7878, 5
  %v7881 = vsel %vm7147, %v7876, %v7880
  %v7882 = vshrl.u32 %v7136, 16
  %v7884 = vrot.slane %v7882, 4
  %v7885 = vor.u32 %v7884, %v7880
  %v7886 = vrot.slane %v7885, 4
  %v7888 = vshll.u32 %v7137, 16
  %v7890 = vrot.slane %v7888, 5
  %v7891 = vsel %vm7147, %v7886, %v7890
  %v7892 = vshrl.u32 %v7137, 16
  %v7894 = vrot.slane %v7892, 4
  %v7895 = vor.u32 %v7894, %v7890
  %v7896 = vrot.slane %v7895, 4
  %v7898 = vshll.u32 %v7138, 16
  %v7900 = vrot.slane %v7898, 5
  %v7901 = vsel %vm7147, %v7896, %v7900
  %v7902 = vshrl.u32 %v7138, 16
  %v7904 = vrot.slane %v7902, 4
  %v7905 = vor.u32 %v7904, %v7900
  %v7906 = vrot.slane %v7905, 4
  %v7908 = vshll.u32 %v7139, 16
  %v7910 = vrot.slane %v7908, 5
  %v7911 = vsel %vm7147, %v7906, %v7910
  %v7912 = vshrl.u32 %v7139, 16
  %v7914 = vrot.slane %v7912, 4
  %v7915 = vor.u32 %v7914, %v7910
  %v7916 = vrot.slane %v7915, 4
  %v7918 = vshll.u32 %v7140, 16
  %v7920 = vrot.slane %v7918, 5
  %v7921 = vsel %vm7147, %v7916, %v7920
  %v7922 = vshrl.u32 %v7140, 16
  %v7924 = vrot.slane %v7922, 4
  %v7925 = vor.u32 %v7924, %v7920
  %v7926 = vrot.slane %v7925, 4
  %v7928 = vshll.u32 %v7141, 16
  %v7930 = vrot.slane %v7928, 5
  %v7931 = vsel %vm7147, %v7926, %v7930
  %v7932 = vshrl.u32 %v7141, 16
  %v7934 = vrot.slane %v7932, 4
  %v7935 = vor.u32 %v7934, %v7930
  %v7936 = vrot.slane %v7935, 4
  %v7938 = vshll.u32 %v7142, 16
  %v7940 = vrot.slane %v7938, 5
  %v7941 = vsel %vm7147, %v7936, %v7940
  %v7942 = vshrl.u32 %v7142, 16
  %v7944 = vrot.slane %v7942, 4
  %v7945 = vor.u32 %v7944, %v7940
  %v7946 = vrot.slane %v7945, 4
  %v7948 = vshll.u32 %v7143, 16
  %v7950 = vrot.slane %v7948, 5
  %v7951 = vsel %vm7147, %v7946, %v7950
  %v7952 = vshrl.u32 %v7143, 16
  %v7954 = vrot.slane %v7952, 4
  %v7955 = vor.u32 %v7954, %v7950
  %v7956 = vrot.slane %v7955, 4
  %v7958 = vshll.u32 %v7144, 16
  %v7960 = vrot.slane %v7958, 5
  %v7961 = vsel %vm7147, %v7956, %v7960
  %7962 = vrot.lane.b32.xlu0 %v7161, 80
  %v7963 = vpop.permute.xlu0 %7962
  %7964 = vrot.lane.b32.xlu0 %v7171, 80
  %v7965 = vpop.permute.xlu0 %7964
  %7966 = vrot.lane.b32.xlu0 %v7181, 80
  %v7967 = vpop.permute.xlu0 %7966
  %7968 = vrot.lane.b32.xlu0 %v7191, 80
  %v7969 = vpop.permute.xlu0 %7968
  %7970 = vrot.lane.b32.xlu0 %v7201, 80
  %v7971 = vpop.permute.xlu0 %7970
  %7972 = vrot.lane.b32.xlu0 %v7211, 80
  %v7973 = vpop.permute.xlu0 %7972
  %7974 = vrot.lane.b32.xlu0 %v7221, 80
  %v7975 = vpop.permute.xlu0 %7974
  %7976 = vrot.lane.b32.xlu0 %v7231, 80
  %v7977 = vpop.permute.xlu0 %7976
  %7978 = vrot.lane.b32.xlu0 %v7241, 80
  %v7979 = vpop.permute.xlu0 %7978
  %7980 = vrot.lane.b32.xlu0 %v7251, 80
  %v7981 = vpop.permute.xlu0 %7980
  %7982 = vrot.lane.b32.xlu0 %v7261, 80
  %v7983 = vpop.permute.xlu0 %7982
  %7984 = vrot.lane.b32.xlu0 %v7271, 80
  %v7985 = vpop.permute.xlu0 %7984
  %7986 = vrot.lane.b32.xlu0 %v7281, 80
  %v7987 = vpop.permute.xlu0 %7986
  %7988 = vrot.lane.b32.xlu0 %v7291, 80
  %v7989 = vpop.permute.xlu0 %7988
  %7990 = vrot.lane.b32.xlu0 %v7301, 80
  %v7991 = vpop.permute.xlu0 %7990
  %7992 = vrot.lane.b32.xlu0 %v7311, 80
  %v7993 = vpop.permute.xlu0 %7992
  %7994 = vrot.lane.b32.xlu0 %v7321, 80
  %v7995 = vpop.permute.xlu0 %7994
  %7996 = vrot.lane.b32.xlu0 %v7331, 80
  %v7997 = vpop.permute.xlu0 %7996
  %7998 = vrot.lane.b32.xlu0 %v7341, 80
  %v7999 = vpop.permute.xlu0 %7998
  %8000 = vrot.lane.b32.xlu0 %v7351, 80
  %v8001 = vpop.permute.xlu0 %8000
  %8002 = vrot.lane.b32.xlu0 %v7361, 80
  %v8003 = vpop.permute.xlu0 %8002
  %8004 = vrot.lane.b32.xlu0 %v7371, 80
  %v8005 = vpop.permute.xlu0 %8004
  %8006 = vrot.lane.b32.xlu0 %v7381, 80
  %v8007 = vpop.permute.xlu0 %8006
  %8008 = vrot.lane.b32.xlu0 %v7391, 80
  %v8009 = vpop.permute.xlu0 %8008
  %8010 = vrot.lane.b32.xlu0 %v7401, 80
  %v8011 = vpop.permute.xlu0 %8010
  %8012 = vrot.lane.b32.xlu0 %v7411, 80
  %v8013 = vpop.permute.xlu0 %8012
  %8014 = vrot.lane.b32.xlu0 %v7421, 80
  %v8015 = vpop.permute.xlu0 %8014
  %8016 = vrot.lane.b32.xlu0 %v7431, 80
  %v8017 = vpop.permute.xlu0 %8016
  %8018 = vrot.lane.b32.xlu0 %v7441, 80
  %v8019 = vpop.permute.xlu0 %8018
  %8020 = vrot.lane.b32.xlu0 %v7451, 80
  %v8021 = vpop.permute.xlu0 %8020
  %8022 = vrot.lane.b32.xlu0 %v7461, 80
  %v8023 = vpop.permute.xlu0 %8022
  %8024 = vrot.lane.b32.xlu0 %v7471, 80
  %v8025 = vpop.permute.xlu0 %8024
  %8026 = vrot.lane.b32.xlu0 %v7481, 80
  %v8027 = vpop.permute.xlu0 %8026
  %8028 = vrot.lane.b32.xlu0 %v7491, 80
  %v8029 = vpop.permute.xlu0 %8028
  %8030 = vrot.lane.b32.xlu0 %v7501, 80
  %v8031 = vpop.permute.xlu0 %8030
  %8032 = vrot.lane.b32.xlu0 %v7511, 80
  %v8033 = vpop.permute.xlu0 %8032
  %8034 = vrot.lane.b32.xlu0 %v7521, 80
  %v8035 = vpop.permute.xlu0 %8034
  %8036 = vrot.lane.b32.xlu0 %v7531, 80
  %v8037 = vpop.permute.xlu0 %8036
  %8038 = vrot.lane.b32.xlu0 %v7541, 80
  %v8039 = vpop.permute.xlu0 %8038
  %8040 = vrot.lane.b32.xlu0 %v7551, 80
  %v8041 = vpop.permute.xlu0 %8040
  %8042 = vrot.lane.b32.xlu0 %v7561, 80
  %v8043 = vpop.permute.xlu0 %8042
  %8044 = vrot.lane.b32.xlu0 %v7571, 80
  %v8045 = vpop.permute.xlu0 %8044
  %8046 = vrot.lane.b32.xlu0 %v7581, 80
  %v8047 = vpop.permute.xlu0 %8046
  %8048 = vrot.lane.b32.xlu0 %v7591, 80
  %v8049 = vpop.permute.xlu0 %8048
  %8050 = vrot.lane.b32.xlu0 %v7601, 80
  %v8051 = vpop.permute.xlu0 %8050
  %8052 = vrot.lane.b32.xlu0 %v7611, 80
  %v8053 = vpop.permute.xlu0 %8052
  %8054 = vrot.lane.b32.xlu0 %v7621, 80
  %v8055 = vpop.permute.xlu0 %8054
  %8056 = vrot.lane.b32.xlu0 %v7631, 80
  %v8057 = vpop.permute.xlu0 %8056
  %8058 = vrot.lane.b32.xlu0 %v7641, 80
  %v8059 = vpop.permute.xlu0 %8058
  %8060 = vrot.lane.b32.xlu0 %v7651, 80
  %v8061 = vpop.permute.xlu0 %8060
  %8062 = vrot.lane.b32.xlu0 %v7661, 80
  %v8063 = vpop.permute.xlu0 %8062
  %8064 = vrot.lane.b32.xlu0 %v7671, 80
  %v8065 = vpop.permute.xlu0 %8064
  %8066 = vrot.lane.b32.xlu0 %v7681, 80
  %v8067 = vpop.permute.xlu0 %8066
  %8068 = vrot.lane.b32.xlu0 %v7691, 80
  %v8069 = vpop.permute.xlu0 %8068
  %8070 = vrot.lane.b32.xlu0 %v7701, 80
  %v8071 = vpop.permute.xlu0 %8070
  %8072 = vrot.lane.b32.xlu0 %v7711, 80
  %v8073 = vpop.permute.xlu0 %8072
  %8074 = vrot.lane.b32.xlu0 %v7721, 80
  %v8075 = vpop.permute.xlu0 %8074
  %8076 = vrot.lane.b32.xlu0 %v7731, 80
  %v8077 = vpop.permute.xlu0 %8076
  %8078 = vrot.lane.b32.xlu0 %v7741, 80
  %v8079 = vpop.permute.xlu0 %8078
  %8080 = vrot.lane.b32.xlu0 %v7751, 80
  %v8081 = vpop.permute.xlu0 %8080
  %8082 = vrot.lane.b32.xlu0 %v7761, 80
  %v8083 = vpop.permute.xlu0 %8082
  %8084 = vrot.lane.b32.xlu0 %v7771, 80
  %v8085 = vpop.permute.xlu0 %8084
  %8086 = vrot.lane.b32.xlu0 %v7781, 80
  %v8087 = vpop.permute.xlu0 %8086
  %8088 = vrot.lane.b32.xlu0 %v7791, 80
  %v8089 = vpop.permute.xlu0 %8088
  %8090 = vrot.lane.b32.xlu0 %v7801, 80
  %v8091 = vpop.permute.xlu0 %8090
  %8092 = vrot.lane.b32.xlu0 %v7811, 80
  %v8093 = vpop.permute.xlu0 %8092
  %8094 = vrot.lane.b32.xlu0 %v7821, 80
  %v8095 = vpop.permute.xlu0 %8094
  %8096 = vrot.lane.b32.xlu0 %v7831, 80
  %v8097 = vpop.permute.xlu0 %8096
  %8098 = vrot.lane.b32.xlu0 %v7841, 80
  %v8099 = vpop.permute.xlu0 %8098
  %8100 = vrot.lane.b32.xlu0 %v7851, 80
  %v8101 = vpop.permute.xlu0 %8100
  %8102 = vrot.lane.b32.xlu0 %v7861, 80
  %v8103 = vpop.permute.xlu0 %8102
  %8104 = vrot.lane.b32.xlu0 %v7871, 80
  %v8105 = vpop.permute.xlu0 %8104
  %8106 = vrot.lane.b32.xlu0 %v7881, 80
  %v8107 = vpop.permute.xlu0 %8106
  %8108 = vrot.lane.b32.xlu0 %v7891, 80
  %v8109 = vpop.permute.xlu0 %8108
  %8110 = vrot.lane.b32.xlu0 %v7901, 80
  %v8111 = vpop.permute.xlu0 %8110
  %8112 = vrot.lane.b32.xlu0 %v7911, 80
  %v8113 = vpop.permute.xlu0 %8112
  %8114 = vrot.lane.b32.xlu0 %v7921, 80
  %v8115 = vpop.permute.xlu0 %8114
  %8116 = vrot.lane.b32.xlu0 %v7931, 80
  %v8117 = vpop.permute.xlu0 %8116
  %8118 = vrot.lane.b32.xlu0 %v7941, 80
  %v8119 = vpop.permute.xlu0 %8118
  %8120 = vrot.lane.b32.xlu0 %v7951, 80
  %v8121 = vpop.permute.xlu0 %8120
  %8122 = vrot.lane.b32.xlu0 %v7961, 80
  %v8123 = vpop.permute.xlu0 %8122
  %vm8205 = vcmask 781952
  %8206 = vst.msk [vmem:[#allocation3] sm:$0xf] %vm8205, %v7963
  %8207 = vst.msk [vmem:[#allocation3 + $0x8] sm:$0xf] %vm8205, %v7965
  %8208 = vst.msk [vmem:[#allocation3 + $0x10] sm:$0xf] %vm8205, %v7967
  %8209 = vst.msk [vmem:[#allocation3 + $0x18] sm:$0xf] %vm8205, %v7969
  %8210 = vst.msk [vmem:[#allocation3 + $0x20] sm:$0xf] %vm8205, %v7971
  %8211 = vst.msk [vmem:[#allocation3 + $0x28] sm:$0xf] %vm8205, %v7973
  %8212 = vst.msk [vmem:[#allocation3 + $0x30] sm:$0xf] %vm8205, %v7975
  %8213 = vst.msk [vmem:[#allocation3 + $0x38] sm:$0xf] %vm8205, %v7977
  %8214 = vst.msk [vmem:[#allocation3 + $0x40] sm:$0xf] %vm8205, %v7979
  %8215 = vst.msk [vmem:[#allocation3 + $0x48] sm:$0xf] %vm8205, %v7981
  %8216 = vst.msk [vmem:[#allocation3 + $0x50] sm:$0xf] %vm8205, %v7983
  %8217 = vst.msk [vmem:[#allocation3 + $0x58] sm:$0xf] %vm8205, %v7985
  %8218 = vst.msk [vmem:[#allocation3 + $0x60] sm:$0xf] %vm8205, %v7987
  %8219 = vst.msk [vmem:[#allocation3 + $0x68] sm:$0xf] %vm8205, %v7989
  %8220 = vst.msk [vmem:[#allocation3 + $0x70] sm:$0xf] %vm8205, %v7991
  %8221 = vst.msk [vmem:[#allocation3 + $0x78] sm:$0xf] %vm8205, %v7993
  %8222 = vst.msk [vmem:[#allocation3 + $0x80] sm:$0xf] %vm8205, %v7995
  %8223 = vst.msk [vmem:[#allocation3 + $0x88] sm:$0xf] %vm8205, %v7997
  %8224 = vst.msk [vmem:[#allocation3 + $0x90] sm:$0xf] %vm8205, %v7999
  %8225 = vst.msk [vmem:[#allocation3 + $0x98] sm:$0xf] %vm8205, %v8001
  %8226 = vst.msk [vmem:[#allocation3 + $0xa0] sm:$0xf] %vm8205, %v8003
  %8227 = vst.msk [vmem:[#allocation3 + $0xa8] sm:$0xf] %vm8205, %v8005
  %8228 = vst.msk [vmem:[#allocation3 + $0xb0] sm:$0xf] %vm8205, %v8007
  %8229 = vst.msk [vmem:[#allocation3 + $0xb8] sm:$0xf] %vm8205, %v8009
  %8230 = vst.msk [vmem:[#allocation3 + $0xc0] sm:$0xf] %vm8205, %v8011
  %8231 = vst.msk [vmem:[#allocation3 + $0xc8] sm:$0xf] %vm8205, %v8013
  %8232 = vst.msk [vmem:[#allocation3 + $0xd0] sm:$0xf] %vm8205, %v8015
  %8233 = vst.msk [vmem:[#allocation3 + $0xd8] sm:$0xf] %vm8205, %v8017
  %8234 = vst.msk [vmem:[#allocation3 + $0xe0] sm:$0xf] %vm8205, %v8019
  %8235 = vst.msk [vmem:[#allocation3 + $0xe8] sm:$0xf] %vm8205, %v8021
  %8236 = vst.msk [vmem:[#allocation3 + $0xf0] sm:$0xf] %vm8205, %v8023
  %8237 = vst.msk [vmem:[#allocation3 + $0xf8] sm:$0xf] %vm8205, %v8025
  %8238 = vst.msk [vmem:[#allocation3 + $0x100] sm:$0xf] %vm8205, %v8027
  %8239 = vst.msk [vmem:[#allocation3 + $0x108] sm:$0xf] %vm8205, %v8029
  %8240 = vst.msk [vmem:[#allocation3 + $0x110] sm:$0xf] %vm8205, %v8031
  %8241 = vst.msk [vmem:[#allocation3 + $0x118] sm:$0xf] %vm8205, %v8033
  %8242 = vst.msk [vmem:[#allocation3 + $0x120] sm:$0xf] %vm8205, %v8035
  %8243 = vst.msk [vmem:[#allocation3 + $0x128] sm:$0xf] %vm8205, %v8037
  %8244 = vst.msk [vmem:[#allocation3 + $0x130] sm:$0xf] %vm8205, %v8039
  %8245 = vst.msk [vmem:[#allocation3 + $0x138] sm:$0xf] %vm8205, %v8041
  %8246 = vst.msk [vmem:[#allocation3 + $0x140] sm:$0xf] %vm8205, %v8043
  %8247 = vst.msk [vmem:[#allocation3 + $0x148] sm:$0xf] %vm8205, %v8045
  %8248 = vst.msk [vmem:[#allocation3 + $0x150] sm:$0xf] %vm8205, %v8047
  %8249 = vst.msk [vmem:[#allocation3 + $0x158] sm:$0xf] %vm8205, %v8049
  %8250 = vst.msk [vmem:[#allocation3 + $0x160] sm:$0xf] %vm8205, %v8051
  %8251 = vst.msk [vmem:[#allocation3 + $0x168] sm:$0xf] %vm8205, %v8053
  %8252 = vst.msk [vmem:[#allocation3 + $0x170] sm:$0xf] %vm8205, %v8055
  %8253 = vst.msk [vmem:[#allocation3 + $0x178] sm:$0xf] %vm8205, %v8057
  %8254 = vst.msk [vmem:[#allocation3 + $0x180] sm:$0xf] %vm8205, %v8059
  %8255 = vst.msk [vmem:[#allocation3 + $0x188] sm:$0xf] %vm8205, %v8061
  %8256 = vst.msk [vmem:[#allocation3 + $0x190] sm:$0xf] %vm8205, %v8063
  %8257 = vst.msk [vmem:[#allocation3 + $0x198] sm:$0xf] %vm8205, %v8065
  %8258 = vst.msk [vmem:[#allocation3 + $0x1a0] sm:$0xf] %vm8205, %v8067
  %8259 = vst.msk [vmem:[#allocation3 + $0x1a8] sm:$0xf] %vm8205, %v8069
  %8260 = vst.msk [vmem:[#allocation3 + $0x1b0] sm:$0xf] %vm8205, %v8071
  %8261 = vst.msk [vmem:[#allocation3 + $0x1b8] sm:$0xf] %vm8205, %v8073
  %8262 = vst.msk [vmem:[#allocation3 + $0x1c0] sm:$0xf] %vm8205, %v8075
  %8263 = vst.msk [vmem:[#allocation3 + $0x1c8] sm:$0xf] %vm8205, %v8077
  %8264 = vst.msk [vmem:[#allocation3 + $0x1d0] sm:$0xf] %vm8205, %v8079
  %8265 = vst.msk [vmem:[#allocation3 + $0x1d8] sm:$0xf] %vm8205, %v8081
  %8266 = vst.msk [vmem:[#allocation3 + $0x1e0] sm:$0xf] %vm8205, %v8083
  %8267 = vst.msk [vmem:[#allocation3 + $0x1e8] sm:$0xf] %vm8205, %v8085
  %8268 = vst.msk [vmem:[#allocation3 + $0x1f0] sm:$0xf] %vm8205, %v8087
  %8269 = vst.msk [vmem:[#allocation3 + $0x1f8] sm:$0xf] %vm8205, %v8089
  %8270 = vst.msk [vmem:[#allocation3 + $0x200] sm:$0xf] %vm8205, %v8091
  %8271 = vst.msk [vmem:[#allocation3 + $0x208] sm:$0xf] %vm8205, %v8093
  %8272 = vst.msk [vmem:[#allocation3 + $0x210] sm:$0xf] %vm8205, %v8095
  %8273 = vst.msk [vmem:[#allocation3 + $0x218] sm:$0xf] %vm8205, %v8097
  %8274 = vst.msk [vmem:[#allocation3 + $0x220] sm:$0xf] %vm8205, %v8099
  %8275 = vst.msk [vmem:[#allocation3 + $0x228] sm:$0xf] %vm8205, %v8101
  %8276 = vst.msk [vmem:[#allocation3 + $0x230] sm:$0xf] %vm8205, %v8103
  %8277 = vst.msk [vmem:[#allocation3 + $0x238] sm:$0xf] %vm8205, %v8105
  %8278 = vst.msk [vmem:[#allocation3 + $0x240] sm:$0xf] %vm8205, %v8107
  %8279 = vst.msk [vmem:[#allocation3 + $0x248] sm:$0xf] %vm8205, %v8109
  %8280 = vst.msk [vmem:[#allocation3 + $0x250] sm:$0xf] %vm8205, %v8111
  %8281 = vst.msk [vmem:[#allocation3 + $0x258] sm:$0xf] %vm8205, %v8113
  %8282 = vst.msk [vmem:[#allocation3 + $0x260] sm:$0xf] %vm8205, %v8115
  %8283 = vst.msk [vmem:[#allocation3 + $0x268] sm:$0xf] %vm8205, %v8117
  %8284 = vst.msk [vmem:[#allocation3 + $0x270] sm:$0xf] %vm8205, %v8119
  %8285 = vst.msk [vmem:[#allocation3 + $0x278] sm:$0xf] %vm8205, %v8121
  %8286 = vst.msk [vmem:[#allocation3 + $0x280] sm:$0xf] %vm8205, %v8123
  %v8287 = vld [vmem:[#allocation2 + $0x14] sm:$0xf]
  %v8288 = vld [vmem:[#allocation2 + $0x18] sm:$0xf]
  %v8289 = vld [vmem:[#allocation2 + $0x1c] sm:$0xf]
  %v8290 = vld [vmem:[#allocation2 + $0x20] sm:$0xf]
  %v8291 = vld [vmem:[#allocation2 + $0x24] sm:$0xf]
  %v8292 = vld [vmem:[#allocation2 + $0x28] sm:$0xf]
  %v8293 = vld [vmem:[#allocation2 + $0x2c] sm:$0xf]
  %v8294 = vld [vmem:[#allocation2 + $0x30] sm:$0xf]
  %v8295 = vld [vmem:[#allocation2 + $0x34] sm:$0xf]
  %v8296 = vld [vmem:[#allocation2 + $0x38] sm:$0xf]
  %v8297 = vld [vmem:[#allocation2 + $0x3c] sm:$0xf]
  %v8298 = vld [vmem:[#allocation2 + $0x40] sm:$0xf]
  %v8299 = vld [vmem:[#allocation2 + $0x44] sm:$0xf]
  %v8300 = vld [vmem:[#allocation2 + $0x48] sm:$0xf]
  %v8301 = vld [vmem:[#allocation2 + $0x4c] sm:$0xf]
  %v8302 = vld [vmem:[#allocation2 + $0x50] sm:$0xf]
  %v8303 = vld [vmem:[#allocation2 + $0x54] sm:$0xf]
  %v8304 = vld [vmem:[#allocation2 + $0x58] sm:$0xf]
  %v8305 = vld [vmem:[#allocation2 + $0x5c] sm:$0xf]
  %v8306 = vld [vmem:[#allocation2 + $0x60] sm:$0xf]
  %v8307 = vld [vmem:[#allocation2 + $0x64] sm:$0xf]
  %v8308 = vld [vmem:[#allocation2 + $0x68] sm:$0xf]
  %v8309 = vld [vmem:[#allocation2 + $0x6c] sm:$0xf]
  %v8310 = vld [vmem:[#allocation2 + $0x70] sm:$0xf]
  %v8311 = vld [vmem:[#allocation2 + $0x74] sm:$0xf]
  %v8312 = vld [vmem:[#allocation2 + $0x78] sm:$0xf]
  %v8313 = vld [vmem:[#allocation2 + $0x7c] sm:$0xf]
  %v8314 = vld [vmem:[#allocation2 + $0x80] sm:$0xf]
  %v8315 = vld [vmem:[#allocation2 + $0x84] sm:$0xf]
  %v8316 = vld [vmem:[#allocation2 + $0x88] sm:$0xf]
  %v8317 = vld [vmem:[#allocation2 + $0x8c] sm:$0xf]
  %v8318 = vld [vmem:[#allocation2 + $0x90] sm:$0xf]
  %v8319 = vld [vmem:[#allocation2 + $0x94] sm:$0xf]
  %v8320 = vld [vmem:[#allocation2 + $0x98] sm:$0xf]
  %v8321 = vld [vmem:[#allocation2 + $0x9c] sm:$0xf]
  %v8322 = vld [vmem:[#allocation2 + $0xa0] sm:$0xf]
  %v8323 = vld [vmem:[#allocation2 + $0xa4] sm:$0xf]
  %v8324 = vld [vmem:[#allocation2 + $0xa8] sm:$0xf]
  %v8325 = vld [vmem:[#allocation2 + $0xac] sm:$0xf]
  %v8326 = vld [vmem:[#allocation2 + $0xb0] sm:$0xf]
  %v8327 = vld [vmem:[#allocation2 + $0xb4] sm:$0xf]
  %v8328 = vld [vmem:[#allocation2 + $0xb8] sm:$0xf]
  %v8329 = vld [vmem:[#allocation2 + $0xbc] sm:$0xf]
  %v8330 = vld [vmem:[#allocation2 + $0xc0] sm:$0xf]
  %v8331 = vld [vmem:[#allocation2 + $0xc4] sm:$0xf]
  %v8332 = vld [vmem:[#allocation2 + $0xc8] sm:$0xf]
  %v8333 = vld [vmem:[#allocation2 + $0xcc] sm:$0xf]
  %v8334 = vld [vmem:[#allocation2 + $0xd0] sm:$0xf]
  %v8335 = vld [vmem:[#allocation2 + $0xd4] sm:$0xf]
  %v8336 = vld [vmem:[#allocation2 + $0xd8] sm:$0xf]
  %v8337 = vld [vmem:[#allocation2 + $0xdc] sm:$0xf]
  %v8338 = vld [vmem:[#allocation2 + $0xe0] sm:$0xf]
  %v8339 = vld [vmem:[#allocation2 + $0xe4] sm:$0xf]
  %v8340 = vld [vmem:[#allocation2 + $0xe8] sm:$0xf]
  %v8341 = vld [vmem:[#allocation2 + $0xec] sm:$0xf]
  %v8342 = vld [vmem:[#allocation2 + $0xf0] sm:$0xf]
  %v8343 = vld [vmem:[#allocation2 + $0xf4] sm:$0xf]
  %v8344 = vld [vmem:[#allocation2 + $0xf8] sm:$0xf]
  %v8345 = vld [vmem:[#allocation2 + $0xfc] sm:$0xf]
  %v8346 = vld [vmem:[#allocation2 + $0x100] sm:$0xf]
  %v8347 = vld [vmem:[#allocation2 + $0x104] sm:$0xf]
  %v8348 = vld [vmem:[#allocation2 + $0x108] sm:$0xf]
  %v8349 = vld [vmem:[#allocation2 + $0x10c] sm:$0xf]
  %v8350 = vld [vmem:[#allocation2 + $0x110] sm:$0xf]
  %v8351 = vld [vmem:[#allocation2 + $0x114] sm:$0xf]
  %v8352 = vld [vmem:[#allocation2 + $0x118] sm:$0xf]
  %v8353 = vld [vmem:[#allocation2 + $0x11c] sm:$0xf]
  %v8354 = vld [vmem:[#allocation2 + $0x120] sm:$0xf]
  %v8355 = vld [vmem:[#allocation2 + $0x124] sm:$0xf]
  %v8356 = vld [vmem:[#allocation2 + $0x128] sm:$0xf]
  %v8357 = vld [vmem:[#allocation2 + $0x12c] sm:$0xf]
  %v8358 = vld [vmem:[#allocation2 + $0x130] sm:$0xf]
  %v8359 = vld [vmem:[#allocation2 + $0x134] sm:$0xf]
  %v8360 = vld [vmem:[#allocation2 + $0x138] sm:$0xf]
  %v8361 = vld [vmem:[#allocation2 + $0x13c] sm:$0xf]
  %v8362 = vld [vmem:[#allocation2 + $0x140] sm:$0xf]
  %v8363 = vld [vmem:[#allocation2 + $0x144] sm:$0xf]
  %v8364 = vld [vmem:[#allocation2 + $0x148] sm:$0xf]
  %v8365 = vld [vmem:[#allocation2 + $0x14c] sm:$0xf]
  %v8366 = vld [vmem:[#allocation2 + $0x150] sm:$0xf]
  %v8367 = vld [vmem:[#allocation2 + $0x154] sm:$0xf]
  %v8368 = vld [vmem:[#allocation2 + $0x158] sm:$0x1]
  %v8370 = vshrl.u32 %v8287, 16
  %v8372 = vrot.slane %v8370, 4
  %v8373 = vshll.u32 %v8287, 16
  %v8375 = vrot.slane %v8373, 5
  %v8376 = vor.u32 %v8372, %v8375
  %v8377 = vrot.slane %v8376, 4
  %v8379 = vshll.u32 %v8288, 16
  %v8381 = vrot.slane %v8379, 5
  %v8382 = vsel %vm7147, %v8377, %v8381
  %v8383 = vshrl.u32 %v8288, 16
  %v8385 = vrot.slane %v8383, 4
  %v8386 = vor.u32 %v8385, %v8381
  %v8387 = vrot.slane %v8386, 4
  %v8389 = vshll.u32 %v8289, 16
  %v8391 = vrot.slane %v8389, 5
  %v8392 = vsel %vm7147, %v8387, %v8391
  %v8393 = vshrl.u32 %v8289, 16
  %v8395 = vrot.slane %v8393, 4
  %v8396 = vor.u32 %v8395, %v8391
  %v8397 = vrot.slane %v8396, 4
  %v8399 = vshll.u32 %v8290, 16
  %v8401 = vrot.slane %v8399, 5
  %v8402 = vsel %vm7147, %v8397, %v8401
  %v8403 = vshrl.u32 %v8290, 16
  %v8405 = vrot.slane %v8403, 4
  %v8406 = vor.u32 %v8405, %v8401
  %v8407 = vrot.slane %v8406, 4
  %v8409 = vshll.u32 %v8291, 16
  %v8411 = vrot.slane %v8409, 5
  %v8412 = vsel %vm7147, %v8407, %v8411
  %v8413 = vshrl.u32 %v8291, 16
  %v8415 = vrot.slane %v8413, 4
  %v8416 = vor.u32 %v8415, %v8411
  %v8417 = vrot.slane %v8416, 4
  %v8419 = vshll.u32 %v8292, 16
  %v8421 = vrot.slane %v8419, 5
  %v8422 = vsel %vm7147, %v8417, %v8421
  %v8423 = vshrl.u32 %v8292, 16
  %v8425 = vrot.slane %v8423, 4
  %v8426 = vor.u32 %v8425, %v8421
  %v8427 = vrot.slane %v8426, 4
  %v8429 = vshll.u32 %v8293, 16
  %v8431 = vrot.slane %v8429, 5
  %v8432 = vsel %vm7147, %v8427, %v8431
  %v8433 = vshrl.u32 %v8293, 16
  %v8435 = vrot.slane %v8433, 4
  %v8436 = vor.u32 %v8435, %v8431
  %v8437 = vrot.slane %v8436, 4
  %v8439 = vshll.u32 %v8294, 16
  %v8441 = vrot.slane %v8439, 5
  %v8442 = vsel %vm7147, %v8437, %v8441
  %v8443 = vshrl.u32 %v8294, 16
  %v8445 = vrot.slane %v8443, 4
  %v8446 = vor.u32 %v8445, %v8441
  %v8447 = vrot.slane %v8446, 4
  %v8449 = vshll.u32 %v8295, 16
  %v8451 = vrot.slane %v8449, 5
  %v8452 = vsel %vm7147, %v8447, %v8451
  %v8453 = vshrl.u32 %v8295, 16
  %v8455 = vrot.slane %v8453, 4
  %v8456 = vor.u32 %v8455, %v8451
  %v8457 = vrot.slane %v8456, 4
  %v8459 = vshll.u32 %v8296, 16
  %v8461 = vrot.slane %v8459, 5
  %v8462 = vsel %vm7147, %v8457, %v8461
  %v8463 = vshrl.u32 %v8296, 16
  %v8465 = vrot.slane %v8463, 4
  %v8466 = vor.u32 %v8465, %v8461
  %v8467 = vrot.slane %v8466, 4
  %v8469 = vshll.u32 %v8297, 16
  %v8471 = vrot.slane %v8469, 5
  %v8472 = vsel %vm7147, %v8467, %v8471
  %v8473 = vshrl.u32 %v8297, 16
  %v8475 = vrot.slane %v8473, 4
  %v8476 = vor.u32 %v8475, %v8471
  %v8477 = vrot.slane %v8476, 4
  %v8479 = vshll.u32 %v8298, 16
  %v8481 = vrot.slane %v8479, 5
  %v8482 = vsel %vm7147, %v8477, %v8481
  %v8483 = vshrl.u32 %v8298, 16
  %v8485 = vrot.slane %v8483, 4
  %v8486 = vor.u32 %v8485, %v8481
  %v8487 = vrot.slane %v8486, 4
  %v8489 = vshll.u32 %v8299, 16
  %v8491 = vrot.slane %v8489, 5
  %v8492 = vsel %vm7147, %v8487, %v8491
  %v8493 = vshrl.u32 %v8299, 16
  %v8495 = vrot.slane %v8493, 4
  %v8496 = vor.u32 %v8495, %v8491
  %v8497 = vrot.slane %v8496, 4
  %v8499 = vshll.u32 %v8300, 16
  %v8501 = vrot.slane %v8499, 5
  %v8502 = vsel %vm7147, %v8497, %v8501
  %v8503 = vshrl.u32 %v8300, 16
  %v8505 = vrot.slane %v8503, 4
  %v8506 = vor.u32 %v8505, %v8501
  %v8507 = vrot.slane %v8506, 4
  %v8509 = vshll.u32 %v8301, 16
  %v8511 = vrot.slane %v8509, 5
  %v8512 = vsel %vm7147, %v8507, %v8511
  %v8513 = vshrl.u32 %v8301, 16
  %v8515 = vrot.slane %v8513, 4
  %v8516 = vor.u32 %v8515, %v8511
  %v8517 = vrot.slane %v8516, 4
  %v8519 = vshll.u32 %v8302, 16
  %v8521 = vrot.slane %v8519, 5
  %v8522 = vsel %vm7147, %v8517, %v8521
  %v8523 = vshrl.u32 %v8302, 16
  %v8525 = vrot.slane %v8523, 4
  %v8526 = vor.u32 %v8525, %v8521
  %v8527 = vrot.slane %v8526, 4
  %v8529 = vshll.u32 %v8303, 16
  %v8531 = vrot.slane %v8529, 5
  %v8532 = vsel %vm7147, %v8527, %v8531
  %v8533 = vshrl.u32 %v8303, 16
  %v8535 = vrot.slane %v8533, 4
  %v8536 = vor.u32 %v8535, %v8531
  %v8537 = vrot.slane %v8536, 4
  %v8539 = vshll.u32 %v8304, 16
  %v8541 = vrot.slane %v8539, 5
  %v8542 = vsel %vm7147, %v8537, %v8541
  %v8543 = vshrl.u32 %v8304, 16
  %v8545 = vrot.slane %v8543, 4
  %v8546 = vor.u32 %v8545, %v8541
  %v8547 = vrot.slane %v8546, 4
  %v8549 = vshll.u32 %v8305, 16
  %v8551 = vrot.slane %v8549, 5
  %v8552 = vsel %vm7147, %v8547, %v8551
  %v8553 = vshrl.u32 %v8305, 16
  %v8555 = vrot.slane %v8553, 4
  %v8556 = vor.u32 %v8555, %v8551
  %v8557 = vrot.slane %v8556, 4
  %v8559 = vshll.u32 %v8306, 16
  %v8561 = vrot.slane %v8559, 5
  %v8562 = vsel %vm7147, %v8557, %v8561
  %v8563 = vshrl.u32 %v8306, 16
  %v8565 = vrot.slane %v8563, 4
  %v8566 = vor.u32 %v8565, %v8561
  %v8567 = vrot.slane %v8566, 4
  %v8569 = vshll.u32 %v8307, 16
  %v8571 = vrot.slane %v8569, 5
  %v8572 = vsel %vm7147, %v8567, %v8571
  %v8573 = vshrl.u32 %v8307, 16
  %v8575 = vrot.slane %v8573, 4
  %v8576 = vor.u32 %v8575, %v8571
  %v8577 = vrot.slane %v8576, 4
  %v8579 = vshll.u32 %v8308, 16
  %v8581 = vrot.slane %v8579, 5
  %v8582 = vsel %vm7147, %v8577, %v8581
  %v8583 = vshrl.u32 %v8308, 16
  %v8585 = vrot.slane %v8583, 4
  %v8586 = vor.u32 %v8585, %v8581
  %v8587 = vrot.slane %v8586, 4
  %v8589 = vshll.u32 %v8309, 16
  %v8591 = vrot.slane %v8589, 5
  %v8592 = vsel %vm7147, %v8587, %v8591
  %v8593 = vshrl.u32 %v8309, 16
  %v8595 = vrot.slane %v8593, 4
  %v8596 = vor.u32 %v8595, %v8591
  %v8597 = vrot.slane %v8596, 4
  %v8599 = vshll.u32 %v8310, 16
  %v8601 = vrot.slane %v8599, 5
  %v8602 = vsel %vm7147, %v8597, %v8601
  %v8603 = vshrl.u32 %v8310, 16
  %v8605 = vrot.slane %v8603, 4
  %v8606 = vor.u32 %v8605, %v8601
  %v8607 = vrot.slane %v8606, 4
  %v8609 = vshll.u32 %v8311, 16
  %v8611 = vrot.slane %v8609, 5
  %v8612 = vsel %vm7147, %v8607, %v8611
  %v8613 = vshrl.u32 %v8311, 16
  %v8615 = vrot.slane %v8613, 4
  %v8616 = vor.u32 %v8615, %v8611
  %v8617 = vrot.slane %v8616, 4
  %v8619 = vshll.u32 %v8312, 16
  %v8621 = vrot.slane %v8619, 5
  %v8622 = vsel %vm7147, %v8617, %v8621
  %v8623 = vshrl.u32 %v8312, 16
  %v8625 = vrot.slane %v8623, 4
  %v8626 = vor.u32 %v8625, %v8621
  %v8627 = vrot.slane %v8626, 4
  %v8629 = vshll.u32 %v8313, 16
  %v8631 = vrot.slane %v8629, 5
  %v8632 = vsel %vm7147, %v8627, %v8631
  %v8633 = vshrl.u32 %v8313, 16
  %v8635 = vrot.slane %v8633, 4
  %v8636 = vor.u32 %v8635, %v8631
  %v8637 = vrot.slane %v8636, 4
  %v8639 = vshll.u32 %v8314, 16
  %v8641 = vrot.slane %v8639, 5
  %v8642 = vsel %vm7147, %v8637, %v8641
  %v8643 = vshrl.u32 %v8314, 16
  %v8645 = vrot.slane %v8643, 4
  %v8646 = vor.u32 %v8645, %v8641
  %v8647 = vrot.slane %v8646, 4
  %v8649 = vshll.u32 %v8315, 16
  %v8651 = vrot.slane %v8649, 5
  %v8652 = vsel %vm7147, %v8647, %v8651
  %v8653 = vshrl.u32 %v8315, 16
  %v8655 = vrot.slane %v8653, 4
  %v8656 = vor.u32 %v8655, %v8651
  %v8657 = vrot.slane %v8656, 4
  %v8659 = vshll.u32 %v8316, 16
  %v8661 = vrot.slane %v8659, 5
  %v8662 = vsel %vm7147, %v8657, %v8661
  %v8663 = vshrl.u32 %v8316, 16
  %v8665 = vrot.slane %v8663, 4
  %v8666 = vor.u32 %v8665, %v8661
  %v8667 = vrot.slane %v8666, 4
  %v8669 = vshll.u32 %v8317, 16
  %v8671 = vrot.slane %v8669, 5
  %v8672 = vsel %vm7147, %v8667, %v8671
  %v8673 = vshrl.u32 %v8317, 16
  %v8675 = vrot.slane %v8673, 4
  %v8676 = vor.u32 %v8675, %v8671
  %v8677 = vrot.slane %v8676, 4
  %v8679 = vshll.u32 %v8318, 16
  %v8681 = vrot.slane %v8679, 5
  %v8682 = vsel %vm7147, %v8677, %v8681
  %v8683 = vshrl.u32 %v8318, 16
  %v8685 = vrot.slane %v8683, 4
  %v8686 = vor.u32 %v8685, %v8681
  %v8687 = vrot.slane %v8686, 4
  %v8689 = vshll.u32 %v8319, 16
  %v8691 = vrot.slane %v8689, 5
  %v8692 = vsel %vm7147, %v8687, %v8691
  %v8693 = vshrl.u32 %v8319, 16
  %v8695 = vrot.slane %v8693, 4
  %v8696 = vor.u32 %v8695, %v8691
  %v8697 = vrot.slane %v8696, 4
  %v8699 = vshll.u32 %v8320, 16
  %v8701 = vrot.slane %v8699, 5
  %v8702 = vsel %vm7147, %v8697, %v8701
  %v8703 = vshrl.u32 %v8320, 16
  %v8705 = vrot.slane %v8703, 4
  %v8706 = vor.u32 %v8705, %v8701
  %v8707 = vrot.slane %v8706, 4
  %v8709 = vshll.u32 %v8321, 16
  %v8711 = vrot.slane %v8709, 5
  %v8712 = vsel %vm7147, %v8707, %v8711
  %v8713 = vshrl.u32 %v8321, 16
  %v8715 = vrot.slane %v8713, 4
  %v8716 = vor.u32 %v8715, %v8711
  %v8717 = vrot.slane %v8716, 4
  %v8719 = vshll.u32 %v8322, 16
  %v8721 = vrot.slane %v8719, 5
  %v8722 = vsel %vm7147, %v8717, %v8721
  %v8723 = vshrl.u32 %v8322, 16
  %v8725 = vrot.slane %v8723, 4
  %v8726 = vor.u32 %v8725, %v8721
  %v8727 = vrot.slane %v8726, 4
  %v8729 = vshll.u32 %v8323, 16
  %v8731 = vrot.slane %v8729, 5
  %v8732 = vsel %vm7147, %v8727, %v8731
  %v8733 = vshrl.u32 %v8323, 16
  %v8735 = vrot.slane %v8733, 4
  %v8736 = vor.u32 %v8735, %v8731
  %v8737 = vrot.slane %v8736, 4
  %v8739 = vshll.u32 %v8324, 16
  %v8741 = vrot.slane %v8739, 5
  %v8742 = vsel %vm7147, %v8737, %v8741
  %v8743 = vshrl.u32 %v8324, 16
  %v8745 = vrot.slane %v8743, 4
  %v8746 = vor.u32 %v8745, %v8741
  %v8747 = vrot.slane %v8746, 4
  %v8749 = vshll.u32 %v8325, 16
  %v8751 = vrot.slane %v8749, 5
  %v8752 = vsel %vm7147, %v8747, %v8751
  %v8753 = vshrl.u32 %v8325, 16
  %v8755 = vrot.slane %v8753, 4
  %v8756 = vor.u32 %v8755, %v8751
  %v8757 = vrot.slane %v8756, 4
  %v8759 = vshll.u32 %v8326, 16
  %v8761 = vrot.slane %v8759, 5
  %v8762 = vsel %vm7147, %v8757, %v8761
  %v8763 = vshrl.u32 %v8326, 16
  %v8765 = vrot.slane %v8763, 4
  %v8766 = vor.u32 %v8765, %v8761
  %v8767 = vrot.slane %v8766, 4
  %v8769 = vshll.u32 %v8327, 16
  %v8771 = vrot.slane %v8769, 5
  %v8772 = vsel %vm7147, %v8767, %v8771
  %v8773 = vshrl.u32 %v8327, 16
  %v8775 = vrot.slane %v8773, 4
  %v8776 = vor.u32 %v8775, %v8771
  %v8777 = vrot.slane %v8776, 4
  %v8779 = vshll.u32 %v8328, 16
  %v8781 = vrot.slane %v8779, 5
  %v8782 = vsel %vm7147, %v8777, %v8781
  %v8783 = vshrl.u32 %v8328, 16
  %v8785 = vrot.slane %v8783, 4
  %v8786 = vor.u32 %v8785, %v8781
  %v8787 = vrot.slane %v8786, 4
  %v8789 = vshll.u32 %v8329, 16
  %v8791 = vrot.slane %v8789, 5
  %v8792 = vsel %vm7147, %v8787, %v8791
  %v8793 = vshrl.u32 %v8329, 16
  %v8795 = vrot.slane %v8793, 4
  %v8796 = vor.u32 %v8795, %v8791
  %v8797 = vrot.slane %v8796, 4
  %v8799 = vshll.u32 %v8330, 16
  %v8801 = vrot.slane %v8799, 5
  %v8802 = vsel %vm7147, %v8797, %v8801
  %v8803 = vshrl.u32 %v8330, 16
  %v8805 = vrot.slane %v8803, 4
  %v8806 = vor.u32 %v8805, %v8801
  %v8807 = vrot.slane %v8806, 4
  %v8809 = vshll.u32 %v8331, 16
  %v8811 = vrot.slane %v8809, 5
  %v8812 = vsel %vm7147, %v8807, %v8811
  %v8813 = vshrl.u32 %v8331, 16
  %v8815 = vrot.slane %v8813, 4
  %v8816 = vor.u32 %v8815, %v8811
  %v8817 = vrot.slane %v8816, 4
  %v8819 = vshll.u32 %v8332, 16
  %v8821 = vrot.slane %v8819, 5
  %v8822 = vsel %vm7147, %v8817, %v8821
  %v8823 = vshrl.u32 %v8332, 16
  %v8825 = vrot.slane %v8823, 4
  %v8826 = vor.u32 %v8825, %v8821
  %v8827 = vrot.slane %v8826, 4
  %v8829 = vshll.u32 %v8333, 16
  %v8831 = vrot.slane %v8829, 5
  %v8832 = vsel %vm7147, %v8827, %v8831
  %v8833 = vshrl.u32 %v8333, 16
  %v8835 = vrot.slane %v8833, 4
  %v8836 = vor.u32 %v8835, %v8831
  %v8837 = vrot.slane %v8836, 4
  %v8839 = vshll.u32 %v8334, 16
  %v8841 = vrot.slane %v8839, 5
  %v8842 = vsel %vm7147, %v8837, %v8841
  %v8843 = vshrl.u32 %v8334, 16
  %v8845 = vrot.slane %v8843, 4
  %v8846 = vor.u32 %v8845, %v8841
  %v8847 = vrot.slane %v8846, 4
  %v8849 = vshll.u32 %v8335, 16
  %v8851 = vrot.slane %v8849, 5
  %v8852 = vsel %vm7147, %v8847, %v8851
  %v8853 = vshrl.u32 %v8335, 16
  %v8855 = vrot.slane %v8853, 4
  %v8856 = vor.u32 %v8855, %v8851
  %v8857 = vrot.slane %v8856, 4
  %v8859 = vshll.u32 %v8336, 16
  %v8861 = vrot.slane %v8859, 5
  %v8862 = vsel %vm7147, %v8857, %v8861
  %v8863 = vshrl.u32 %v8336, 16
  %v8865 = vrot.slane %v8863, 4
  %v8866 = vor.u32 %v8865, %v8861
  %v8867 = vrot.slane %v8866, 4
  %v8869 = vshll.u32 %v8337, 16
  %v8871 = vrot.slane %v8869, 5
  %v8872 = vsel %vm7147, %v8867, %v8871
  %v8873 = vshrl.u32 %v8337, 16
  %v8875 = vrot.slane %v8873, 4
  %v8876 = vor.u32 %v8875, %v8871
  %v8877 = vrot.slane %v8876, 4
  %v8879 = vshll.u32 %v8338, 16
  %v8881 = vrot.slane %v8879, 5
  %v8882 = vsel %vm7147, %v8877, %v8881
  %v8883 = vshrl.u32 %v8338, 16
  %v8885 = vrot.slane %v8883, 4
  %v8886 = vor.u32 %v8885, %v8881
  %v8887 = vrot.slane %v8886, 4
  %v8889 = vshll.u32 %v8339, 16
  %v8891 = vrot.slane %v8889, 5
  %v8892 = vsel %vm7147, %v8887, %v8891
  %v8893 = vshrl.u32 %v8339, 16
  %v8895 = vrot.slane %v8893, 4
  %v8896 = vor.u32 %v8895, %v8891
  %v8897 = vrot.slane %v8896, 4
  %v8899 = vshll.u32 %v8340, 16
  %v8901 = vrot.slane %v8899, 5
  %v8902 = vsel %vm7147, %v8897, %v8901
  %v8903 = vshrl.u32 %v8340, 16
  %v8905 = vrot.slane %v8903, 4
  %v8906 = vor.u32 %v8905, %v8901
  %v8907 = vrot.slane %v8906, 4
  %v8909 = vshll.u32 %v8341, 16
  %v8911 = vrot.slane %v8909, 5
  %v8912 = vsel %vm7147, %v8907, %v8911
  %v8913 = vshrl.u32 %v8341, 16
  %v8915 = vrot.slane %v8913, 4
  %v8916 = vor.u32 %v8915, %v8911
  %v8917 = vrot.slane %v8916, 4
  %v8919 = vshll.u32 %v8342, 16
  %v8921 = vrot.slane %v8919, 5
  %v8922 = vsel %vm7147, %v8917, %v8921
  %v8923 = vshrl.u32 %v8342, 16
  %v8925 = vrot.slane %v8923, 4
  %v8926 = vor.u32 %v8925, %v8921
  %v8927 = vrot.slane %v8926, 4
  %v8929 = vshll.u32 %v8343, 16
  %v8931 = vrot.slane %v8929, 5
  %v8932 = vsel %vm7147, %v8927, %v8931
  %v8933 = vshrl.u32 %v8343, 16
  %v8935 = vrot.slane %v8933, 4
  %v8936 = vor.u32 %v8935, %v8931
  %v8937 = vrot.slane %v8936, 4
  %v8939 = vshll.u32 %v8344, 16
  %v8941 = vrot.slane %v8939, 5
  %v8942 = vsel %vm7147, %v8937, %v8941
  %v8943 = vshrl.u32 %v8344, 16
  %v8945 = vrot.slane %v8943, 4
  %v8946 = vor.u32 %v8945, %v8941
  %v8947 = vrot.slane %v8946, 4
  %v8949 = vshll.u32 %v8345, 16
  %v8951 = vrot.slane %v8949, 5
  %v8952 = vsel %vm7147, %v8947, %v8951
  %v8953 = vshrl.u32 %v8345, 16
  %v8955 = vrot.slane %v8953, 4
  %v8956 = vor.u32 %v8955, %v8951
  %v8957 = vrot.slane %v8956, 4
  %v8959 = vshll.u32 %v8346, 16
  %v8961 = vrot.slane %v8959, 5
  %v8962 = vsel %vm7147, %v8957, %v8961
  %v8963 = vshrl.u32 %v8346, 16
  %v8965 = vrot.slane %v8963, 4
  %v8966 = vor.u32 %v8965, %v8961
  %v8967 = vrot.slane %v8966, 4
  %v8969 = vshll.u32 %v8347, 16
  %v8971 = vrot.slane %v8969, 5
  %v8972 = vsel %vm7147, %v8967, %v8971
  %v8973 = vshrl.u32 %v8347, 16
  %v8975 = vrot.slane %v8973, 4
  %v8976 = vor.u32 %v8975, %v8971
  %v8977 = vrot.slane %v8976, 4
  %v8979 = vshll.u32 %v8348, 16
  %v8981 = vrot.slane %v8979, 5
  %v8982 = vsel %vm7147, %v8977, %v8981
  %v8983 = vshrl.u32 %v8348, 16
  %v8985 = vrot.slane %v8983, 4
  %v8986 = vor.u32 %v8985, %v8981
  %v8987 = vrot.slane %v8986, 4
  %v8989 = vshll.u32 %v8349, 16
  %v8991 = vrot.slane %v8989, 5
  %v8992 = vsel %vm7147, %v8987, %v8991
  %v8993 = vshrl.u32 %v8349, 16
  %v8995 = vrot.slane %v8993, 4
  %v8996 = vor.u32 %v8995, %v8991
  %v8997 = vrot.slane %v8996, 4
  %v8999 = vshll.u32 %v8350, 16
  %v9001 = vrot.slane %v8999, 5
  %v9002 = vsel %vm7147, %v8997, %v9001
  %v9003 = vshrl.u32 %v8350, 16
  %v9005 = vrot.slane %v9003, 4
  %v9006 = vor.u32 %v9005, %v9001
  %v9007 = vrot.slane %v9006, 4
  %v9009 = vshll.u32 %v8351, 16
  %v9011 = vrot.slane %v9009, 5
  %v9012 = vsel %vm7147, %v9007, %v9011
  %v9013 = vshrl.u32 %v8351, 16
  %v9015 = vrot.slane %v9013, 4
  %v9016 = vor.u32 %v9015, %v9011
  %v9017 = vrot.slane %v9016, 4
  %v9019 = vshll.u32 %v8352, 16
  %v9021 = vrot.slane %v9019, 5
  %v9022 = vsel %vm7147, %v9017, %v9021
  %v9023 = vshrl.u32 %v8352, 16
  %v9025 = vrot.slane %v9023, 4
  %v9026 = vor.u32 %v9025, %v9021
  %v9027 = vrot.slane %v9026, 4
  %v9029 = vshll.u32 %v8353, 16
  %v9031 = vrot.slane %v9029, 5
  %v9032 = vsel %vm7147, %v9027, %v9031
  %v9033 = vshrl.u32 %v8353, 16
  %v9035 = vrot.slane %v9033, 4
  %v9036 = vor.u32 %v9035, %v9031
  %v9037 = vrot.slane %v9036, 4
  %v9039 = vshll.u32 %v8354, 16
  %v9041 = vrot.slane %v9039, 5
  %v9042 = vsel %vm7147, %v9037, %v9041
  %v9043 = vshrl.u32 %v8354, 16
  %v9045 = vrot.slane %v9043, 4
  %v9046 = vor.u32 %v9045, %v9041
  %v9047 = vrot.slane %v9046, 4
  %v9049 = vshll.u32 %v8355, 16
  %v9051 = vrot.slane %v9049, 5
  %v9052 = vsel %vm7147, %v9047, %v9051
  %v9053 = vshrl.u32 %v8355, 16
  %v9055 = vrot.slane %v9053, 4
  %v9056 = vor.u32 %v9055, %v9051
  %v9057 = vrot.slane %v9056, 4
  %v9059 = vshll.u32 %v8356, 16
  %v9061 = vrot.slane %v9059, 5
  %v9062 = vsel %vm7147, %v9057, %v9061
  %v9063 = vshrl.u32 %v8356, 16
  %v9065 = vrot.slane %v9063, 4
  %v9066 = vor.u32 %v9065, %v9061
  %v9067 = vrot.slane %v9066, 4
  %v9069 = vshll.u32 %v8357, 16
  %v9071 = vrot.slane %v9069, 5
  %v9072 = vsel %vm7147, %v9067, %v9071
  %v9073 = vshrl.u32 %v8357, 16
  %v9075 = vrot.slane %v9073, 4
  %v9076 = vor.u32 %v9075, %v9071
  %v9077 = vrot.slane %v9076, 4
  %v9079 = vshll.u32 %v8358, 16
  %v9081 = vrot.slane %v9079, 5
  %v9082 = vsel %vm7147, %v9077, %v9081
  %v9083 = vshrl.u32 %v8358, 16
  %v9085 = vrot.slane %v9083, 4
  %v9086 = vor.u32 %v9085, %v9081
  %v9087 = vrot.slane %v9086, 4
  %v9089 = vshll.u32 %v8359, 16
  %v9091 = vrot.slane %v9089, 5
  %v9092 = vsel %vm7147, %v9087, %v9091
  %v9093 = vshrl.u32 %v8359, 16
  %v9095 = vrot.slane %v9093, 4
  %v9096 = vor.u32 %v9095, %v9091
  %v9097 = vrot.slane %v9096, 4
  %v9099 = vshll.u32 %v8360, 16
  %v9101 = vrot.slane %v9099, 5
  %v9102 = vsel %vm7147, %v9097, %v9101
  %v9103 = vshrl.u32 %v8360, 16
  %v9105 = vrot.slane %v9103, 4
  %v9106 = vor.u32 %v9105, %v9101
  %v9107 = vrot.slane %v9106, 4
  %v9109 = vshll.u32 %v8361, 16
  %v9111 = vrot.slane %v9109, 5
  %v9112 = vsel %vm7147, %v9107, %v9111
  %v9113 = vshrl.u32 %v8361, 16
  %v9115 = vrot.slane %v9113, 4
  %v9116 = vor.u32 %v9115, %v9111
  %v9117 = vrot.slane %v9116, 4
  %v9119 = vshll.u32 %v8362, 16
  %v9121 = vrot.slane %v9119, 5
  %v9122 = vsel %vm7147, %v9117, %v9121
  %v9123 = vshrl.u32 %v8362, 16
  %v9125 = vrot.slane %v9123, 4
  %v9126 = vor.u32 %v9125, %v9121
  %v9127 = vrot.slane %v9126, 4
  %v9129 = vshll.u32 %v8363, 16
  %v9131 = vrot.slane %v9129, 5
  %v9132 = vsel %vm7147, %v9127, %v9131
  %v9133 = vshrl.u32 %v8363, 16
  %v9135 = vrot.slane %v9133, 4
  %v9136 = vor.u32 %v9135, %v9131
  %v9137 = vrot.slane %v9136, 4
  %v9139 = vshll.u32 %v8364, 16
  %v9141 = vrot.slane %v9139, 5
  %v9142 = vsel %vm7147, %v9137, %v9141
  %v9143 = vshrl.u32 %v8364, 16
  %v9145 = vrot.slane %v9143, 4
  %v9146 = vor.u32 %v9145, %v9141
  %v9147 = vrot.slane %v9146, 4
  %v9149 = vshll.u32 %v8365, 16
  %v9151 = vrot.slane %v9149, 5
  %v9152 = vsel %vm7147, %v9147, %v9151
  %v9153 = vshrl.u32 %v8365, 16
  %v9155 = vrot.slane %v9153, 4
  %v9156 = vor.u32 %v9155, %v9151
  %v9157 = vrot.slane %v9156, 4
  %v9159 = vshll.u32 %v8366, 16
  %v9161 = vrot.slane %v9159, 5
  %v9162 = vsel %vm7147, %v9157, %v9161
  %v9163 = vshrl.u32 %v8366, 16
  %v9165 = vrot.slane %v9163, 4
  %v9166 = vor.u32 %v9165, %v9161
  %v9167 = vrot.slane %v9166, 4
  %v9169 = vshll.u32 %v8367, 16
  %v9171 = vrot.slane %v9169, 5
  %v9172 = vsel %vm7147, %v9167, %v9171
  %v9173 = vshrl.u32 %v8367, 16
  %v9175 = vrot.slane %v9173, 4
  %v9176 = vor.u32 %v9175, %v9171
  %v9177 = vrot.slane %v9176, 4
  %v9179 = vshll.u32 %v8368, 16
  %v9181 = vrot.slane %v9179, 5
  %v9182 = vsel %vm7147, %v9177, %v9181
  %9183 = vrot.lane.b32.xlu0 %v8382, 96
  %v9184 = vpop.permute.xlu0 %9183
  %9185 = vrot.lane.b32.xlu0 %v8392, 96
  %v9186 = vpop.permute.xlu0 %9185
  %9187 = vrot.lane.b32.xlu0 %v8402, 96
  %v9188 = vpop.permute.xlu0 %9187
  %9189 = vrot.lane.b32.xlu0 %v8412, 96
  %v9190 = vpop.permute.xlu0 %9189
  %9191 = vrot.lane.b32.xlu0 %v8422, 96
  %v9192 = vpop.permute.xlu0 %9191
  %9193 = vrot.lane.b32.xlu0 %v8432, 96
  %v9194 = vpop.permute.xlu0 %9193
  %9195 = vrot.lane.b32.xlu0 %v8442, 96
  %v9196 = vpop.permute.xlu0 %9195
  %9197 = vrot.lane.b32.xlu0 %v8452, 96
  %v9198 = vpop.permute.xlu0 %9197
  %9199 = vrot.lane.b32.xlu0 %v8462, 96
  %v9200 = vpop.permute.xlu0 %9199
  %9201 = vrot.lane.b32.xlu0 %v8472, 96
  %v9202 = vpop.permute.xlu0 %9201
  %9203 = vrot.lane.b32.xlu0 %v8482, 96
  %v9204 = vpop.permute.xlu0 %9203
  %9205 = vrot.lane.b32.xlu0 %v8492, 96
  %v9206 = vpop.permute.xlu0 %9205
  %9207 = vrot.lane.b32.xlu0 %v8502, 96
  %v9208 = vpop.permute.xlu0 %9207
  %9209 = vrot.lane.b32.xlu0 %v8512, 96
  %v9210 = vpop.permute.xlu0 %9209
  %9211 = vrot.lane.b32.xlu0 %v8522, 96
  %v9212 = vpop.permute.xlu0 %9211
  %9213 = vrot.lane.b32.xlu0 %v8532, 96
  %v9214 = vpop.permute.xlu0 %9213
  %9215 = vrot.lane.b32.xlu0 %v8542, 96
  %v9216 = vpop.permute.xlu0 %9215
  %9217 = vrot.lane.b32.xlu0 %v8552, 96
  %v9218 = vpop.permute.xlu0 %9217
  %9219 = vrot.lane.b32.xlu0 %v8562, 96
  %v9220 = vpop.permute.xlu0 %9219
  %9221 = vrot.lane.b32.xlu0 %v8572, 96
  %v9222 = vpop.permute.xlu0 %9221
  %9223 = vrot.lane.b32.xlu0 %v8582, 96
  %v9224 = vpop.permute.xlu0 %9223
  %9225 = vrot.lane.b32.xlu0 %v8592, 96
  %v9226 = vpop.permute.xlu0 %9225
  %9227 = vrot.lane.b32.xlu0 %v8602, 96
  %v9228 = vpop.permute.xlu0 %9227
  %9229 = vrot.lane.b32.xlu0 %v8612, 96
  %v9230 = vpop.permute.xlu0 %9229
  %9231 = vrot.lane.b32.xlu0 %v8622, 96
  %v9232 = vpop.permute.xlu0 %9231
  %9233 = vrot.lane.b32.xlu0 %v8632, 96
  %v9234 = vpop.permute.xlu0 %9233
  %9235 = vrot.lane.b32.xlu0 %v8642, 96
  %v9236 = vpop.permute.xlu0 %9235
  %9237 = vrot.lane.b32.xlu0 %v8652, 96
  %v9238 = vpop.permute.xlu0 %9237
  %9239 = vrot.lane.b32.xlu0 %v8662, 96
  %v9240 = vpop.permute.xlu0 %9239
  %9241 = vrot.lane.b32.xlu0 %v8672, 96
  %v9242 = vpop.permute.xlu0 %9241
  %9243 = vrot.lane.b32.xlu0 %v8682, 96
  %v9244 = vpop.permute.xlu0 %9243
  %9245 = vrot.lane.b32.xlu0 %v8692, 96
  %v9246 = vpop.permute.xlu0 %9245
  %9247 = vrot.lane.b32.xlu0 %v8702, 96
  %v9248 = vpop.permute.xlu0 %9247
  %9249 = vrot.lane.b32.xlu0 %v8712, 96
  %v9250 = vpop.permute.xlu0 %9249
  %9251 = vrot.lane.b32.xlu0 %v8722, 96
  %v9252 = vpop.permute.xlu0 %9251
  %9253 = vrot.lane.b32.xlu0 %v8732, 96
  %v9254 = vpop.permute.xlu0 %9253
  %9255 = vrot.lane.b32.xlu0 %v8742, 96
  %v9256 = vpop.permute.xlu0 %9255
  %9257 = vrot.lane.b32.xlu0 %v8752, 96
  %v9258 = vpop.permute.xlu0 %9257
  %9259 = vrot.lane.b32.xlu0 %v8762, 96
  %v9260 = vpop.permute.xlu0 %9259
  %9261 = vrot.lane.b32.xlu0 %v8772, 96
  %v9262 = vpop.permute.xlu0 %9261
  %9263 = vrot.lane.b32.xlu0 %v8782, 96
  %v9264 = vpop.permute.xlu0 %9263
  %9265 = vrot.lane.b32.xlu0 %v8792, 96
  %v9266 = vpop.permute.xlu0 %9265
  %9267 = vrot.lane.b32.xlu0 %v8802, 96
  %v9268 = vpop.permute.xlu0 %9267
  %9269 = vrot.lane.b32.xlu0 %v8812, 96
  %v9270 = vpop.permute.xlu0 %9269
  %9271 = vrot.lane.b32.xlu0 %v8822, 96
  %v9272 = vpop.permute.xlu0 %9271
  %9273 = vrot.lane.b32.xlu0 %v8832, 96
  %v9274 = vpop.permute.xlu0 %9273
  %9275 = vrot.lane.b32.xlu0 %v8842, 96
  %v9276 = vpop.permute.xlu0 %9275
  %9277 = vrot.lane.b32.xlu0 %v8852, 96
  %v9278 = vpop.permute.xlu0 %9277
  %9279 = vrot.lane.b32.xlu0 %v8862, 96
  %v9280 = vpop.permute.xlu0 %9279
  %9281 = vrot.lane.b32.xlu0 %v8872, 96
  %v9282 = vpop.permute.xlu0 %9281
  %9283 = vrot.lane.b32.xlu0 %v8882, 96
  %v9284 = vpop.permute.xlu0 %9283
  %9285 = vrot.lane.b32.xlu0 %v8892, 96
  %v9286 = vpop.permute.xlu0 %9285
  %9287 = vrot.lane.b32.xlu0 %v8902, 96
  %v9288 = vpop.permute.xlu0 %9287
  %9289 = vrot.lane.b32.xlu0 %v8912, 96
  %v9290 = vpop.permute.xlu0 %9289
  %9291 = vrot.lane.b32.xlu0 %v8922, 96
  %v9292 = vpop.permute.xlu0 %9291
  %9293 = vrot.lane.b32.xlu0 %v8932, 96
  %v9294 = vpop.permute.xlu0 %9293
  %9295 = vrot.lane.b32.xlu0 %v8942, 96
  %v9296 = vpop.permute.xlu0 %9295
  %9297 = vrot.lane.b32.xlu0 %v8952, 96
  %v9298 = vpop.permute.xlu0 %9297
  %9299 = vrot.lane.b32.xlu0 %v8962, 96
  %v9300 = vpop.permute.xlu0 %9299
  %9301 = vrot.lane.b32.xlu0 %v8972, 96
  %v9302 = vpop.permute.xlu0 %9301
  %9303 = vrot.lane.b32.xlu0 %v8982, 96
  %v9304 = vpop.permute.xlu0 %9303
  %9305 = vrot.lane.b32.xlu0 %v8992, 96
  %v9306 = vpop.permute.xlu0 %9305
  %9307 = vrot.lane.b32.xlu0 %v9002, 96
  %v9308 = vpop.permute.xlu0 %9307
  %9309 = vrot.lane.b32.xlu0 %v9012, 96
  %v9310 = vpop.permute.xlu0 %9309
  %9311 = vrot.lane.b32.xlu0 %v9022, 96
  %v9312 = vpop.permute.xlu0 %9311
  %9313 = vrot.lane.b32.xlu0 %v9032, 96
  %v9314 = vpop.permute.xlu0 %9313
  %9315 = vrot.lane.b32.xlu0 %v9042, 96
  %v9316 = vpop.permute.xlu0 %9315
  %9317 = vrot.lane.b32.xlu0 %v9052, 96
  %v9318 = vpop.permute.xlu0 %9317
  %9319 = vrot.lane.b32.xlu0 %v9062, 96
  %v9320 = vpop.permute.xlu0 %9319
  %9321 = vrot.lane.b32.xlu0 %v9072, 96
  %v9322 = vpop.permute.xlu0 %9321
  %9323 = vrot.lane.b32.xlu0 %v9082, 96
  %v9324 = vpop.permute.xlu0 %9323
  %9325 = vrot.lane.b32.xlu0 %v9092, 96
  %v9326 = vpop.permute.xlu0 %9325
  %9327 = vrot.lane.b32.xlu0 %v9102, 96
  %v9328 = vpop.permute.xlu0 %9327
  %9329 = vrot.lane.b32.xlu0 %v9112, 96
  %v9330 = vpop.permute.xlu0 %9329
  %9331 = vrot.lane.b32.xlu0 %v9122, 96
  %v9332 = vpop.permute.xlu0 %9331
  %9333 = vrot.lane.b32.xlu0 %v9132, 96
  %v9334 = vpop.permute.xlu0 %9333
  %9335 = vrot.lane.b32.xlu0 %v9142, 96
  %v9336 = vpop.permute.xlu0 %9335
  %9337 = vrot.lane.b32.xlu0 %v9152, 96
  %v9338 = vpop.permute.xlu0 %9337
  %9339 = vrot.lane.b32.xlu0 %v9162, 96
  %v9340 = vpop.permute.xlu0 %9339
  %9341 = vrot.lane.b32.xlu0 %v9172, 96
  %v9342 = vpop.permute.xlu0 %9341
  %9343 = vrot.lane.b32.xlu0 %v9182, 96
  %v9344 = vpop.permute.xlu0 %9343
  %vm9426 = vcmask 913152
  %9427 = vst.msk [vmem:[#allocation3] sm:$0xf] %vm9426, %v9184
  %9428 = vst.msk [vmem:[#allocation3 + $0x8] sm:$0xf] %vm9426, %v9186
  %9429 = vst.msk [vmem:[#allocation3 + $0x10] sm:$0xf] %vm9426, %v9188
  %9430 = vst.msk [vmem:[#allocation3 + $0x18] sm:$0xf] %vm9426, %v9190
  %9431 = vst.msk [vmem:[#allocation3 + $0x20] sm:$0xf] %vm9426, %v9192
  %9432 = vst.msk [vmem:[#allocation3 + $0x28] sm:$0xf] %vm9426, %v9194
  %9433 = vst.msk [vmem:[#allocation3 + $0x30] sm:$0xf] %vm9426, %v9196
  %9434 = vst.msk [vmem:[#allocation3 + $0x38] sm:$0xf] %vm9426, %v9198
  %9435 = vst.msk [vmem:[#allocation3 + $0x40] sm:$0xf] %vm9426, %v9200
  %9436 = vst.msk [vmem:[#allocation3 + $0x48] sm:$0xf] %vm9426, %v9202
  %9437 = vst.msk [vmem:[#allocation3 + $0x50] sm:$0xf] %vm9426, %v9204
  %9438 = vst.msk [vmem:[#allocation3 + $0x58] sm:$0xf] %vm9426, %v9206
  %9439 = vst.msk [vmem:[#allocation3 + $0x60] sm:$0xf] %vm9426, %v9208
  %9440 = vst.msk [vmem:[#allocation3 + $0x68] sm:$0xf] %vm9426, %v9210
  %9441 = vst.msk [vmem:[#allocation3 + $0x70] sm:$0xf] %vm9426, %v9212
  %9442 = vst.msk [vmem:[#allocation3 + $0x78] sm:$0xf] %vm9426, %v9214
  %9443 = vst.msk [vmem:[#allocation3 + $0x80] sm:$0xf] %vm9426, %v9216
  %9444 = vst.msk [vmem:[#allocation3 + $0x88] sm:$0xf] %vm9426, %v9218
  %9445 = vst.msk [vmem:[#allocation3 + $0x90] sm:$0xf] %vm9426, %v9220
  %9446 = vst.msk [vmem:[#allocation3 + $0x98] sm:$0xf] %vm9426, %v9222
  %9447 = vst.msk [vmem:[#allocation3 + $0xa0] sm:$0xf] %vm9426, %v9224
  %9448 = vst.msk [vmem:[#allocation3 + $0xa8] sm:$0xf] %vm9426, %v9226
  %9449 = vst.msk [vmem:[#allocation3 + $0xb0] sm:$0xf] %vm9426, %v9228
  %9450 = vst.msk [vmem:[#allocation3 + $0xb8] sm:$0xf] %vm9426, %v9230
  %9451 = vst.msk [vmem:[#allocation3 + $0xc0] sm:$0xf] %vm9426, %v9232
  %9452 = vst.msk [vmem:[#allocation3 + $0xc8] sm:$0xf] %vm9426, %v9234
  %9453 = vst.msk [vmem:[#allocation3 + $0xd0] sm:$0xf] %vm9426, %v9236
  %9454 = vst.msk [vmem:[#allocation3 + $0xd8] sm:$0xf] %vm9426, %v9238
  %9455 = vst.msk [vmem:[#allocation3 + $0xe0] sm:$0xf] %vm9426, %v9240
  %9456 = vst.msk [vmem:[#allocation3 + $0xe8] sm:$0xf] %vm9426, %v9242
  %9457 = vst.msk [vmem:[#allocation3 + $0xf0] sm:$0xf] %vm9426, %v9244
  %9458 = vst.msk [vmem:[#allocation3 + $0xf8] sm:$0xf] %vm9426, %v9246
  %9459 = vst.msk [vmem:[#allocation3 + $0x100] sm:$0xf] %vm9426, %v9248
  %9460 = vst.msk [vmem:[#allocation3 + $0x108] sm:$0xf] %vm9426, %v9250
  %9461 = vst.msk [vmem:[#allocation3 + $0x110] sm:$0xf] %vm9426, %v9252
  %9462 = vst.msk [vmem:[#allocation3 + $0x118] sm:$0xf] %vm9426, %v9254
  %9463 = vst.msk [vmem:[#allocation3 + $0x120] sm:$0xf] %vm9426, %v9256
  %9464 = vst.msk [vmem:[#allocation3 + $0x128] sm:$0xf] %vm9426, %v9258
  %9465 = vst.msk [vmem:[#allocation3 + $0x130] sm:$0xf] %vm9426, %v9260
  %9466 = vst.msk [vmem:[#allocation3 + $0x138] sm:$0xf] %vm9426, %v9262
  %9467 = vst.msk [vmem:[#allocation3 + $0x140] sm:$0xf] %vm9426, %v9264
  %9468 = vst.msk [vmem:[#allocation3 + $0x148] sm:$0xf] %vm9426, %v9266
  %9469 = vst.msk [vmem:[#allocation3 + $0x150] sm:$0xf] %vm9426, %v9268
  %9470 = vst.msk [vmem:[#allocation3 + $0x158] sm:$0xf] %vm9426, %v9270
  %9471 = vst.msk [vmem:[#allocation3 + $0x160] sm:$0xf] %vm9426, %v9272
  %9472 = vst.msk [vmem:[#allocation3 + $0x168] sm:$0xf] %vm9426, %v9274
  %9473 = vst.msk [vmem:[#allocation3 + $0x170] sm:$0xf] %vm9426, %v9276
  %9474 = vst.msk [vmem:[#allocation3 + $0x178] sm:$0xf] %vm9426, %v9278
  %9475 = vst.msk [vmem:[#allocation3 + $0x180] sm:$0xf] %vm9426, %v9280
  %9476 = vst.msk [vmem:[#allocation3 + $0x188] sm:$0xf] %vm9426, %v9282
  %9477 = vst.msk [vmem:[#allocation3 + $0x190] sm:$0xf] %vm9426, %v9284
  %9478 = vst.msk [vmem:[#allocation3 + $0x198] sm:$0xf] %vm9426, %v9286
  %9479 = vst.msk [vmem:[#allocation3 + $0x1a0] sm:$0xf] %vm9426, %v9288
  %9480 = vst.msk [vmem:[#allocation3 + $0x1a8] sm:$0xf] %vm9426, %v9290
  %9481 = vst.msk [vmem:[#allocation3 + $0x1b0] sm:$0xf] %vm9426, %v9292
  %9482 = vst.msk [vmem:[#allocation3 + $0x1b8] sm:$0xf] %vm9426, %v9294
  %9483 = vst.msk [vmem:[#allocation3 + $0x1c0] sm:$0xf] %vm9426, %v9296
  %9484 = vst.msk [vmem:[#allocation3 + $0x1c8] sm:$0xf] %vm9426, %v9298
  %9485 = vst.msk [vmem:[#allocation3 + $0x1d0] sm:$0xf] %vm9426, %v9300
  %9486 = vst.msk [vmem:[#allocation3 + $0x1d8] sm:$0xf] %vm9426, %v9302
  %9487 = vst.msk [vmem:[#allocation3 + $0x1e0] sm:$0xf] %vm9426, %v9304
  %9488 = vst.msk [vmem:[#allocation3 + $0x1e8] sm:$0xf] %vm9426, %v9306
  %9489 = vst.msk [vmem:[#allocation3 + $0x1f0] sm:$0xf] %vm9426, %v9308
  %9490 = vst.msk [vmem:[#allocation3 + $0x1f8] sm:$0xf] %vm9426, %v9310
  %9491 = vst.msk [vmem:[#allocation3 + $0x200] sm:$0xf] %vm9426, %v9312
  %9492 = vst.msk [vmem:[#allocation3 + $0x208] sm:$0xf] %vm9426, %v9314
  %9493 = vst.msk [vmem:[#allocation3 + $0x210] sm:$0xf] %vm9426, %v9316
  %9494 = vst.msk [vmem:[#allocation3 + $0x218] sm:$0xf] %vm9426, %v9318
  %9495 = vst.msk [vmem:[#allocation3 + $0x220] sm:$0xf] %vm9426, %v9320
  %9496 = vst.msk [vmem:[#allocation3 + $0x228] sm:$0xf] %vm9426, %v9322
  %9497 = vst.msk [vmem:[#allocation3 + $0x230] sm:$0xf] %vm9426, %v9324
  %9498 = vst.msk [vmem:[#allocation3 + $0x238] sm:$0xf] %vm9426, %v9326
  %9499 = vst.msk [vmem:[#allocation3 + $0x240] sm:$0xf] %vm9426, %v9328
  %9500 = vst.msk [vmem:[#allocation3 + $0x248] sm:$0xf] %vm9426, %v9330
  %9501 = vst.msk [vmem:[#allocation3 + $0x250] sm:$0xf] %vm9426, %v9332
  %9502 = vst.msk [vmem:[#allocation3 + $0x258] sm:$0xf] %vm9426, %v9334
  %9503 = vst.msk [vmem:[#allocation3 + $0x260] sm:$0xf] %vm9426, %v9336
  %9504 = vst.msk [vmem:[#allocation3 + $0x268] sm:$0xf] %vm9426, %v9338
  %9505 = vst.msk [vmem:[#allocation3 + $0x270] sm:$0xf] %vm9426, %v9340
  %9506 = vst.msk [vmem:[#allocation3 + $0x278] sm:$0xf] %vm9426, %v9342
  %9507 = vst.msk [vmem:[#allocation3 + $0x280] sm:$0xf] %vm9426, %v9344
  %v9508 = vld [vmem:[#allocation2 + $0x14] sm:$0xe]
  %v9509 = vld [vmem:[#allocation2 + $0x18] sm:$0xf]
  %v9510 = vld [vmem:[#allocation2 + $0x1c] sm:$0xf]
  %v9511 = vld [vmem:[#allocation2 + $0x20] sm:$0xf]
  %v9512 = vld [vmem:[#allocation2 + $0x24] sm:$0xf]
  %v9513 = vld [vmem:[#allocation2 + $0x28] sm:$0xf]
  %v9514 = vld [vmem:[#allocation2 + $0x2c] sm:$0xf]
  %v9515 = vld [vmem:[#allocation2 + $0x30] sm:$0xf]
  %v9516 = vld [vmem:[#allocation2 + $0x34] sm:$0xf]
  %v9517 = vld [vmem:[#allocation2 + $0x38] sm:$0xf]
  %v9518 = vld [vmem:[#allocation2 + $0x3c] sm:$0xf]
  %v9519 = vld [vmem:[#allocation2 + $0x40] sm:$0xf]
  %v9520 = vld [vmem:[#allocation2 + $0x44] sm:$0xf]
  %v9521 = vld [vmem:[#allocation2 + $0x48] sm:$0xf]
  %v9522 = vld [vmem:[#allocation2 + $0x4c] sm:$0xf]
  %v9523 = vld [vmem:[#allocation2 + $0x50] sm:$0xf]
  %v9524 = vld [vmem:[#allocation2 + $0x54] sm:$0xf]
  %v9525 = vld [vmem:[#allocation2 + $0x58] sm:$0xf]
  %v9526 = vld [vmem:[#allocation2 + $0x5c] sm:$0xf]
  %v9527 = vld [vmem:[#allocation2 + $0x60] sm:$0xf]
  %v9528 = vld [vmem:[#allocation2 + $0x64] sm:$0xf]
  %v9529 = vld [vmem:[#allocation2 + $0x68] sm:$0xf]
  %v9530 = vld [vmem:[#allocation2 + $0x6c] sm:$0xf]
  %v9531 = vld [vmem:[#allocation2 + $0x70] sm:$0xf]
  %v9532 = vld [vmem:[#allocation2 + $0x74] sm:$0xf]
  %v9533 = vld [vmem:[#allocation2 + $0x78] sm:$0xf]
  %v9534 = vld [vmem:[#allocation2 + $0x7c] sm:$0xf]
  %v9535 = vld [vmem:[#allocation2 + $0x80] sm:$0xf]
  %v9536 = vld [vmem:[#allocation2 + $0x84] sm:$0xf]
  %v9537 = vld [vmem:[#allocation2 + $0x88] sm:$0xf]
  %v9538 = vld [vmem:[#allocation2 + $0x8c] sm:$0xf]
  %v9539 = vld [vmem:[#allocation2 + $0x90] sm:$0xf]
  %v9540 = vld [vmem:[#allocation2 + $0x94] sm:$0xf]
  %v9541 = vld [vmem:[#allocation2 + $0x98] sm:$0xf]
  %v9542 = vld [vmem:[#allocation2 + $0x9c] sm:$0xf]
  %v9543 = vld [vmem:[#allocation2 + $0xa0] sm:$0xf]
  %v9544 = vld [vmem:[#allocation2 + $0xa4] sm:$0xf]
  %v9545 = vld [vmem:[#allocation2 + $0xa8] sm:$0xf]
  %v9546 = vld [vmem:[#allocation2 + $0xac] sm:$0xf]
  %v9547 = vld [vmem:[#allocation2 + $0xb0] sm:$0xf]
  %v9548 = vld [vmem:[#allocation2 + $0xb4] sm:$0xf]
  %v9549 = vld [vmem:[#allocation2 + $0xb8] sm:$0xf]
  %v9550 = vld [vmem:[#allocation2 + $0xbc] sm:$0xf]
  %v9551 = vld [vmem:[#allocation2 + $0xc0] sm:$0xf]
  %v9552 = vld [vmem:[#allocation2 + $0xc4] sm:$0xf]
  %v9553 = vld [vmem:[#allocation2 + $0xc8] sm:$0xf]
  %v9554 = vld [vmem:[#allocation2 + $0xcc] sm:$0xf]
  %v9555 = vld [vmem:[#allocation2 + $0xd0] sm:$0xf]
  %v9556 = vld [vmem:[#allocation2 + $0xd4] sm:$0xf]
  %v9557 = vld [vmem:[#allocation2 + $0xd8] sm:$0xf]
  %v9558 = vld [vmem:[#allocation2 + $0xdc] sm:$0xf]
  %v9559 = vld [vmem:[#allocation2 + $0xe0] sm:$0xf]
  %v9560 = vld [vmem:[#allocation2 + $0xe4] sm:$0xf]
  %v9561 = vld [vmem:[#allocation2 + $0xe8] sm:$0xf]
  %v9562 = vld [vmem:[#allocation2 + $0xec] sm:$0xf]
  %v9563 = vld [vmem:[#allocation2 + $0xf0] sm:$0xf]
  %v9564 = vld [vmem:[#allocation2 + $0xf4] sm:$0xf]
  %v9565 = vld [vmem:[#allocation2 + $0xf8] sm:$0xf]
  %v9566 = vld [vmem:[#allocation2 + $0xfc] sm:$0xf]
  %v9567 = vld [vmem:[#allocation2 + $0x100] sm:$0xf]
  %v9568 = vld [vmem:[#allocation2 + $0x104] sm:$0xf]
  %v9569 = vld [vmem:[#allocation2 + $0x108] sm:$0xf]
  %v9570 = vld [vmem:[#allocation2 + $0x10c] sm:$0xf]
  %v9571 = vld [vmem:[#allocation2 + $0x110] sm:$0xf]
  %v9572 = vld [vmem:[#allocation2 + $0x114] sm:$0xf]
  %v9573 = vld [vmem:[#allocation2 + $0x118] sm:$0xf]
  %v9574 = vld [vmem:[#allocation2 + $0x11c] sm:$0xf]
  %v9575 = vld [vmem:[#allocation2 + $0x120] sm:$0xf]
  %v9576 = vld [vmem:[#allocation2 + $0x124] sm:$0xf]
  %v9577 = vld [vmem:[#allocation2 + $0x128] sm:$0xf]
  %v9578 = vld [vmem:[#allocation2 + $0x12c] sm:$0xf]
  %v9579 = vld [vmem:[#allocation2 + $0x130] sm:$0xf]
  %v9580 = vld [vmem:[#allocation2 + $0x134] sm:$0xf]
  %v9581 = vld [vmem:[#allocation2 + $0x138] sm:$0xf]
  %v9582 = vld [vmem:[#allocation2 + $0x13c] sm:$0xf]
  %v9583 = vld [vmem:[#allocation2 + $0x140] sm:$0xf]
  %v9584 = vld [vmem:[#allocation2 + $0x144] sm:$0xf]
  %v9585 = vld [vmem:[#allocation2 + $0x148] sm:$0xf]
  %v9586 = vld [vmem:[#allocation2 + $0x14c] sm:$0xf]
  %v9587 = vld [vmem:[#allocation2 + $0x150] sm:$0xf]
  %v9588 = vld [vmem:[#allocation2 + $0x154] sm:$0xf]
  %v9589 = vld [vmem:[#allocation2 + $0x158] sm:$0x1]
  %vm9672 = vcmask 1042432
  %vm9673 = vcmask 1046532
  %vm9674 = vmor %vm9672, %vm9673
  %v9675 = vrot.slane %v9508, 5
  %v9676 = vrot.slane %v9675, 4
  %v9677 = vrot.slane %v9509, 5
  %v9678 = vsel %vm9674, %v9676, %v9677
  %v9679 = vrot.slane %v9677, 4
  %v9680 = vrot.slane %v9510, 5
  %v9681 = vsel %vm9674, %v9679, %v9680
  %v9682 = vrot.slane %v9680, 4
  %v9683 = vrot.slane %v9511, 5
  %v9684 = vsel %vm9674, %v9682, %v9683
  %v9685 = vrot.slane %v9683, 4
  %v9686 = vrot.slane %v9512, 5
  %v9687 = vsel %vm9674, %v9685, %v9686
  %v9688 = vrot.slane %v9686, 4
  %v9689 = vrot.slane %v9513, 5
  %v9690 = vsel %vm9674, %v9688, %v9689
  %v9691 = vrot.slane %v9689, 4
  %v9692 = vrot.slane %v9514, 5
  %v9693 = vsel %vm9674, %v9691, %v9692
  %v9694 = vrot.slane %v9692, 4
  %v9695 = vrot.slane %v9515, 5
  %v9696 = vsel %vm9674, %v9694, %v9695
  %v9697 = vrot.slane %v9695, 4
  %v9698 = vrot.slane %v9516, 5
  %v9699 = vsel %vm9674, %v9697, %v9698
  %v9700 = vrot.slane %v9698, 4
  %v9701 = vrot.slane %v9517, 5
  %v9702 = vsel %vm9674, %v9700, %v9701
  %v9703 = vrot.slane %v9701, 4
  %v9704 = vrot.slane %v9518, 5
  %v9705 = vsel %vm9674, %v9703, %v9704
  %v9706 = vrot.slane %v9704, 4
  %v9707 = vrot.slane %v9519, 5
  %v9708 = vsel %vm9674, %v9706, %v9707
  %v9709 = vrot.slane %v9707, 4
  %v9710 = vrot.slane %v9520, 5
  %v9711 = vsel %vm9674, %v9709, %v9710
  %v9712 = vrot.slane %v9710, 4
  %v9713 = vrot.slane %v9521, 5
  %v9714 = vsel %vm9674, %v9712, %v9713
  %v9715 = vrot.slane %v9713, 4
  %v9716 = vrot.slane %v9522, 5
  %v9717 = vsel %vm9674, %v9715, %v9716
  %v9718 = vrot.slane %v9716, 4
  %v9719 = vrot.slane %v9523, 5
  %v9720 = vsel %vm9674, %v9718, %v9719
  %v9721 = vrot.slane %v9719, 4
  %v9722 = vrot.slane %v9524, 5
  %v9723 = vsel %vm9674, %v9721, %v9722
  %v9724 = vrot.slane %v9722, 4
  %v9725 = vrot.slane %v9525, 5
  %v9726 = vsel %vm9674, %v9724, %v9725
  %v9727 = vrot.slane %v9725, 4
  %v9728 = vrot.slane %v9526, 5
  %v9729 = vsel %vm9674, %v9727, %v9728
  %v9730 = vrot.slane %v9728, 4
  %v9731 = vrot.slane %v9527, 5
  %v9732 = vsel %vm9674, %v9730, %v9731
  %v9733 = vrot.slane %v9731, 4
  %v9734 = vrot.slane %v9528, 5
  %v9735 = vsel %vm9674, %v9733, %v9734
  %v9736 = vrot.slane %v9734, 4
  %v9737 = vrot.slane %v9529, 5
  %v9738 = vsel %vm9674, %v9736, %v9737
  %v9739 = vrot.slane %v9737, 4
  %v9740 = vrot.slane %v9530, 5
  %v9741 = vsel %vm9674, %v9739, %v9740
  %v9742 = vrot.slane %v9740, 4
  %v9743 = vrot.slane %v9531, 5
  %v9744 = vsel %vm9674, %v9742, %v9743
  %v9745 = vrot.slane %v9743, 4
  %v9746 = vrot.slane %v9532, 5
  %v9747 = vsel %vm9674, %v9745, %v9746
  %v9748 = vrot.slane %v9746, 4
  %v9749 = vrot.slane %v9533, 5
  %v9750 = vsel %vm9674, %v9748, %v9749
  %v9751 = vrot.slane %v9749, 4
  %v9752 = vrot.slane %v9534, 5
  %v9753 = vsel %vm9674, %v9751, %v9752
  %v9754 = vrot.slane %v9752, 4
  %v9755 = vrot.slane %v9535, 5
  %v9756 = vsel %vm9674, %v9754, %v9755
  %v9757 = vrot.slane %v9755, 4
  %v9758 = vrot.slane %v9536, 5
  %v9759 = vsel %vm9674, %v9757, %v9758
  %v9760 = vrot.slane %v9758, 4
  %v9761 = vrot.slane %v9537, 5
  %v9762 = vsel %vm9674, %v9760, %v9761
  %v9763 = vrot.slane %v9761, 4
  %v9764 = vrot.slane %v9538, 5
  %v9765 = vsel %vm9674, %v9763, %v9764
  %v9766 = vrot.slane %v9764, 4
  %v9767 = vrot.slane %v9539, 5
  %v9768 = vsel %vm9674, %v9766, %v9767
  %v9769 = vrot.slane %v9767, 4
  %v9770 = vrot.slane %v9540, 5
  %v9771 = vsel %vm9674, %v9769, %v9770
  %v9772 = vrot.slane %v9770, 4
  %v9773 = vrot.slane %v9541, 5
  %v9774 = vsel %vm9674, %v9772, %v9773
  %v9775 = vrot.slane %v9773, 4
  %v9776 = vrot.slane %v9542, 5
  %v9777 = vsel %vm9674, %v9775, %v9776
  %v9778 = vrot.slane %v9776, 4
  %v9779 = vrot.slane %v9543, 5
  %v9780 = vsel %vm9674, %v9778, %v9779
  %v9781 = vrot.slane %v9779, 4
  %v9782 = vrot.slane %v9544, 5
  %v9783 = vsel %vm9674, %v9781, %v9782
  %v9784 = vrot.slane %v9782, 4
  %v9785 = vrot.slane %v9545, 5
  %v9786 = vsel %vm9674, %v9784, %v9785
  %v9787 = vrot.slane %v9785, 4
  %v9788 = vrot.slane %v9546, 5
  %v9789 = vsel %vm9674, %v9787, %v9788
  %v9790 = vrot.slane %v9788, 4
  %v9791 = vrot.slane %v9547, 5
  %v9792 = vsel %vm9674, %v9790, %v9791
  %v9793 = vrot.slane %v9791, 4
  %v9794 = vrot.slane %v9548, 5
  %v9795 = vsel %vm9674, %v9793, %v9794
  %v9796 = vrot.slane %v9794, 4
  %v9797 = vrot.slane %v9549, 5
  %v9798 = vsel %vm9674, %v9796, %v9797
  %v9799 = vrot.slane %v9797, 4
  %v9800 = vrot.slane %v9550, 5
  %v9801 = vsel %vm9674, %v9799, %v9800
  %v9802 = vrot.slane %v9800, 4
  %v9803 = vrot.slane %v9551, 5
  %v9804 = vsel %vm9674, %v9802, %v9803
  %v9805 = vrot.slane %v9803, 4
  %v9806 = vrot.slane %v9552, 5
  %v9807 = vsel %vm9674, %v9805, %v9806
  %v9808 = vrot.slane %v9806, 4
  %v9809 = vrot.slane %v9553, 5
  %v9810 = vsel %vm9674, %v9808, %v9809
  %v9811 = vrot.slane %v9809, 4
  %v9812 = vrot.slane %v9554, 5
  %v9813 = vsel %vm9674, %v9811, %v9812
  %v9814 = vrot.slane %v9812, 4
  %v9815 = vrot.slane %v9555, 5
  %v9816 = vsel %vm9674, %v9814, %v9815
  %v9817 = vrot.slane %v9815, 4
  %v9818 = vrot.slane %v9556, 5
  %v9819 = vsel %vm9674, %v9817, %v9818
  %v9820 = vrot.slane %v9818, 4
  %v9821 = vrot.slane %v9557, 5
  %v9822 = vsel %vm9674, %v9820, %v9821
  %v9823 = vrot.slane %v9821, 4
  %v9824 = vrot.slane %v9558, 5
  %v9825 = vsel %vm9674, %v9823, %v9824
  %v9826 = vrot.slane %v9824, 4
  %v9827 = vrot.slane %v9559, 5
  %v9828 = vsel %vm9674, %v9826, %v9827
  %v9829 = vrot.slane %v9827, 4
  %v9830 = vrot.slane %v9560, 5
  %v9831 = vsel %vm9674, %v9829, %v9830
  %v9832 = vrot.slane %v9830, 4
  %v9833 = vrot.slane %v9561, 5
  %v9834 = vsel %vm9674, %v9832, %v9833
  %v9835 = vrot.slane %v9833, 4
  %v9836 = vrot.slane %v9562, 5
  %v9837 = vsel %vm9674, %v9835, %v9836
  %v9838 = vrot.slane %v9836, 4
  %v9839 = vrot.slane %v9563, 5
  %v9840 = vsel %vm9674, %v9838, %v9839
  %v9841 = vrot.slane %v9839, 4
  %v9842 = vrot.slane %v9564, 5
  %v9843 = vsel %vm9674, %v9841, %v9842
  %v9844 = vrot.slane %v9842, 4
  %v9845 = vrot.slane %v9565, 5
  %v9846 = vsel %vm9674, %v9844, %v9845
  %v9847 = vrot.slane %v9845, 4
  %v9848 = vrot.slane %v9566, 5
  %v9849 = vsel %vm9674, %v9847, %v9848
  %v9850 = vrot.slane %v9848, 4
  %v9851 = vrot.slane %v9567, 5
  %v9852 = vsel %vm9674, %v9850, %v9851
  %v9853 = vrot.slane %v9851, 4
  %v9854 = vrot.slane %v9568, 5
  %v9855 = vsel %vm9674, %v9853, %v9854
  %v9856 = vrot.slane %v9854, 4
  %v9857 = vrot.slane %v9569, 5
  %v9858 = vsel %vm9674, %v9856, %v9857
  %v9859 = vrot.slane %v9857, 4
  %v9860 = vrot.slane %v9570, 5
  %v9861 = vsel %vm9674, %v9859, %v9860
  %v9862 = vrot.slane %v9860, 4
  %v9863 = vrot.slane %v9571, 5
  %v9864 = vsel %vm9674, %v9862, %v9863
  %v9865 = vrot.slane %v9863, 4
  %v9866 = vrot.slane %v9572, 5
  %v9867 = vsel %vm9674, %v9865, %v9866
  %v9868 = vrot.slane %v9866, 4
  %v9869 = vrot.slane %v9573, 5
  %v9870 = vsel %vm9674, %v9868, %v9869
  %v9871 = vrot.slane %v9869, 4
  %v9872 = vrot.slane %v9574, 5
  %v9873 = vsel %vm9674, %v9871, %v9872
  %v9874 = vrot.slane %v9872, 4
  %v9875 = vrot.slane %v9575, 5
  %v9876 = vsel %vm9674, %v9874, %v9875
  %v9877 = vrot.slane %v9875, 4
  %v9878 = vrot.slane %v9576, 5
  %v9879 = vsel %vm9674, %v9877, %v9878
  %v9880 = vrot.slane %v9878, 4
  %v9881 = vrot.slane %v9577, 5
  %v9882 = vsel %vm9674, %v9880, %v9881
  %v9883 = vrot.slane %v9881, 4
  %v9884 = vrot.slane %v9578, 5
  %v9885 = vsel %vm9674, %v9883, %v9884
  %v9886 = vrot.slane %v9884, 4
  %v9887 = vrot.slane %v9579, 5
  %v9888 = vsel %vm9674, %v9886, %v9887
  %v9889 = vrot.slane %v9887, 4
  %v9890 = vrot.slane %v9580, 5
  %v9891 = vsel %vm9674, %v9889, %v9890
  %v9892 = vrot.slane %v9890, 4
  %v9893 = vrot.slane %v9581, 5
  %v9894 = vsel %vm9674, %v9892, %v9893
  %v9895 = vrot.slane %v9893, 4
  %v9896 = vrot.slane %v9582, 5
  %v9897 = vsel %vm9674, %v9895, %v9896
  %v9898 = vrot.slane %v9896, 4
  %v9899 = vrot.slane %v9583, 5
  %v9900 = vsel %vm9674, %v9898, %v9899
  %v9901 = vrot.slane %v9899, 4
  %v9902 = vrot.slane %v9584, 5
  %v9903 = vsel %vm9674, %v9901, %v9902
  %v9904 = vrot.slane %v9902, 4
  %v9905 = vrot.slane %v9585, 5
  %v9906 = vsel %vm9674, %v9904, %v9905
  %v9907 = vrot.slane %v9905, 4
  %v9908 = vrot.slane %v9586, 5
  %v9909 = vsel %vm9674, %v9907, %v9908
  %v9910 = vrot.slane %v9908, 4
  %v9911 = vrot.slane %v9587, 5
  %v9912 = vsel %vm9674, %v9910, %v9911
  %v9913 = vrot.slane %v9911, 4
  %v9914 = vrot.slane %v9588, 5
  %v9915 = vsel %vm9674, %v9913, %v9914
  %v9916 = vrot.slane %v9914, 4
  %v9917 = vrot.slane %v9589, 5
  %v9918 = vsel %vm9674, %v9916, %v9917
  %9919 = vrot.lane.b32.xlu0 %v9678, 112
  %v9920 = vpop.permute.xlu0 %9919
  %9921 = vrot.lane.b32.xlu0 %v9681, 112
  %v9922 = vpop.permute.xlu0 %9921
  %9923 = vrot.lane.b32.xlu0 %v9684, 112
  %v9924 = vpop.permute.xlu0 %9923
  %9925 = vrot.lane.b32.xlu0 %v9687, 112
  %v9926 = vpop.permute.xlu0 %9925
  %9927 = vrot.lane.b32.xlu0 %v9690, 112
  %v9928 = vpop.permute.xlu0 %9927
  %9929 = vrot.lane.b32.xlu0 %v9693, 112
  %v9930 = vpop.permute.xlu0 %9929
  %9931 = vrot.lane.b32.xlu0 %v9696, 112
  %v9932 = vpop.permute.xlu0 %9931
  %9933 = vrot.lane.b32.xlu0 %v9699, 112
  %v9934 = vpop.permute.xlu0 %9933
  %9935 = vrot.lane.b32.xlu0 %v9702, 112
  %v9936 = vpop.permute.xlu0 %9935
  %9937 = vrot.lane.b32.xlu0 %v9705, 112
  %v9938 = vpop.permute.xlu0 %9937
  %9939 = vrot.lane.b32.xlu0 %v9708, 112
  %v9940 = vpop.permute.xlu0 %9939
  %9941 = vrot.lane.b32.xlu0 %v9711, 112
  %v9942 = vpop.permute.xlu0 %9941
  %9943 = vrot.lane.b32.xlu0 %v9714, 112
  %v9944 = vpop.permute.xlu0 %9943
  %9945 = vrot.lane.b32.xlu0 %v9717, 112
  %v9946 = vpop.permute.xlu0 %9945
  %9947 = vrot.lane.b32.xlu0 %v9720, 112
  %v9948 = vpop.permute.xlu0 %9947
  %9949 = vrot.lane.b32.xlu0 %v9723, 112
  %v9950 = vpop.permute.xlu0 %9949
  %9951 = vrot.lane.b32.xlu0 %v9726, 112
  %v9952 = vpop.permute.xlu0 %9951
  %9953 = vrot.lane.b32.xlu0 %v9729, 112
  %v9954 = vpop.permute.xlu0 %9953
  %9955 = vrot.lane.b32.xlu0 %v9732, 112
  %v9956 = vpop.permute.xlu0 %9955
  %9957 = vrot.lane.b32.xlu0 %v9735, 112
  %v9958 = vpop.permute.xlu0 %9957
  %9959 = vrot.lane.b32.xlu0 %v9738, 112
  %v9960 = vpop.permute.xlu0 %9959
  %9961 = vrot.lane.b32.xlu0 %v9741, 112
  %v9962 = vpop.permute.xlu0 %9961
  %9963 = vrot.lane.b32.xlu0 %v9744, 112
  %v9964 = vpop.permute.xlu0 %9963
  %9965 = vrot.lane.b32.xlu0 %v9747, 112
  %v9966 = vpop.permute.xlu0 %9965
  %9967 = vrot.lane.b32.xlu0 %v9750, 112
  %v9968 = vpop.permute.xlu0 %9967
  %9969 = vrot.lane.b32.xlu0 %v9753, 112
  %v9970 = vpop.permute.xlu0 %9969
  %9971 = vrot.lane.b32.xlu0 %v9756, 112
  %v9972 = vpop.permute.xlu0 %9971
  %9973 = vrot.lane.b32.xlu0 %v9759, 112
  %v9974 = vpop.permute.xlu0 %9973
  %9975 = vrot.lane.b32.xlu0 %v9762, 112
  %v9976 = vpop.permute.xlu0 %9975
  %9977 = vrot.lane.b32.xlu0 %v9765, 112
  %v9978 = vpop.permute.xlu0 %9977
  %9979 = vrot.lane.b32.xlu0 %v9768, 112
  %v9980 = vpop.permute.xlu0 %9979
  %9981 = vrot.lane.b32.xlu0 %v9771, 112
  %v9982 = vpop.permute.xlu0 %9981
  %9983 = vrot.lane.b32.xlu0 %v9774, 112
  %v9984 = vpop.permute.xlu0 %9983
  %9985 = vrot.lane.b32.xlu0 %v9777, 112
  %v9986 = vpop.permute.xlu0 %9985
  %9987 = vrot.lane.b32.xlu0 %v9780, 112
  %v9988 = vpop.permute.xlu0 %9987
  %9989 = vrot.lane.b32.xlu0 %v9783, 112
  %v9990 = vpop.permute.xlu0 %9989
  %9991 = vrot.lane.b32.xlu0 %v9786, 112
  %v9992 = vpop.permute.xlu0 %9991
  %9993 = vrot.lane.b32.xlu0 %v9789, 112
  %v9994 = vpop.permute.xlu0 %9993
  %9995 = vrot.lane.b32.xlu0 %v9792, 112
  %v9996 = vpop.permute.xlu0 %9995
  %9997 = vrot.lane.b32.xlu0 %v9795, 112
  %v9998 = vpop.permute.xlu0 %9997
  %9999 = vrot.lane.b32.xlu0 %v9798, 112
  %v10000 = vpop.permute.xlu0 %9999
  %10001 = vrot.lane.b32.xlu0 %v9801, 112
  %v10002 = vpop.permute.xlu0 %10001
  %10003 = vrot.lane.b32.xlu0 %v9804, 112
  %v10004 = vpop.permute.xlu0 %10003
  %10005 = vrot.lane.b32.xlu0 %v9807, 112
  %v10006 = vpop.permute.xlu0 %10005
  %10007 = vrot.lane.b32.xlu0 %v9810, 112
  %v10008 = vpop.permute.xlu0 %10007
  %10009 = vrot.lane.b32.xlu0 %v9813, 112
  %v10010 = vpop.permute.xlu0 %10009
  %10011 = vrot.lane.b32.xlu0 %v9816, 112
  %v10012 = vpop.permute.xlu0 %10011
  %10013 = vrot.lane.b32.xlu0 %v9819, 112
  %v10014 = vpop.permute.xlu0 %10013
  %10015 = vrot.lane.b32.xlu0 %v9822, 112
  %v10016 = vpop.permute.xlu0 %10015
  %10017 = vrot.lane.b32.xlu0 %v9825, 112
  %v10018 = vpop.permute.xlu0 %10017
  %10019 = vrot.lane.b32.xlu0 %v9828, 112
  %v10020 = vpop.permute.xlu0 %10019
  %10021 = vrot.lane.b32.xlu0 %v9831, 112
  %v10022 = vpop.permute.xlu0 %10021
  %10023 = vrot.lane.b32.xlu0 %v9834, 112
  %v10024 = vpop.permute.xlu0 %10023
  %10025 = vrot.lane.b32.xlu0 %v9837, 112
  %v10026 = vpop.permute.xlu0 %10025
  %10027 = vrot.lane.b32.xlu0 %v9840, 112
  %v10028 = vpop.permute.xlu0 %10027
  %10029 = vrot.lane.b32.xlu0 %v9843, 112
  %v10030 = vpop.permute.xlu0 %10029
  %10031 = vrot.lane.b32.xlu0 %v9846, 112
  %v10032 = vpop.permute.xlu0 %10031
  %10033 = vrot.lane.b32.xlu0 %v9849, 112
  %v10034 = vpop.permute.xlu0 %10033
  %10035 = vrot.lane.b32.xlu0 %v9852, 112
  %v10036 = vpop.permute.xlu0 %10035
  %10037 = vrot.lane.b32.xlu0 %v9855, 112
  %v10038 = vpop.permute.xlu0 %10037
  %10039 = vrot.lane.b32.xlu0 %v9858, 112
  %v10040 = vpop.permute.xlu0 %10039
  %10041 = vrot.lane.b32.xlu0 %v9861, 112
  %v10042 = vpop.permute.xlu0 %10041
  %10043 = vrot.lane.b32.xlu0 %v9864, 112
  %v10044 = vpop.permute.xlu0 %10043
  %10045 = vrot.lane.b32.xlu0 %v9867, 112
  %v10046 = vpop.permute.xlu0 %10045
  %10047 = vrot.lane.b32.xlu0 %v9870, 112
  %v10048 = vpop.permute.xlu0 %10047
  %10049 = vrot.lane.b32.xlu0 %v9873, 112
  %v10050 = vpop.permute.xlu0 %10049
  %10051 = vrot.lane.b32.xlu0 %v9876, 112
  %v10052 = vpop.permute.xlu0 %10051
  %10053 = vrot.lane.b32.xlu0 %v9879, 112
  %v10054 = vpop.permute.xlu0 %10053
  %10055 = vrot.lane.b32.xlu0 %v9882, 112
  %v10056 = vpop.permute.xlu0 %10055
  %10057 = vrot.lane.b32.xlu0 %v9885, 112
  %v10058 = vpop.permute.xlu0 %10057
  %10059 = vrot.lane.b32.xlu0 %v9888, 112
  %v10060 = vpop.permute.xlu0 %10059
  %10061 = vrot.lane.b32.xlu0 %v9891, 112
  %v10062 = vpop.permute.xlu0 %10061
  %10063 = vrot.lane.b32.xlu0 %v9894, 112
  %v10064 = vpop.permute.xlu0 %10063
  %10065 = vrot.lane.b32.xlu0 %v9897, 112
  %v10066 = vpop.permute.xlu0 %10065
  %10067 = vrot.lane.b32.xlu0 %v9900, 112
  %v10068 = vpop.permute.xlu0 %10067
  %10069 = vrot.lane.b32.xlu0 %v9903, 112
  %v10070 = vpop.permute.xlu0 %10069
  %10071 = vrot.lane.b32.xlu0 %v9906, 112
  %v10072 = vpop.permute.xlu0 %10071
  %10073 = vrot.lane.b32.xlu0 %v9909, 112
  %v10074 = vpop.permute.xlu0 %10073
  %10075 = vrot.lane.b32.xlu0 %v9912, 112
  %v10076 = vpop.permute.xlu0 %10075
  %10077 = vrot.lane.b32.xlu0 %v9915, 112
  %v10078 = vpop.permute.xlu0 %10077
  %10079 = vrot.lane.b32.xlu0 %v9918, 112
  %v10080 = vpop.permute.xlu0 %10079
  %vm10162 = vcmask 1044352
  %10163 = vst.msk [vmem:[#allocation3] sm:$0xf] %vm10162, %v9920
  %10164 = vst.msk [vmem:[#allocation3 + $0x8] sm:$0xf] %vm10162, %v9922
  %10165 = vst.msk [vmem:[#allocation3 + $0x10] sm:$0xf] %vm10162, %v9924
  %10166 = vst.msk [vmem:[#allocation3 + $0x18] sm:$0xf] %vm10162, %v9926
  %10167 = vst.msk [vmem:[#allocation3 + $0x20] sm:$0xf] %vm10162, %v9928
  %10168 = vst.msk [vmem:[#allocation3 + $0x28] sm:$0xf] %vm10162, %v9930
  %10169 = vst.msk [vmem:[#allocation3 + $0x30] sm:$0xf] %vm10162, %v9932
  %10170 = vst.msk [vmem:[#allocation3 + $0x38] sm:$0xf] %vm10162, %v9934
  %10171 = vst.msk [vmem:[#allocation3 + $0x40] sm:$0xf] %vm10162, %v9936
  %10172 = vst.msk [vmem:[#allocation3 + $0x48] sm:$0xf] %vm10162, %v9938
  %10173 = vst.msk [vmem:[#allocation3 + $0x50] sm:$0xf] %vm10162, %v9940
  %10174 = vst.msk [vmem:[#allocation3 + $0x58] sm:$0xf] %vm10162, %v9942
  %10175 = vst.msk [vmem:[#allocation3 + $0x60] sm:$0xf] %vm10162, %v9944
  %10176 = vst.msk [vmem:[#allocation3 + $0x68] sm:$0xf] %vm10162, %v9946
  %10177 = vst.msk [vmem:[#allocation3 + $0x70] sm:$0xf] %vm10162, %v9948
  %10178 = vst.msk [vmem:[#allocation3 + $0x78] sm:$0xf] %vm10162, %v9950
  %10179 = vst.msk [vmem:[#allocation3 + $0x80] sm:$0xf] %vm10162, %v9952
  %10180 = vst.msk [vmem:[#allocation3 + $0x88] sm:$0xf] %vm10162, %v9954
  %10181 = vst.msk [vmem:[#allocation3 + $0x90] sm:$0xf] %vm10162, %v9956
  %10182 = vst.msk [vmem:[#allocation3 + $0x98] sm:$0xf] %vm10162, %v9958
  %10183 = vst.msk [vmem:[#allocation3 + $0xa0] sm:$0xf] %vm10162, %v9960
  %10184 = vst.msk [vmem:[#allocation3 + $0xa8] sm:$0xf] %vm10162, %v9962
  %10185 = vst.msk [vmem:[#allocation3 + $0xb0] sm:$0xf] %vm10162, %v9964
  %10186 = vst.msk [vmem:[#allocation3 + $0xb8] sm:$0xf] %vm10162, %v9966
  %10187 = vst.msk [vmem:[#allocation3 + $0xc0] sm:$0xf] %vm10162, %v9968
  %10188 = vst.msk [vmem:[#allocation3 + $0xc8] sm:$0xf] %vm10162, %v9970
  %10189 = vst.msk [vmem:[#allocation3 + $0xd0] sm:$0xf] %vm10162, %v9972
  %10190 = vst.msk [vmem:[#allocation3 + $0xd8] sm:$0xf] %vm10162, %v9974
  %10191 = vst.msk [vmem:[#allocation3 + $0xe0] sm:$0xf] %vm10162, %v9976
  %10192 = vst.msk [vmem:[#allocation3 + $0xe8] sm:$0xf] %vm10162, %v9978
  %10193 = vst.msk [vmem:[#allocation3 + $0xf0] sm:$0xf] %vm10162, %v9980
  %10194 = vst.msk [vmem:[#allocation3 + $0xf8] sm:$0xf] %vm10162, %v9982
  %10195 = vst.msk [vmem:[#allocation3 + $0x100] sm:$0xf] %vm10162, %v9984
  %10196 = vst.msk [vmem:[#allocation3 + $0x108] sm:$0xf] %vm10162, %v9986
  %10197 = vst.msk [vmem:[#allocation3 + $0x110] sm:$0xf] %vm10162, %v9988
  %10198 = vst.msk [vmem:[#allocation3 + $0x118] sm:$0xf] %vm10162, %v9990
  %10199 = vst.msk [vmem:[#allocation3 + $0x120] sm:$0xf] %vm10162, %v9992
  %10200 = vst.msk [vmem:[#allocation3 + $0x128] sm:$0xf] %vm10162, %v9994
  %10201 = vst.msk [vmem:[#allocation3 + $0x130] sm:$0xf] %vm10162, %v9996
  %10202 = vst.msk [vmem:[#allocation3 + $0x138] sm:$0xf] %vm10162, %v9998
  %10203 = vst.msk [vmem:[#allocation3 + $0x140] sm:$0xf] %vm10162, %v10000
  %10204 = vst.msk [vmem:[#allocation3 + $0x148] sm:$0xf] %vm10162, %v10002
  %10205 = vst.msk [vmem:[#allocation3 + $0x150] sm:$0xf] %vm10162, %v10004
  %10206 = vst.msk [vmem:[#allocation3 + $0x158] sm:$0xf] %vm10162, %v10006
  %10207 = vst.msk [vmem:[#allocation3 + $0x160] sm:$0xf] %vm10162, %v10008
  %10208 = vst.msk [vmem:[#allocation3 + $0x168] sm:$0xf] %vm10162, %v10010
  %10209 = vst.msk [vmem:[#allocation3 + $0x170] sm:$0xf] %vm10162, %v10012
  %10210 = vst.msk [vmem:[#allocation3 + $0x178] sm:$0xf] %vm10162, %v10014
  %10211 = vst.msk [vmem:[#allocation3 + $0x180] sm:$0xf] %vm10162, %v10016
  %10212 = vst.msk [vmem:[#allocation3 + $0x188] sm:$0xf] %vm10162, %v10018
  %10213 = vst.msk [vmem:[#allocation3 + $0x190] sm:$0xf] %vm10162, %v10020
  %10214 = vst.msk [vmem:[#allocation3 + $0x198] sm:$0xf] %vm10162, %v10022
  %10215 = vst.msk [vmem:[#allocation3 + $0x1a0] sm:$0xf] %vm10162, %v10024
  %10216 = vst.msk [vmem:[#allocation3 + $0x1a8] sm:$0xf] %vm10162, %v10026
  %10217 = vst.msk [vmem:[#allocation3 + $0x1b0] sm:$0xf] %vm10162, %v10028
  %10218 = vst.msk [vmem:[#allocation3 + $0x1b8] sm:$0xf] %vm10162, %v10030
  %10219 = vst.msk [vmem:[#allocation3 + $0x1c0] sm:$0xf] %vm10162, %v10032
  %10220 = vst.msk [vmem:[#allocation3 + $0x1c8] sm:$0xf] %vm10162, %v10034
  %10221 = vst.msk [vmem:[#allocation3 + $0x1d0] sm:$0xf] %vm10162, %v10036
  %10222 = vst.msk [vmem:[#allocation3 + $0x1d8] sm:$0xf] %vm10162, %v10038
  %10223 = vst.msk [vmem:[#allocation3 + $0x1e0] sm:$0xf] %vm10162, %v10040
  %10224 = vst.msk [vmem:[#allocation3 + $0x1e8] sm:$0xf] %vm10162, %v10042
  %10225 = vst.msk [vmem:[#allocation3 + $0x1f0] sm:$0xf] %vm10162, %v10044
  %10226 = vst.msk [vmem:[#allocation3 + $0x1f8] sm:$0xf] %vm10162, %v10046
  %10227 = vst.msk [vmem:[#allocation3 + $0x200] sm:$0xf] %vm10162, %v10048
  %10228 = vst.msk [vmem:[#allocation3 + $0x208] sm:$0xf] %vm10162, %v10050
  %10229 = vst.msk [vmem:[#allocation3 + $0x210] sm:$0xf] %vm10162, %v10052
  %10230 = vst.msk [vmem:[#allocation3 + $0x218] sm:$0xf] %vm10162, %v10054
  %10231 = vst.msk [vmem:[#allocation3 + $0x220] sm:$0xf] %vm10162, %v10056
  %10232 = vst.msk [vmem:[#allocation3 + $0x228] sm:$0xf] %vm10162, %v10058
  %10233 = vst.msk [vmem:[#allocation3 + $0x230] sm:$0xf] %vm10162, %v10060
  %10234 = vst.msk [vmem:[#allocation3 + $0x238] sm:$0xf] %vm10162, %v10062
  %10235 = vst.msk [vmem:[#allocation3 + $0x240] sm:$0xf] %vm10162, %v10064
  %10236 = vst.msk [vmem:[#allocation3 + $0x248] sm:$0xf] %vm10162, %v10066
  %10237 = vst.msk [vmem:[#allocation3 + $0x250] sm:$0xf] %vm10162, %v10068
  %10238 = vst.msk [vmem:[#allocation3 + $0x258] sm:$0xf] %vm10162, %v10070
  %10239 = vst.msk [vmem:[#allocation3 + $0x260] sm:$0xf] %vm10162, %v10072
  %10240 = vst.msk [vmem:[#allocation3 + $0x268] sm:$0xf] %vm10162, %v10074
  %10241 = vst.msk [vmem:[#allocation3 + $0x270] sm:$0xf] %vm10162, %v10076
  %10242 = vst.msk [vmem:[#allocation3 + $0x278] sm:$0xf] %vm10162, %v10078
  %10243 = vst.msk [vmem:[#allocation3 + $0x280] sm:$0xf] %vm10162, %v10080
  %v10244 = vld [vmem:[#allocation2 + $0x14] sm:$0xe]
  %v10245 = vld [vmem:[#allocation2 + $0x18] sm:$0xf]
  %v10246 = vld [vmem:[#allocation2 + $0x1c] sm:$0xf]
  %v10247 = vld [vmem:[#allocation2 + $0x20] sm:$0xf]
  %v10248 = vld [vmem:[#allocation2 + $0x24] sm:$0xf]
  %v10249 = vld [vmem:[#allocation2 + $0x28] sm:$0xf]
  %v10250 = vld [vmem:[#allocation2 + $0x2c] sm:$0xf]
  %v10251 = vld [vmem:[#allocation2 + $0x30] sm:$0xf]
  %v10252 = vld [vmem:[#allocation2 + $0x34] sm:$0xf]
  %v10253 = vld [vmem:[#allocation2 + $0x38] sm:$0xf]
  %v10254 = vld [vmem:[#allocation2 + $0x3c] sm:$0xf]
  %v10255 = vld [vmem:[#allocation2 + $0x40] sm:$0xf]
  %v10256 = vld [vmem:[#allocation2 + $0x44] sm:$0xf]
  %v10257 = vld [vmem:[#allocation2 + $0x48] sm:$0xf]
  %v10258 = vld [vmem:[#allocation2 + $0x4c] sm:$0xf]
  %v10259 = vld [vmem:[#allocation2 + $0x50] sm:$0xf]
  %v10260 = vld [vmem:[#allocation2 + $0x54] sm:$0xf]
  %v10261 = vld [vmem:[#allocation2 + $0x58] sm:$0xf]
  %v10262 = vld [vmem:[#allocation2 + $0x5c] sm:$0xf]
  %v10263 = vld [vmem:[#allocation2 + $0x60] sm:$0xf]
  %v10264 = vld [vmem:[#allocation2 + $0x64] sm:$0xf]
  %v10265 = vld [vmem:[#allocation2 + $0x68] sm:$0xf]
  %v10266 = vld [vmem:[#allocation2 + $0x6c] sm:$0xf]
  %v10267 = vld [vmem:[#allocation2 + $0x70] sm:$0xf]
  %v10268 = vld [vmem:[#allocation2 + $0x74] sm:$0xf]
  %v10269 = vld [vmem:[#allocation2 + $0x78] sm:$0xf]
  %v10270 = vld [vmem:[#allocation2 + $0x7c] sm:$0xf]
  %v10271 = vld [vmem:[#allocation2 + $0x80] sm:$0xf]
  %v10272 = vld [vmem:[#allocation2 + $0x84] sm:$0xf]
  %v10273 = vld [vmem:[#allocation2 + $0x88] sm:$0xf]
  %v10274 = vld [vmem:[#allocation2 + $0x8c] sm:$0xf]
  %v10275 = vld [vmem:[#allocation2 + $0x90] sm:$0xf]
  %v10276 = vld [vmem:[#allocation2 + $0x94] sm:$0xf]
  %v10277 = vld [vmem:[#allocation2 + $0x98] sm:$0xf]
  %v10278 = vld [vmem:[#allocation2 + $0x9c] sm:$0xf]
  %v10279 = vld [vmem:[#allocation2 + $0xa0] sm:$0xf]
  %v10280 = vld [vmem:[#allocation2 + $0xa4] sm:$0xf]
  %v10281 = vld [vmem:[#allocation2 + $0xa8] sm:$0xf]
  %v10282 = vld [vmem:[#allocation2 + $0xac] sm:$0xf]
  %v10283 = vld [vmem:[#allocation2 + $0xb0] sm:$0xf]
  %v10284 = vld [vmem:[#allocation2 + $0xb4] sm:$0xf]
  %v10285 = vld [vmem:[#allocation2 + $0xb8] sm:$0xf]
  %v10286 = vld [vmem:[#allocation2 + $0xbc] sm:$0xf]
  %v10287 = vld [vmem:[#allocation2 + $0xc0] sm:$0xf]
  %v10288 = vld [vmem:[#allocation2 + $0xc4] sm:$0xf]
  %v10289 = vld [vmem:[#allocation2 + $0xc8] sm:$0xf]
  %v10290 = vld [vmem:[#allocation2 + $0xcc] sm:$0xf]
  %v10291 = vld [vmem:[#allocation2 + $0xd0] sm:$0xf]
  %v10292 = vld [vmem:[#allocation2 + $0xd4] sm:$0xf]
  %v10293 = vld [vmem:[#allocation2 + $0xd8] sm:$0xf]
  %v10294 = vld [vmem:[#allocation2 + $0xdc] sm:$0xf]
  %v10295 = vld [vmem:[#allocation2 + $0xe0] sm:$0xf]
  %v10296 = vld [vmem:[#allocation2 + $0xe4] sm:$0xf]
  %v10297 = vld [vmem:[#allocation2 + $0xe8] sm:$0xf]
  %v10298 = vld [vmem:[#allocation2 + $0xec] sm:$0xf]
  %v10299 = vld [vmem:[#allocation2 + $0xf0] sm:$0xf]
  %v10300 = vld [vmem:[#allocation2 + $0xf4] sm:$0xf]
  %v10301 = vld [vmem:[#allocation2 + $0xf8] sm:$0xf]
  %v10302 = vld [vmem:[#allocation2 + $0xfc] sm:$0xf]
  %v10303 = vld [vmem:[#allocation2 + $0x100] sm:$0xf]
  %v10304 = vld [vmem:[#allocation2 + $0x104] sm:$0xf]
  %v10305 = vld [vmem:[#allocation2 + $0x108] sm:$0xf]
  %v10306 = vld [vmem:[#allocation2 + $0x10c] sm:$0xf]
  %v10307 = vld [vmem:[#allocation2 + $0x110] sm:$0xf]
  %v10308 = vld [vmem:[#allocation2 + $0x114] sm:$0xf]
  %v10309 = vld [vmem:[#allocation2 + $0x118] sm:$0xf]
  %v10310 = vld [vmem:[#allocation2 + $0x11c] sm:$0xf]
  %v10311 = vld [vmem:[#allocation2 + $0x120] sm:$0xf]
  %v10312 = vld [vmem:[#allocation2 + $0x124] sm:$0xf]
  %v10313 = vld [vmem:[#allocation2 + $0x128] sm:$0xf]
  %v10314 = vld [vmem:[#allocation2 + $0x12c] sm:$0xf]
  %v10315 = vld [vmem:[#allocation2 + $0x130] sm:$0xf]
  %v10316 = vld [vmem:[#allocation2 + $0x134] sm:$0xf]
  %v10317 = vld [vmem:[#allocation2 + $0x138] sm:$0xf]
  %v10318 = vld [vmem:[#allocation2 + $0x13c] sm:$0xf]
  %v10319 = vld [vmem:[#allocation2 + $0x140] sm:$0xf]
  %v10320 = vld [vmem:[#allocation2 + $0x144] sm:$0xf]
  %v10321 = vld [vmem:[#allocation2 + $0x148] sm:$0xf]
  %v10322 = vld [vmem:[#allocation2 + $0x14c] sm:$0xf]
  %v10323 = vld [vmem:[#allocation2 + $0x150] sm:$0xf]
  %v10324 = vld [vmem:[#allocation2 + $0x154] sm:$0xf]
  %v10325 = vld [vmem:[#allocation2 + $0x158] sm:$0x3]
  %vm10326 = vsmask.f32 2304
  %vm10327 = vsmask.f32 6416
  %vm10328 = vmor %vm10326, %vm10327
  %v10330 = vshrl.u32 %v10244, 16
  %v10332 = vrot.slane %v10330, 5
  %v10333 = vshll.u32 %v10244, 16
  %v10335 = vrot.slane %v10333, 6
  %v10336 = vor.u32 %v10332, %v10335
  %v10337 = vrot.slane %v10336, 4
  %v10339 = vshrl.u32 %v10245, 16
  %v10341 = vrot.slane %v10339, 5
  %v10342 = vshll.u32 %v10245, 16
  %v10344 = vrot.slane %v10342, 6
  %v10345 = vor.u32 %v10341, %v10344
  %v10346 = vsel %vm10328, %v10337, %v10345
  %v10347 = vrot.slane %v10345, 4
  %v10349 = vshrl.u32 %v10246, 16
  %v10351 = vrot.slane %v10349, 5
  %v10352 = vshll.u32 %v10246, 16
  %v10354 = vrot.slane %v10352, 6
  %v10355 = vor.u32 %v10351, %v10354
  %v10356 = vsel %vm10328, %v10347, %v10355
  %v10357 = vrot.slane %v10355, 4
  %v10359 = vshrl.u32 %v10247, 16
  %v10361 = vrot.slane %v10359, 5
  %v10362 = vshll.u32 %v10247, 16
  %v10364 = vrot.slane %v10362, 6
  %v10365 = vor.u32 %v10361, %v10364
  %v10366 = vsel %vm10328, %v10357, %v10365
  %v10367 = vrot.slane %v10365, 4
  %v10369 = vshrl.u32 %v10248, 16
  %v10371 = vrot.slane %v10369, 5
  %v10372 = vshll.u32 %v10248, 16
  %v10374 = vrot.slane %v10372, 6
  %v10375 = vor.u32 %v10371, %v10374
  %v10376 = vsel %vm10328, %v10367, %v10375
  %v10377 = vrot.slane %v10375, 4
  %v10379 = vshrl.u32 %v10249, 16
  %v10381 = vrot.slane %v10379, 5
  %v10382 = vshll.u32 %v10249, 16
  %v10384 = vrot.slane %v10382, 6
  %v10385 = vor.u32 %v10381, %v10384
  %v10386 = vsel %vm10328, %v10377, %v10385
  %v10387 = vrot.slane %v10385, 4
  %v10389 = vshrl.u32 %v10250, 16
  %v10391 = vrot.slane %v10389, 5
  %v10392 = vshll.u32 %v10250, 16
  %v10394 = vrot.slane %v10392, 6
  %v10395 = vor.u32 %v10391, %v10394
  %v10396 = vsel %vm10328, %v10387, %v10395
  %v10397 = vrot.slane %v10395, 4
  %v10399 = vshrl.u32 %v10251, 16
  %v10401 = vrot.slane %v10399, 5
  %v10402 = vshll.u32 %v10251, 16
  %v10404 = vrot.slane %v10402, 6
  %v10405 = vor.u32 %v10401, %v10404
  %v10406 = vsel %vm10328, %v10397, %v10405
  %v10407 = vrot.slane %v10405, 4
  %v10409 = vshrl.u32 %v10252, 16
  %v10411 = vrot.slane %v10409, 5
  %v10412 = vshll.u32 %v10252, 16
  %v10414 = vrot.slane %v10412, 6
  %v10415 = vor.u32 %v10411, %v10414
  %v10416 = vsel %vm10328, %v10407, %v10415
  %v10417 = vrot.slane %v10415, 4
  %v10419 = vshrl.u32 %v10253, 16
  %v10421 = vrot.slane %v10419, 5
  %v10422 = vshll.u32 %v10253, 16
  %v10424 = vrot.slane %v10422, 6
  %v10425 = vor.u32 %v10421, %v10424
  %v10426 = vsel %vm10328, %v10417, %v10425
  %v10427 = vrot.slane %v10425, 4
  %v10429 = vshrl.u32 %v10254, 16
  %v10431 = vrot.slane %v10429, 5
  %v10432 = vshll.u32 %v10254, 16
  %v10434 = vrot.slane %v10432, 6
  %v10435 = vor.u32 %v10431, %v10434
  %v10436 = vsel %vm10328, %v10427, %v10435
  %v10437 = vrot.slane %v10435, 4
  %v10439 = vshrl.u32 %v10255, 16
  %v10441 = vrot.slane %v10439, 5
  %v10442 = vshll.u32 %v10255, 16
  %v10444 = vrot.slane %v10442, 6
  %v10445 = vor.u32 %v10441, %v10444
  %v10446 = vsel %vm10328, %v10437, %v10445
  %v10447 = vrot.slane %v10445, 4
  %v10449 = vshrl.u32 %v10256, 16
  %v10451 = vrot.slane %v10449, 5
  %v10452 = vshll.u32 %v10256, 16
  %v10454 = vrot.slane %v10452, 6
  %v10455 = vor.u32 %v10451, %v10454
  %v10456 = vsel %vm10328, %v10447, %v10455
  %v10457 = vrot.slane %v10455, 4
  %v10459 = vshrl.u32 %v10257, 16
  %v10461 = vrot.slane %v10459, 5
  %v10462 = vshll.u32 %v10257, 16
  %v10464 = vrot.slane %v10462, 6
  %v10465 = vor.u32 %v10461, %v10464
  %v10466 = vsel %vm10328, %v10457, %v10465
  %v10467 = vrot.slane %v10465, 4
  %v10469 = vshrl.u32 %v10258, 16
  %v10471 = vrot.slane %v10469, 5
  %v10472 = vshll.u32 %v10258, 16
  %v10474 = vrot.slane %v10472, 6
  %v10475 = vor.u32 %v10471, %v10474
  %v10476 = vsel %vm10328, %v10467, %v10475
  %v10477 = vrot.slane %v10475, 4
  %v10479 = vshrl.u32 %v10259, 16
  %v10481 = vrot.slane %v10479, 5
  %v10482 = vshll.u32 %v10259, 16
  %v10484 = vrot.slane %v10482, 6
  %v10485 = vor.u32 %v10481, %v10484
  %v10486 = vsel %vm10328, %v10477, %v10485
  %v10487 = vrot.slane %v10485, 4
  %v10489 = vshrl.u32 %v10260, 16
  %v10491 = vrot.slane %v10489, 5
  %v10492 = vshll.u32 %v10260, 16
  %v10494 = vrot.slane %v10492, 6
  %v10495 = vor.u32 %v10491, %v10494
  %v10496 = vsel %vm10328, %v10487, %v10495
  %v10497 = vrot.slane %v10495, 4
  %v10499 = vshrl.u32 %v10261, 16
  %v10501 = vrot.slane %v10499, 5
  %v10502 = vshll.u32 %v10261, 16
  %v10504 = vrot.slane %v10502, 6
  %v10505 = vor.u32 %v10501, %v10504
  %v10506 = vsel %vm10328, %v10497, %v10505
  %v10507 = vrot.slane %v10505, 4
  %v10509 = vshrl.u32 %v10262, 16
  %v10511 = vrot.slane %v10509, 5
  %v10512 = vshll.u32 %v10262, 16
  %v10514 = vrot.slane %v10512, 6
  %v10515 = vor.u32 %v10511, %v10514
  %v10516 = vsel %vm10328, %v10507, %v10515
  %v10517 = vrot.slane %v10515, 4
  %v10519 = vshrl.u32 %v10263, 16
  %v10521 = vrot.slane %v10519, 5
  %v10522 = vshll.u32 %v10263, 16
  %v10524 = vrot.slane %v10522, 6
  %v10525 = vor.u32 %v10521, %v10524
  %v10526 = vsel %vm10328, %v10517, %v10525
  %v10527 = vrot.slane %v10525, 4
  %v10529 = vshrl.u32 %v10264, 16
  %v10531 = vrot.slane %v10529, 5
  %v10532 = vshll.u32 %v10264, 16
  %v10534 = vrot.slane %v10532, 6
  %v10535 = vor.u32 %v10531, %v10534
  %v10536 = vsel %vm10328, %v10527, %v10535
  %v10537 = vrot.slane %v10535, 4
  %v10539 = vshrl.u32 %v10265, 16
  %v10541 = vrot.slane %v10539, 5
  %v10542 = vshll.u32 %v10265, 16
  %v10544 = vrot.slane %v10542, 6
  %v10545 = vor.u32 %v10541, %v10544
  %v10546 = vsel %vm10328, %v10537, %v10545
  %v10547 = vrot.slane %v10545, 4
  %v10549 = vshrl.u32 %v10266, 16
  %v10551 = vrot.slane %v10549, 5
  %v10552 = vshll.u32 %v10266, 16
  %v10554 = vrot.slane %v10552, 6
  %v10555 = vor.u32 %v10551, %v10554
  %v10556 = vsel %vm10328, %v10547, %v10555
  %v10557 = vrot.slane %v10555, 4
  %v10559 = vshrl.u32 %v10267, 16
  %v10561 = vrot.slane %v10559, 5
  %v10562 = vshll.u32 %v10267, 16
  %v10564 = vrot.slane %v10562, 6
  %v10565 = vor.u32 %v10561, %v10564
  %v10566 = vsel %vm10328, %v10557, %v10565
  %v10567 = vrot.slane %v10565, 4
  %v10569 = vshrl.u32 %v10268, 16
  %v10571 = vrot.slane %v10569, 5
  %v10572 = vshll.u32 %v10268, 16
  %v10574 = vrot.slane %v10572, 6
  %v10575 = vor.u32 %v10571, %v10574
  %v10576 = vsel %vm10328, %v10567, %v10575
  %v10577 = vrot.slane %v10575, 4
  %v10579 = vshrl.u32 %v10269, 16
  %v10581 = vrot.slane %v10579, 5
  %v10582 = vshll.u32 %v10269, 16
  %v10584 = vrot.slane %v10582, 6
  %v10585 = vor.u32 %v10581, %v10584
  %v10586 = vsel %vm10328, %v10577, %v10585
  %v10587 = vrot.slane %v10585, 4
  %v10589 = vshrl.u32 %v10270, 16
  %v10591 = vrot.slane %v10589, 5
  %v10592 = vshll.u32 %v10270, 16
  %v10594 = vrot.slane %v10592, 6
  %v10595 = vor.u32 %v10591, %v10594
  %v10596 = vsel %vm10328, %v10587, %v10595
  %v10597 = vrot.slane %v10595, 4
  %v10599 = vshrl.u32 %v10271, 16
  %v10601 = vrot.slane %v10599, 5
  %v10602 = vshll.u32 %v10271, 16
  %v10604 = vrot.slane %v10602, 6
  %v10605 = vor.u32 %v10601, %v10604
  %v10606 = vsel %vm10328, %v10597, %v10605
  %v10607 = vrot.slane %v10605, 4
  %v10609 = vshrl.u32 %v10272, 16
  %v10611 = vrot.slane %v10609, 5
  %v10612 = vshll.u32 %v10272, 16
  %v10614 = vrot.slane %v10612, 6
  %v10615 = vor.u32 %v10611, %v10614
  %v10616 = vsel %vm10328, %v10607, %v10615
  %v10617 = vrot.slane %v10615, 4
  %v10619 = vshrl.u32 %v10273, 16
  %v10621 = vrot.slane %v10619, 5
  %v10622 = vshll.u32 %v10273, 16
  %v10624 = vrot.slane %v10622, 6
  %v10625 = vor.u32 %v10621, %v10624
  %v10626 = vsel %vm10328, %v10617, %v10625
  %v10627 = vrot.slane %v10625, 4
  %v10629 = vshrl.u32 %v10274, 16
  %v10631 = vrot.slane %v10629, 5
  %v10632 = vshll.u32 %v10274, 16
  %v10634 = vrot.slane %v10632, 6
  %v10635 = vor.u32 %v10631, %v10634
  %v10636 = vsel %vm10328, %v10627, %v10635
  %v10637 = vrot.slane %v10635, 4
  %v10639 = vshrl.u32 %v10275, 16
  %v10641 = vrot.slane %v10639, 5
  %v10642 = vshll.u32 %v10275, 16
  %v10644 = vrot.slane %v10642, 6
  %v10645 = vor.u32 %v10641, %v10644
  %v10646 = vsel %vm10328, %v10637, %v10645
  %v10647 = vrot.slane %v10645, 4
  %v10649 = vshrl.u32 %v10276, 16
  %v10651 = vrot.slane %v10649, 5
  %v10652 = vshll.u32 %v10276, 16
  %v10654 = vrot.slane %v10652, 6
  %v10655 = vor.u32 %v10651, %v10654
  %v10656 = vsel %vm10328, %v10647, %v10655
  %v10657 = vrot.slane %v10655, 4
  %v10659 = vshrl.u32 %v10277, 16
  %v10661 = vrot.slane %v10659, 5
  %v10662 = vshll.u32 %v10277, 16
  %v10664 = vrot.slane %v10662, 6
  %v10665 = vor.u32 %v10661, %v10664
  %v10666 = vsel %vm10328, %v10657, %v10665
  %v10667 = vrot.slane %v10665, 4
  %v10669 = vshrl.u32 %v10278, 16
  %v10671 = vrot.slane %v10669, 5
  %v10672 = vshll.u32 %v10278, 16
  %v10674 = vrot.slane %v10672, 6
  %v10675 = vor.u32 %v10671, %v10674
  %v10676 = vsel %vm10328, %v10667, %v10675
  %v10677 = vrot.slane %v10675, 4
  %v10679 = vshrl.u32 %v10279, 16
  %v10681 = vrot.slane %v10679, 5
  %v10682 = vshll.u32 %v10279, 16
  %v10684 = vrot.slane %v10682, 6
  %v10685 = vor.u32 %v10681, %v10684
  %v10686 = vsel %vm10328, %v10677, %v10685
  %v10687 = vrot.slane %v10685, 4
  %v10689 = vshrl.u32 %v10280, 16
  %v10691 = vrot.slane %v10689, 5
  %v10692 = vshll.u32 %v10280, 16
  %v10694 = vrot.slane %v10692, 6
  %v10695 = vor.u32 %v10691, %v10694
  %v10696 = vsel %vm10328, %v10687, %v10695
  %v10697 = vrot.slane %v10695, 4
  %v10699 = vshrl.u32 %v10281, 16
  %v10701 = vrot.slane %v10699, 5
  %v10702 = vshll.u32 %v10281, 16
  %v10704 = vrot.slane %v10702, 6
  %v10705 = vor.u32 %v10701, %v10704
  %v10706 = vsel %vm10328, %v10697, %v10705
  %v10707 = vrot.slane %v10705, 4
  %v10709 = vshrl.u32 %v10282, 16
  %v10711 = vrot.slane %v10709, 5
  %v10712 = vshll.u32 %v10282, 16
  %v10714 = vrot.slane %v10712, 6
  %v10715 = vor.u32 %v10711, %v10714
  %v10716 = vsel %vm10328, %v10707, %v10715
  %v10717 = vrot.slane %v10715, 4
  %v10719 = vshrl.u32 %v10283, 16
  %v10721 = vrot.slane %v10719, 5
  %v10722 = vshll.u32 %v10283, 16
  %v10724 = vrot.slane %v10722, 6
  %v10725 = vor.u32 %v10721, %v10724
  %v10726 = vsel %vm10328, %v10717, %v10725
  %v10727 = vrot.slane %v10725, 4
  %v10729 = vshrl.u32 %v10284, 16
  %v10731 = vrot.slane %v10729, 5
  %v10732 = vshll.u32 %v10284, 16
  %v10734 = vrot.slane %v10732, 6
  %v10735 = vor.u32 %v10731, %v10734
  %v10736 = vsel %vm10328, %v10727, %v10735
  %v10737 = vrot.slane %v10735, 4
  %v10739 = vshrl.u32 %v10285, 16
  %v10741 = vrot.slane %v10739, 5
  %v10742 = vshll.u32 %v10285, 16
  %v10744 = vrot.slane %v10742, 6
  %v10745 = vor.u32 %v10741, %v10744
  %v10746 = vsel %vm10328, %v10737, %v10745
  %v10747 = vrot.slane %v10745, 4
  %v10749 = vshrl.u32 %v10286, 16
  %v10751 = vrot.slane %v10749, 5
  %v10752 = vshll.u32 %v10286, 16
  %v10754 = vrot.slane %v10752, 6
  %v10755 = vor.u32 %v10751, %v10754
  %v10756 = vsel %vm10328, %v10747, %v10755
  %v10757 = vrot.slane %v10755, 4
  %v10759 = vshrl.u32 %v10287, 16
  %v10761 = vrot.slane %v10759, 5
  %v10762 = vshll.u32 %v10287, 16
  %v10764 = vrot.slane %v10762, 6
  %v10765 = vor.u32 %v10761, %v10764
  %v10766 = vsel %vm10328, %v10757, %v10765
  %v10767 = vrot.slane %v10765, 4
  %v10769 = vshrl.u32 %v10288, 16
  %v10771 = vrot.slane %v10769, 5
  %v10772 = vshll.u32 %v10288, 16
  %v10774 = vrot.slane %v10772, 6
  %v10775 = vor.u32 %v10771, %v10774
  %v10776 = vsel %vm10328, %v10767, %v10775
  %v10777 = vrot.slane %v10775, 4
  %v10779 = vshrl.u32 %v10289, 16
  %v10781 = vrot.slane %v10779, 5
  %v10782 = vshll.u32 %v10289, 16
  %v10784 = vrot.slane %v10782, 6
  %v10785 = vor.u32 %v10781, %v10784
  %v10786 = vsel %vm10328, %v10777, %v10785
  %v10787 = vrot.slane %v10785, 4
  %v10789 = vshrl.u32 %v10290, 16
  %v10791 = vrot.slane %v10789, 5
  %v10792 = vshll.u32 %v10290, 16
  %v10794 = vrot.slane %v10792, 6
  %v10795 = vor.u32 %v10791, %v10794
  %v10796 = vsel %vm10328, %v10787, %v10795
  %v10797 = vrot.slane %v10795, 4
  %v10799 = vshrl.u32 %v10291, 16
  %v10801 = vrot.slane %v10799, 5
  %v10802 = vshll.u32 %v10291, 16
  %v10804 = vrot.slane %v10802, 6
  %v10805 = vor.u32 %v10801, %v10804
  %v10806 = vsel %vm10328, %v10797, %v10805
  %v10807 = vrot.slane %v10805, 4
  %v10809 = vshrl.u32 %v10292, 16
  %v10811 = vrot.slane %v10809, 5
  %v10812 = vshll.u32 %v10292, 16
  %v10814 = vrot.slane %v10812, 6
  %v10815 = vor.u32 %v10811, %v10814
  %v10816 = vsel %vm10328, %v10807, %v10815
  %v10817 = vrot.slane %v10815, 4
  %v10819 = vshrl.u32 %v10293, 16
  %v10821 = vrot.slane %v10819, 5
  %v10822 = vshll.u32 %v10293, 16
  %v10824 = vrot.slane %v10822, 6
  %v10825 = vor.u32 %v10821, %v10824
  %v10826 = vsel %vm10328, %v10817, %v10825
  %v10827 = vrot.slane %v10825, 4
  %v10829 = vshrl.u32 %v10294, 16
  %v10831 = vrot.slane %v10829, 5
  %v10832 = vshll.u32 %v10294, 16
  %v10834 = vrot.slane %v10832, 6
  %v10835 = vor.u32 %v10831, %v10834
  %v10836 = vsel %vm10328, %v10827, %v10835
  %v10837 = vrot.slane %v10835, 4
  %v10839 = vshrl.u32 %v10295, 16
  %v10841 = vrot.slane %v10839, 5
  %v10842 = vshll.u32 %v10295, 16
  %v10844 = vrot.slane %v10842, 6
  %v10845 = vor.u32 %v10841, %v10844
  %v10846 = vsel %vm10328, %v10837, %v10845
  %v10847 = vrot.slane %v10845, 4
  %v10849 = vshrl.u32 %v10296, 16
  %v10851 = vrot.slane %v10849, 5
  %v10852 = vshll.u32 %v10296, 16
  %v10854 = vrot.slane %v10852, 6
  %v10855 = vor.u32 %v10851, %v10854
  %v10856 = vsel %vm10328, %v10847, %v10855
  %v10857 = vrot.slane %v10855, 4
  %v10859 = vshrl.u32 %v10297, 16
  %v10861 = vrot.slane %v10859, 5
  %v10862 = vshll.u32 %v10297, 16
  %v10864 = vrot.slane %v10862, 6
  %v10865 = vor.u32 %v10861, %v10864
  %v10866 = vsel %vm10328, %v10857, %v10865
  %v10867 = vrot.slane %v10865, 4
  %v10869 = vshrl.u32 %v10298, 16
  %v10871 = vrot.slane %v10869, 5
  %v10872 = vshll.u32 %v10298, 16
  %v10874 = vrot.slane %v10872, 6
  %v10875 = vor.u32 %v10871, %v10874
  %v10876 = vsel %vm10328, %v10867, %v10875
  %v10877 = vrot.slane %v10875, 4
  %v10879 = vshrl.u32 %v10299, 16
  %v10881 = vrot.slane %v10879, 5
  %v10882 = vshll.u32 %v10299, 16
  %v10884 = vrot.slane %v10882, 6
  %v10885 = vor.u32 %v10881, %v10884
  %v10886 = vsel %vm10328, %v10877, %v10885
  %v10887 = vrot.slane %v10885, 4
  %v10889 = vshrl.u32 %v10300, 16
  %v10891 = vrot.slane %v10889, 5
  %v10892 = vshll.u32 %v10300, 16
  %v10894 = vrot.slane %v10892, 6
  %v10895 = vor.u32 %v10891, %v10894
  %v10896 = vsel %vm10328, %v10887, %v10895
  %v10897 = vrot.slane %v10895, 4
  %v10899 = vshrl.u32 %v10301, 16
  %v10901 = vrot.slane %v10899, 5
  %v10902 = vshll.u32 %v10301, 16
  %v10904 = vrot.slane %v10902, 6
  %v10905 = vor.u32 %v10901, %v10904
  %v10906 = vsel %vm10328, %v10897, %v10905
  %v10907 = vrot.slane %v10905, 4
  %v10909 = vshrl.u32 %v10302, 16
  %v10911 = vrot.slane %v10909, 5
  %v10912 = vshll.u32 %v10302, 16
  %v10914 = vrot.slane %v10912, 6
  %v10915 = vor.u32 %v10911, %v10914
  %v10916 = vsel %vm10328, %v10907, %v10915
  %v10917 = vrot.slane %v10915, 4
  %v10919 = vshrl.u32 %v10303, 16
  %v10921 = vrot.slane %v10919, 5
  %v10922 = vshll.u32 %v10303, 16
  %v10924 = vrot.slane %v10922, 6
  %v10925 = vor.u32 %v10921, %v10924
  %v10926 = vsel %vm10328, %v10917, %v10925
  %v10927 = vrot.slane %v10925, 4
  %v10929 = vshrl.u32 %v10304, 16
  %v10931 = vrot.slane %v10929, 5
  %v10932 = vshll.u32 %v10304, 16
  %v10934 = vrot.slane %v10932, 6
  %v10935 = vor.u32 %v10931, %v10934
  %v10936 = vsel %vm10328, %v10927, %v10935
  %v10937 = vrot.slane %v10935, 4
  %v10939 = vshrl.u32 %v10305, 16
  %v10941 = vrot.slane %v10939, 5
  %v10942 = vshll.u32 %v10305, 16
  %v10944 = vrot.slane %v10942, 6
  %v10945 = vor.u32 %v10941, %v10944
  %v10946 = vsel %vm10328, %v10937, %v10945
  %v10947 = vrot.slane %v10945, 4
  %v10949 = vshrl.u32 %v10306, 16
  %v10951 = vrot.slane %v10949, 5
  %v10952 = vshll.u32 %v10306, 16
  %v10954 = vrot.slane %v10952, 6
  %v10955 = vor.u32 %v10951, %v10954
  %v10956 = vsel %vm10328, %v10947, %v10955
  %v10957 = vrot.slane %v10955, 4
  %v10959 = vshrl.u32 %v10307, 16
  %v10961 = vrot.slane %v10959, 5
  %v10962 = vshll.u32 %v10307, 16
  %v10964 = vrot.slane %v10962, 6
  %v10965 = vor.u32 %v10961, %v10964
  %v10966 = vsel %vm10328, %v10957, %v10965
  %v10967 = vrot.slane %v10965, 4
  %v10969 = vshrl.u32 %v10308, 16
  %v10971 = vrot.slane %v10969, 5
  %v10972 = vshll.u32 %v10308, 16
  %v10974 = vrot.slane %v10972, 6
  %v10975 = vor.u32 %v10971, %v10974
  %v10976 = vsel %vm10328, %v10967, %v10975
  %v10977 = vrot.slane %v10975, 4
  %v10979 = vshrl.u32 %v10309, 16
  %v10981 = vrot.slane %v10979, 5
  %v10982 = vshll.u32 %v10309, 16
  %v10984 = vrot.slane %v10982, 6
  %v10985 = vor.u32 %v10981, %v10984
  %v10986 = vsel %vm10328, %v10977, %v10985
  %v10987 = vrot.slane %v10985, 4
  %v10989 = vshrl.u32 %v10310, 16
  %v10991 = vrot.slane %v10989, 5
  %v10992 = vshll.u32 %v10310, 16
  %v10994 = vrot.slane %v10992, 6
  %v10995 = vor.u32 %v10991, %v10994
  %v10996 = vsel %vm10328, %v10987, %v10995
  %v10997 = vrot.slane %v10995, 4
  %v10999 = vshrl.u32 %v10311, 16
  %v11001 = vrot.slane %v10999, 5
  %v11002 = vshll.u32 %v10311, 16
  %v11004 = vrot.slane %v11002, 6
  %v11005 = vor.u32 %v11001, %v11004
  %v11006 = vsel %vm10328, %v10997, %v11005
  %v11007 = vrot.slane %v11005, 4
  %v11009 = vshrl.u32 %v10312, 16
  %v11011 = vrot.slane %v11009, 5
  %v11012 = vshll.u32 %v10312, 16
  %v11014 = vrot.slane %v11012, 6
  %v11015 = vor.u32 %v11011, %v11014
  %v11016 = vsel %vm10328, %v11007, %v11015
  %v11017 = vrot.slane %v11015, 4
  %v11019 = vshrl.u32 %v10313, 16
  %v11021 = vrot.slane %v11019, 5
  %v11022 = vshll.u32 %v10313, 16
  %v11024 = vrot.slane %v11022, 6
  %v11025 = vor.u32 %v11021, %v11024
  %v11026 = vsel %vm10328, %v11017, %v11025
  %v11027 = vrot.slane %v11025, 4
  %v11029 = vshrl.u32 %v10314, 16
  %v11031 = vrot.slane %v11029, 5
  %v11032 = vshll.u32 %v10314, 16
  %v11034 = vrot.slane %v11032, 6
  %v11035 = vor.u32 %v11031, %v11034
  %v11036 = vsel %vm10328, %v11027, %v11035
  %v11037 = vrot.slane %v11035, 4
  %v11039 = vshrl.u32 %v10315, 16
  %v11041 = vrot.slane %v11039, 5
  %v11042 = vshll.u32 %v10315, 16
  %v11044 = vrot.slane %v11042, 6
  %v11045 = vor.u32 %v11041, %v11044
  %v11046 = vsel %vm10328, %v11037, %v11045
  %v11047 = vrot.slane %v11045, 4
  %v11049 = vshrl.u32 %v10316, 16
  %v11051 = vrot.slane %v11049, 5
  %v11052 = vshll.u32 %v10316, 16
  %v11054 = vrot.slane %v11052, 6
  %v11055 = vor.u32 %v11051, %v11054
  %v11056 = vsel %vm10328, %v11047, %v11055
  %v11057 = vrot.slane %v11055, 4
  %v11059 = vshrl.u32 %v10317, 16
  %v11061 = vrot.slane %v11059, 5
  %v11062 = vshll.u32 %v10317, 16
  %v11064 = vrot.slane %v11062, 6
  %v11065 = vor.u32 %v11061, %v11064
  %v11066 = vsel %vm10328, %v11057, %v11065
  %v11067 = vrot.slane %v11065, 4
  %v11069 = vshrl.u32 %v10318, 16
  %v11071 = vrot.slane %v11069, 5
  %v11072 = vshll.u32 %v10318, 16
  %v11074 = vrot.slane %v11072, 6
  %v11075 = vor.u32 %v11071, %v11074
  %v11076 = vsel %vm10328, %v11067, %v11075
  %v11077 = vrot.slane %v11075, 4
  %v11079 = vshrl.u32 %v10319, 16
  %v11081 = vrot.slane %v11079, 5
  %v11082 = vshll.u32 %v10319, 16
  %v11084 = vrot.slane %v11082, 6
  %v11085 = vor.u32 %v11081, %v11084
  %v11086 = vsel %vm10328, %v11077, %v11085
  %v11087 = vrot.slane %v11085, 4
  %v11089 = vshrl.u32 %v10320, 16
  %v11091 = vrot.slane %v11089, 5
  %v11092 = vshll.u32 %v10320, 16
  %v11094 = vrot.slane %v11092, 6
  %v11095 = vor.u32 %v11091, %v11094
  %v11096 = vsel %vm10328, %v11087, %v11095
  %v11097 = vrot.slane %v11095, 4
  %v11099 = vshrl.u32 %v10321, 16
  %v11101 = vrot.slane %v11099, 5
  %v11102 = vshll.u32 %v10321, 16
  %v11104 = vrot.slane %v11102, 6
  %v11105 = vor.u32 %v11101, %v11104
  %v11106 = vsel %vm10328, %v11097, %v11105
  %v11107 = vrot.slane %v11105, 4
  %v11109 = vshrl.u32 %v10322, 16
  %v11111 = vrot.slane %v11109, 5
  %v11112 = vshll.u32 %v10322, 16
  %v11114 = vrot.slane %v11112, 6
  %v11115 = vor.u32 %v11111, %v11114
  %v11116 = vsel %vm10328, %v11107, %v11115
  %v11117 = vrot.slane %v11115, 4
  %v11119 = vshrl.u32 %v10323, 16
  %v11121 = vrot.slane %v11119, 5
  %v11122 = vshll.u32 %v10323, 16
  %v11124 = vrot.slane %v11122, 6
  %v11125 = vor.u32 %v11121, %v11124
  %v11126 = vsel %vm10328, %v11117, %v11125
  %v11127 = vrot.slane %v11125, 4
  %v11129 = vshrl.u32 %v10324, 16
  %v11131 = vrot.slane %v11129, 5
  %v11132 = vshll.u32 %v10324, 16
  %v11134 = vrot.slane %v11132, 6
  %v11135 = vor.u32 %v11131, %v11134
  %v11136 = vsel %vm10328, %v11127, %v11135
  %v11137 = vrot.slane %v11135, 4
  %v11139 = vshrl.u32 %v10325, 16
  %v11141 = vrot.slane %v11139, 5
  %v11142 = vshll.u32 %v10325, 16
  %v11144 = vrot.slane %v11142, 6
  %v11145 = vor.u32 %v11141, %v11144
  %v11146 = vsel %vm10328, %v11137, %v11145
  %11228 = vst.msk [vmem:[#allocation3 + $0x4] sm:$0xf] %vm2120, %v10346
  %11229 = vst.msk [vmem:[#allocation3 + $0xc] sm:$0xf] %vm2120, %v10356
  %11230 = vst.msk [vmem:[#allocation3 + $0x14] sm:$0xf] %vm2120, %v10366
  %11231 = vst.msk [vmem:[#allocation3 + $0x1c] sm:$0xf] %vm2120, %v10376
  %11232 = vst.msk [vmem:[#allocation3 + $0x24] sm:$0xf] %vm2120, %v10386
  %11233 = vst.msk [vmem:[#allocation3 + $0x2c] sm:$0xf] %vm2120, %v10396
  %11234 = vst.msk [vmem:[#allocation3 + $0x34] sm:$0xf] %vm2120, %v10406
  %11235 = vst.msk [vmem:[#allocation3 + $0x3c] sm:$0xf] %vm2120, %v10416
  %11236 = vst.msk [vmem:[#allocation3 + $0x44] sm:$0xf] %vm2120, %v10426
  %11237 = vst.msk [vmem:[#allocation3 + $0x4c] sm:$0xf] %vm2120, %v10436
  %11238 = vst.msk [vmem:[#allocation3 + $0x54] sm:$0xf] %vm2120, %v10446
  %11239 = vst.msk [vmem:[#allocation3 + $0x5c] sm:$0xf] %vm2120, %v10456
  %11240 = vst.msk [vmem:[#allocation3 + $0x64] sm:$0xf] %vm2120, %v10466
  %11241 = vst.msk [vmem:[#allocation3 + $0x6c] sm:$0xf] %vm2120, %v10476
  %11242 = vst.msk [vmem:[#allocation3 + $0x74] sm:$0xf] %vm2120, %v10486
  %11243 = vst.msk [vmem:[#allocation3 + $0x7c] sm:$0xf] %vm2120, %v10496
  %11244 = vst.msk [vmem:[#allocation3 + $0x84] sm:$0xf] %vm2120, %v10506
  %11245 = vst.msk [vmem:[#allocation3 + $0x8c] sm:$0xf] %vm2120, %v10516
  %11246 = vst.msk [vmem:[#allocation3 + $0x94] sm:$0xf] %vm2120, %v10526
  %11247 = vst.msk [vmem:[#allocation3 + $0x9c] sm:$0xf] %vm2120, %v10536
  %11248 = vst.msk [vmem:[#allocation3 + $0xa4] sm:$0xf] %vm2120, %v10546
  %11249 = vst.msk [vmem:[#allocation3 + $0xac] sm:$0xf] %vm2120, %v10556
  %11250 = vst.msk [vmem:[#allocation3 + $0xb4] sm:$0xf] %vm2120, %v10566
  %11251 = vst.msk [vmem:[#allocation3 + $0xbc] sm:$0xf] %vm2120, %v10576
  %11252 = vst.msk [vmem:[#allocation3 + $0xc4] sm:$0xf] %vm2120, %v10586
  %11253 = vst.msk [vmem:[#allocation3 + $0xcc] sm:$0xf] %vm2120, %v10596
  %11254 = vst.msk [vmem:[#allocation3 + $0xd4] sm:$0xf] %vm2120, %v10606
  %11255 = vst.msk [vmem:[#allocation3 + $0xdc] sm:$0xf] %vm2120, %v10616
  %11256 = vst.msk [vmem:[#allocation3 + $0xe4] sm:$0xf] %vm2120, %v10626
  %11257 = vst.msk [vmem:[#allocation3 + $0xec] sm:$0xf] %vm2120, %v10636
  %11258 = vst.msk [vmem:[#allocation3 + $0xf4] sm:$0xf] %vm2120, %v10646
  %11259 = vst.msk [vmem:[#allocation3 + $0xfc] sm:$0xf] %vm2120, %v10656
  %11260 = vst.msk [vmem:[#allocation3 + $0x104] sm:$0xf] %vm2120, %v10666
  %11261 = vst.msk [vmem:[#allocation3 + $0x10c] sm:$0xf] %vm2120, %v10676
  %11262 = vst.msk [vmem:[#allocation3 + $0x114] sm:$0xf] %vm2120, %v10686
  %11263 = vst.msk [vmem:[#allocation3 + $0x11c] sm:$0xf] %vm2120, %v10696
  %11264 = vst.msk [vmem:[#allocation3 + $0x124] sm:$0xf] %vm2120, %v10706
  %11265 = vst.msk [vmem:[#allocation3 + $0x12c] sm:$0xf] %vm2120, %v10716
  %11266 = vst.msk [vmem:[#allocation3 + $0x134] sm:$0xf] %vm2120, %v10726
  %11267 = vst.msk [vmem:[#allocation3 + $0x13c] sm:$0xf] %vm2120, %v10736
  %11268 = vst.msk [vmem:[#allocation3 + $0x144] sm:$0xf] %vm2120, %v10746
  %11269 = vst.msk [vmem:[#allocation3 + $0x14c] sm:$0xf] %vm2120, %v10756
  %11270 = vst.msk [vmem:[#allocation3 + $0x154] sm:$0xf] %vm2120, %v10766
  %11271 = vst.msk [vmem:[#allocation3 + $0x15c] sm:$0xf] %vm2120, %v10776
  %11272 = vst.msk [vmem:[#allocation3 + $0x164] sm:$0xf] %vm2120, %v10786
  %11273 = vst.msk [vmem:[#allocation3 + $0x16c] sm:$0xf] %vm2120, %v10796
  %11274 = vst.msk [vmem:[#allocation3 + $0x174] sm:$0xf] %vm2120, %v10806
  %11275 = vst.msk [vmem:[#allocation3 + $0x17c] sm:$0xf] %vm2120, %v10816
  %11276 = vst.msk [vmem:[#allocation3 + $0x184] sm:$0xf] %vm2120, %v10826
  %11277 = vst.msk [vmem:[#allocation3 + $0x18c] sm:$0xf] %vm2120, %v10836
  %11278 = vst.msk [vmem:[#allocation3 + $0x194] sm:$0xf] %vm2120, %v10846
  %11279 = vst.msk [vmem:[#allocation3 + $0x19c] sm:$0xf] %vm2120, %v10856
  %11280 = vst.msk [vmem:[#allocation3 + $0x1a4] sm:$0xf] %vm2120, %v10866
  %11281 = vst.msk [vmem:[#allocation3 + $0x1ac] sm:$0xf] %vm2120, %v10876
  %11282 = vst.msk [vmem:[#allocation3 + $0x1b4] sm:$0xf] %vm2120, %v10886
  %11283 = vst.msk [vmem:[#allocation3 + $0x1bc] sm:$0xf] %vm2120, %v10896
  %11284 = vst.msk [vmem:[#allocation3 + $0x1c4] sm:$0xf] %vm2120, %v10906
  %11285 = vst.msk [vmem:[#allocation3 + $0x1cc] sm:$0xf] %vm2120, %v10916
  %11286 = vst.msk [vmem:[#allocation3 + $0x1d4] sm:$0xf] %vm2120, %v10926
  %11287 = vst.msk [vmem:[#allocation3 + $0x1dc] sm:$0xf] %vm2120, %v10936
  %11288 = vst.msk [vmem:[#allocation3 + $0x1e4] sm:$0xf] %vm2120, %v10946
  %11289 = vst.msk [vmem:[#allocation3 + $0x1ec] sm:$0xf] %vm2120, %v10956
  %11290 = vst.msk [vmem:[#allocation3 + $0x1f4] sm:$0xf] %vm2120, %v10966
  %11291 = vst.msk [vmem:[#allocation3 + $0x1fc] sm:$0xf] %vm2120, %v10976
  %11292 = vst.msk [vmem:[#allocation3 + $0x204] sm:$0xf] %vm2120, %v10986
  %11293 = vst.msk [vmem:[#allocation3 + $0x20c] sm:$0xf] %vm2120, %v10996
  %11294 = vst.msk [vmem:[#allocation3 + $0x214] sm:$0xf] %vm2120, %v11006
  %11295 = vst.msk [vmem:[#allocation3 + $0x21c] sm:$0xf] %vm2120, %v11016
  %11296 = vst.msk [vmem:[#allocation3 + $0x224] sm:$0xf] %vm2120, %v11026
  %11297 = vst.msk [vmem:[#allocation3 + $0x22c] sm:$0xf] %vm2120, %v11036
  %11298 = vst.msk [vmem:[#allocation3 + $0x234] sm:$0xf] %vm2120, %v11046
  %11299 = vst.msk [vmem:[#allocation3 + $0x23c] sm:$0xf] %vm2120, %v11056
  %11300 = vst.msk [vmem:[#allocation3 + $0x244] sm:$0xf] %vm2120, %v11066
  %11301 = vst.msk [vmem:[#allocation3 + $0x24c] sm:$0xf] %vm2120, %v11076
  %11302 = vst.msk [vmem:[#allocation3 + $0x254] sm:$0xf] %vm2120, %v11086
  %11303 = vst.msk [vmem:[#allocation3 + $0x25c] sm:$0xf] %vm2120, %v11096
  %11304 = vst.msk [vmem:[#allocation3 + $0x264] sm:$0xf] %vm2120, %v11106
  %11305 = vst.msk [vmem:[#allocation3 + $0x26c] sm:$0xf] %vm2120, %v11116
  %11306 = vst.msk [vmem:[#allocation3 + $0x274] sm:$0xf] %vm2120, %v11126
  %11307 = vst.msk [vmem:[#allocation3 + $0x27c] sm:$0xf] %vm2120, %v11136
  %11308 = vst.msk [vmem:[#allocation3 + $0x284] sm:$0xf] %vm2120, %v11146
  %v11309 = vld [vmem:[#allocation3] sm:$0xff]
  %v11310 = vld [vmem:[#allocation3 + $0x8] sm:$0xff]
  %v11311 = vld [vmem:[#allocation3 + $0x10] sm:$0xff]
  %v11312 = vld [vmem:[#allocation3 + $0x18] sm:$0xff]
  %v11313 = vld [vmem:[#allocation3 + $0x20] sm:$0xff]
  %v11314 = vld [vmem:[#allocation3 + $0x28] sm:$0xff]
  %v11315 = vld [vmem:[#allocation3 + $0x30] sm:$0xff]
  %v11316 = vld [vmem:[#allocation3 + $0x38] sm:$0xff]
  %v11317 = vld [vmem:[#allocation3 + $0x40] sm:$0xff]
  %v11318 = vld [vmem:[#allocation3 + $0x48] sm:$0xff]
  %v11319 = vld [vmem:[#allocation3 + $0x50] sm:$0xff]
  %v11320 = vld [vmem:[#allocation3 + $0x58] sm:$0xff]
  %v11321 = vld [vmem:[#allocation3 + $0x60] sm:$0xff]
  %v11322 = vld [vmem:[#allocation3 + $0x68] sm:$0xff]
  %v11323 = vld [vmem:[#allocation3 + $0x70] sm:$0xff]
  %v11324 = vld [vmem:[#allocation3 + $0x78] sm:$0xff]
  %v11325 = vld [vmem:[#allocation3 + $0x80] sm:$0xff]
  %v11326 = vld [vmem:[#allocation3 + $0x88] sm:$0xff]
  %v11327 = vld [vmem:[#allocation3 + $0x90] sm:$0xff]
  %v11328 = vld [vmem:[#allocation3 + $0x98] sm:$0xff]
  %v11329 = vld [vmem:[#allocation3 + $0xa0] sm:$0xff]
  %v11330 = vld [vmem:[#allocation3 + $0xa8] sm:$0xff]
  %v11331 = vld [vmem:[#allocation3 + $0xb0] sm:$0xff]
  %v11332 = vld [vmem:[#allocation3 + $0xb8] sm:$0xff]
  %v11333 = vld [vmem:[#allocation3 + $0xc0] sm:$0xff]
  %v11334 = vld [vmem:[#allocation3 + $0xc8] sm:$0xff]
  %v11335 = vld [vmem:[#allocation3 + $0xd0] sm:$0xff]
  %v11336 = vld [vmem:[#allocation3 + $0xd8] sm:$0xff]
  %v11337 = vld [vmem:[#allocation3 + $0xe0] sm:$0xff]
  %v11338 = vld [vmem:[#allocation3 + $0xe8] sm:$0xff]
  %v11339 = vld [vmem:[#allocation3 + $0xf0] sm:$0xff]
  %v11340 = vld [vmem:[#allocation3 + $0xf8] sm:$0xff]
  %v11341 = vld [vmem:[#allocation3 + $0x100] sm:$0xff]
  %v11342 = vld [vmem:[#allocation3 + $0x108] sm:$0xff]
  %v11343 = vld [vmem:[#allocation3 + $0x110] sm:$0xff]
  %v11344 = vld [vmem:[#allocation3 + $0x118] sm:$0xff]
  %v11345 = vld [vmem:[#allocation3 + $0x120] sm:$0xff]
  %v11346 = vld [vmem:[#allocation3 + $0x128] sm:$0xff]
  %v11347 = vld [vmem:[#allocation3 + $0x130] sm:$0xff]
  %v11348 = vld [vmem:[#allocation3 + $0x138] sm:$0xff]
  %v11349 = vld [vmem:[#allocation3 + $0x140] sm:$0xff]
  %v11350 = vld [vmem:[#allocation3 + $0x148] sm:$0xff]
  %v11351 = vld [vmem:[#allocation3 + $0x150] sm:$0xff]
  %v11352 = vld [vmem:[#allocation3 + $0x158] sm:$0xff]
  %v11353 = vld [vmem:[#allocation3 + $0x160] sm:$0xff]
  %v11354 = vld [vmem:[#allocation3 + $0x168] sm:$0xff]
  %v11355 = vld [vmem:[#allocation3 + $0x170] sm:$0xff]
  %v11356 = vld [vmem:[#allocation3 + $0x178] sm:$0xff]
  %v11357 = vld [vmem:[#allocation3 + $0x180] sm:$0xff]
  %v11358 = vld [vmem:[#allocation3 + $0x188] sm:$0xff]
  %v11359 = vld [vmem:[#allocation3 + $0x190] sm:$0xff]
  %v11360 = vld [vmem:[#allocation3 + $0x198] sm:$0xff]
  %v11361 = vld [vmem:[#allocation3 + $0x1a0] sm:$0xff]
  %v11362 = vld [vmem:[#allocation3 + $0x1a8] sm:$0xff]
  %v11363 = vld [vmem:[#allocation3 + $0x1b0] sm:$0xff]
  %v11364 = vld [vmem:[#allocation3 + $0x1b8] sm:$0xff]
  %v11365 = vld [vmem:[#allocation3 + $0x1c0] sm:$0xff]
  %v11366 = vld [vmem:[#allocation3 + $0x1c8] sm:$0xff]
  %v11367 = vld [vmem:[#allocation3 + $0x1d0] sm:$0xff]
  %v11368 = vld [vmem:[#allocation3 + $0x1d8] sm:$0xff]
  %v11369 = vld [vmem:[#allocation3 + $0x1e0] sm:$0xff]
  %v11370 = vld [vmem:[#allocation3 + $0x1e8] sm:$0xff]
  %v11371 = vld [vmem:[#allocation3 + $0x1f0] sm:$0xff]
  %v11372 = vld [vmem:[#allocation3 + $0x1f8] sm:$0xff]
  %v11373 = vld [vmem:[#allocation3 + $0x200] sm:$0xff]
  %v11374 = vld [vmem:[#allocation3 + $0x208] sm:$0xff]
  %v11375 = vld [vmem:[#allocation3 + $0x210] sm:$0xff]
  %v11376 = vld [vmem:[#allocation3 + $0x218] sm:$0xff]
  %v11377 = vld [vmem:[#allocation3 + $0x220] sm:$0xff]
  %v11378 = vld [vmem:[#allocation3 + $0x228] sm:$0xff]
  %v11379 = vld [vmem:[#allocation3 + $0x230] sm:$0xff]
  %v11380 = vld [vmem:[#allocation3 + $0x238] sm:$0xff]
  %v11381 = vld [vmem:[#allocation3 + $0x240] sm:$0xff]
  %v11382 = vld [vmem:[#allocation3 + $0x248] sm:$0xff]
  %v11383 = vld [vmem:[#allocation3 + $0x250] sm:$0xff]
  %v11384 = vld [vmem:[#allocation3 + $0x258] sm:$0xff]
  %v11385 = vld [vmem:[#allocation3 + $0x260] sm:$0xff]
  %v11386 = vld [vmem:[#allocation3 + $0x268] sm:$0xff]
  %v11387 = vld [vmem:[#allocation3 + $0x270] sm:$0xff]
  %v11388 = vld [vmem:[#allocation3 + $0x278] sm:$0xff]
  %v11389 = vld [vmem:[#allocation3 + $0x280] sm:$0xff]
  %v11390 = vld [vmem:[%s3] sm:$0xf]
  %v11391 = vld [vmem:[%s3 + $0x4] sm:$0xf]
  %v11392 = vld [vmem:[%s3 + $0x8] sm:$0xf]
  %v11393 = vld [vmem:[%s3 + $0xc] sm:$0xf]
  %v11394 = vld [vmem:[%s3 + $0x10] sm:$0xf]
  %v11395 = vld [vmem:[%s3 + $0x14] sm:$0xf]
  %v11396 = vld [vmem:[%s3 + $0x18] sm:$0xf]
  %v11397 = vld [vmem:[%s3 + $0x1c] sm:$0xf]
  %v11398 = vld [vmem:[%s3 + $0x20] sm:$0xf]
  %v11399 = vld [vmem:[%s3 + $0x24] sm:$0xf]
  %v11400 = vld [vmem:[%s3 + $0x28] sm:$0xf]
  %v11401 = vld [vmem:[%s3 + $0x2c] sm:$0xf]
  %v11402 = vld [vmem:[%s3 + $0x30] sm:$0xf]
  %v11403 = vld [vmem:[%s3 + $0x34] sm:$0xf]
  %v11404 = vld [vmem:[%s3 + $0x38] sm:$0xf]
  %v11405 = vld [vmem:[%s3 + $0x3c] sm:$0xf]
  %v11406 = vld [vmem:[%s3 + $0x40] sm:$0xf]
  %v11407 = vld [vmem:[%s3 + $0x44] sm:$0xf]
  %v11408 = vld [vmem:[%s4] sm:$0x1]
  %v11410 = vlaneseq
  %v11411 = vshrl.u32 %v11410, 7
  %v11412 = vsub.s32 0, %v11411
  %v11413 = vrot.slane %v11408, %v11412
  %v11496 = vunpack.c.l.b16 %v11309
  %v11497 = vunpack.c.h.b16 %v11309
  %v11498 = vunpack.c.l.b16 %v11310
  %v11499 = vunpack.c.h.b16 %v11310
  %v11500 = vunpack.c.l.b16 %v11311
  %v11501 = vunpack.c.h.b16 %v11311
  %v11502 = vunpack.c.l.b16 %v11312
  %v11503 = vunpack.c.h.b16 %v11312
  %v11504 = vunpack.c.l.b16 %v11313
  %v11505 = vunpack.c.h.b16 %v11313
  %v11506 = vunpack.c.l.b16 %v11314
  %v11507 = vunpack.c.h.b16 %v11314
  %v11508 = vunpack.c.l.b16 %v11315
  %v11509 = vunpack.c.h.b16 %v11315
  %v11510 = vunpack.c.l.b16 %v11316
  %v11511 = vunpack.c.h.b16 %v11316
  %v11512 = vunpack.c.l.b16 %v11317
  %v11513 = vunpack.c.h.b16 %v11317
  %v11514 = vunpack.c.l.b16 %v11318
  %v11515 = vunpack.c.h.b16 %v11318
  %v11516 = vunpack.c.l.b16 %v11319
  %v11517 = vunpack.c.h.b16 %v11319
  %v11518 = vunpack.c.l.b16 %v11320
  %v11519 = vunpack.c.h.b16 %v11320
  %v11520 = vunpack.c.l.b16 %v11321
  %v11521 = vunpack.c.h.b16 %v11321
  %v11522 = vunpack.c.l.b16 %v11322
  %v11523 = vunpack.c.h.b16 %v11322
  %v11524 = vunpack.c.l.b16 %v11323
  %v11525 = vunpack.c.h.b16 %v11323
  %v11526 = vunpack.c.l.b16 %v11324
  %v11527 = vunpack.c.h.b16 %v11324
  %v11528 = vunpack.c.l.b16 %v11325
  %v11529 = vunpack.c.h.b16 %v11325
  %v11530 = vunpack.c.l.b16 %v11326
  %v11531 = vunpack.c.h.b16 %v11326
  %v11532 = vunpack.c.l.b16 %v11327
  %v11533 = vunpack.c.h.b16 %v11327
  %v11534 = vunpack.c.l.b16 %v11328
  %v11535 = vunpack.c.h.b16 %v11328
  %v11536 = vunpack.c.l.b16 %v11329
  %v11537 = vunpack.c.h.b16 %v11329
  %v11538 = vunpack.c.l.b16 %v11330
  %v11539 = vunpack.c.h.b16 %v11330
  %v11540 = vunpack.c.l.b16 %v11331
  %v11541 = vunpack.c.h.b16 %v11331
  %v11542 = vunpack.c.l.b16 %v11332
  %v11543 = vunpack.c.h.b16 %v11332
  %v11544 = vunpack.c.l.b16 %v11333
  %v11545 = vunpack.c.h.b16 %v11333
  %v11546 = vunpack.c.l.b16 %v11334
  %v11547 = vunpack.c.h.b16 %v11334
  %v11548 = vunpack.c.l.b16 %v11335
  %v11549 = vunpack.c.h.b16 %v11335
  %v11550 = vunpack.c.l.b16 %v11336
  %v11551 = vunpack.c.h.b16 %v11336
  %v11552 = vunpack.c.l.b16 %v11337
  %v11553 = vunpack.c.h.b16 %v11337
  %v11554 = vunpack.c.l.b16 %v11338
  %v11555 = vunpack.c.h.b16 %v11338
  %v11556 = vunpack.c.l.b16 %v11339
  %v11557 = vunpack.c.h.b16 %v11339
  %v11558 = vunpack.c.l.b16 %v11340
  %v11559 = vunpack.c.h.b16 %v11340
  %v11560 = vunpack.c.l.b16 %v11341
  %v11561 = vunpack.c.h.b16 %v11341
  %v11562 = vunpack.c.l.b16 %v11342
  %v11563 = vunpack.c.h.b16 %v11342
  %v11564 = vunpack.c.l.b16 %v11343
  %v11565 = vunpack.c.h.b16 %v11343
  %v11566 = vunpack.c.l.b16 %v11344
  %v11567 = vunpack.c.h.b16 %v11344
  %v11568 = vunpack.c.l.b16 %v11345
  %v11569 = vunpack.c.h.b16 %v11345
  %v11570 = vunpack.c.l.b16 %v11346
  %v11571 = vunpack.c.h.b16 %v11346
  %v11572 = vunpack.c.l.b16 %v11347
  %v11573 = vunpack.c.h.b16 %v11347
  %v11574 = vunpack.c.l.b16 %v11348
  %v11575 = vunpack.c.h.b16 %v11348
  %v11576 = vunpack.c.l.b16 %v11349
  %v11577 = vunpack.c.h.b16 %v11349
  %v11578 = vunpack.c.l.b16 %v11350
  %v11579 = vunpack.c.h.b16 %v11350
  %v11580 = vunpack.c.l.b16 %v11351
  %v11581 = vunpack.c.h.b16 %v11351
  %v11582 = vunpack.c.l.b16 %v11352
  %v11583 = vunpack.c.h.b16 %v11352
  %v11584 = vunpack.c.l.b16 %v11353
  %v11585 = vunpack.c.h.b16 %v11353
  %v11586 = vunpack.c.l.b16 %v11354
  %v11587 = vunpack.c.h.b16 %v11354
  %v11588 = vunpack.c.l.b16 %v11355
  %v11589 = vunpack.c.h.b16 %v11355
  %v11590 = vunpack.c.l.b16 %v11356
  %v11591 = vunpack.c.h.b16 %v11356
  %v11592 = vunpack.c.l.b16 %v11357
  %v11593 = vunpack.c.h.b16 %v11357
  %v11594 = vunpack.c.l.b16 %v11358
  %v11595 = vunpack.c.h.b16 %v11358
  %v11596 = vunpack.c.l.b16 %v11359
  %v11597 = vunpack.c.h.b16 %v11359
  %v11598 = vunpack.c.l.b16 %v11360
  %v11599 = vunpack.c.h.b16 %v11360
  %v11600 = vunpack.c.l.b16 %v11361
  %v11601 = vunpack.c.h.b16 %v11361
  %v11602 = vunpack.c.l.b16 %v11362
  %v11603 = vunpack.c.h.b16 %v11362
  %v11604 = vunpack.c.l.b16 %v11363
  %v11605 = vunpack.c.h.b16 %v11363
  %v11606 = vunpack.c.l.b16 %v11364
  %v11607 = vunpack.c.h.b16 %v11364
  %v11608 = vunpack.c.l.b16 %v11365
  %v11609 = vunpack.c.h.b16 %v11365
  %v11610 = vunpack.c.l.b16 %v11366
  %v11611 = vunpack.c.h.b16 %v11366
  %v11612 = vunpack.c.l.b16 %v11367
  %v11613 = vunpack.c.h.b16 %v11367
  %v11614 = vunpack.c.l.b16 %v11368
  %v11615 = vunpack.c.h.b16 %v11368
  %v11616 = vunpack.c.l.b16 %v11369
  %v11617 = vunpack.c.h.b16 %v11369
  %v11618 = vunpack.c.l.b16 %v11370
  %v11619 = vunpack.c.h.b16 %v11370
  %v11620 = vunpack.c.l.b16 %v11371
  %v11621 = vunpack.c.h.b16 %v11371
  %v11622 = vunpack.c.l.b16 %v11372
  %v11623 = vunpack.c.h.b16 %v11372
  %v11624 = vunpack.c.l.b16 %v11373
  %v11625 = vunpack.c.h.b16 %v11373
  %v11626 = vunpack.c.l.b16 %v11374
  %v11627 = vunpack.c.h.b16 %v11374
  %v11628 = vunpack.c.l.b16 %v11375
  %v11629 = vunpack.c.h.b16 %v11375
  %v11630 = vunpack.c.l.b16 %v11376
  %v11631 = vunpack.c.h.b16 %v11376
  %v11632 = vunpack.c.l.b16 %v11377
  %v11633 = vunpack.c.h.b16 %v11377
  %v11634 = vunpack.c.l.b16 %v11378
  %v11635 = vunpack.c.h.b16 %v11378
  %v11636 = vunpack.c.l.b16 %v11379
  %v11637 = vunpack.c.h.b16 %v11379
  %v11638 = vunpack.c.l.b16 %v11380
  %v11639 = vunpack.c.h.b16 %v11380
  %v11640 = vunpack.c.l.b16 %v11381
  %v11641 = vunpack.c.h.b16 %v11381
  %v11642 = vunpack.c.l.b16 %v11382
  %v11643 = vunpack.c.h.b16 %v11382
  %v11644 = vunpack.c.l.b16 %v11383
  %v11645 = vunpack.c.h.b16 %v11383
  %v11646 = vunpack.c.l.b16 %v11384
  %v11647 = vunpack.c.h.b16 %v11384
  %v11648 = vunpack.c.l.b16 %v11385
  %v11649 = vunpack.c.h.b16 %v11385
  %v11650 = vunpack.c.l.b16 %v11386
  %v11651 = vunpack.c.h.b16 %v11386
  %v11652 = vunpack.c.l.b16 %v11387
  %v11653 = vunpack.c.h.b16 %v11387
  %v11654 = vunpack.c.l.b16 %v11388
  %v11655 = vunpack.c.h.b16 %v11388
  %v11656 = vunpack.c.l.b16 %v11389
  %v11657 = vunpack.c.h.b16 %v11389
  %v11658 = vpack.c.b16 %v11498, %v11496
  %v11659 = vpack.c.b16 %v11499, %v11497
  %v11660 = vpack.c.b16 %v11502, %v11500
  %v11661 = vpack.c.b16 %v11503, %v11501
  %v11662 = vpack.c.b16 %v11506, %v11504
  %v11663 = vpack.c.b16 %v11507, %v11505
  %v11664 = vpack.c.b16 %v11510, %v11508
  %v11665 = vpack.c.b16 %v11511, %v11509
  %v11666 = vpack.c.b16 %v11514, %v11512
  %v11667 = vpack.c.b16 %v11515, %v11513
  %v11668 = vpack.c.b16 %v11518, %v11516
  %v11669 = vpack.c.b16 %v11519, %v11517
  %v11670 = vpack.c.b16 %v11522, %v11520
  %v11671 = vpack.c.b16 %v11523, %v11521
  %v11672 = vpack.c.b16 %v11526, %v11524
  %v11673 = vpack.c.b16 %v11527, %v11525
  %v11674 = vpack.c.b16 %v11530, %v11528
  %v11675 = vpack.c.b16 %v11531, %v11529
  %v11676 = vpack.c.b16 %v11534, %v11532
  %v11677 = vpack.c.b16 %v11535, %v11533
  %v11678 = vpack.c.b16 %v11538, %v11536
  %v11679 = vpack.c.b16 %v11539, %v11537
  %v11680 = vpack.c.b16 %v11542, %v11540
  %v11681 = vpack.c.b16 %v11543, %v11541
  %v11682 = vpack.c.b16 %v11546, %v11544
  %v11683 = vpack.c.b16 %v11547, %v11545
  %v11684 = vpack.c.b16 %v11550, %v11548
  %v11685 = vpack.c.b16 %v11551, %v11549
  %v11686 = vpack.c.b16 %v11554, %v11552
  %v11687 = vpack.c.b16 %v11555, %v11553
  %v11688 = vpack.c.b16 %v11558, %v11556
  %v11689 = vpack.c.b16 %v11559, %v11557
  %v11690 = vpack.c.b16 %v11562, %v11560
  %v11691 = vpack.c.b16 %v11563, %v11561
  %v11692 = vpack.c.b16 %v11566, %v11564
  %v11693 = vpack.c.b16 %v11567, %v11565
  %v11694 = vpack.c.b16 %v11570, %v11568
  %v11695 = vpack.c.b16 %v11571, %v11569
  %v11696 = vpack.c.b16 %v11574, %v11572
  %v11697 = vpack.c.b16 %v11575, %v11573
  %v11698 = vpack.c.b16 %v11578, %v11576
  %v11699 = vpack.c.b16 %v11579, %v11577
  %v11700 = vpack.c.b16 %v11582, %v11580
  %v11701 = vpack.c.b16 %v11583, %v11581
  %v11702 = vpack.c.b16 %v11586, %v11584
  %v11703 = vpack.c.b16 %v11587, %v11585
  %v11704 = vpack.c.b16 %v11590, %v11588
  %v11705 = vpack.c.b16 %v11591, %v11589
  %v11706 = vpack.c.b16 %v11594, %v11592
  %v11707 = vpack.c.b16 %v11595, %v11593
  %v11708 = vpack.c.b16 %v11598, %v11596
  %v11709 = vpack.c.b16 %v11599, %v11597
  %v11710 = vpack.c.b16 %v11602, %v11600
  %v11711 = vpack.c.b16 %v11603, %v11601
  %v11712 = vpack.c.b16 %v11606, %v11604
  %v11713 = vpack.c.b16 %v11607, %v11605
  %v11714 = vpack.c.b16 %v11610, %v11608
  %v11715 = vpack.c.b16 %v11611, %v11609
  %v11716 = vpack.c.b16 %v11614, %v11612
  %v11717 = vpack.c.b16 %v11615, %v11613
  %v11718 = vpack.c.b16 %v11618, %v11616
  %v11719 = vpack.c.b16 %v11619, %v11617
  %v11720 = vpack.c.b16 %v11622, %v11620
  %v11721 = vpack.c.b16 %v11623, %v11621
  %v11722 = vpack.c.b16 %v11626, %v11624
  %v11723 = vpack.c.b16 %v11627, %v11625
  %v11724 = vpack.c.b16 %v11630, %v11628
  %v11725 = vpack.c.b16 %v11631, %v11629
  %v11726 = vpack.c.b16 %v11634, %v11632
  %v11727 = vpack.c.b16 %v11635, %v11633
  %v11728 = vpack.c.b16 %v11638, %v11636
  %v11729 = vpack.c.b16 %v11639, %v11637
  %v11730 = vpack.c.b16 %v11642, %v11640
  %v11731 = vpack.c.b16 %v11643, %v11641
  %v11732 = vpack.c.b16 %v11646, %v11644
  %v11733 = vpack.c.b16 %v11647, %v11645
  %v11734 = vpack.c.b16 %v11650, %v11648
  %v11735 = vpack.c.b16 %v11651, %v11649
  %v11736 = vpack.c.b16 %v11654, %v11652
  %v11737 = vpack.c.b16 %v11655, %v11653
  %v11738 = vpack.c.b16 %v11656, %v11656
  %v11739 = vpack.c.b16 %v11657, %v11657
  %v11799 = vunpack.c.l.b16 %v11390
  %v11800 = vunpack.c.l.b16 %v11391
  %v11801 = vunpack.c.l.b16 %v11392
  %v11802 = vunpack.c.l.b16 %v11393
  %v11803 = vunpack.c.l.b16 %v11394
  %v11804 = vunpack.c.l.b16 %v11395
  %v11805 = vunpack.c.l.b16 %v11396
  %v11806 = vunpack.c.l.b16 %v11397
  %v11807 = vunpack.c.l.b16 %v11398
  %v11808 = vunpack.c.l.b16 %v11399
  %v11809 = vunpack.c.l.b16 %v11400
  %v11810 = vunpack.c.l.b16 %v11401
  %v11811 = vunpack.c.l.b16 %v11402
  %v11812 = vunpack.c.l.b16 %v11403
  %v11813 = vunpack.c.l.b16 %v11404
  %v11814 = vunpack.c.l.b16 %v11405
  %v11815 = vunpack.c.l.b16 %v11406
  %v11816 = vunpack.c.l.b16 %v11407
  %v11817 = vpack.c.b16 %v11800, %v11799
  %v11818 = vpack.c.b16 %v11802, %v11801
  %v11819 = vpack.c.b16 %v11804, %v11803
  %v11820 = vpack.c.b16 %v11806, %v11805
  %v11821 = vpack.c.b16 %v11808, %v11807
  %v11822 = vpack.c.b16 %v11810, %v11809
  %v11823 = vpack.c.b16 %v11812, %v11811
  %v11824 = vpack.c.b16 %v11814, %v11813
  %v11825 = vpack.c.b16 %v11816, %v11815
  %vm11835 = vcmask 130048
  %v11837 = vsel %vm11835, %v11659, 0
  %v11840 = vsel %vm11835, %v11661, 0
  %v11843 = vsel %vm11835, %v11663, 0
  %v11846 = vsel %vm11835, %v11665, 0
  %v11849 = vsel %vm11835, %v11667, 0
  %v11852 = vsel %vm11835, %v11669, 0
  %v11855 = vsel %vm11835, %v11671, 0
  %v11858 = vsel %vm11835, %v11673, 0
  %v11861 = vsel %vm11835, %v11675, 0
  %v11864 = vsel %vm11835, %v11677, 0
  %v11867 = vsel %vm11835, %v11679, 0
  %v11870 = vsel %vm11835, %v11681, 0
  %v11873 = vsel %vm11835, %v11683, 0
  %v11876 = vsel %vm11835, %v11685, 0
  %v11879 = vsel %vm11835, %v11687, 0
  %v11882 = vsel %vm11835, %v11689, 0
  %v11885 = vsel %vm11835, %v11691, 0
  %v11888 = vsel %vm11835, %v11693, 0
  %v11891 = vsel %vm11835, %v11695, 0
  %v11894 = vsel %vm11835, %v11697, 0
  %v11897 = vsel %vm11835, %v11699, 0
  %v11900 = vsel %vm11835, %v11701, 0
  %v11903 = vsel %vm11835, %v11703, 0
  %v11906 = vsel %vm11835, %v11705, 0
  %v11909 = vsel %vm11835, %v11707, 0
  %v11912 = vsel %vm11835, %v11709, 0
  %v11915 = vsel %vm11835, %v11711, 0
  %v11918 = vsel %vm11835, %v11713, 0
  %v11921 = vsel %vm11835, %v11715, 0
  %v11924 = vsel %vm11835, %v11717, 0
  %v11927 = vsel %vm11835, %v11719, 0
  %v11930 = vsel %vm11835, %v11721, 0
  %v11933 = vsel %vm11835, %v11723, 0
  %v11936 = vsel %vm11835, %v11725, 0
  %v11939 = vsel %vm11835, %v11727, 0
  %v11942 = vsel %vm11835, %v11729, 0
  %v11945 = vsel %vm11835, %v11731, 0
  %v11948 = vsel %vm11835, %v11733, 0
  %v11951 = vsel %vm11835, %v11735, 0
  %v11954 = vsel %vm11835, %v11737, 0
  %v11957 = vsel %vm11835, %v11739, 0
  %11959 = vmatprep.subr.bf16.mxu0 0
  %11960 = vmatpush1.bf16.msra.mxu0 %v11817
  %11961 = vmatprep.subr.bf16.mxu0 0
  %11962 = vmatpush1.bf16.msra.mxu0 %v11818
  %11963 = vmatprep.subr.bf16.mxu0 0
  %11964 = vmatpush1.bf16.msra.mxu0 %v11819
  %11965 = vmatprep.subr.bf16.mxu0 0
  %11966 = vmatpush1.bf16.msra.mxu0 %v11820
  %11967 = vmatprep.subr.bf16.mxu0 0
  %11968 = vmatpush1.bf16.msra.mxu0 %v11821
  %11969 = vmatprep.subr.bf16.mxu0 0
  %11970 = vmatpush1.bf16.msra.mxu0 %v11822
  %11971 = vmatprep.subr.bf16.mxu0 0
  %11972 = vmatpush1.bf16.msra.mxu0 %v11823
  %11973 = vmatprep.subr.bf16.mxu0 0
  %11974 = vmatpush1.bf16.msra.mxu0 %v11824
  %11975 = vmatprep.subr.bf16.mxu0 0
  %11976 = vmatpush1.bf16.msra.mxu0 %v11825
  %11977 = vmatprep.subr.bf16.mxu0 0
  %11978 = vmatpush1.bf16.msra.mxu0 0
  %11979 = vmatprep.subr.bf16.mxu0 0
  %11980 = vmatpush1.bf16.msra.mxu0 0
  %11981 = vmatprep.subr.bf16.mxu0 0
  %11982 = vmatpush1.bf16.msra.mxu0 0
  %11983 = vmatprep.subr.bf16.mxu0 0
  %11984 = vmatpush1.bf16.msra.mxu0 0
  %11985 = vmatprep.subr.bf16.mxu0 0
  %11986 = vmatpush1.bf16.msra.mxu0 0
  %11987 = vmatprep.subr.bf16.mxu0 0
  %11988 = vmatpush1.bf16.msra.mxu0 0
  %11989 = vmatprep.subr.bf16.mxu0 0
  %11990 = vmatpush1.bf16.msra.mxu0 0
  %11991 = vmatprep.mubr.bf16.mxu0 %v11837
  %11992 = vmatmul.mubr.bf16.gmra.mrb[0].mxu0 %v11658
  %v11993 = vpop.f32.mrb[0].mxu0
  %v11994 = vadd.f32 %v11413, %v11993
  %v11995 = vpop.f32.mrb[0].mxu0
  %v11996 = vpop.f32.mrb[0].mxu0
  %v11997 = vadd.f32 %v11413, %v11996
  %v11998 = vpop.f32.mrb[0].mxu0
  %11999 = vmatprep.mubr.bf16.mxu0 %v11840
  %12000 = vmatmul.mubr.bf16.gmra.mrb[0].mxu0 %v11660
  %v12001 = vpop.f32.mrb[0].mxu0
  %v12002 = vadd.f32 %v11413, %v12001
  %v12003 = vpop.f32.mrb[0].mxu0
  %v12004 = vpop.f32.mrb[0].mxu0
  %v12005 = vadd.f32 %v11413, %v12004
  %v12006 = vpop.f32.mrb[0].mxu0
  %12007 = vmatprep.mubr.bf16.mxu0 %v11843
  %12008 = vmatmul.mubr.bf16.gmra.mrb[0].mxu0 %v11662
  %v12009 = vpop.f32.mrb[0].mxu0
  %v12010 = vadd.f32 %v11413, %v12009
  %v12011 = vpop.f32.mrb[0].mxu0
  %v12012 = vpop.f32.mrb[0].mxu0
  %v12013 = vadd.f32 %v11413, %v12012
  %v12014 = vpop.f32.mrb[0].mxu0
  %12015 = vmatprep.mubr.bf16.mxu0 %v11846
  %12016 = vmatmul.mubr.bf16.gmra.mrb[0].mxu0 %v11664
  %v12017 = vpop.f32.mrb[0].mxu0
  %v12018 = vadd.f32 %v11413, %v12017
  %v12019 = vpop.f32.mrb[0].mxu0
  %v12020 = vpop.f32.mrb[0].mxu0
  %v12021 = vadd.f32 %v11413, %v12020
  %v12022 = vpop.f32.mrb[0].mxu0
  %12023 = vmatprep.mubr.bf16.mxu0 %v11849
  %12024 = vmatmul.mubr.bf16.gmra.mrb[0].mxu0 %v11666
  %v12025 = vpop.f32.mrb[0].mxu0
  %v12026 = vadd.f32 %v11413, %v12025
  %v12027 = vpop.f32.mrb[0].mxu0
  %v12028 = vpop.f32.mrb[0].mxu0
  %v12029 = vadd.f32 %v11413, %v12028
  %v12030 = vpop.f32.mrb[0].mxu0
  %12031 = vmatprep.mubr.bf16.mxu0 %v11852
  %12032 = vmatmul.mubr.bf16.gmra.mrb[0].mxu0 %v11668
  %v12033 = vpop.f32.mrb[0].mxu0
  %v12034 = vadd.f32 %v11413, %v12033
  %v12035 = vpop.f32.mrb[0].mxu0
  %v12036 = vpop.f32.mrb[0].mxu0
  %v12037 = vadd.f32 %v11413, %v12036
  %v12038 = vpop.f32.mrb[0].mxu0
  %12039 = vmatprep.mubr.bf16.mxu0 %v11855
  %12040 = vmatmul.mubr.bf16.gmra.mrb[0].mxu0 %v11670
  %v12041 = vpop.f32.mrb[0].mxu0
  %v12042 = vadd.f32 %v11413, %v12041
  %v12043 = vpop.f32.mrb[0].mxu0
  %v12044 = vpop.f32.mrb[0].mxu0
  %v12045 = vadd.f32 %v11413, %v12044
  %v12046 = vpop.f32.mrb[0].mxu0
  %12047 = vmatprep.mubr.bf16.mxu0 %v11858
  %12048 = vmatmul.mubr.bf16.gmra.mrb[0].mxu0 %v11672
  %v12049 = vpop.f32.mrb[0].mxu0
  %v12050 = vadd.f32 %v11413, %v12049
  %v12051 = vpop.f32.mrb[0].mxu0
  %v12052 = vpop.f32.mrb[0].mxu0
  %v12053 = vadd.f32 %v11413, %v12052
  %v12054 = vpop.f32.mrb[0].mxu0
  %12055 = vmatprep.mubr.bf16.mxu0 %v11861
  %12056 = vmatmul.mubr.bf16.gmra.mrb[0].mxu0 %v11674
  %v12057 = vpop.f32.mrb[0].mxu0
  %v12058 = vadd.f32 %v11413, %v12057
  %v12059 = vpop.f32.mrb[0].mxu0
  %v12060 = vpop.f32.mrb[0].mxu0
  %v12061 = vadd.f32 %v11413, %v12060
  %v12062 = vpop.f32.mrb[0].mxu0
  %12063 = vmatprep.mubr.bf16.mxu0 %v11864
  %12064 = vmatmul.mubr.bf16.gmra.mrb[0].mxu0 %v11676
  %v12065 = vpop.f32.mrb[0].mxu0
  %v12066 = vadd.f32 %v11413, %v12065
  %v12067 = vpop.f32.mrb[0].mxu0
  %v12068 = vpop.f32.mrb[0].mxu0
  %v12069 = vadd.f32 %v11413, %v12068
  %v12070 = vpop.f32.mrb[0].mxu0
  %12071 = vmatprep.mubr.bf16.mxu0 %v11867
  %12072 = vmatmul.mubr.bf16.gmra.mrb[0].mxu0 %v11678
  %v12073 = vpop.f32.mrb[0].mxu0
  %v12074 = vadd.f32 %v11413, %v12073
  %v12075 = vpop.f32.mrb[0].mxu0
  %v12076 = vpop.f32.mrb[0].mxu0
  %v12077 = vadd.f32 %v11413, %v12076
  %v12078 = vpop.f32.mrb[0].mxu0
  %12079 = vmatprep.mubr.bf16.mxu0 %v11870
  %12080 = vmatmul.mubr.bf16.gmra.mrb[0].mxu0 %v11680
  %v12081 = vpop.f32.mrb[0].mxu0
  %v12082 = vadd.f32 %v11413, %v12081
  %v12083 = vpop.f32.mrb[0].mxu0
  %v12084 = vpop.f32.mrb[0].mxu0
  %v12085 = vadd.f32 %v11413, %v12084
  %v12086 = vpop.f32.mrb[0].mxu0
  %12087 = vmatprep.mubr.bf16.mxu0 %v11873
  %12088 = vmatmul.mubr.bf16.gmra.mrb[0].mxu0 %v11682
  %v12089 = vpop.f32.mrb[0].mxu0
  %v12090 = vadd.f32 %v11413, %v12089
  %v12091 = vpop.f32.mrb[0].mxu0
  %v12092 = vpop.f32.mrb[0].mxu0
  %v12093 = vadd.f32 %v11413, %v12092
  %v12094 = vpop.f32.mrb[0].mxu0
  %12095 = vmatprep.mubr.bf16.mxu0 %v11876
  %12096 = vmatmul.mubr.bf16.gmra.mrb[0].mxu0 %v11684
  %v12097 = vpop.f32.mrb[0].mxu0
  %v12098 = vadd.f32 %v11413, %v12097
  %v12099 = vpop.f32.mrb[0].mxu0
  %v12100 = vpop.f32.mrb[0].mxu0
  %v12101 = vadd.f32 %v11413, %v12100
  %v12102 = vpop.f32.mrb[0].mxu0
  %12103 = vmatprep.mubr.bf16.mxu0 %v11879
  %12104 = vmatmul.mubr.bf16.gmra.mrb[0].mxu0 %v11686
  %v12105 = vpop.f32.mrb[0].mxu0
  %v12106 = vadd.f32 %v11413, %v12105
  %v12107 = vpop.f32.mrb[0].mxu0
  %v12108 = vpop.f32.mrb[0].mxu0
  %v12109 = vadd.f32 %v11413, %v12108
  %v12110 = vpop.f32.mrb[0].mxu0
  %12111 = vmatprep.mubr.bf16.mxu0 %v11882
  %12112 = vmatmul.mubr.bf16.gmra.mrb[0].mxu0 %v11688
  %v12113 = vpop.f32.mrb[0].mxu0
  %v12114 = vadd.f32 %v11413, %v12113
  %v12115 = vpop.f32.mrb[0].mxu0
  %v12116 = vpop.f32.mrb[0].mxu0
  %v12117 = vadd.f32 %v11413, %v12116
  %v12118 = vpop.f32.mrb[0].mxu0
  %12119 = vmatprep.mubr.bf16.mxu0 %v11885
  %12120 = vmatmul.mubr.bf16.gmra.mrb[0].mxu0 %v11690
  %v12121 = vpop.f32.mrb[0].mxu0
  %v12122 = vadd.f32 %v11413, %v12121
  %v12123 = vpop.f32.mrb[0].mxu0
  %v12124 = vpop.f32.mrb[0].mxu0
  %v12125 = vadd.f32 %v11413, %v12124
  %v12126 = vpop.f32.mrb[0].mxu0
  %12127 = vmatprep.mubr.bf16.mxu0 %v11888
  %12128 = vmatmul.mubr.bf16.gmra.mrb[0].mxu0 %v11692
  %v12129 = vpop.f32.mrb[0].mxu0
  %v12130 = vadd.f32 %v11413, %v12129
  %v12131 = vpop.f32.mrb[0].mxu0
  %v12132 = vpop.f32.mrb[0].mxu0
  %v12133 = vadd.f32 %v11413, %v12132
  %v12134 = vpop.f32.mrb[0].mxu0
  %12135 = vmatprep.mubr.bf16.mxu0 %v11891
  %12136 = vmatmul.mubr.bf16.gmra.mrb[0].mxu0 %v11694
  %v12137 = vpop.f32.mrb[0].mxu0
  %v12138 = vadd.f32 %v11413, %v12137
  %v12139 = vpop.f32.mrb[0].mxu0
  %v12140 = vpop.f32.mrb[0].mxu0
  %v12141 = vadd.f32 %v11413, %v12140
  %v12142 = vpop.f32.mrb[0].mxu0
  %12143 = vmatprep.mubr.bf16.mxu0 %v11894
  %12144 = vmatmul.mubr.bf16.gmra.mrb[0].mxu0 %v11696
  %v12145 = vpop.f32.mrb[0].mxu0
  %v12146 = vadd.f32 %v11413, %v12145
  %v12147 = vpop.f32.mrb[0].mxu0
  %v12148 = vpop.f32.mrb[0].mxu0
  %v12149 = vadd.f32 %v11413, %v12148
  %v12150 = vpop.f32.mrb[0].mxu0
  %12151 = vmatprep.mubr.bf16.mxu0 %v11897
  %12152 = vmatmul.mubr.bf16.gmra.mrb[0].mxu0 %v11698
  %v12153 = vpop.f32.mrb[0].mxu0
  %v12154 = vadd.f32 %v11413, %v12153
  %v12155 = vpop.f32.mrb[0].mxu0
  %v12156 = vpop.f32.mrb[0].mxu0
  %v12157 = vadd.f32 %v11413, %v12156
  %v12158 = vpop.f32.mrb[0].mxu0
  %12159 = vmatprep.mubr.bf16.mxu0 %v11900
  %12160 = vmatmul.mubr.bf16.gmra.mrb[0].mxu0 %v11700
  %v12161 = vpop.f32.mrb[0].mxu0
  %v12162 = vadd.f32 %v11413, %v12161
  %v12163 = vpop.f32.mrb[0].mxu0
  %v12164 = vpop.f32.mrb[0].mxu0
  %v12165 = vadd.f32 %v11413, %v12164
  %v12166 = vpop.f32.mrb[0].mxu0
  %12167 = vmatprep.mubr.bf16.mxu0 %v11903
  %12168 = vmatmul.mubr.bf16.gmra.mrb[0].mxu0 %v11702
  %v12169 = vpop.f32.mrb[0].mxu0
  %v12170 = vadd.f32 %v11413, %v12169
  %v12171 = vpop.f32.mrb[0].mxu0
  %v12172 = vpop.f32.mrb[0].mxu0
  %v12173 = vadd.f32 %v11413, %v12172
  %v12174 = vpop.f32.mrb[0].mxu0
  %12175 = vmatprep.mubr.bf16.mxu0 %v11906
  %12176 = vmatmul.mubr.bf16.gmra.mrb[0].mxu0 %v11704
  %v12177 = vpop.f32.mrb[0].mxu0
  %v12178 = vadd.f32 %v11413, %v12177
  %v12179 = vpop.f32.mrb[0].mxu0
  %v12180 = vpop.f32.mrb[0].mxu0
  %v12181 = vadd.f32 %v11413, %v12180
  %v12182 = vpop.f32.mrb[0].mxu0
  %12183 = vmatprep.mubr.bf16.mxu0 %v11909
  %12184 = vmatmul.mubr.bf16.gmra.mrb[0].mxu0 %v11706
  %v12185 = vpop.f32.mrb[0].mxu0
  %v12186 = vadd.f32 %v11413, %v12185
  %v12187 = vpop.f32.mrb[0].mxu0
  %v12188 = vpop.f32.mrb[0].mxu0
  %v12189 = vadd.f32 %v11413, %v12188
  %v12190 = vpop.f32.mrb[0].mxu0
  %12191 = vmatprep.mubr.bf16.mxu0 %v11912
  %12192 = vmatmul.mubr.bf16.gmra.mrb[0].mxu0 %v11708
  %v12193 = vpop.f32.mrb[0].mxu0
  %v12194 = vadd.f32 %v11413, %v12193
  %v12195 = vpop.f32.mrb[0].mxu0
  %v12196 = vpop.f32.mrb[0].mxu0
  %v12197 = vadd.f32 %v11413, %v12196
  %v12198 = vpop.f32.mrb[0].mxu0
  %12199 = vmatprep.mubr.bf16.mxu0 %v11915
  %12200 = vmatmul.mubr.bf16.gmra.mrb[0].mxu0 %v11710
  %v12201 = vpop.f32.mrb[0].mxu0
  %v12202 = vadd.f32 %v11413, %v12201
  %v12203 = vpop.f32.mrb[0].mxu0
  %v12204 = vpop.f32.mrb[0].mxu0
  %v12205 = vadd.f32 %v11413, %v12204
  %v12206 = vpop.f32.mrb[0].mxu0
  %12207 = vmatprep.mubr.bf16.mxu0 %v11918
  %12208 = vmatmul.mubr.bf16.gmra.mrb[0].mxu0 %v11712
  %v12209 = vpop.f32.mrb[0].mxu0
  %v12210 = vadd.f32 %v11413, %v12209
  %v12211 = vpop.f32.mrb[0].mxu0
  %v12212 = vpop.f32.mrb[0].mxu0
  %v12213 = vadd.f32 %v11413, %v12212
  %v12214 = vpop.f32.mrb[0].mxu0
  %12215 = vmatprep.mubr.bf16.mxu0 %v11921
  %12216 = vmatmul.mubr.bf16.gmra.mrb[0].mxu0 %v11714
  %v12217 = vpop.f32.mrb[0].mxu0
  %v12218 = vadd.f32 %v11413, %v12217
  %v12219 = vpop.f32.mrb[0].mxu0
  %v12220 = vpop.f32.mrb[0].mxu0
  %v12221 = vadd.f32 %v11413, %v12220
  %v12222 = vpop.f32.mrb[0].mxu0
  %12223 = vmatprep.mubr.bf16.mxu0 %v11924
  %12224 = vmatmul.mubr.bf16.gmra.mrb[0].mxu0 %v11716
  %v12225 = vpop.f32.mrb[0].mxu0
  %v12226 = vadd.f32 %v11413, %v12225
  %v12227 = vpop.f32.mrb[0].mxu0
  %v12228 = vpop.f32.mrb[0].mxu0
  %v12229 = vadd.f32 %v11413, %v12228
  %v12230 = vpop.f32.mrb[0].mxu0
  %12231 = vmatprep.mubr.bf16.mxu0 %v11927
  %12232 = vmatmul.mubr.bf16.gmra.mrb[0].mxu0 %v11718
  %v12233 = vpop.f32.mrb[0].mxu0
  %v12234 = vadd.f32 %v11413, %v12233
  %v12235 = vpop.f32.mrb[0].mxu0
  %v12236 = vpop.f32.mrb[0].mxu0
  %v12237 = vadd.f32 %v11413, %v12236
  %v12238 = vpop.f32.mrb[0].mxu0
  %12239 = vmatprep.mubr.bf16.mxu0 %v11930
  %12240 = vmatmul.mubr.bf16.gmra.mrb[0].mxu0 %v11720
  %v12241 = vpop.f32.mrb[0].mxu0
  %v12242 = vadd.f32 %v11413, %v12241
  %v12243 = vpop.f32.mrb[0].mxu0
  %v12244 = vpop.f32.mrb[0].mxu0
  %v12245 = vadd.f32 %v11413, %v12244
  %v12246 = vpop.f32.mrb[0].mxu0
  %12247 = vmatprep.mubr.bf16.mxu0 %v11933
  %12248 = vmatmul.mubr.bf16.gmra.mrb[0].mxu0 %v11722
  %v12249 = vpop.f32.mrb[0].mxu0
  %v12250 = vadd.f32 %v11413, %v12249
  %v12251 = vpop.f32.mrb[0].mxu0
  %v12252 = vpop.f32.mrb[0].mxu0
  %v12253 = vadd.f32 %v11413, %v12252
  %v12254 = vpop.f32.mrb[0].mxu0
  %12255 = vmatprep.mubr.bf16.mxu0 %v11936
  %12256 = vmatmul.mubr.bf16.gmra.mrb[0].mxu0 %v11724
  %v12257 = vpop.f32.mrb[0].mxu0
  %v12258 = vadd.f32 %v11413, %v12257
  %v12259 = vpop.f32.mrb[0].mxu0
  %v12260 = vpop.f32.mrb[0].mxu0
  %v12261 = vadd.f32 %v11413, %v12260
  %v12262 = vpop.f32.mrb[0].mxu0
  %12263 = vmatprep.mubr.bf16.mxu0 %v11939
  %12264 = vmatmul.mubr.bf16.gmra.mrb[0].mxu0 %v11726
  %v12265 = vpop.f32.mrb[0].mxu0
  %v12266 = vadd.f32 %v11413, %v12265
  %v12267 = vpop.f32.mrb[0].mxu0
  %v12268 = vpop.f32.mrb[0].mxu0
  %v12269 = vadd.f32 %v11413, %v12268
  %v12270 = vpop.f32.mrb[0].mxu0
  %12271 = vmatprep.mubr.bf16.mxu0 %v11942
  %12272 = vmatmul.mubr.bf16.gmra.mrb[0].mxu0 %v11728
  %v12273 = vpop.f32.mrb[0].mxu0
  %v12274 = vadd.f32 %v11413, %v12273
  %v12275 = vpop.f32.mrb[0].mxu0
  %v12276 = vpop.f32.mrb[0].mxu0
  %v12277 = vadd.f32 %v11413, %v12276
  %v12278 = vpop.f32.mrb[0].mxu0
  %12279 = vmatprep.mubr.bf16.mxu0 %v11945
  %12280 = vmatmul.mubr.bf16.gmra.mrb[0].mxu0 %v11730
  %v12281 = vpop.f32.mrb[0].mxu0
  %v12282 = vadd.f32 %v11413, %v12281
  %v12283 = vpop.f32.mrb[0].mxu0
  %v12284 = vpop.f32.mrb[0].mxu0
  %v12285 = vadd.f32 %v11413, %v12284
  %v12286 = vpop.f32.mrb[0].mxu0
  %12287 = vmatprep.mubr.bf16.mxu0 %v11948
  %12288 = vmatmul.mubr.bf16.gmra.mrb[0].mxu0 %v11732
  %v12289 = vpop.f32.mrb[0].mxu0
  %v12290 = vadd.f32 %v11413, %v12289
  %v12291 = vpop.f32.mrb[0].mxu0
  %v12292 = vpop.f32.mrb[0].mxu0
  %v12293 = vadd.f32 %v11413, %v12292
  %v12294 = vpop.f32.mrb[0].mxu0
  %12295 = vmatprep.mubr.bf16.mxu0 %v11951
  %12296 = vmatmul.mubr.bf16.gmra.mrb[0].mxu0 %v11734
  %v12297 = vpop.f32.mrb[0].mxu0
  %v12298 = vadd.f32 %v11413, %v12297
  %v12299 = vpop.f32.mrb[0].mxu0
  %v12300 = vpop.f32.mrb[0].mxu0
  %v12301 = vadd.f32 %v11413, %v12300
  %v12302 = vpop.f32.mrb[0].mxu0
  %12303 = vmatprep.mubr.bf16.mxu0 %v11954
  %12304 = vmatmul.mubr.bf16.gmra.mrb[0].mxu0 %v11736
  %v12305 = vpop.f32.mrb[0].mxu0
  %v12306 = vadd.f32 %v11413, %v12305
  %v12307 = vpop.f32.mrb[0].mxu0
  %v12308 = vpop.f32.mrb[0].mxu0
  %v12309 = vadd.f32 %v11413, %v12308
  %v12310 = vpop.f32.mrb[0].mxu0
  %12311 = vmatprep.mubr.bf16.mxu0 %v11957
  %12312 = vmatmul.mubr.bf16.gmra.mrb[0].mxu0 %v11738
  %v12313 = vpop.f32.mrb[0].mxu0
  %v12314 = vadd.f32 %v11413, %v12313
  %v12315 = vpop.f32.mrb[0].mxu0
  %v12316 = vpop.f32.mrb[0].mxu0
  %v12317 = vpop.f32.mrb[0].mxu0
  %12318 = vdwg.mxu0
  %12319 = vrot.lane.b32.xlu0 %v39, 22
  %v12320 = vpop.permute.xlu0 %12319
  %12321 = vrot.lane.b32.xlu0 %v40, 22
  %v12322 = vpop.permute.xlu0 %12321
  %12323 = vrot.lane.b32.xlu0 %v41, 22
  %v12324 = vpop.permute.xlu0 %12323
  %12325 = vrot.lane.b32.xlu0 %v42, 22
  %v12326 = vpop.permute.xlu0 %12325
  %12327 = vrot.lane.b32.xlu0 %v43, 22
  %v12328 = vpop.permute.xlu0 %12327
  %12329 = vrot.lane.b32.xlu0 %v44, 22
  %v12330 = vpop.permute.xlu0 %12329
  %12331 = vrot.lane.b32.xlu0 %v45, 22
  %v12332 = vpop.permute.xlu0 %12331
  %12333 = vrot.lane.b32.xlu0 %v46, 22
  %v12334 = vpop.permute.xlu0 %12333
  %12335 = vrot.lane.b32.xlu0 %v47, 22
  %v12336 = vpop.permute.xlu0 %12335
  %12337 = vrot.lane.b32.xlu0 %v48, 22
  %v12338 = vpop.permute.xlu0 %12337
  %12339 = vrot.lane.b32.xlu0 %v49, 22
  %v12340 = vpop.permute.xlu0 %12339
  %12341 = vrot.lane.b32.xlu0 %v50, 22
  %v12342 = vpop.permute.xlu0 %12341
  %12343 = vrot.lane.b32.xlu0 %v51, 22
  %v12344 = vpop.permute.xlu0 %12343
  %12345 = vrot.lane.b32.xlu0 %v52, 22
  %v12346 = vpop.permute.xlu0 %12345
  %12347 = vrot.lane.b32.xlu0 %v53, 22
  %v12348 = vpop.permute.xlu0 %12347
  %12349 = vrot.lane.b32.xlu0 %v54, 22
  %v12350 = vpop.permute.xlu0 %12349
  %12351 = vrot.lane.b32.xlu0 %v55, 22
  %v12352 = vpop.permute.xlu0 %12351
  %12353 = vrot.lane.b32.xlu0 %v56, 22
  %v12354 = vpop.permute.xlu0 %12353
  %12355 = vrot.lane.b32.xlu0 %v57, 22
  %v12356 = vpop.permute.xlu0 %12355
  %12357 = vrot.lane.b32.xlu0 %v58, 22
  %v12358 = vpop.permute.xlu0 %12357
  %12359 = vrot.lane.b32.xlu0 %v59, 22
  %v12360 = vpop.permute.xlu0 %12359
  %12361 = vrot.lane.b32.xlu0 %v60, 22
  %v12362 = vpop.permute.xlu0 %12361
  %12363 = vrot.lane.b32.xlu0 %v61, 22
  %v12364 = vpop.permute.xlu0 %12363
  %12365 = vrot.lane.b32.xlu0 %v62, 22
  %v12366 = vpop.permute.xlu0 %12365
  %12367 = vrot.lane.b32.xlu0 %v63, 22
  %v12368 = vpop.permute.xlu0 %12367
  %12369 = vrot.lane.b32.xlu0 %v64, 22
  %v12370 = vpop.permute.xlu0 %12369
  %12371 = vrot.lane.b32.xlu0 %v65, 22
  %v12372 = vpop.permute.xlu0 %12371
  %12373 = vrot.lane.b32.xlu0 %v66, 22
  %v12374 = vpop.permute.xlu0 %12373
  %12375 = vrot.lane.b32.xlu0 %v67, 22
  %v12376 = vpop.permute.xlu0 %12375
  %12377 = vrot.lane.b32.xlu0 %v68, 22
  %v12378 = vpop.permute.xlu0 %12377
  %12379 = vrot.lane.b32.xlu0 %v69, 22
  %v12380 = vpop.permute.xlu0 %12379
  %12381 = vrot.lane.b32.xlu0 %v70, 22
  %v12382 = vpop.permute.xlu0 %12381
  %12383 = vrot.lane.b32.xlu0 %v71, 22
  %v12384 = vpop.permute.xlu0 %12383
  %12385 = vrot.lane.b32.xlu0 %v72, 22
  %v12386 = vpop.permute.xlu0 %12385
  %12387 = vrot.lane.b32.xlu0 %v73, 22
  %v12388 = vpop.permute.xlu0 %12387
  %12389 = vrot.lane.b32.xlu0 %v74, 22
  %v12390 = vpop.permute.xlu0 %12389
  %12391 = vrot.lane.b32.xlu0 %v75, 22
  %v12392 = vpop.permute.xlu0 %12391
  %12393 = vrot.lane.b32.xlu0 %v76, 22
  %v12394 = vpop.permute.xlu0 %12393
  %12395 = vrot.lane.b32.xlu0 %v77, 22
  %v12396 = vpop.permute.xlu0 %12395
  %12397 = vrot.lane.b32.xlu0 %v78, 22
  %v12398 = vpop.permute.xlu0 %12397
  %12399 = vrot.lane.b32.xlu0 %v79, 22
  %v12400 = vpop.permute.xlu0 %12399
  %12401 = vrot.lane.b32.xlu0 %v80, 22
  %v12402 = vpop.permute.xlu0 %12401
  %12403 = vrot.lane.b32.xlu0 %v81, 22
  %v12404 = vpop.permute.xlu0 %12403
  %12405 = vrot.lane.b32.xlu0 %v82, 22
  %v12406 = vpop.permute.xlu0 %12405
  %12407 = vrot.lane.b32.xlu0 %v83, 22
  %v12408 = vpop.permute.xlu0 %12407
  %12409 = vrot.lane.b32.xlu0 %v84, 22
  %v12410 = vpop.permute.xlu0 %12409
  %12411 = vrot.lane.b32.xlu0 %v85, 22
  %v12412 = vpop.permute.xlu0 %12411
  %12413 = vrot.lane.b32.xlu0 %v86, 22
  %v12414 = vpop.permute.xlu0 %12413
  %12415 = vrot.lane.b32.xlu0 %v87, 22
  %v12416 = vpop.permute.xlu0 %12415
  %12417 = vrot.lane.b32.xlu0 %v88, 22
  %v12418 = vpop.permute.xlu0 %12417
  %12419 = vrot.lane.b32.xlu0 %v89, 22
  %v12420 = vpop.permute.xlu0 %12419
  %12421 = vrot.lane.b32.xlu0 %v90, 22
  %v12422 = vpop.permute.xlu0 %12421
  %12423 = vrot.lane.b32.xlu0 %v91, 22
  %v12424 = vpop.permute.xlu0 %12423
  %12425 = vrot.lane.b32.xlu0 %v92, 22
  %v12426 = vpop.permute.xlu0 %12425
  %12427 = vrot.lane.b32.xlu0 %v93, 22
  %v12428 = vpop.permute.xlu0 %12427
  %12429 = vrot.lane.b32.xlu0 %v94, 22
  %v12430 = vpop.permute.xlu0 %12429
  %12431 = vrot.lane.b32.xlu0 %v95, 22
  %v12432 = vpop.permute.xlu0 %12431
  %12433 = vrot.lane.b32.xlu0 %v96, 22
  %v12434 = vpop.permute.xlu0 %12433
  %12435 = vrot.lane.b32.xlu0 %v97, 22
  %v12436 = vpop.permute.xlu0 %12435
  %12437 = vrot.lane.b32.xlu0 %v98, 22
  %v12438 = vpop.permute.xlu0 %12437
  %12439 = vrot.lane.b32.xlu0 %v99, 22
  %v12440 = vpop.permute.xlu0 %12439
  %12441 = vrot.lane.b32.xlu0 %v100, 22
  %v12442 = vpop.permute.xlu0 %12441
  %12443 = vrot.lane.b32.xlu0 %v101, 22
  %v12444 = vpop.permute.xlu0 %12443
  %12445 = vrot.lane.b32.xlu0 %v102, 22
  %v12446 = vpop.permute.xlu0 %12445
  %12447 = vrot.lane.b32.xlu0 %v103, 22
  %v12448 = vpop.permute.xlu0 %12447
  %12449 = vrot.lane.b32.xlu0 %v104, 22
  %v12450 = vpop.permute.xlu0 %12449
  %12451 = vrot.lane.b32.xlu0 %v105, 22
  %v12452 = vpop.permute.xlu0 %12451
  %12453 = vrot.lane.b32.xlu0 %v106, 22
  %v12454 = vpop.permute.xlu0 %12453
  %12455 = vrot.lane.b32.xlu0 %v107, 22
  %v12456 = vpop.permute.xlu0 %12455
  %12457 = vrot.lane.b32.xlu0 %v108, 22
  %v12458 = vpop.permute.xlu0 %12457
  %12459 = vrot.lane.b32.xlu0 %v109, 22
  %v12460 = vpop.permute.xlu0 %12459
  %12461 = vrot.lane.b32.xlu0 %v110, 22
  %v12462 = vpop.permute.xlu0 %12461
  %12463 = vrot.lane.b32.xlu0 %v111, 22
  %v12464 = vpop.permute.xlu0 %12463
  %12465 = vrot.lane.b32.xlu0 %v112, 22
  %v12466 = vpop.permute.xlu0 %12465
  %12467 = vrot.lane.b32.xlu0 %v113, 22
  %v12468 = vpop.permute.xlu0 %12467
  %12469 = vrot.lane.b32.xlu0 %v114, 22
  %v12470 = vpop.permute.xlu0 %12469
  %12471 = vrot.lane.b32.xlu0 %v115, 22
  %v12472 = vpop.permute.xlu0 %12471
  %12473 = vrot.lane.b32.xlu0 %v116, 22
  %v12474 = vpop.permute.xlu0 %12473
  %12475 = vrot.lane.b32.xlu0 %v117, 22
  %v12476 = vpop.permute.xlu0 %12475
  %12477 = vrot.lane.b32.xlu0 %v118, 22
  %v12478 = vpop.permute.xlu0 %12477
  %12479 = vrot.lane.b32.xlu0 %v119, 22
  %v12480 = vpop.permute.xlu0 %12479
  %v12562 = vmul.f32 %v11994, %v12320
  %v12563 = vmul.f32 %v11997, %v12322
  %v12564 = vmul.f32 %v12002, %v12324
  %v12565 = vmul.f32 %v12005, %v12326
  %v12566 = vmul.f32 %v12010, %v12328
  %v12567 = vmul.f32 %v12013, %v12330
  %v12568 = vmul.f32 %v12018, %v12332
  %v12569 = vmul.f32 %v12021, %v12334
  %v12570 = vmul.f32 %v12026, %v12336
  %v12571 = vmul.f32 %v12029, %v12338
  %v12572 = vmul.f32 %v12034, %v12340
  %v12573 = vmul.f32 %v12037, %v12342
  %v12574 = vmul.f32 %v12042, %v12344
  %v12575 = vmul.f32 %v12045, %v12346
  %v12576 = vmul.f32 %v12050, %v12348
  %v12577 = vmul.f32 %v12053, %v12350
  %v12578 = vmul.f32 %v12058, %v12352
  %v12579 = vmul.f32 %v12061, %v12354
  %v12580 = vmul.f32 %v12066, %v12356
  %v12581 = vmul.f32 %v12069, %v12358
  %v12582 = vmul.f32 %v12074, %v12360
  %v12583 = vmul.f32 %v12077, %v12362
  %v12584 = vmul.f32 %v12082, %v12364
  %v12585 = vmul.f32 %v12085, %v12366
  %v12586 = vmul.f32 %v12090, %v12368
  %v12587 = vmul.f32 %v12093, %v12370
  %v12588 = vmul.f32 %v12098, %v12372
  %v12589 = vmul.f32 %v12101, %v12374
  %v12590 = vmul.f32 %v12106, %v12376
  %v12591 = vmul.f32 %v12109, %v12378
  %v12592 = vmul.f32 %v12114, %v12380
  %v12593 = vmul.f32 %v12117, %v12382
  %v12594 = vmul.f32 %v12122, %v12384
  %v12595 = vmul.f32 %v12125, %v12386
  %v12596 = vmul.f32 %v12130, %v12388
  %v12597 = vmul.f32 %v12133, %v12390
  %v12598 = vmul.f32 %v12138, %v12392
  %v12599 = vmul.f32 %v12141, %v12394
  %v12600 = vmul.f32 %v12146, %v12396
  %v12601 = vmul.f32 %v12149, %v12398
  %v12602 = vmul.f32 %v12154, %v12400
  %v12603 = vmul.f32 %v12157, %v12402
  %v12604 = vmul.f32 %v12162, %v12404
  %v12605 = vmul.f32 %v12165, %v12406
  %v12606 = vmul.f32 %v12170, %v12408
  %v12607 = vmul.f32 %v12173, %v12410
  %v12608 = vmul.f32 %v12178, %v12412
  %v12609 = vmul.f32 %v12181, %v12414
  %v12610 = vmul.f32 %v12186, %v12416
  %v12611 = vmul.f32 %v12189, %v12418
  %v12612 = vmul.f32 %v12194, %v12420
  %v12613 = vmul.f32 %v12197, %v12422
  %v12614 = vmul.f32 %v12202, %v12424
  %v12615 = vmul.f32 %v12205, %v12426
  %v12616 = vmul.f32 %v12210, %v12428
  %v12617 = vmul.f32 %v12213, %v12430
  %v12618 = vmul.f32 %v12218, %v12432
  %v12619 = vmul.f32 %v12221, %v12434
  %v12620 = vmul.f32 %v12226, %v12436
  %v12621 = vmul.f32 %v12229, %v12438
  %v12622 = vmul.f32 %v12234, %v12440
  %v12623 = vmul.f32 %v12237, %v12442
  %v12624 = vmul.f32 %v12242, %v12444
  %v12625 = vmul.f32 %v12245, %v12446
  %v12626 = vmul.f32 %v12250, %v12448
  %v12627 = vmul.f32 %v12253, %v12450
  %v12628 = vmul.f32 %v12258, %v12452
  %v12629 = vmul.f32 %v12261, %v12454
  %v12630 = vmul.f32 %v12266, %v12456
  %v12631 = vmul.f32 %v12269, %v12458
  %v12632 = vmul.f32 %v12274, %v12460
  %v12633 = vmul.f32 %v12277, %v12462
  %v12634 = vmul.f32 %v12282, %v12464
  %v12635 = vmul.f32 %v12285, %v12466
  %v12636 = vmul.f32 %v12290, %v12468
  %v12637 = vmul.f32 %v12293, %v12470
  %v12638 = vmul.f32 %v12298, %v12472
  %v12639 = vmul.f32 %v12301, %v12474
  %v12640 = vmul.f32 %v12306, %v12476
  %v12641 = vmul.f32 %v12309, %v12478
  %v12642 = vmul.f32 %v12314, %v12480
  %v12643 = vand.u32 2147483647, %v12562
  %v12644 = vand.u32 2147483647, %v12563
  %v12645 = vand.u32 2147483647, %v12564
  %v12646 = vand.u32 2147483647, %v12565
  %v12647 = vand.u32 2147483647, %v12566
  %v12648 = vand.u32 2147483647, %v12567
  %v12649 = vand.u32 2147483647, %v12568
  %v12650 = vand.u32 2147483647, %v12569
  %v12651 = vand.u32 2147483647, %v12570
  %v12652 = vand.u32 2147483647, %v12571
  %v12653 = vand.u32 2147483647, %v12572
  %v12654 = vand.u32 2147483647, %v12573
  %v12655 = vand.u32 2147483647, %v12574
  %v12656 = vand.u32 2147483647, %v12575
  %v12657 = vand.u32 2147483647, %v12576
  %v12658 = vand.u32 2147483647, %v12577
  %v12659 = vand.u32 2147483647, %v12578
  %v12660 = vand.u32 2147483647, %v12579
  %v12661 = vand.u32 2147483647, %v12580
  %v12662 = vand.u32 2147483647, %v12581
  %v12663 = vand.u32 2147483647, %v12582
  %v12664 = vand.u32 2147483647, %v12583
  %v12665 = vand.u32 2147483647, %v12584
  %v12666 = vand.u32 2147483647, %v12585
  %v12667 = vand.u32 2147483647, %v12586
  %v12668 = vand.u32 2147483647, %v12587
  %v12669 = vand.u32 2147483647, %v12588
  %v12670 = vand.u32 2147483647, %v12589
  %v12671 = vand.u32 2147483647, %v12590
  %v12672 = vand.u32 2147483647, %v12591
  %v12673 = vand.u32 2147483647, %v12592
  %v12674 = vand.u32 2147483647, %v12593
  %v12675 = vand.u32 2147483647, %v12594
  %v12676 = vand.u32 2147483647, %v12595
  %v12677 = vand.u32 2147483647, %v12596
  %v12678 = vand.u32 2147483647, %v12597
  %v12679 = vand.u32 2147483647, %v12598
  %v12680 = vand.u32 2147483647, %v12599
  %v12681 = vand.u32 2147483647, %v12600
  %v12682 = vand.u32 2147483647, %v12601
  %v12683 = vand.u32 2147483647, %v12602
  %v12684 = vand.u32 2147483647, %v12603
  %v12685 = vand.u32 2147483647, %v12604
  %v12686 = vand.u32 2147483647, %v12605
  %v12687 = vand.u32 2147483647, %v12606
  %v12688 = vand.u32 2147483647, %v12607
  %v12689 = vand.u32 2147483647, %v12608
  %v12690 = vand.u32 2147483647, %v12609
  %v12691 = vand.u32 2147483647, %v12610
  %v12692 = vand.u32 2147483647, %v12611
  %v12693 = vand.u32 2147483647, %v12612
  %v12694 = vand.u32 2147483647, %v12613
  %v12695 = vand.u32 2147483647, %v12614
  %v12696 = vand.u32 2147483647, %v12615
  %v12697 = vand.u32 2147483647, %v12616
  %v12698 = vand.u32 2147483647, %v12617
  %v12699 = vand.u32 2147483647, %v12618
  %v12700 = vand.u32 2147483647, %v12619
  %v12701 = vand.u32 2147483647, %v12620
  %v12702 = vand.u32 2147483647, %v12621
  %v12703 = vand.u32 2147483647, %v12622
  %v12704 = vand.u32 2147483647, %v12623
  %v12705 = vand.u32 2147483647, %v12624
  %v12706 = vand.u32 2147483647, %v12625
  %v12707 = vand.u32 2147483647, %v12626
  %v12708 = vand.u32 2147483647, %v12627
  %v12709 = vand.u32 2147483647, %v12628
  %v12710 = vand.u32 2147483647, %v12629
  %v12711 = vand.u32 2147483647, %v12630
  %v12712 = vand.u32 2147483647, %v12631
  %v12713 = vand.u32 2147483647, %v12632
  %v12714 = vand.u32 2147483647, %v12633
  %v12715 = vand.u32 2147483647, %v12634
  %v12716 = vand.u32 2147483647, %v12635
  %v12717 = vand.u32 2147483647, %v12636
  %v12718 = vand.u32 2147483647, %v12637
  %v12719 = vand.u32 2147483647, %v12638
  %v12720 = vand.u32 2147483647, %v12639
  %v12721 = vand.u32 2147483647, %v12640
  %v12722 = vand.u32 2147483647, %v12641
  %v12723 = vand.u32 2147483647, %v12642
  %vm12724 = vcmask 187568
  %v12725 = vsel %vm12724, %v12643, -inf
  %v12726 = vsel %vm12724, %v12644, -inf
  %v12727 = vsel %vm12724, %v12645, -inf
  %v12728 = vsel %vm12724, %v12646, -inf
  %v12729 = vsel %vm12724, %v12647, -inf
  %v12730 = vmax.f32 %v12725, %v12729
  %v12731 = vsel %vm12724, %v12648, -inf
  %v12732 = vmax.f32 %v12726, %v12731
  %v12733 = vsel %vm12724, %v12649, -inf
  %v12734 = vmax.f32 %v12727, %v12733
  %v12735 = vsel %vm12724, %v12650, -inf
  %v12736 = vmax.f32 %v12728, %v12735
  %v12737 = vsel %vm12724, %v12651, -inf
  %v12738 = vmax.f32 %v12730, %v12737
  %v12739 = vsel %vm12724, %v12652, -inf
  %v12740 = vmax.f32 %v12732, %v12739
  %v12741 = vsel %vm12724, %v12653, -inf
  %v12742 = vmax.f32 %v12734, %v12741
  %v12743 = vsel %vm12724, %v12654, -inf
  %v12744 = vmax.f32 %v12736, %v12743
  %v12745 = vsel %vm12724, %v12655, -inf
  %v12746 = vmax.f32 %v12738, %v12745
  %v12747 = vsel %vm12724, %v12656, -inf
  %v12748 = vmax.f32 %v12740, %v12747
  %v12749 = vsel %vm12724, %v12657, -inf
  %v12750 = vmax.f32 %v12742, %v12749
  %v12751 = vsel %vm12724, %v12658, -inf
  %v12752 = vmax.f32 %v12744, %v12751
  %v12753 = vsel %vm12724, %v12659, -inf
  %v12754 = vmax.f32 %v12746, %v12753
  %v12755 = vsel %vm12724, %v12660, -inf
  %v12756 = vmax.f32 %v12748, %v12755
  %v12757 = vsel %vm12724, %v12661, -inf
  %v12758 = vmax.f32 %v12750, %v12757
  %v12759 = vsel %vm12724, %v12662, -inf
  %v12760 = vmax.f32 %v12752, %v12759
  %v12761 = vsel %vm12724, %v12663, -inf
  %v12762 = vmax.f32 %v12754, %v12761
  %v12763 = vsel %vm12724, %v12664, -inf
  %v12764 = vmax.f32 %v12756, %v12763
  %v12765 = vsel %vm12724, %v12665, -inf
  %v12766 = vmax.f32 %v12758, %v12765
  %v12767 = vsel %vm12724, %v12666, -inf
  %v12768 = vmax.f32 %v12760, %v12767
  %v12769 = vsel %vm12724, %v12667, -inf
  %v12770 = vmax.f32 %v12762, %v12769
  %v12771 = vsel %vm12724, %v12668, -inf
  %v12772 = vmax.f32 %v12764, %v12771
  %v12773 = vsel %vm12724, %v12669, -inf
  %v12774 = vmax.f32 %v12766, %v12773
  %v12775 = vsel %vm12724, %v12670, -inf
  %v12776 = vmax.f32 %v12768, %v12775
  %v12777 = vsel %vm12724, %v12671, -inf
  %v12778 = vmax.f32 %v12770, %v12777
  %v12779 = vsel %vm12724, %v12672, -inf
  %v12780 = vmax.f32 %v12772, %v12779
  %v12781 = vsel %vm12724, %v12673, -inf
  %v12782 = vmax.f32 %v12774, %v12781
  %v12783 = vsel %vm12724, %v12674, -inf
  %v12784 = vmax.f32 %v12776, %v12783
  %v12785 = vsel %vm12724, %v12675, -inf
  %v12786 = vmax.f32 %v12778, %v12785
  %v12787 = vsel %vm12724, %v12676, -inf
  %v12788 = vmax.f32 %v12780, %v12787
  %v12789 = vsel %vm12724, %v12677, -inf
  %v12790 = vmax.f32 %v12782, %v12789
  %v12791 = vsel %vm12724, %v12678, -inf
  %v12792 = vmax.f32 %v12784, %v12791
  %v12793 = vsel %vm12724, %v12679, -inf
  %v12794 = vmax.f32 %v12786, %v12793
  %v12795 = vsel %vm12724, %v12680, -inf
  %v12796 = vmax.f32 %v12788, %v12795
  %v12797 = vsel %vm12724, %v12681, -inf
  %v12798 = vmax.f32 %v12790, %v12797
  %v12799 = vsel %vm12724, %v12682, -inf
  %v12800 = vmax.f32 %v12792, %v12799
  %v12801 = vsel %vm12724, %v12683, -inf
  %v12802 = vmax.f32 %v12794, %v12801
  %v12803 = vsel %vm12724, %v12684, -inf
  %v12804 = vmax.f32 %v12796, %v12803
  %v12805 = vsel %vm12724, %v12685, -inf
  %v12806 = vmax.f32 %v12798, %v12805
  %v12807 = vsel %vm12724, %v12686, -inf
  %v12808 = vmax.f32 %v12800, %v12807
  %v12809 = vsel %vm12724, %v12687, -inf
  %v12810 = vmax.f32 %v12802, %v12809
  %v12811 = vsel %vm12724, %v12688, -inf
  %v12812 = vmax.f32 %v12804, %v12811
  %v12813 = vsel %vm12724, %v12689, -inf
  %v12814 = vmax.f32 %v12806, %v12813
  %v12815 = vsel %vm12724, %v12690, -inf
  %v12816 = vmax.f32 %v12808, %v12815
  %v12817 = vsel %vm12724, %v12691, -inf
  %v12818 = vmax.f32 %v12810, %v12817
  %v12819 = vsel %vm12724, %v12692, -inf
  %v12820 = vmax.f32 %v12812, %v12819
  %v12821 = vsel %vm12724, %v12693, -inf
  %v12822 = vmax.f32 %v12814, %v12821
  %v12823 = vsel %vm12724, %v12694, -inf
  %v12824 = vmax.f32 %v12816, %v12823
  %v12825 = vsel %vm12724, %v12695, -inf
  %v12826 = vmax.f32 %v12818, %v12825
  %v12827 = vsel %vm12724, %v12696, -inf
  %v12828 = vmax.f32 %v12820, %v12827
  %v12829 = vsel %vm12724, %v12697, -inf
  %v12830 = vmax.f32 %v12822, %v12829
  %v12831 = vsel %vm12724, %v12698, -inf
  %v12832 = vmax.f32 %v12824, %v12831
  %v12833 = vsel %vm12724, %v12699, -inf
  %v12834 = vmax.f32 %v12826, %v12833
  %v12835 = vsel %vm12724, %v12700, -inf
  %v12836 = vmax.f32 %v12828, %v12835
  %v12837 = vsel %vm12724, %v12701, -inf
  %v12838 = vmax.f32 %v12830, %v12837
  %v12839 = vsel %vm12724, %v12702, -inf
  %v12840 = vmax.f32 %v12832, %v12839
  %v12841 = vsel %vm12724, %v12703, -inf
  %v12842 = vmax.f32 %v12834, %v12841
  %v12843 = vsel %vm12724, %v12704, -inf
  %v12844 = vmax.f32 %v12836, %v12843
  %v12845 = vsel %vm12724, %v12705, -inf
  %v12846 = vmax.f32 %v12838, %v12845
  %v12847 = vsel %vm12724, %v12706, -inf
  %v12848 = vmax.f32 %v12840, %v12847
  %v12849 = vsel %vm12724, %v12707, -inf
  %v12850 = vmax.f32 %v12842, %v12849
  %v12851 = vsel %vm12724, %v12708, -inf
  %v12852 = vmax.f32 %v12844, %v12851
  %v12853 = vsel %vm12724, %v12709, -inf
  %v12854 = vmax.f32 %v12846, %v12853
  %v12855 = vsel %vm12724, %v12710, -inf
  %v12856 = vmax.f32 %v12848, %v12855
  %v12857 = vsel %vm12724, %v12711, -inf
  %v12858 = vmax.f32 %v12850, %v12857
  %v12859 = vsel %vm12724, %v12712, -inf
  %v12860 = vmax.f32 %v12852, %v12859
  %v12861 = vsel %vm12724, %v12713, -inf
  %v12862 = vmax.f32 %v12854, %v12861
  %v12863 = vsel %vm12724, %v12714, -inf
  %v12864 = vmax.f32 %v12856, %v12863
  %v12865 = vsel %vm12724, %v12715, -inf
  %v12866 = vmax.f32 %v12858, %v12865
  %v12867 = vsel %vm12724, %v12716, -inf
  %v12868 = vmax.f32 %v12860, %v12867
  %v12869 = vsel %vm12724, %v12717, -inf
  %v12870 = vmax.f32 %v12862, %v12869
  %v12871 = vsel %vm12724, %v12718, -inf
  %v12872 = vmax.f32 %v12864, %v12871
  %v12873 = vsel %vm12724, %v12719, -inf
  %v12874 = vmax.f32 %v12866, %v12873
  %v12875 = vsel %vm12724, %v12720, -inf
  %v12876 = vmax.f32 %v12868, %v12875
  %v12877 = vsel %vm12724, %v12721, -inf
  %v12878 = vmax.f32 %v12870, %v12877
  %v12879 = vsel %vm12724, %v12722, -inf
  %v12880 = vmax.f32 %v12872, %v12879
  %v12881 = vsel %vm12724, %v12723, -inf
  %v12882 = vmax.f32 %v12874, %v12881
  %v12883 = vmax.f32 %v12882, %v12876
  %v12884 = vmax.f32 %v12878, %v12880
  %v12885 = vmax.f32 %v12883, %v12884
  %12886 = vmax.xlane.f32.xlu0 %v12885
  %v12887 = vpop.xlane.xlu0 %12886
  %v12888 = vrot.slane %v12887, 4
  %v12889 = vmax.f32 %v12887, %v12888
  %v12890 = vrot.slane %v12889, 2
  %v12891 = vmax.f32 %v12889, %v12890
  %v12892 = vrot.slane %v12891, 1
  %v12893 = vmax.f32 %v12891, %v12892
  %s12894 = vtos %v12893
  %v12895 = vstv %s12894
  %v12896 = vmax.f32 %v11994, 0.0
  %v12897 = vmax.f32 %v11997, 0.0
  %v12898 = vmax.f32 %v12002, 0.0
  %v12899 = vmax.f32 %v12005, 0.0
  %v12900 = vmax.f32 %v12010, 0.0
  %v12901 = vmax.f32 %v12013, 0.0
  %v12902 = vmax.f32 %v12018, 0.0
  %v12903 = vmax.f32 %v12021, 0.0
  %v12904 = vmax.f32 %v12026, 0.0
  %v12905 = vmax.f32 %v12029, 0.0
  %v12906 = vmax.f32 %v12034, 0.0
  %v12907 = vmax.f32 %v12037, 0.0
  %v12908 = vmax.f32 %v12042, 0.0
  %v12909 = vmax.f32 %v12045, 0.0
  %v12910 = vmax.f32 %v12050, 0.0
  %v12911 = vmax.f32 %v12053, 0.0
  %v12912 = vmax.f32 %v12058, 0.0
  %v12913 = vmax.f32 %v12061, 0.0
  %v12914 = vmax.f32 %v12066, 0.0
  %v12915 = vmax.f32 %v12069, 0.0
  %v12916 = vmax.f32 %v12074, 0.0
  %v12917 = vmax.f32 %v12077, 0.0
  %v12918 = vmax.f32 %v12082, 0.0
  %v12919 = vmax.f32 %v12085, 0.0
  %v12920 = vmax.f32 %v12090, 0.0
  %v12921 = vmax.f32 %v12093, 0.0
  %v12922 = vmax.f32 %v12098, 0.0
  %v12923 = vmax.f32 %v12101, 0.0
  %v12924 = vmax.f32 %v12106, 0.0
  %v12925 = vmax.f32 %v12109, 0.0
  %v12926 = vmax.f32 %v12114, 0.0
  %v12927 = vmax.f32 %v12117, 0.0
  %v12928 = vmax.f32 %v12122, 0.0
  %v12929 = vmax.f32 %v12125, 0.0
  %v12930 = vmax.f32 %v12130, 0.0
  %v12931 = vmax.f32 %v12133, 0.0
  %v12932 = vmax.f32 %v12138, 0.0
  %v12933 = vmax.f32 %v12141, 0.0
  %v12934 = vmax.f32 %v12146, 0.0
  %v12935 = vmax.f32 %v12149, 0.0
  %v12936 = vmax.f32 %v12154, 0.0
  %v12937 = vmax.f32 %v12157, 0.0
  %v12938 = vmax.f32 %v12162, 0.0
  %v12939 = vmax.f32 %v12165, 0.0
  %v12940 = vmax.f32 %v12170, 0.0
  %v12941 = vmax.f32 %v12173, 0.0
  %v12942 = vmax.f32 %v12178, 0.0
  %v12943 = vmax.f32 %v12181, 0.0
  %v12944 = vmax.f32 %v12186, 0.0
  %v12945 = vmax.f32 %v12189, 0.0
  %v12946 = vmax.f32 %v12194, 0.0
  %v12947 = vmax.f32 %v12197, 0.0
  %v12948 = vmax.f32 %v12202, 0.0
  %v12949 = vmax.f32 %v12205, 0.0
  %v12950 = vmax.f32 %v12210, 0.0
  %v12951 = vmax.f32 %v12213, 0.0
  %v12952 = vmax.f32 %v12218, 0.0
  %v12953 = vmax.f32 %v12221, 0.0
  %v12954 = vmax.f32 %v12226, 0.0
  %v12955 = vmax.f32 %v12229, 0.0
  %v12956 = vmax.f32 %v12234, 0.0
  %v12957 = vmax.f32 %v12237, 0.0
  %v12958 = vmax.f32 %v12242, 0.0
  %v12959 = vmax.f32 %v12245, 0.0
  %v12960 = vmax.f32 %v12250, 0.0
  %v12961 = vmax.f32 %v12253, 0.0
  %v12962 = vmax.f32 %v12258, 0.0
  %v12963 = vmax.f32 %v12261, 0.0
  %v12964 = vmax.f32 %v12266, 0.0
  %v12965 = vmax.f32 %v12269, 0.0
  %v12966 = vmax.f32 %v12274, 0.0
  %v12967 = vmax.f32 %v12277, 0.0
  %v12968 = vmax.f32 %v12282, 0.0
  %v12969 = vmax.f32 %v12285, 0.0
  %v12970 = vmax.f32 %v12290, 0.0
  %v12971 = vmax.f32 %v12293, 0.0
  %v12972 = vmax.f32 %v12298, 0.0
  %v12973 = vmax.f32 %v12301, 0.0
  %v12974 = vmax.f32 %v12306, 0.0
  %v12975 = vmax.f32 %v12309, 0.0
  %v12976 = vmax.f32 %v12314, 0.0
  %v12977 = vpack.c.bf16 %v12897, %v12896
  %v12978 = vpack.c.bf16 %v12899, %v12898
  %v12979 = vpack.c.bf16 %v12901, %v12900
  %v12980 = vpack.c.bf16 %v12903, %v12902
  %v12981 = vpack.c.bf16 %v12905, %v12904
  %v12982 = vpack.c.bf16 %v12907, %v12906
  %v12983 = vpack.c.bf16 %v12909, %v12908
  %v12984 = vpack.c.bf16 %v12911, %v12910
  %v12985 = vpack.c.bf16 %v12913, %v12912
  %v12986 = vpack.c.bf16 %v12915, %v12914
  %v12987 = vpack.c.bf16 %v12917, %v12916
  %v12988 = vpack.c.bf16 %v12919, %v12918
  %v12989 = vpack.c.bf16 %v12921, %v12920
  %v12990 = vpack.c.bf16 %v12923, %v12922
  %v12991 = vpack.c.bf16 %v12925, %v12924
  %v12992 = vpack.c.bf16 %v12927, %v12926
  %v12993 = vpack.c.bf16 %v12929, %v12928
  %v12994 = vpack.c.bf16 %v12931, %v12930
  %v12995 = vpack.c.bf16 %v12933, %v12932
  %v12996 = vpack.c.bf16 %v12935, %v12934
  %v12997 = vpack.c.bf16 %v12937, %v12936
  %v12998 = vpack.c.bf16 %v12939, %v12938
  %v12999 = vpack.c.bf16 %v12941, %v12940
  %v13000 = vpack.c.bf16 %v12943, %v12942
  %v13001 = vpack.c.bf16 %v12945, %v12944
  %v13002 = vpack.c.bf16 %v12947, %v12946
  %v13003 = vpack.c.bf16 %v12949, %v12948
  %v13004 = vpack.c.bf16 %v12951, %v12950
  %v13005 = vpack.c.bf16 %v12953, %v12952
  %v13006 = vpack.c.bf16 %v12955, %v12954
  %v13007 = vpack.c.bf16 %v12957, %v12956
  %v13008 = vpack.c.bf16 %v12959, %v12958
  %v13009 = vpack.c.bf16 %v12961, %v12960
  %v13010 = vpack.c.bf16 %v12963, %v12962
  %v13011 = vpack.c.bf16 %v12965, %v12964
  %v13012 = vpack.c.bf16 %v12967, %v12966
  %v13013 = vpack.c.bf16 %v12969, %v12968
  %v13014 = vpack.c.bf16 %v12971, %v12970
  %v13015 = vpack.c.bf16 %v12973, %v12972
  %v13016 = vpack.c.bf16 %v12975, %v12974
  %v13017 = vpack.c.bf16 %v12976, %v12976
  %v13018 = vld [vmem:[%s6] sm:$0xff]
  %v13019 = vld [vmem:[%s6 + $0x8] sm:$0xff]
  %v13020 = vld [vmem:[%s6 + $0x10] sm:$0xff]
  %v13021 = vld [vmem:[%s6 + $0x18] sm:$0xff]
  %v13022 = vld [vmem:[%s6 + $0x20] sm:$0xff]
  %v13023 = vld [vmem:[%s6 + $0x28] sm:$0xff]
  %v13024 = vld [vmem:[%s6 + $0x30] sm:$0xff]
  %v13025 = vld [vmem:[%s6 + $0x38] sm:$0xff]
  %v13026 = vld [vmem:[%s6 + $0x40] sm:$0xff]
  %v13027 = vld [vmem:[%s6 + $0x48] sm:$0xff]
  %v13028 = vld [vmem:[%s6 + $0x50] sm:$0xff]
  %v13029 = vld [vmem:[%s6 + $0x58] sm:$0xff]
  %v13042 = vunpack.c.l.b16 %v13018
  %v13043 = vunpack.c.h.b16 %v13018
  %v13044 = vunpack.c.l.b16 %v13019
  %v13045 = vunpack.c.h.b16 %v13019
  %v13046 = vunpack.c.l.b16 %v13020
  %v13047 = vunpack.c.h.b16 %v13020
  %v13048 = vunpack.c.l.b16 %v13021
  %v13049 = vunpack.c.h.b16 %v13021
  %v13050 = vunpack.c.l.b16 %v13022
  %v13051 = vunpack.c.h.b16 %v13022
  %v13052 = vunpack.c.l.b16 %v13023
  %v13053 = vunpack.c.h.b16 %v13023
  %v13054 = vunpack.c.l.b16 %v13024
  %v13055 = vunpack.c.h.b16 %v13024
  %v13056 = vunpack.c.l.b16 %v13025
  %v13057 = vunpack.c.h.b16 %v13025
  %v13058 = vunpack.c.l.b16 %v13026
  %v13059 = vunpack.c.h.b16 %v13026
  %v13060 = vunpack.c.l.b16 %v13027
  %v13061 = vunpack.c.h.b16 %v13027
  %v13062 = vunpack.c.l.b16 %v13028
  %v13063 = vunpack.c.h.b16 %v13028
  %v13064 = vunpack.c.l.b16 %v13029
  %v13065 = vunpack.c.h.b16 %v13029
  %v13066 = vpack.c.b16 %v13048, %v13042
  %v13067 = vpack.c.b16 %v13049, %v13043
  %v13068 = vpack.c.b16 %v13050, %v13044
  %v13069 = vpack.c.b16 %v13051, %v13045
  %v13070 = vpack.c.b16 %v13052, %v13046
  %v13071 = vpack.c.b16 %v13053, %v13047
  %v13072 = vpack.c.b16 %v13060, %v13054
  %v13073 = vpack.c.b16 %v13061, %v13055
  %v13074 = vpack.c.b16 %v13062, %v13056
  %v13075 = vpack.c.b16 %v13063, %v13057
  %v13076 = vpack.c.b16 %v13064, %v13058
  %v13077 = vpack.c.b16 %v13065, %v13059
  %vm13088 = vcmask 64512
  %v13090 = vsel %vm13088, %v13071, 0
  %v13093 = vsel %vm13088, %v13077, 0
  %v13096 = vsel %vm571, %v13017, 0
  %13098 = vmatprep.subr.bf16.mxu0 0
  %13099 = vmatpush1.bf16.msra.mxu0 %v12977
  %13100 = vmatprep.subr.bf16.mxu0 0
  %13101 = vmatpush1.bf16.msra.mxu0 %v12978
  %13102 = vmatprep.subr.bf16.mxu0 0
  %13103 = vmatpush1.bf16.msra.mxu0 %v12979
  %13104 = vmatprep.subr.bf16.mxu0 0
  %13105 = vmatpush1.bf16.msra.mxu0 %v12980
  %13106 = vmatprep.subr.bf16.mxu0 0
  %13107 = vmatpush1.bf16.msra.mxu0 %v12981
  %13108 = vmatprep.subr.bf16.mxu0 0
  %13109 = vmatpush1.bf16.msra.mxu0 %v12982
  %13110 = vmatprep.subr.bf16.mxu0 0
  %13111 = vmatpush1.bf16.msra.mxu0 %v12983
  %13112 = vmatprep.subr.bf16.mxu0 0
  %13113 = vmatpush1.bf16.msra.mxu0 %v12984
  %13114 = vmatprep.subr.bf16.mxu0 0
  %13115 = vmatpush1.bf16.msra.mxu0 %v12985
  %13116 = vmatprep.subr.bf16.mxu0 0
  %13117 = vmatpush1.bf16.msra.mxu0 %v12986
  %13118 = vmatprep.subr.bf16.mxu0 0
  %13119 = vmatpush1.bf16.msra.mxu0 %v12987
  %13120 = vmatprep.subr.bf16.mxu0 0
  %13121 = vmatpush1.bf16.msra.mxu0 %v12988
  %13122 = vmatprep.subr.bf16.mxu0 0
  %13123 = vmatpush1.bf16.msra.mxu0 %v12989
  %13124 = vmatprep.subr.bf16.mxu0 0
  %13125 = vmatpush1.bf16.msra.mxu0 %v12990
  %13126 = vmatprep.subr.bf16.mxu0 0
  %13127 = vmatpush1.bf16.msra.mxu0 %v12991
  %13128 = vmatprep.subr.bf16.mxu0 0
  %13129 = vmatpush1.bf16.msra.mxu0 %v12992
  %13130 = vmatprep.mubr.bf16.mxu0 %v13067
  %13131 = vmatmul.mubr.bf16.gmra.mrb[0].mxu0 %v13066
  %v13132 = vpop.f32.mrb[0].mxu0
  %v13133 = vadd.f32 0.0, %v13132
  %v13134 = vpop.f32.mrb[0].mxu0
  %v13135 = vpop.f32.mrb[0].mxu0
  %v13136 = vadd.f32 0.0, %v13135
  %v13137 = vpop.f32.mrb[0].mxu0
  %13138 = vmatprep.mubr.bf16.mxu0 %v13073
  %13139 = vmatmul.mubr.bf16.gmra.mrb[0].mxu0 %v13072
  %v13140 = vpop.f32.mrb[0].mxu0
  %v13141 = vadd.f32 0.0, %v13140
  %v13142 = vpop.f32.mrb[0].mxu0
  %v13143 = vpop.f32.mrb[0].mxu0
  %v13144 = vadd.f32 0.0, %v13143
  %v13145 = vpop.f32.mrb[0].mxu0
  %13146 = vdwg.mxu0
  %13147 = vmatprep.subr.bf16.mxu0 0
  %13148 = vmatpush1.bf16.msra.mxu0 %v12993
  %13149 = vmatprep.subr.bf16.mxu0 0
  %13150 = vmatpush1.bf16.msra.mxu0 %v12994
  %13151 = vmatprep.subr.bf16.mxu0 0
  %13152 = vmatpush1.bf16.msra.mxu0 %v12995
  %13153 = vmatprep.subr.bf16.mxu0 0
  %13154 = vmatpush1.bf16.msra.mxu0 %v12996
  %13155 = vmatprep.subr.bf16.mxu0 0
  %13156 = vmatpush1.bf16.msra.mxu0 %v12997
  %13157 = vmatprep.subr.bf16.mxu0 0
  %13158 = vmatpush1.bf16.msra.mxu0 %v12998
  %13159 = vmatprep.subr.bf16.mxu0 0
  %13160 = vmatpush1.bf16.msra.mxu0 %v12999
  %13161 = vmatprep.subr.bf16.mxu0 0
  %13162 = vmatpush1.bf16.msra.mxu0 %v13000
  %13163 = vmatprep.subr.bf16.mxu0 0
  %13164 = vmatpush1.bf16.msra.mxu0 %v13001
  %13165 = vmatprep.subr.bf16.mxu0 0
  %13166 = vmatpush1.bf16.msra.mxu0 %v13002
  %13167 = vmatprep.subr.bf16.mxu0 0
  %13168 = vmatpush1.bf16.msra.mxu0 %v13003
  %13169 = vmatprep.subr.bf16.mxu0 0
  %13170 = vmatpush1.bf16.msra.mxu0 %v13004
  %13171 = vmatprep.subr.bf16.mxu0 0
  %13172 = vmatpush1.bf16.msra.mxu0 %v13005
  %13173 = vmatprep.subr.bf16.mxu0 0
  %13174 = vmatpush1.bf16.msra.mxu0 %v13006
  %13175 = vmatprep.subr.bf16.mxu0 0
  %13176 = vmatpush1.bf16.msra.mxu0 %v13007
  %13177 = vmatprep.subr.bf16.mxu0 0
  %13178 = vmatpush1.bf16.msra.mxu0 %v13008
  %13179 = vmatprep.mubr.bf16.mxu0 %v13069
  %13180 = vmatmul.mubr.bf16.gmra.mrb[0].mxu0 %v13068
  %v13181 = vpop.f32.mrb[0].mxu0
  %v13182 = vadd.f32 %v13133, %v13181
  %v13183 = vpop.f32.mrb[0].mxu0
  %v13184 = vpop.f32.mrb[0].mxu0
  %v13185 = vadd.f32 %v13136, %v13184
  %v13186 = vpop.f32.mrb[0].mxu0
  %13187 = vmatprep.mubr.bf16.mxu0 %v13075
  %13188 = vmatmul.mubr.bf16.gmra.mrb[0].mxu0 %v13074
  %v13189 = vpop.f32.mrb[0].mxu0
  %v13190 = vadd.f32 %v13141, %v13189
  %v13191 = vpop.f32.mrb[0].mxu0
  %v13192 = vpop.f32.mrb[0].mxu0
  %v13193 = vadd.f32 %v13144, %v13192
  %v13194 = vpop.f32.mrb[0].mxu0
  %13195 = vdwg.mxu0
  %13196 = vmatprep.subr.bf16.mxu0 0
  %13197 = vmatpush1.bf16.msra.mxu0 %v13009
  %13198 = vmatprep.subr.bf16.mxu0 0
  %13199 = vmatpush1.bf16.msra.mxu0 %v13010
  %13200 = vmatprep.subr.bf16.mxu0 0
  %13201 = vmatpush1.bf16.msra.mxu0 %v13011
  %13202 = vmatprep.subr.bf16.mxu0 0
  %13203 = vmatpush1.bf16.msra.mxu0 %v13012
  %13204 = vmatprep.subr.bf16.mxu0 0
  %13205 = vmatpush1.bf16.msra.mxu0 %v13013
  %13206 = vmatprep.subr.bf16.mxu0 0
  %13207 = vmatpush1.bf16.msra.mxu0 %v13014
  %13208 = vmatprep.subr.bf16.mxu0 0
  %13209 = vmatpush1.bf16.msra.mxu0 %v13015
  %13210 = vmatprep.subr.bf16.mxu0 0
  %13211 = vmatpush1.bf16.msra.mxu0 %v13016
  %13212 = vmatprep.subr.bf16.mxu0 0
  %13213 = vmatpush1.bf16.msra.mxu0 %v13096
  %13214 = vmatprep.subr.bf16.mxu0 0
  %13215 = vmatpush1.bf16.msra.mxu0 0
  %13216 = vmatprep.subr.bf16.mxu0 0
  %13217 = vmatpush1.bf16.msra.mxu0 0
  %13218 = vmatprep.subr.bf16.mxu0 0
  %13219 = vmatpush1.bf16.msra.mxu0 0
  %13220 = vmatprep.subr.bf16.mxu0 0
  %13221 = vmatpush1.bf16.msra.mxu0 0
  %13222 = vmatprep.subr.bf16.mxu0 0
  %13223 = vmatpush1.bf16.msra.mxu0 0
  %13224 = vmatprep.subr.bf16.mxu0 0
  %13225 = vmatpush1.bf16.msra.mxu0 0
  %13226 = vmatprep.subr.bf16.mxu0 0
  %13227 = vmatpush1.bf16.msra.mxu0 0
  %13228 = vmatprep.mubr.bf16.mxu0 %v13090
  %13229 = vmatmul.mubr.bf16.gmra.mrb[0].mxu0 %v13070
  %v13230 = vpop.f32.mrb[0].mxu0
  %v13231 = vadd.f32 %v13182, %v13230
  %v13232 = vpop.f32.mrb[0].mxu0
  %v13233 = vpop.f32.mrb[0].mxu0
  %v13234 = vadd.f32 %v13185, %v13233
  %v13235 = vpop.f32.mrb[0].mxu0
  %13236 = vmatprep.mubr.bf16.mxu0 %v13093
  %13237 = vmatmul.mubr.bf16.gmra.mrb[0].mxu0 %v13076
  %v13238 = vpop.f32.mrb[0].mxu0
  %v13239 = vadd.f32 %v13190, %v13238
  %v13240 = vpop.f32.mrb[0].mxu0
  %v13241 = vpop.f32.mrb[0].mxu0
  %v13242 = vadd.f32 %v13193, %v13241
  %v13243 = vpop.f32.mrb[0].mxu0
  %13244 = vdwg.mxu0
  %v13245 = vpack.c.bf16 %v13234, %v13231
  %v13246 = vpack.c.bf16 %v13242, %v13239
  %vm13247 = vcmask 195584
  %13248 = vst.msk [vmem:[#allocation4] sm:$0xff] %vm13247, %v13245
  %13249 = vst.msk [vmem:[#allocation4 + $0x8] sm:$0xff] %vm13247, %v13246
  %13250 = vst [vmem:[#allocation5] sm:$0xff] 0
  %13251 = vst [vmem:[#allocation5 + $0x8] sm:$0xf] 0
  %v13252 = vld [vmem:[#allocation4] sm:$0x1]
  %vm13253 = vcmask 188416
  %13254 = vst.msk [vmem:[#allocation5] sm:$0x1] %vm13253, %v13252
  %v13255 = vld [vmem:[#allocation4] sm:$0x2]
  %v13257 = vunpack.c.l.b16 %v13255
  %v13258 = vpack.c.b16 %v13257, %v13257
  %v13259 = vrot.slane %v13258, 5
  %v13260 = vrot.slane %v13259, 4
  %13261 = vrot.lane.b32.xlu0 %v13260, 24
  %v13262 = vpop.permute.xlu0 %13261
  %vm13264 = vcmask 385216
  %13265 = vst.msk [vmem:[#allocation5] sm:$0x1] %vm13264, %v13262
  %v13266 = vld [vmem:[#allocation4] sm:$0x4]
  %v13268 = vunpack.c.l.b16 %v13266
  %v13269 = vpack.c.b16 %v13268, %v13268
  %v13270 = vrot.slane %v13269, 6
  %v13271 = vrot.slane %v13270, 4
  %13272 = vrot.lane.b32.xlu0 %v13271, 48
  %v13273 = vpop.permute.xlu0 %13272
  %vm13275 = vcmask 582016
  %13276 = vst.msk [vmem:[#allocation5] sm:$0x1] %vm13275, %v13273
  %v13277 = vld [vmem:[#allocation4] sm:$0x8]
  %v13279 = vunpack.c.l.b16 %v13277
  %v13280 = vpack.c.b16 %v13279, %v13279
  %v13281 = vrot.slane %v13280, 7
  %v13282 = vrot.slane %v13281, 4
  %13283 = vrot.lane.b32.xlu0 %v13282, 72
  %v13284 = vpop.permute.xlu0 %13283
  %vm13286 = vcmask 778816
  %13287 = vst.msk [vmem:[#allocation5] sm:$0x1] %vm13286, %v13284
  %v13288 = vld [vmem:[#allocation4] sm:$0x10]
  %v13290 = vunpack.c.h.b16 %v13288
  %v13291 = vpack.c.b16 %v13290, %v13290
  %13292 = vrot.lane.b32.xlu0 %v13291, 96
  %v13293 = vpop.permute.xlu0 %13292
  %vm13295 = vcmask 975616
  %13296 = vst.msk [vmem:[#allocation5] sm:$0x1] %vm13295, %v13293
  %v13297 = vld [vmem:[#allocation4] sm:$0x20]
  %v13299 = vunpack.c.h.b16 %v13297
  %v13300 = vpack.c.b16 %v13299, %v13299
  %v13301 = vrot.slane %v13300, 5
  %v13302 = vrot.slane %v13301, 4
  %13303 = vrot.lane.b32.xlu0 %v13302, 120
  %v13304 = vpop.permute.xlu0 %13303
  %v13305 = vrot.slane %v13304, 4
  %vm13306 = vcmask 982016
  %v13307 = vsel %vm13306, %v13305, %v13304
  %vm13309 = vcmask 1041344
  %vm13310 = vcmask 126980
  %vm13311 = vmor %vm13310, %vm13309
  %13312 = vst.msk [vmem:[#allocation5] sm:$0x11] %vm13311, %v13307
  %v13313 = vld [vmem:[#allocation4] sm:$0x40]
  %v13315 = vunpack.c.h.b16 %v13313
  %v13316 = vpack.c.b16 %v13315, %v13315
  %v13317 = vrot.slane %v13316, 6
  %v13318 = vrot.slane %v13317, 4
  %13319 = vrot.lane.b32.xlu0 %v13318, 16
  %v13320 = vpop.permute.xlu0 %13319
  %vm13322 = vcmask 319616
  %13323 = vst.msk [vmem:[#allocation5 + $0x4] sm:$0x1] %vm13322, %v13320
  %v13324 = vld [vmem:[#allocation4] sm:$0x80]
  %v13326 = vunpack.c.h.b16 %v13324
  %v13327 = vpack.c.b16 %v13326, %v13326
  %v13328 = vrot.slane %v13327, 7
  %v13329 = vrot.slane %v13328, 4
  %13330 = vrot.lane.b32.xlu0 %v13329, 40
  %v13331 = vpop.permute.xlu0 %13330
  %vm13333 = vcmask 516416
  %13334 = vst.msk [vmem:[#allocation5 + $0x4] sm:$0x1] %vm13333, %v13331
  %v13335 = vld [vmem:[#allocation4 + $0x8] sm:$0x1]
  %v13337 = vunpack.c.l.b16 %v13335
  %v13338 = vpack.c.b16 %v13337, %v13337
  %13339 = vrot.lane.b32.xlu0 %v13338, 64
  %v13340 = vpop.permute.xlu0 %13339
  %vm13342 = vcmask 713216
  %13343 = vst.msk [vmem:[#allocation5 + $0x4] sm:$0x1] %vm13342, %v13340
  %v13344 = vld [vmem:[#allocation4 + $0x8] sm:$0x2]
  %v13346 = vunpack.c.l.b16 %v13344
  %v13347 = vpack.c.b16 %v13346, %v13346
  %v13348 = vrot.slane %v13347, 5
  %v13349 = vrot.slane %v13348, 4
  %13350 = vrot.lane.b32.xlu0 %v13349, 88
  %v13351 = vpop.permute.xlu0 %13350
  %vm13353 = vcmask 910016
  %13354 = vst.msk [vmem:[#allocation5 + $0x4] sm:$0x1] %vm13353, %v13351
  %v13355 = vld [vmem:[#allocation4 + $0x8] sm:$0x4]
  %v13357 = vunpack.c.l.b16 %v13355
  %v13358 = vpack.c.b16 %v13357, %v13357
  %v13359 = vrot.slane %v13358, 6
  %v13360 = vrot.slane %v13359, 4
  %13361 = vrot.lane.b32.xlu0 %v13360, 112
  %v13362 = vpop.permute.xlu0 %13361
  %v13363 = vrot.slane %v13362, 4
  %vm13364 = vcmask 916480
  %v13365 = vsel %vm13364, %v13363, %v13362
  %vm13367 = vcmask 1041280
  %vm13368 = vcmask 61444
  %vm13369 = vmor %vm13368, %vm13367
  %13370 = vst.msk [vmem:[#allocation5 + $0x4] sm:$0x11] %vm13369, %v13365
  %v13371 = vld [vmem:[#allocation4 + $0x8] sm:$0x8]
  %v13373 = vunpack.c.l.b16 %v13371
  %v13374 = vpack.c.b16 %v13373, %v13373
  %v13375 = vrot.slane %v13374, 7
  %v13376 = vrot.slane %v13375, 4
  %13377 = vrot.lane.b32.xlu0 %v13376, 8
  %v13378 = vpop.permute.xlu0 %13377
  %vm13380 = vcmask 254016
  %13381 = vst.msk [vmem:[#allocation5 + $0x8] sm:$0x1] %vm13380, %v13378
  %v13382 = vld [vmem:[#allocation4 + $0x8] sm:$0x10]
  %v13384 = vunpack.c.h.b16 %v13382
  %v13385 = vpack.c.b16 %v13384, %v13384
  %13386 = vrot.lane.b32.xlu0 %v13385, 32
  %v13387 = vpop.permute.xlu0 %13386
  %vm13389 = vcmask 450816
  %13390 = vst.msk [vmem:[#allocation5 + $0x8] sm:$0x1] %vm13389, %v13387
  %v13391 = vld [vmem:[#allocation4 + $0x8] sm:$0x20]
  %v13393 = vunpack.c.h.b16 %v13391
  %v13394 = vpack.c.b16 %v13393, %v13393
  %v13395 = vrot.slane %v13394, 5
  %v13396 = vrot.slane %v13395, 4
  %13397 = vrot.lane.b32.xlu0 %v13396, 56
  %v13398 = vpop.permute.xlu0 %13397
  %vm13400 = vcmask 647616
  %13401 = vst.msk [vmem:[#allocation5 + $0x8] sm:$0x1] %vm13400, %v13398
  %v13402 = vld [vmem:[#allocation4 + $0x8] sm:$0x40]
  %v13404 = vunpack.c.h.b16 %v13402
  %v13405 = vpack.c.b16 %v13404, %v13404
  %v13406 = vrot.slane %v13405, 6
  %v13407 = vrot.slane %v13406, 4
  %13408 = vrot.lane.b32.xlu0 %v13407, 80
  %v13409 = vpop.permute.xlu0 %13408
  %vm13411 = vcmask 844416
  %13412 = vst.msk [vmem:[#allocation5 + $0x8] sm:$0x1] %vm13411, %v13409
  %v13413 = vld [vmem:[#allocation4 + $0x8] sm:$0x80]
  %v13415 = vunpack.c.h.b16 %v13413
  %v13416 = vpack.c.b16 %v13415, %v13415
  %v13417 = vrot.slane %v13416, 7
  %v13418 = vrot.slane %v13417, 4
  %13419 = vrot.lane.b32.xlu0 %v13418, 104
  %v13420 = vpop.permute.xlu0 %13419
  %vm13422 = vcmask 1041216
  %13423 = vst.msk [vmem:[#allocation5 + $0x8] sm:$0x1] %vm13422, %v13420
  %v13424 = vld [vmem:[#allocation5] sm:$0xff]
  %v13425 = vld [vmem:[#allocation5 + $0x8] sm:$0xf]
  %v13426 = vld [vmem:[%s7] sm:$0xf]
  %v13427 = vld [vmem:[%s7 + $0x4] sm:$0xf]
  %v13428 = vld [vmem:[%s7 + $0x8] sm:$0xf]
  %v13429 = vld [vmem:[%s7 + $0xc] sm:$0xf]
  %v13430 = vld [vmem:[%s7 + $0x10] sm:$0xf]
  %v13431 = vld [vmem:[%s7 + $0x14] sm:$0xf]
  %v13432 = vld [vmem:[%s7 + $0x18] sm:$0xf]
  %v13433 = vld [vmem:[%s7 + $0x1c] sm:$0xf]
  %v13434 = vld [vmem:[%s7 + $0x20] sm:$0xf]
  %v13435 = vld [vmem:[%s7 + $0x24] sm:$0xf]
  %v13436 = vld [vmem:[%s7 + $0x28] sm:$0xf]
  %v13437 = vld [vmem:[%s7 + $0x2c] sm:$0xf]
  %v13438 = vld [vmem:[%s7 + $0x30] sm:$0xf]
  %v13439 = vld [vmem:[%s7 + $0x34] sm:$0xf]
  %v13440 = vld [vmem:[%s7 + $0x38] sm:$0xf]
  %v13441 = vld [vmem:[%s7 + $0x3c] sm:$0xf]
  %v13442 = vld [vmem:[%s7 + $0x40] sm:$0xf]
  %v13443 = vld [vmem:[%s7 + $0x44] sm:$0xf]
  %v13444 = vld [vmem:[%s7 + $0x48] sm:$0xf]
  %v13445 = vld [vmem:[%s7 + $0x4c] sm:$0xf]
  %v13446 = vld [vmem:[%s7 + $0x50] sm:$0xf]
  %v13447 = vld [vmem:[%s7 + $0x54] sm:$0xf]
  %v13448 = vld [vmem:[%s7 + $0x58] sm:$0xf]
  %v13449 = vld [vmem:[%s7 + $0x5c] sm:$0xf]
  %v13450 = vld [vmem:[%s7 + $0x60] sm:$0xf]
  %v13451 = vld [vmem:[%s7 + $0x64] sm:$0xf]
  %v13452 = vld [vmem:[%s7 + $0x68] sm:$0xf]
  %v13453 = vld [vmem:[%s7 + $0x6c] sm:$0xf]
  %v13454 = vld [vmem:[%s7 + $0x70] sm:$0xf]
  %v13455 = vld [vmem:[%s7 + $0x74] sm:$0xf]
  %v13456 = vld [vmem:[%s7 + $0x78] sm:$0xf]
  %v13457 = vld [vmem:[%s7 + $0x7c] sm:$0xf]
  %v13458 = vld [vmem:[%s7 + $0x80] sm:$0xf]
  %v13459 = vld [vmem:[%s7 + $0x84] sm:$0xf]
  %v13460 = vld [vmem:[%s7 + $0x88] sm:$0xf]
  %v13461 = vld [vmem:[%s7 + $0x8c] sm:$0xf]
  %v13462 = vld [vmem:[%s7 + $0x90] sm:$0xf]
  %v13463 = vld [vmem:[%s7 + $0x94] sm:$0xf]
  %v13464 = vld [vmem:[%s7 + $0x98] sm:$0xf]
  %v13465 = vld [vmem:[%s7 + $0x9c] sm:$0xf]
  %v13466 = vld [vmem:[%s7 + $0xa0] sm:$0xf]
  %v13467 = vld [vmem:[%s7 + $0xa4] sm:$0xf]
  %v13468 = vld [vmem:[%s7 + $0xa8] sm:$0xf]
  %v13469 = vld [vmem:[%s7 + $0xac] sm:$0xf]
  %v13470 = vld [vmem:[%s7 + $0xb0] sm:$0xf]
  %v13471 = vld [vmem:[%s7 + $0xb4] sm:$0xf]
  %v13472 = vld [vmem:[%s7 + $0xb8] sm:$0xf]
  %v13473 = vld [vmem:[%s7 + $0xbc] sm:$0xf]
  %v13474 = vld [vmem:[%s8] sm:$0x1]
  %v13476 = vlaneseq
  %v13477 = vshrl.u32 %v13476, 7
  %v13478 = vsub.s32 0, %v13477
  %v13479 = vrot.slane %v13474, %v13478
  %v13483 = vunpack.c.l.b16 %v13424
  %v13484 = vunpack.c.h.b16 %v13424
  %v13485 = vunpack.c.l.b16 %v13425
  %v13486 = vpack.c.b16 %v13483, %v13483
  %v13487 = vpack.c.b16 %v13484, %v13484
  %v13488 = vpack.c.b16 %v13485, %v13485
  %v13540 = vunpack.c.l.b16 %v13426
  %v13541 = vunpack.c.l.b16 %v13427
  %v13542 = vunpack.c.l.b16 %v13428
  %v13543 = vunpack.c.l.b16 %v13429
  %v13544 = vunpack.c.l.b16 %v13430
  %v13545 = vunpack.c.l.b16 %v13431
  %v13546 = vunpack.c.l.b16 %v13432
  %v13547 = vunpack.c.l.b16 %v13433
  %v13548 = vunpack.c.l.b16 %v13434
  %v13549 = vunpack.c.l.b16 %v13435
  %v13550 = vunpack.c.l.b16 %v13436
  %v13551 = vunpack.c.l.b16 %v13437
  %v13552 = vunpack.c.l.b16 %v13438
  %v13553 = vunpack.c.l.b16 %v13439
  %v13554 = vunpack.c.l.b16 %v13440
  %v13555 = vunpack.c.l.b16 %v13441
  %v13556 = vunpack.c.l.b16 %v13442
  %v13557 = vunpack.c.l.b16 %v13443
  %v13558 = vunpack.c.l.b16 %v13444
  %v13559 = vunpack.c.l.b16 %v13445
  %v13560 = vunpack.c.l.b16 %v13446
  %v13561 = vunpack.c.l.b16 %v13447
  %v13562 = vunpack.c.l.b16 %v13448
  %v13563 = vunpack.c.l.b16 %v13449
  %v13564 = vunpack.c.l.b16 %v13450
  %v13565 = vunpack.c.l.b16 %v13451
  %v13566 = vunpack.c.l.b16 %v13452
  %v13567 = vunpack.c.l.b16 %v13453
  %v13568 = vunpack.c.l.b16 %v13454
  %v13569 = vunpack.c.l.b16 %v13455
  %v13570 = vunpack.c.l.b16 %v13456
  %v13571 = vunpack.c.l.b16 %v13457
  %v13572 = vunpack.c.l.b16 %v13458
  %v13573 = vunpack.c.l.b16 %v13459
  %v13574 = vunpack.c.l.b16 %v13460
  %v13575 = vunpack.c.l.b16 %v13461
  %v13576 = vunpack.c.l.b16 %v13462
  %v13577 = vunpack.c.l.b16 %v13463
  %v13578 = vunpack.c.l.b16 %v13464
  %v13579 = vunpack.c.l.b16 %v13465
  %v13580 = vunpack.c.l.b16 %v13466
  %v13581 = vunpack.c.l.b16 %v13467
  %v13582 = vunpack.c.l.b16 %v13468
  %v13583 = vunpack.c.l.b16 %v13469
  %v13584 = vunpack.c.l.b16 %v13470
  %v13585 = vunpack.c.l.b16 %v13471
  %v13586 = vunpack.c.l.b16 %v13472
  %v13587 = vunpack.c.l.b16 %v13473
  %v13588 = vpack.c.b16 %v13541, %v13540
  %v13589 = vpack.c.b16 %v13543, %v13542
  %v13590 = vpack.c.b16 %v13545, %v13544
  %v13591 = vpack.c.b16 %v13547, %v13546
  %v13592 = vpack.c.b16 %v13549, %v13548
  %v13593 = vpack.c.b16 %v13551, %v13550
  %v13594 = vpack.c.b16 %v13553, %v13552
  %v13595 = vpack.c.b16 %v13555, %v13554
  %v13596 = vpack.c.b16 %v13557, %v13556
  %v13597 = vpack.c.b16 %v13559, %v13558
  %v13598 = vpack.c.b16 %v13561, %v13560
  %v13599 = vpack.c.b16 %v13563, %v13562
  %v13600 = vpack.c.b16 %v13565, %v13564
  %v13601 = vpack.c.b16 %v13567, %v13566
  %v13602 = vpack.c.b16 %v13569, %v13568
  %v13603 = vpack.c.b16 %v13571, %v13570
  %v13604 = vpack.c.b16 %v13573, %v13572
  %v13605 = vpack.c.b16 %v13575, %v13574
  %v13606 = vpack.c.b16 %v13577, %v13576
  %v13607 = vpack.c.b16 %v13579, %v13578
  %v13608 = vpack.c.b16 %v13581, %v13580
  %v13609 = vpack.c.b16 %v13583, %v13582
  %v13610 = vpack.c.b16 %v13585, %v13584
  %v13611 = vpack.c.b16 %v13587, %v13586
  %13636 = vmatprep.subr.bf16.mxu0 0
  %13637 = vmatpush1.bf16.msra.mxu0 %v13588
  %13638 = vmatprep.subr.bf16.mxu0 0
  %13639 = vmatpush1.bf16.msra.mxu0 %v13589
  %13640 = vmatprep.subr.bf16.mxu0 0
  %13641 = vmatpush1.bf16.msra.mxu0 %v13590
  %13642 = vmatprep.subr.bf16.mxu0 0
  %13643 = vmatpush1.bf16.msra.mxu0 %v13591
  %13644 = vmatprep.subr.bf16.mxu0 0
  %13645 = vmatpush1.bf16.msra.mxu0 %v13592
  %13646 = vmatprep.subr.bf16.mxu0 0
  %13647 = vmatpush1.bf16.msra.mxu0 %v13593
  %13648 = vmatprep.subr.bf16.mxu0 0
  %13649 = vmatpush1.bf16.msra.mxu0 %v13594
  %13650 = vmatprep.subr.bf16.mxu0 0
  %13651 = vmatpush1.bf16.msra.mxu0 %v13595
  %13652 = vmatprep.subr.bf16.mxu0 0
  %13653 = vmatpush1.bf16.msra.mxu0 %v13596
  %13654 = vmatprep.subr.bf16.mxu0 0
  %13655 = vmatpush1.bf16.msra.mxu0 %v13597
  %13656 = vmatprep.subr.bf16.mxu0 0
  %13657 = vmatpush1.bf16.msra.mxu0 %v13598
  %13658 = vmatprep.subr.bf16.mxu0 0
  %13659 = vmatpush1.bf16.msra.mxu0 %v13599
  %13660 = vmatprep.subr.bf16.mxu0 0
  %13661 = vmatpush1.bf16.msra.mxu0 %v13600
  %13662 = vmatprep.subr.bf16.mxu0 0
  %13663 = vmatpush1.bf16.msra.mxu0 %v13601
  %13664 = vmatprep.subr.bf16.mxu0 0
  %13665 = vmatpush1.bf16.msra.mxu0 %v13602
  %13666 = vmatprep.subr.bf16.mxu0 0
  %13667 = vmatpush1.bf16.msra.mxu0 %v13603
  %13668 = vmatprep.mubr.bf16.mxu0 %v13487
  %13669 = vmatmul.mubr.bf16.gmra.mrb[0].mxu0 %v13486
  %v13670 = vpop.f32.mrb[0].mxu0
  %v13671 = vadd.f32 %v13479, %v13670
  %v13672 = vpop.f32.mrb[0].mxu0
  %v13673 = vpop.f32.mrb[0].mxu0
  %v13674 = vpop.f32.mrb[0].mxu0
  %13675 = vdwg.mxu0
  %13676 = vmatprep.subr.bf16.mxu0 0
  %13677 = vmatpush1.bf16.msra.mxu0 %v13604
  %13678 = vmatprep.subr.bf16.mxu0 0
  %13679 = vmatpush1.bf16.msra.mxu0 %v13605
  %13680 = vmatprep.subr.bf16.mxu0 0
  %13681 = vmatpush1.bf16.msra.mxu0 %v13606
  %13682 = vmatprep.subr.bf16.mxu0 0
  %13683 = vmatpush1.bf16.msra.mxu0 %v13607
  %13684 = vmatprep.subr.bf16.mxu0 0
  %13685 = vmatpush1.bf16.msra.mxu0 %v13608
  %13686 = vmatprep.subr.bf16.mxu0 0
  %13687 = vmatpush1.bf16.msra.mxu0 %v13609
  %13688 = vmatprep.subr.bf16.mxu0 0
  %13689 = vmatpush1.bf16.msra.mxu0 %v13610
  %13690 = vmatprep.subr.bf16.mxu0 0
  %13691 = vmatpush1.bf16.msra.mxu0 %v13611
  %13692 = vmatprep.subr.bf16.mxu0 0
  %13693 = vmatpush1.bf16.msra.mxu0 0
  %13694 = vmatprep.subr.bf16.mxu0 0
  %13695 = vmatpush1.bf16.msra.mxu0 0
  %13696 = vmatprep.subr.bf16.mxu0 0
  %13697 = vmatpush1.bf16.msra.mxu0 0
  %13698 = vmatprep.subr.bf16.mxu0 0
  %13699 = vmatpush1.bf16.msra.mxu0 0
  %13700 = vmatprep.subr.bf16.mxu0 0
  %13701 = vmatpush1.bf16.msra.mxu0 0
  %13702 = vmatprep.subr.bf16.mxu0 0
  %13703 = vmatpush1.bf16.msra.mxu0 0
  %13704 = vmatprep.subr.bf16.mxu0 0
  %13705 = vmatpush1.bf16.msra.mxu0 0
  %13706 = vmatprep.subr.bf16.mxu0 0
  %13707 = vmatpush1.bf16.msra.mxu0 0
  %13708 = vmatprep.mubr.bf16.mxu0 0
  %13709 = vmatmul.mubr.bf16.gmra.mrb[0].mxu0 %v13488
  %v13710 = vpop.f32.mrb[0].mxu0
  %v13711 = vadd.f32 %v13671, %v13710
  %v13712 = vpop.f32.mrb[0].mxu0
  %v13713 = vpop.f32.mrb[0].mxu0
  %v13714 = vpop.f32.mrb[0].mxu0
  %13715 = vdwg.mxu0
  %v13716 = vand.u32 2147483647, %v13711
  %vm13717 = vcmask 326968
  %v13718 = vsel %vm13717, %v13716, -inf
  %13719 = vmax.xlane.f32.xlu0 %v13718
  %v13720 = vpop.xlane.xlu0 %13719
  %v13721 = vrot.slane %v13720, 4
  %v13722 = vmax.f32 %v13720, %v13721
  %v13723 = vrot.slane %v13722, 2
  %v13724 = vmax.f32 %v13722, %v13723
  %v13725 = vrot.slane %v13724, 1
  %v13726 = vmax.f32 %v13724, %v13725
  %s13727 = vtos %v13726
  %v13728 = vstv %s13727
  %v13729 = vmax.f32 %v13711, 0.0
  %v13730 = vpack.c.bf16 %v13729, %v13729
  %v13731 = vld [vmem:[%s9] sm:$0xf]
  %v13732 = vld [vmem:[%s9 + $0x4] sm:$0xf]
  %v13733 = vld [vmem:[%s9 + $0x8] sm:$0xf]
  %v13734 = vld [vmem:[%s9 + $0xc] sm:$0xf]
  %v13735 = vld [vmem:[%s9 + $0x10] sm:$0xf]
  %v13736 = vld [vmem:[%s10] sm:$0x1]
  %v13738 = vlaneseq
  %v13739 = vshrl.u32 %v13738, 7
  %v13740 = vsub.s32 0, %v13739
  %v13741 = vrot.slane %v13736, %v13740
  %v13748 = vunpack.c.l.b16 %v13731
  %v13749 = vunpack.c.l.b16 %v13732
  %v13750 = vunpack.c.l.b16 %v13733
  %v13751 = vunpack.c.l.b16 %v13734
  %v13752 = vunpack.c.l.b16 %v13735
  %v13753 = vpack.c.b16 %v13749, %v13748
  %v13754 = vpack.c.b16 %v13751, %v13750
  %v13755 = vpack.c.b16 %v13752, %v13752
  %vm13758 = vcmask 326656
  %v13760 = vsel %vm13758, %v13730, 0
  %v13763 = vsel %vm571, %v13755, 0
  %13765 = vmatprep.subr.bf16.mxu0 0
  %13766 = vmatpush1.bf16.msra.mxu0 %v13753
  %13767 = vmatprep.subr.bf16.mxu0 0
  %13768 = vmatpush1.bf16.msra.mxu0 %v13754
  %13769 = vmatprep.subr.bf16.mxu0 0
  %13770 = vmatpush1.bf16.msra.mxu0 %v13763
  %13771 = vmatprep.subr.bf16.mxu0 0
  %13772 = vmatpush1.bf16.msra.mxu0 0
  %13773 = vmatprep.subr.bf16.mxu0 0
  %13774 = vmatpush1.bf16.msra.mxu0 0
  %13775 = vmatprep.subr.bf16.mxu0 0
  %13776 = vmatpush1.bf16.msra.mxu0 0
  %13777 = vmatprep.subr.bf16.mxu0 0
  %13778 = vmatpush1.bf16.msra.mxu0 0
  %13779 = vmatprep.subr.bf16.mxu0 0
  %13780 = vmatpush1.bf16.msra.mxu0 0
  %13781 = vmatprep.subr.bf16.mxu0 0
  %13782 = vmatpush1.bf16.msra.mxu0 0
  %13783 = vmatprep.subr.bf16.mxu0 0
  %13784 = vmatpush1.bf16.msra.mxu0 0
  %13785 = vmatprep.subr.bf16.mxu0 0
  %13786 = vmatpush1.bf16.msra.mxu0 0
  %13787 = vmatprep.subr.bf16.mxu0 0
  %13788 = vmatpush1.bf16.msra.mxu0 0
  %13789 = vmatprep.subr.bf16.mxu0 0
  %13790 = vmatpush1.bf16.msra.mxu0 0
  %13791 = vmatprep.subr.bf16.mxu0 0
  %13792 = vmatpush1.bf16.msra.mxu0 0
  %13793 = vmatprep.subr.bf16.mxu0 0
  %13794 = vmatpush1.bf16.msra.mxu0 0
  %13795 = vmatprep.subr.bf16.mxu0 0
  %13796 = vmatpush1.bf16.msra.mxu0 0
  %13797 = vmatprep.mubr.bf16.mxu0 0
  %13798 = vmatmul.mubr.bf16.gmra.mrb[0].mxu0 %v13760
  %v13799 = vpop.f32.mrb[0].mxu0
  %v13800 = vadd.f32 %v13741, %v13799
  %v13801 = vpop.f32.mrb[0].mxu0
  %v13802 = vpop.f32.mrb[0].mxu0
  %v13803 = vpop.f32.mrb[0].mxu0
  %13804 = vdwg.mxu0
  %v13805 = vand.u32 2147483647, %v13800
  %vm13806 = vcmask 130168
  %v13807 = vsel %vm13806, %v13805, -inf
  %13808 = vmax.xlane.f32.xlu0 %v13807
  %v13809 = vpop.xlane.xlu0 %13808
  %v13810 = vrot.slane %v13809, 4
  %v13811 = vmax.f32 %v13809, %v13810
  %v13812 = vrot.slane %v13811, 2
  %v13813 = vmax.f32 %v13811, %v13812
  %v13814 = vrot.slane %v13813, 1
  %v13815 = vmax.f32 %v13813, %v13814
  %s13816 = vtos %v13815
  %v13817 = vstv %s13816
  %13818 = vst [vmem:[%s11] sm:$0xff] %v13800
  %vm13819 = vcmask 0
  %13820 = vst.msk [vmem:[%s11 + $0x7] sm:$0x1] %vm13819, %v1592
  %vm13821 = vcmask 8200
  %13822 = vst.msk [vmem:[%s11 + $0x7] sm:$0x1] %vm13821, %v12895
  %vm13823 = vcmask 16400
  %13824 = vst.msk [vmem:[%s11 + $0x7] sm:$0x1] %vm13823, %v13728
  %vm13825 = vcmask 24600
  %13826 = vst.msk [vmem:[%s11 + $0x7] sm:$0x1] %vm13825, %v13817
  // Predicated region
  $region46: #{forward.1} parent=0 // pred_check
    _
  $region47: #{forward.1} parent=0 // pred_check_branch
    %13828 = sbr.rel (0) target = $region49
  $region48: #{forward.1} parent=0 // pred_region
    _
  $region49: #{forward.1} parent=0 // pred_fallthru
    _
  // Predicated region
  $region50: #{forward.1} parent=0 // pred_check
    _
  $region51: #{forward.1} parent=0 // pred_check_branch
    %13830 = sbr.rel (0) target = $region53
  $region52: #{forward.1} parent=0 // pred_region
    _
  $region53: #{forward.1} parent=0 // pred_fallthru
    _

</llo_original>
